<compile_context>
chip_gen: v7x
topology: tpu7x:2x2x1
jax: 0.10.0
libtpu: 0.0.40
codegen_flags: <defaults>
</compile_context>

<pallas_src>
import numpy as np
import jax
import jax.numpy as jnp
from jax.experimental import pallas as pl
from jax.experimental.pallas import tpu as pltpu

# ----------------------------- static config --------------------------------
FR_POS = 4          # cfg.model.radiance.fr_pos
FR_VIEW = 4         # cfg.model.radiance.fr_view
NET_DEPTH = 3       # cfg.model.radiance.net_depth (D)
NET_WIDTH = 64      # cfg.model.net_width (W)
FEATURE_WIDTH = 32  # cfg.model.feature_width (W_geo_feat)
SKIPS = (2,)        # cfg.model.radiance.skips
INPUT_DIM = 3

assert FR_POS == FR_VIEW, "fused x/view embedding assumes shared freq bands"


def _freq_bands(multires):
    # Embedder with log_sampling=True: 2 ** linspace(0, multires-1, multires)
    if multires < 0:
        return []
    return [float(f) for f in (2.0 ** np.linspace(0.0, multires - 1, multires))]


POS_FREQS = _freq_bands(FR_POS)
VIEW_FREQS = _freq_bands(FR_VIEW)


def _embed_out_dim(multires, input_dim=INPUT_DIM):
    if multires < 0:
        return input_dim
    return input_dim + input_dim * multires * 2  # include_input + sin/cos per freq


IN_CH_PTS = _embed_out_dim(FR_POS)      # 27
IN_CH_VIEW = _embed_out_dim(FR_VIEW)    # 27
IN_DIM_0 = IN_CH_PTS + IN_CH_VIEW + 3 + FEATURE_WIDTH   # 89
RAW_DIM = 3 + 3 + 3 + FEATURE_WIDTH     # 41: [x, view, normal, geo_feat] (bf16 slab)
XV_DIM = 2 * INPUT_DIM                  # 6:  [x, view] (f32, feeds the angles)
ANG_HALF = 2 * INPUT_DIM * FR_POS       # 24: per-freq [f*x(3), f*v(3)]
TRIG_DIM = 2 * ANG_HALF                 # 48: [sin half | cos half] via pi/2 phase
NUM_LAYERS = NET_DEPTH + 1


def _layer_dims():
    dims = []
    for l in range(NUM_LAYERS):
        out_dim = 3 if l == NET_DEPTH else NET_WIDTH
        if l == 0:
            in_dim = IN_DIM_0
        elif l in SKIPS:
            in_dim = IN_DIM_0 + NET_WIDTH
        else:
            in_dim = NET_WIDTH
        dims.append((in_dim, out_dim))
    return dims


LAYER_DIMS = _layer_dims()


# ------------------------------ Pallas kernel --------------------------------
def radiance_kernel(xv_ref, slab_ref, r_ref, phase_ref, w_in_raw_ref,
                    w_in_trig_ref, b02_ref, w1_ref, b1_ref, w2h_ref,
                    w3_ref, b3_ref, o_ref):
    f32 = jnp.float32
    bf16 = jnp.bfloat16

    # Positional-encoding angles for [x, view]: xv (TN,6) f32 @ R (6,48) with
    # R[i, 6k+i] = R[i, 24+6k+i] = 2**k, plus an exact f32 pi/2 phase on the
    # cos half, so a single sin over (TN,48) yields [sin block | cos block].
    # Angles stay f32 to preserve the embedding precision of the reference.
    # (If this f32 dot ever lowers to a reduced-precision MXU path on some
    # generation, switch it to precision=HIGHEST or a hi/lo bf16 split.)
    ang = jnp.dot(xv_ref[...], r_ref[...], preferred_element_type=f32)
    trig = jnp.sin(ang + phase_ref[...]).astype(bf16)              # (TN, 48)

    slab = slab_ref[...]                                           # (TN, 41) bf16

    # Fused input projection: columns 0:64 -> layer-0 pre-activation,
    # columns 64:128 -> radiance_input contribution of the skip layer (l=2).
    # b0/b2 are pre-folded into one (1,128) bias.  The split dots against
    # host-side re-ordered weight slices replace the 89/153-wide lane-axis
    # concatenates of the reference (static slicing, zero runtime cost).
    zin = jnp.dot(slab, w_in_raw_ref[...], preferred_element_type=f32)
    zin += jnp.dot(trig, w_in_trig_ref[...], preferred_element_type=f32)
    zin += b02_ref[...]

    # layer 0 (ReLU)
    h0 = jnp.maximum(zin[:, :NET_WIDTH], 0.0)
    # layer 1 (ReLU)
    h1 = jnp.dot(h0.astype(bf16), w1_ref[...], preferred_element_type=f32)
    h1 = jnp.maximum(h1 + b1_ref[...], 0.0)
    # layer 2 (skip): [h1, radiance_input] @ W2 == h1 @ W2[:64] + ri @ W2[64:]
    # (matches torch.cat([h, radiance_input], dim=-1) row order)
    h2 = jnp.dot(h1.astype(bf16), w2h_ref[...], preferred_element_type=f32)
    h2 = jnp.maximum(h2 + zin[:, NET_WIDTH:], 0.0)
    # layer 3 (rgb head, Sigmoid)
    z3 = jnp.dot(h2.astype(bf16), w3_ref[...], preferred_element_type=f32)
    o_ref[...] = jax.nn.sigmoid(z3 + b3_ref[...]).astype(o_ref.dtype)


# --------------------------- wrapper / weight packing -------------------------
def _split_input_weight(w_ri):
    """Re-order rows of an (89, out) weight that consumes radiance_input =
    [embed(x)(27), embed(v)(27), n(3), g(32)] into raw / sin / cos blocks."""
    raw = jnp.concatenate(
        [w_ri[0:3], w_ri[27:30], w_ri[54:57], w_ri[57:]], axis=0)     # (41, out)
    sin_rows, cos_rows = [], []
    for k in range(FR_POS):
        sin_rows += [w_ri[3 + 6 * k: 6 + 6 * k], w_ri[30 + 6 * k: 33 + 6 * k]]
        cos_rows += [w_ri[6 + 6 * k: 9 + 6 * k], w_ri[33 + 6 * k: 36 + 6 * k]]
    return raw, jnp.concatenate(sin_rows, 0), jnp.concatenate(cos_rows, 0)


def _angle_matrix_and_phase():
    """(6,48) select/scale matrix and (1,48) phase row for the sin|cos block."""
    r = np.zeros((XV_DIM, TRIG_DIM), np.float32)
    for k in range(FR_POS):
        for i in range(INPUT_DIM):
            r[i, 6 * k + i] = POS_FREQS[k]                       # sin half, x
            r[i, ANG_HALF + 6 * k + i] = POS_FREQS[k]            # cos half, x
            r[INPUT_DIM + i, 6 * k + INPUT_DIM + i] = VIEW_FREQS[k]            # sin, v
            r[INPUT_DIM + i, ANG_HALF + 6 * k + INPUT_DIM + i] = VIEW_FREQS[k]  # cos, v
    phase = np.zeros((1, TRIG_DIM), np.float32)
    phase[:, ANG_HALF:] = np.pi / 2.0                            # sin(a + pi/2) = cos(a)
    return jnp.asarray(r), jnp.asarray(phase)


def _round_up(a, b):
    return (a + b - 1) // b * b


def _pick_tile(n, tile_cap):
    """Rows per grid step.  Aim for >= ~8 grid steps so (a) the BlockSpec
    pipeline is deep enough to hide DMA on single-core v5e/v6e and (b) each
    v7x TensorCore still gets >= 4 steps when the parallel axis is split."""
    tile = _round_up(max((n + 7) // 8, 1), 256)   # ~n/8, rounded to 256 rows
    tile = min(tile, tile_cap)
    tile = min(tile, _round_up(n, 8))             # never exceed (padded) n
    return max(tile, 8)


def radiance_net_pallas(x, view_dirs, normals, geo_feat, params, *, tile_n=2048):
    """x/view_dirs/normals: [N,3], geo_feat: [N, FEATURE_WIDTH] -> rgb [N,3].

    params: list of (w, b) with w[l] of shape (in_dim, out_dim) (transpose of
    nn.Linear.weight) and b[l] of shape (1, out_dim); dims as in LAYER_DIMS.
    tile_n: upper bound on rows per grid step — sweep per generation
    (v5e/v6e: 1024-4096, v7x: 512-2048).
    """
    f32, bf16 = jnp.float32, jnp.bfloat16

    # ---- host-side (trace-time) weight repacking ---------------------------
    (w0, b0), (w1, b1), (w2, b2), (w3, b3) = params
    w0_raw, w0_sin, w0_cos = _split_input_weight(w0)
    w2_raw, w2_sin, w2_cos = _split_input_weight(w2[NET_WIDTH:])
    w2_h = w2[:NET_WIDTH]
    # fuse layer-0 / layer-2 input projections along the output axis (64+64)
    w_in_raw = jnp.concatenate([w0_raw, w2_raw], axis=1).astype(bf16)   # (41,128)
    w_in_trig = jnp.concatenate(                                        # (48,128)
        [jnp.concatenate([w0_sin, w0_cos], axis=0),
         jnp.concatenate([w2_sin, w2_cos], axis=0)], axis=1).astype(bf16)
    b02 = jnp.concatenate([b0, b2], axis=1).astype(f32)                 # (1,128)
    r_mat, phase = _angle_matrix_and_phase()                            # f32 consts

    weights = [r_mat, phase, w_in_raw, w_in_trig, b02,
               w1.astype(bf16), b1.astype(f32),
               w2_h.astype(bf16),
               w3.astype(bf16), b3.astype(f32)]

    # ---- inputs: lane-dense bf16 slab + tiny f32 [x|view] for the angles ---
    slab = jnp.concatenate([x, view_dirs, normals, geo_feat], axis=-1).astype(bf16)
    xv = jnp.concatenate([x, view_dirs], axis=-1).astype(f32)           # (N, 6)

    n = slab.shape[0]
    tile = _pick_tile(n, tile_n)
    n_pad = _round_up(n, tile)
    if n_pad != n:                       # padded rows are sliced off below
        slab = jnp.pad(slab, ((0, n_pad - n), (0, 0)))
        xv = jnp.pad(xv, ((0, n_pad - n), (0, 0)))
    grid = (n_pad // tile,)

    in_specs = [pl.BlockSpec((tile, XV_DIM), lambda i: (i, 0)),
                pl.BlockSpec((tile, RAW_DIM), lambda i: (i, 0))]
    in_specs += [pl.BlockSpec(w.shape, lambda i: (0, 0)) for w in weights]
    out_spec = pl.BlockSpec((tile, 3), lambda i: (i, 0))

    out = pl.pallas_call(
        radiance_kernel,
        out_shape=jax.ShapeDtypeStruct((n_pad, 3), jnp.float32),
        grid_spec=pltpu.PrefetchScalarGridSpec(
            num_scalar_prefetch=0,
            grid=grid,
            in_specs=in_specs,
            out_specs=out_spec,
        ),
        compiler_params=pltpu.CompilerParams(
            dimension_semantics=("parallel",),
            # ~12-16 MiB working set at the 2048-row cap; 32 MiB is above the
            # v5e default scoped limit (16 MiB) and safely below v7x's 64 MiB
            # physical per-core VMEM.
            vmem_limit_bytes=32 * 1024 * 1024,
        ),
    )(xv, slab, *weights)
    return out[:n]


# --------------------------- pure-JAX reference -------------------------------
def radiance_net_ref(x, view_dirs, normals, geo_feat, params):
    def embed(t, freqs):
        outs = [t]
        for f in freqs:
            outs.append(jnp.sin(t * f))
            outs.append(jnp.cos(t * f))
        return jnp.concatenate(outs, axis=-1)

    ri = jnp.concatenate(
        [embed(x, POS_FREQS), embed(view_dirs, VIEW_FREQS), normals, geo_feat],
        axis=-1)
    h = ri
    for i, (w, b) in enumerate(params):
        if i in SKIPS:
            h = jnp.concatenate([h, ri], axis=-1)   # same order as torch.cat([h, ri])
        h = h @ w + b
        h = jnp.maximum(h, 0.0) if i != NUM_LAYERS - 1 else jax.nn.sigmoid(h)
    return h


# --------------------------------- main ---------------------------------------
def make_params(key):
    params = []
    for (in_dim, out_dim) in LAYER_DIMS:
        key, kw, kb = jax.random.split(key, 3)
        w = jax.random.normal(kw, (in_dim, out_dim), jnp.float32) / np.sqrt(in_dim)
        b = jax.random.normal(kb, (1, out_dim), jnp.float32) * 0.01
        params.append((w, b))
    return params


if __name__ == "__main__":
    key = jax.random.PRNGKey(0)
    k_p, k_x, k_v, k_n, k_g = jax.random.split(key, 5)

    params = make_params(k_p)

    N = 4000  # not a tile multiple -> exercises padding; tile=512 -> grid=(8,)
    x = jax.random.normal(k_x, (N, 3), jnp.float32)
    view_dirs = jax.random.normal(k_v, (N, 3), jnp.float32)
    view_dirs = view_dirs / jnp.linalg.norm(view_dirs, axis=-1, keepdims=True)
    normals = jax.random.normal(k_n, (N, 3), jnp.float32)
    normals = normals / jnp.linalg.norm(normals, axis=-1, keepdims=True)
    geo_feat = jax.random.normal(k_g, (N, FEATURE_WIDTH), jnp.float32)

    out = radiance_net_pallas(x, view_dirs, normals, geo_feat, params, tile_n=2048)
    out = jax.block_until_ready(out)

    ref = jax.block_until_ready(
        radiance_net_ref(x, view_dirs, normals, geo_feat, params))
    # bf16 matmuls vs f32 reference -> slightly relaxed tolerance
    np.testing.assert_allclose(np.asarray(out), np.asarray(ref),
                               rtol=2e-2, atol=2e-2)

    print("KERNEL_OK")
</pallas_src>

<mosaic_0001>
module attributes {stable_mosaic.version = 11 : i64} {
  func.func @radiance_kernel(%arg0: i32, %arg1: memref<512x6xf32, #tpu.memory_space<vmem>>, %arg2: memref<512x41xbf16, #tpu.memory_space<vmem>>, %arg3: memref<6x48xf32, #tpu.memory_space<vmem>>, %arg4: memref<1x48xf32, #tpu.memory_space<vmem>>, %arg5: memref<41x128xbf16, #tpu.memory_space<vmem>>, %arg6: memref<48x128xbf16, #tpu.memory_space<vmem>>, %arg7: memref<1x128xf32, #tpu.memory_space<vmem>>, %arg8: memref<64x64xbf16, #tpu.memory_space<vmem>>, %arg9: memref<1x64xf32, #tpu.memory_space<vmem>>, %arg10: memref<64x64xbf16, #tpu.memory_space<vmem>>, %arg11: memref<64x3xbf16, #tpu.memory_space<vmem>>, %arg12: memref<1x3xf32, #tpu.memory_space<vmem>>, %arg13: memref<512x3xf32, #tpu.memory_space<vmem>>) attributes {dimension_semantics = [#tpu.dimension_semantics<parallel>], iteration_bounds = array<i64: 8>, scalar_prefetch = 0 : i64, scratch_operands = 0 : i64, tpu.core_type = #tpu.core_type<tc>, window_params = [{transform_indices = @transform_0, window_bounds = array<i64: 512, 6>}, {transform_indices = @transform_1, window_bounds = array<i64: 512, 41>}, {pipeline_mode = #tpu.pipeline_mode<synchronous>, transform_indices = @transform_2, window_bounds = array<i64: 6, 48>}, {pipeline_mode = #tpu.pipeline_mode<synchronous>, transform_indices = @transform_3, window_bounds = array<i64: 1, 48>}, {pipeline_mode = #tpu.pipeline_mode<synchronous>, transform_indices = @transform_4, window_bounds = array<i64: 41, 128>}, {pipeline_mode = #tpu.pipeline_mode<synchronous>, transform_indices = @transform_5, window_bounds = array<i64: 48, 128>}, {pipeline_mode = #tpu.pipeline_mode<synchronous>, transform_indices = @transform_6, window_bounds = array<i64: 1, 128>}, {pipeline_mode = #tpu.pipeline_mode<synchronous>, transform_indices = @transform_7, window_bounds = array<i64: 64, 64>}, {pipeline_mode = #tpu.pipeline_mode<synchronous>, transform_indices = @transform_8, window_bounds = array<i64: 1, 64>}, {pipeline_mode = #tpu.pipeline_mode<synchronous>, transform_indices = @transform_9, window_bounds = array<i64: 64, 64>}, {pipeline_mode = #tpu.pipeline_mode<synchronous>, transform_indices = @transform_10, window_bounds = array<i64: 64, 3>}, {pipeline_mode = #tpu.pipeline_mode<synchronous>, transform_indices = @transform_11, window_bounds = array<i64: 1, 3>}, {transform_indices = @transform_12, window_bounds = array<i64: 512, 3>}]} {
    %c0 = arith.constant 0 : index
    %c0_0 = arith.constant 0 : index
    %0 = vector.load %arg1[%c0, %c0_0] : memref<512x6xf32, #tpu.memory_space<vmem>>, vector<512x6xf32>
    %c0_1 = arith.constant 0 : index
    %c0_2 = arith.constant 0 : index
    %1 = vector.load %arg3[%c0_1, %c0_2] : memref<6x48xf32, #tpu.memory_space<vmem>>, vector<6x48xf32>
    %cst = arith.constant dense<0.000000e+00> : vector<512x48xf32>
    %2 = tpu.matmul %0, %1, %cst {dimension_numbers = #tpu.dot_dimension_numbers<[1], [0], [0], [1], [0, 0, 1, 1], [], []>} : vector<512x6xf32>, vector<6x48xf32>, vector<512x48xf32> -> vector<512x48xf32>
    %c0_3 = arith.constant 0 : index
    %c0_4 = arith.constant 0 : index
    %3 = vector.load %arg4[%c0_3, %c0_4] : memref<1x48xf32, #tpu.memory_space<vmem>>, vector<1x48xf32>
    %4 = vector.broadcast %3 : vector<1x48xf32> to vector<512x48xf32>
    %5 = arith.addf %2, %4 : vector<512x48xf32>
    %6 = math.sin %5 : vector<512x48xf32>
    %7 = arith.truncf %6 : vector<512x48xf32> to vector<512x48xbf16>
    %c0_5 = arith.constant 0 : index
    %c0_6 = arith.constant 0 : index
    %8 = vector.load %arg2[%c0_5, %c0_6] : memref<512x41xbf16, #tpu.memory_space<vmem>>, vector<512x41xbf16>
    %c0_7 = arith.constant 0 : index
    %c0_8 = arith.constant 0 : index
    %9 = vector.load %arg5[%c0_7, %c0_8] : memref<41x128xbf16, #tpu.memory_space<vmem>>, vector<41x128xbf16>
    %cst_9 = arith.constant dense<0.000000e+00> : vector<512x128xf32>
    %10 = tpu.matmul %8, %9, %cst_9 {dimension_numbers = #tpu.dot_dimension_numbers<[1], [0], [0], [1], [0, 0, 1, 1], [], []>} : vector<512x41xbf16>, vector<41x128xbf16>, vector<512x128xf32> -> vector<512x128xf32>
    %c0_10 = arith.constant 0 : index
    %c0_11 = arith.constant 0 : index
    %11 = vector.load %arg6[%c0_10, %c0_11] : memref<48x128xbf16, #tpu.memory_space<vmem>>, vector<48x128xbf16>
    %cst_12 = arith.constant dense<0.000000e+00> : vector<512x128xf32>
    %12 = tpu.matmul %7, %11, %cst_12 {dimension_numbers = #tpu.dot_dimension_numbers<[1], [0], [0], [1], [0, 0, 1, 1], [], []>} : vector<512x48xbf16>, vector<48x128xbf16>, vector<512x128xf32> -> vector<512x128xf32>
    %13 = arith.addf %10, %12 : vector<512x128xf32>
    %c0_13 = arith.constant 0 : index
    %c0_14 = arith.constant 0 : index
    %14 = vector.load %arg7[%c0_13, %c0_14] : memref<1x128xf32, #tpu.memory_space<vmem>>, vector<1x128xf32>
    %15 = vector.broadcast %14 : vector<1x128xf32> to vector<512x128xf32>
    %16 = arith.addf %13, %15 : vector<512x128xf32>
    %17 = vector.extract_strided_slice %16 {offsets = [0, 0], sizes = [512, 64], strides = [1, 1]} : vector<512x128xf32> to vector<512x64xf32>
    %cst_15 = arith.constant 0.000000e+00 : f32
    %18 = vector.broadcast %cst_15 : f32 to vector<512x64xf32>
    %19 = arith.maximumf %17, %18 : vector<512x64xf32>
    %20 = arith.truncf %19 : vector<512x64xf32> to vector<512x64xbf16>
    %c0_16 = arith.constant 0 : index
    %c0_17 = arith.constant 0 : index
    %21 = vector.load %arg8[%c0_16, %c0_17] : memref<64x64xbf16, #tpu.memory_space<vmem>>, vector<64x64xbf16>
    %cst_18 = arith.constant dense<0.000000e+00> : vector<512x64xf32>
    %22 = tpu.matmul %20, %21, %cst_18 {dimension_numbers = #tpu.dot_dimension_numbers<[1], [0], [0], [1], [0, 0, 1, 1], [], []>} : vector<512x64xbf16>, vector<64x64xbf16>, vector<512x64xf32> -> vector<512x64xf32>
    %c0_19 = arith.constant 0 : index
    %c0_20 = arith.constant 0 : index
    %23 = vector.load %arg9[%c0_19, %c0_20] : memref<1x64xf32, #tpu.memory_space<vmem>>, vector<1x64xf32>
    %24 = vector.broadcast %23 : vector<1x64xf32> to vector<512x64xf32>
    %25 = arith.addf %22, %24 : vector<512x64xf32>
    %cst_21 = arith.constant 0.000000e+00 : f32
    %26 = vector.broadcast %cst_21 : f32 to vector<512x64xf32>
    %27 = arith.maximumf %25, %26 : vector<512x64xf32>
    %28 = arith.truncf %27 : vector<512x64xf32> to vector<512x64xbf16>
    %c0_22 = arith.constant 0 : index
    %c0_23 = arith.constant 0 : index
    %29 = vector.load %arg10[%c0_22, %c0_23] : memref<64x64xbf16, #tpu.memory_space<vmem>>, vector<64x64xbf16>
    %cst_24 = arith.constant dense<0.000000e+00> : vector<512x64xf32>
    %30 = tpu.matmul %28, %29, %cst_24 {dimension_numbers = #tpu.dot_dimension_numbers<[1], [0], [0], [1], [0, 0, 1, 1], [], []>} : vector<512x64xbf16>, vector<64x64xbf16>, vector<512x64xf32> -> vector<512x64xf32>
    %31 = vector.extract_strided_slice %16 {offsets = [0, 64], sizes = [512, 64], strides = [1, 1]} : vector<512x128xf32> to vector<512x64xf32>
    %32 = arith.addf %30, %31 : vector<512x64xf32>
    %cst_25 = arith.constant 0.000000e+00 : f32
    %33 = vector.broadcast %cst_25 : f32 to vector<512x64xf32>
    %34 = arith.maximumf %32, %33 : vector<512x64xf32>
    %35 = arith.truncf %34 : vector<512x64xf32> to vector<512x64xbf16>
    %c0_26 = arith.constant 0 : index
    %c0_27 = arith.constant 0 : index
    %36 = vector.load %arg11[%c0_26, %c0_27] : memref<64x3xbf16, #tpu.memory_space<vmem>>, vector<64x3xbf16>
    %cst_28 = arith.constant dense<0.000000e+00> : vector<512x3xf32>
    %37 = tpu.matmul %35, %36, %cst_28 {dimension_numbers = #tpu.dot_dimension_numbers<[1], [0], [0], [1], [0, 0, 1, 1], [], []>} : vector<512x64xbf16>, vector<64x3xbf16>, vector<512x3xf32> -> vector<512x3xf32>
    %c0_29 = arith.constant 0 : index
    %c0_30 = arith.constant 0 : index
    %38 = vector.load %arg12[%c0_29, %c0_30] : memref<1x3xf32, #tpu.memory_space<vmem>>, vector<1x3xf32>
    %39 = vector.broadcast %38 : vector<1x3xf32> to vector<512x3xf32>
    %40 = arith.addf %37, %39 : vector<512x3xf32>
    %41 = arith.negf %40 : vector<512x3xf32>
    %42 = math.exp %41 : vector<512x3xf32>
    %cst_31 = arith.constant 1.000000e+00 : f32
    %43 = vector.broadcast %cst_31 : f32 to vector<512x3xf32>
    %44 = arith.addf %43, %42 : vector<512x3xf32>
    %45 = arith.divf %43, %44 : vector<512x3xf32>
    %c0_32 = arith.constant 0 : index
    %c0_33 = arith.constant 0 : index
    %46 = vector.load %arg13[%c0_32, %c0_33] : memref<512x3xf32, #tpu.memory_space<vmem>>, vector<512x3xf32>
    tpu.vector_store %arg13[%c0_32, %c0_33], %45 {strides = array<i32>} : memref<512x3xf32, #tpu.memory_space<vmem>>, vector<512x3xf32>,
    return
  }
  func.func @transform_0(%arg0: i32) -> (i32, i32) {
    %c0_i32 = arith.constant 0 : i32
    %c0_i32_0 = arith.constant 0 : i32
    return %arg0, %c0_i32 : i32, i32
  }
  func.func @transform_1(%arg0: i32) -> (i32, i32) {
    %c0_i32 = arith.constant 0 : i32
    %c0_i32_0 = arith.constant 0 : i32
    return %arg0, %c0_i32 : i32, i32
  }
  func.func @transform_2(%arg0: i32) -> (i32, i32) {
    %c0_i32 = arith.constant 0 : i32
    %c0_i32_0 = arith.constant 0 : i32
    %c0_i32_1 = arith.constant 0 : i32
    return %c0_i32, %c0_i32_0 : i32, i32
  }
  func.func @transform_3(%arg0: i32) -> (i32, i32) {
    %c0_i32 = arith.constant 0 : i32
    %c0_i32_0 = arith.constant 0 : i32
    %c0_i32_1 = arith.constant 0 : i32
    return %c0_i32, %c0_i32_0 : i32, i32
  }
  func.func @transform_4(%arg0: i32) -> (i32, i32) {
    %c0_i32 = arith.constant 0 : i32
    %c0_i32_0 = arith.constant 0 : i32
    %c0_i32_1 = arith.constant 0 : i32
    return %c0_i32, %c0_i32_0 : i32, i32
  }
  func.func @transform_5(%arg0: i32) -> (i32, i32) {
    %c0_i32 = arith.constant 0 : i32
    %c0_i32_0 = arith.constant 0 : i32
    %c0_i32_1 = arith.constant 0 : i32
    return %c0_i32, %c0_i32_0 : i32, i32
  }
  func.func @transform_6(%arg0: i32) -> (i32, i32) {
    %c0_i32 = arith.constant 0 : i32
    %c0_i32_0 = arith.constant 0 : i32
    %c0_i32_1 = arith.constant 0 : i32
    return %c0_i32, %c0_i32_0 : i32, i32
  }
  func.func @transform_7(%arg0: i32) -> (i32, i32) {
    %c0_i32 = arith.constant 0 : i32
    %c0_i32_0 = arith.constant 0 : i32
    %c0_i32_1 = arith.constant 0 : i32
    return %c0_i32, %c0_i32_0 : i32, i32
  }
  func.func @transform_8(%arg0: i32) -> (i32, i32) {
    %c0_i32 = arith.constant 0 : i32
    %c0_i32_0 = arith.constant 0 : i32
    %c0_i32_1 = arith.constant 0 : i32
    return %c0_i32, %c0_i32_0 : i32, i32
  }
  func.func @transform_9(%arg0: i32) -> (i32, i32) {
    %c0_i32 = arith.constant 0 : i32
    %c0_i32_0 = arith.constant 0 : i32
    %c0_i32_1 = arith.constant 0 : i32
    return %c0_i32, %c0_i32_0 : i32, i32
  }
  func.func @transform_10(%arg0: i32) -> (i32, i32) {
    %c0_i32 = arith.constant 0 : i32
    %c0_i32_0 = arith.constant 0 : i32
    %c0_i32_1 = arith.constant 0 : i32
    return %c0_i32, %c0_i32_0 : i32, i32
  }
  func.func @transform_11(%arg0: i32) -> (i32, i32) {
    %c0_i32 = arith.constant 0 : i32
    %c0_i32_0 = arith.constant 0 : i32
    %c0_i32_1 = arith.constant 0 : i32
    return %c0_i32, %c0_i32_0 : i32, i32
  }
  func.func @transform_12(%arg0: i32) -> (i32, i32) {
    %c0_i32 = arith.constant 0 : i32
    %c0_i32_0 = arith.constant 0 : i32
    return %arg0, %c0_i32 : i32, i32
  }
}

</mosaic_0001>

<llo_original>
// kernel: tpu_custom_call.1
$region0: #{tpu_custom_call.1}
  #allocation0 [shape = 'u32[]', space=smem, size = 0x4, offset = 0x4, fixed_abs, tag = 'smem constant byte address 0x4 - core index']
  #allocation1 [shape = 'u32[144,128]{1,0:T(1,128)}', space=vmem, size = 0x12000, scoped, tag = 'internal scratch']
  %s0 = inlined_call_operand.vmem [shape: f32[4096,6], index: 0, kind: input, shape index: {}]
  %s1 = inlined_call_operand.vmem [shape: bf16[4096,41], index: 1, kind: input, shape index: {}]
  %s2 = inlined_call_operand.vmem [shape: f32[6,48], index: 2, kind: input, shape index: {}]
  %s3 = inlined_call_operand.vmem [shape: f32[1,48], index: 3, kind: input, shape index: {}]
  %s4 = inlined_call_operand.vmem [shape: bf16[41,128], index: 4, kind: input, shape index: {}]
  %s5 = inlined_call_operand.vmem [shape: bf16[48,128], index: 5, kind: input, shape index: {}]
  %s6 = inlined_call_operand.vmem [shape: f32[1,128], index: 6, kind: input, shape index: {}]
  %s7 = inlined_call_operand.vmem [shape: bf16[64,64], index: 7, kind: input, shape index: {}]
  %s8 = inlined_call_operand.vmem [shape: f32[1,64], index: 8, kind: input, shape index: {}]
  %s9 = inlined_call_operand.vmem [shape: bf16[64,64], index: 9, kind: input, shape index: {}]
  %s10 = inlined_call_operand.vmem [shape: bf16[64,3], index: 10, kind: input, shape index: {}]
  %s11 = inlined_call_operand.vmem [shape: f32[1,3], index: 11, kind: input, shape index: {}]
  %s12 = inlined_call_operand.vmem [shape: f32[4096,3], index: 12, kind: output, shape index: {}]
  %s13 = sld [smem:[#allocation0]]
  $region81: #{tpu_custom_call.1} parent=0
    _
  %s15 = ssub.s32 1, %s13
  %s16 = scalar_select 0, %s15, %s13
  loop: start=0, step=1, limit=10
  $region2: #{tpu_custom_call.1} parent=0 // loop_pre_header
    _
  $region3: #{tpu_custom_call.1} parent=0 // loop_header
    %s18 = sphi 0, %s22
    %p19 = scmp.ge.s32.totalorder %s18, 10
    %s28 = sphi 0, %s30
    %s31 = sphi 0, %s28
    %s32 = sphi 0, %s31
    %s48 = sphi 0, %s32
    %s54 = sphi 0, %s56
    %s57 = sphi 0, %s54
    %s58 = sphi 0, %s57
    %s74 = sphi 0, %s58
    %s78 = sphi 0, %s78
    %s80 = sphi 0, %s78
    %s81 = sphi 0, %s80
    %s95 = sphi 0, %s81
    %s99 = sphi 0, %s99
    %s101 = sphi 0, %s99
    %s102 = sphi 0, %s101
    %s116 = sphi 0, %s102
    %s120 = sphi 0, %s120
    %s122 = sphi 0, %s120
    %s123 = sphi 0, %s122
    %s137 = sphi 0, %s123
    %s141 = sphi 0, %s141
    %s143 = sphi 0, %s141
    %s144 = sphi 0, %s143
    %s158 = sphi 0, %s144
    %s162 = sphi 0, %s162
    %s164 = sphi 0, %s162
    %s165 = sphi 0, %s164
    %s179 = sphi 0, %s165
    %s183 = sphi 0, %s183
    %s185 = sphi 0, %s183
    %s186 = sphi 0, %s185
    %s200 = sphi 0, %s186
    %s204 = sphi 0, %s204
    %s206 = sphi 0, %s204
    %s207 = sphi 0, %s206
    %s221 = sphi 0, %s207
    %s225 = sphi 0, %s225
    %s227 = sphi 0, %s225
    %s228 = sphi 0, %s227
    %s242 = sphi 0, %s228
    %s246 = sphi 0, %s246
    %s248 = sphi 0, %s246
    %s249 = sphi 0, %s248
    %s263 = sphi 0, %s249
    %s267 = sphi 0, %s267
    %s269 = sphi 0, %s267
    %s270 = sphi 0, %s269
    %s284 = sphi 0, %s270
    %s290 = sphi 0, %s292
    %s293 = sphi 0, %s290
    %s294 = sphi 0, %s293
    %s310 = sphi 0, %s294
  $region4: #{tpu_custom_call.1} parent=0 // loop_header_branch
    %21 = sbr.rel (%p19) target = $region8
  $region5: #{tpu_custom_call.1} parent=0 // loop_body
    %s23 = ssub.s32 %s18, 1
    %s24 = ssub.s32 %s18, 2
    %s25 = sadd.s32 %s18, 1
    %s26 = ssub.s32 %s18, %s25
    %p27 = scmp.eq.s32.totalorder %s26, 0
    %s29 = sadd.s32 %s28, 1
    %s30 = scalar_select %p27, %s28, %s29
    %p33 = pneg %p27
    %p34 = scmp.eq.s32.totalorder %s18, 7
    %p35 = por %p33, %p34
    %p36 = scmp.ne.s32.totalorder %s28, %s31
    %p37 = scmp.eq.s32.totalorder %s18, 0
    %p38 = por %p36, %p37
    %p39 = scmp.ne.s32.totalorder %s28, %s31
    %p40 = scmp.eq.s32.totalorder %s23, 7
    %p41 = por %p39, %p40
    %p42 = scmp.ne.s32.totalorder %s31, %s32
    %p43 = scmp.eq.s32.totalorder %s23, 0
    %p44 = por %p42, %p43
    %p45 = scmp.ne.s32.totalorder %s31, %s32
    %p46 = scmp.eq.s32.totalorder %s24, 7
    %p47 = por %p45, %p46
    %p49 = scmp.ne.s32.totalorder %s32, %s48
    %p50 = scmp.eq.s32.totalorder %s24, 0
    %p51 = por %p49, %p50
    %s52 = ssub.s32 %s18, %s25
    %p53 = scmp.eq.s32.totalorder %s52, 0
    %s55 = sadd.s32 %s54, 1
    %s56 = scalar_select %p53, %s54, %s55
    %p59 = pneg %p53
    %p60 = scmp.eq.s32.totalorder %s18, 7
    %p61 = por %p59, %p60
    %p62 = scmp.ne.s32.totalorder %s54, %s57
    %p63 = scmp.eq.s32.totalorder %s18, 0
    %p64 = por %p62, %p63
    %p65 = scmp.ne.s32.totalorder %s54, %s57
    %p66 = scmp.eq.s32.totalorder %s23, 7
    %p67 = por %p65, %p66
    %p68 = scmp.ne.s32.totalorder %s57, %s58
    %p69 = scmp.eq.s32.totalorder %s23, 0
    %p70 = por %p68, %p69
    %p71 = scmp.ne.s32.totalorder %s57, %s58
    %p72 = scmp.eq.s32.totalorder %s24, 7
    %p73 = por %p71, %p72
    %p75 = scmp.ne.s32.totalorder %s58, %s74
    %p76 = scmp.eq.s32.totalorder %s24, 0
    %p77 = por %p75, %p76
    %s79 = sadd.s32 %s78, 1
    %p82 = scmp.eq.s32.totalorder %s18, 7
    %p83 = scmp.ne.s32.totalorder %s78, %s80
    %p84 = scmp.eq.s32.totalorder %s18, 0
    %p85 = por %p83, %p84
    %p86 = scmp.ne.s32.totalorder %s78, %s80
    %p87 = scmp.eq.s32.totalorder %s23, 7
    %p88 = por %p86, %p87
    %p89 = scmp.ne.s32.totalorder %s80, %s81
    %p90 = scmp.eq.s32.totalorder %s23, 0
    %p91 = por %p89, %p90
    %p92 = scmp.ne.s32.totalorder %s80, %s81
    %p93 = scmp.eq.s32.totalorder %s24, 7
    %p94 = por %p92, %p93
    %p96 = scmp.ne.s32.totalorder %s81, %s95
    %p97 = scmp.eq.s32.totalorder %s24, 0
    %p98 = por %p96, %p97
    %s100 = sadd.s32 %s99, 1
    %p103 = scmp.eq.s32.totalorder %s18, 7
    %p104 = scmp.ne.s32.totalorder %s99, %s101
    %p105 = scmp.eq.s32.totalorder %s18, 0
    %p106 = por %p104, %p105
    %p107 = scmp.ne.s32.totalorder %s99, %s101
    %p108 = scmp.eq.s32.totalorder %s23, 7
    %p109 = por %p107, %p108
    %p110 = scmp.ne.s32.totalorder %s101, %s102
    %p111 = scmp.eq.s32.totalorder %s23, 0
    %p112 = por %p110, %p111
    %p113 = scmp.ne.s32.totalorder %s101, %s102
    %p114 = scmp.eq.s32.totalorder %s24, 7
    %p115 = por %p113, %p114
    %p117 = scmp.ne.s32.totalorder %s102, %s116
    %p118 = scmp.eq.s32.totalorder %s24, 0
    %p119 = por %p117, %p118
    %s121 = sadd.s32 %s120, 1
    %p124 = scmp.eq.s32.totalorder %s18, 7
    %p125 = scmp.ne.s32.totalorder %s120, %s122
    %p126 = scmp.eq.s32.totalorder %s18, 0
    %p127 = por %p125, %p126
    %p128 = scmp.ne.s32.totalorder %s120, %s122
    %p129 = scmp.eq.s32.totalorder %s23, 7
    %p130 = por %p128, %p129
    %p131 = scmp.ne.s32.totalorder %s122, %s123
    %p132 = scmp.eq.s32.totalorder %s23, 0
    %p133 = por %p131, %p132
    %p134 = scmp.ne.s32.totalorder %s122, %s123
    %p135 = scmp.eq.s32.totalorder %s24, 7
    %p136 = por %p134, %p135
    %p138 = scmp.ne.s32.totalorder %s123, %s137
    %p139 = scmp.eq.s32.totalorder %s24, 0
    %p140 = por %p138, %p139
    %s142 = sadd.s32 %s141, 1
    %p145 = scmp.eq.s32.totalorder %s18, 7
    %p146 = scmp.ne.s32.totalorder %s141, %s143
    %p147 = scmp.eq.s32.totalorder %s18, 0
    %p148 = por %p146, %p147
    %p149 = scmp.ne.s32.totalorder %s141, %s143
    %p150 = scmp.eq.s32.totalorder %s23, 7
    %p151 = por %p149, %p150
    %p152 = scmp.ne.s32.totalorder %s143, %s144
    %p153 = scmp.eq.s32.totalorder %s23, 0
    %p154 = por %p152, %p153
    %p155 = scmp.ne.s32.totalorder %s143, %s144
    %p156 = scmp.eq.s32.totalorder %s24, 7
    %p157 = por %p155, %p156
    %p159 = scmp.ne.s32.totalorder %s144, %s158
    %p160 = scmp.eq.s32.totalorder %s24, 0
    %p161 = por %p159, %p160
    %s163 = sadd.s32 %s162, 1
    %p166 = scmp.eq.s32.totalorder %s18, 7
    %p167 = scmp.ne.s32.totalorder %s162, %s164
    %p168 = scmp.eq.s32.totalorder %s18, 0
    %p169 = por %p167, %p168
    %p170 = scmp.ne.s32.totalorder %s162, %s164
    %p171 = scmp.eq.s32.totalorder %s23, 7
    %p172 = por %p170, %p171
    %p173 = scmp.ne.s32.totalorder %s164, %s165
    %p174 = scmp.eq.s32.totalorder %s23, 0
    %p175 = por %p173, %p174
    %p176 = scmp.ne.s32.totalorder %s164, %s165
    %p177 = scmp.eq.s32.totalorder %s24, 7
    %p178 = por %p176, %p177
    %p180 = scmp.ne.s32.totalorder %s165, %s179
    %p181 = scmp.eq.s32.totalorder %s24, 0
    %p182 = por %p180, %p181
    %s184 = sadd.s32 %s183, 1
    %p187 = scmp.eq.s32.totalorder %s18, 7
    %p188 = scmp.ne.s32.totalorder %s183, %s185
    %p189 = scmp.eq.s32.totalorder %s18, 0
    %p190 = por %p188, %p189
    %p191 = scmp.ne.s32.totalorder %s183, %s185
    %p192 = scmp.eq.s32.totalorder %s23, 7
    %p193 = por %p191, %p192
    %p194 = scmp.ne.s32.totalorder %s185, %s186
    %p195 = scmp.eq.s32.totalorder %s23, 0
    %p196 = por %p194, %p195
    %p197 = scmp.ne.s32.totalorder %s185, %s186
    %p198 = scmp.eq.s32.totalorder %s24, 7
    %p199 = por %p197, %p198
    %p201 = scmp.ne.s32.totalorder %s186, %s200
    %p202 = scmp.eq.s32.totalorder %s24, 0
    %p203 = por %p201, %p202
    %s205 = sadd.s32 %s204, 1
    %p208 = scmp.eq.s32.totalorder %s18, 7
    %p209 = scmp.ne.s32.totalorder %s204, %s206
    %p210 = scmp.eq.s32.totalorder %s18, 0
    %p211 = por %p209, %p210
    %p212 = scmp.ne.s32.totalorder %s204, %s206
    %p213 = scmp.eq.s32.totalorder %s23, 7
    %p214 = por %p212, %p213
    %p215 = scmp.ne.s32.totalorder %s206, %s207
    %p216 = scmp.eq.s32.totalorder %s23, 0
    %p217 = por %p215, %p216
    %p218 = scmp.ne.s32.totalorder %s206, %s207
    %p219 = scmp.eq.s32.totalorder %s24, 7
    %p220 = por %p218, %p219
    %p222 = scmp.ne.s32.totalorder %s207, %s221
    %p223 = scmp.eq.s32.totalorder %s24, 0
    %p224 = por %p222, %p223
    %s226 = sadd.s32 %s225, 1
    %p229 = scmp.eq.s32.totalorder %s18, 7
    %p230 = scmp.ne.s32.totalorder %s225, %s227
    %p231 = scmp.eq.s32.totalorder %s18, 0
    %p232 = por %p230, %p231
    %p233 = scmp.ne.s32.totalorder %s225, %s227
    %p234 = scmp.eq.s32.totalorder %s23, 7
    %p235 = por %p233, %p234
    %p236 = scmp.ne.s32.totalorder %s227, %s228
    %p237 = scmp.eq.s32.totalorder %s23, 0
    %p238 = por %p236, %p237
    %p239 = scmp.ne.s32.totalorder %s227, %s228
    %p240 = scmp.eq.s32.totalorder %s24, 7
    %p241 = por %p239, %p240
    %p243 = scmp.ne.s32.totalorder %s228, %s242
    %p244 = scmp.eq.s32.totalorder %s24, 0
    %p245 = por %p243, %p244
    %s247 = sadd.s32 %s246, 1
    %p250 = scmp.eq.s32.totalorder %s18, 7
    %p251 = scmp.ne.s32.totalorder %s246, %s248
    %p252 = scmp.eq.s32.totalorder %s18, 0
    %p253 = por %p251, %p252
    %p254 = scmp.ne.s32.totalorder %s246, %s248
    %p255 = scmp.eq.s32.totalorder %s23, 7
    %p256 = por %p254, %p255
    %p257 = scmp.ne.s32.totalorder %s248, %s249
    %p258 = scmp.eq.s32.totalorder %s23, 0
    %p259 = por %p257, %p258
    %p260 = scmp.ne.s32.totalorder %s248, %s249
    %p261 = scmp.eq.s32.totalorder %s24, 7
    %p262 = por %p260, %p261
    %p264 = scmp.ne.s32.totalorder %s249, %s263
    %p265 = scmp.eq.s32.totalorder %s24, 0
    %p266 = por %p264, %p265
    %s268 = sadd.s32 %s267, 1
    %p271 = scmp.eq.s32.totalorder %s18, 7
    %p272 = scmp.ne.s32.totalorder %s267, %s269
    %p273 = scmp.eq.s32.totalorder %s18, 0
    %p274 = por %p272, %p273
    %p275 = scmp.ne.s32.totalorder %s267, %s269
    %p276 = scmp.eq.s32.totalorder %s23, 7
    %p277 = por %p275, %p276
    %p278 = scmp.ne.s32.totalorder %s269, %s270
    %p279 = scmp.eq.s32.totalorder %s23, 0
    %p280 = por %p278, %p279
    %p281 = scmp.ne.s32.totalorder %s269, %s270
    %p282 = scmp.eq.s32.totalorder %s24, 7
    %p283 = por %p281, %p282
    %p285 = scmp.ne.s32.totalorder %s270, %s284
    %p286 = scmp.eq.s32.totalorder %s24, 0
    %p287 = por %p285, %p286
    %s288 = ssub.s32 %s18, %s25
    %p289 = scmp.eq.s32.totalorder %s288, 0
    %s291 = sadd.s32 %s290, 1
    %s292 = scalar_select %p289, %s290, %s291
    %p295 = pneg %p289
    %p296 = scmp.eq.s32.totalorder %s18, 7
    %p297 = por %p295, %p296
    %p298 = scmp.ne.s32.totalorder %s290, %s293
    %p299 = scmp.eq.s32.totalorder %s18, 0
    %p300 = por %p298, %p299
    %p301 = scmp.ne.s32.totalorder %s290, %s293
    %p302 = scmp.eq.s32.totalorder %s23, 7
    %p303 = por %p301, %p302
    %p304 = scmp.ne.s32.totalorder %s293, %s294
    %p305 = scmp.eq.s32.totalorder %s23, 0
    %p306 = por %p304, %p305
    %p307 = scmp.ne.s32.totalorder %s293, %s294
    %p308 = scmp.eq.s32.totalorder %s24, 7
    %p309 = por %p307, %p308
    %p311 = scmp.ne.s32.totalorder %s294, %s310
    %p312 = scmp.eq.s32.totalorder %s24, 0
    %p313 = por %p311, %p312
    %p314 = scmp.le.s32.totalorder 1, %s18
    %p315 = scmp.lt.s32.totalorder %s18, 9
    %p316 = pnand %p314, %p315
    %p317 = pneg %p316
    // Predicated region
    $region9: #{tpu_custom_call.1} parent=5 // pred_check
      _
    $region10: #{tpu_custom_call.1} parent=5 // pred_check_branch
      %319 = sbr.rel (%p316) target = $region12
    $region11: #{tpu_custom_call.1} parent=5 // pred_region
      %s320 = ssub.s32 %s18, 1
      // Predicated region
      $region13: #{tpu_custom_call.1} parent=11 // pred_check
        %p321 = pneg %p91
      $region14: #{tpu_custom_call.1} parent=11 // pred_check_branch
        %323 = sbr.rel (%p321) target = $region16
      $region15: #{tpu_custom_call.1} parent=11 // pred_region
        _
      $region16: #{tpu_custom_call.1} parent=11 // pred_fallthru
        _
      // Predicated region
      $region17: #{tpu_custom_call.1} parent=11 // pred_check
        %p324 = pneg %p112
      $region18: #{tpu_custom_call.1} parent=11 // pred_check_branch
        %326 = sbr.rel (%p324) target = $region20
      $region19: #{tpu_custom_call.1} parent=11 // pred_region
        _
      $region20: #{tpu_custom_call.1} parent=11 // pred_fallthru
        _
      // Predicated region
      $region21: #{tpu_custom_call.1} parent=11 // pred_check
        %p327 = pneg %p133
      $region22: #{tpu_custom_call.1} parent=11 // pred_check_branch
        %329 = sbr.rel (%p327) target = $region24
      $region23: #{tpu_custom_call.1} parent=11 // pred_region
        _
      $region24: #{tpu_custom_call.1} parent=11 // pred_fallthru
        _
      // Predicated region
      $region25: #{tpu_custom_call.1} parent=11 // pred_check
        %p330 = pneg %p154
      $region26: #{tpu_custom_call.1} parent=11 // pred_check_branch
        %332 = sbr.rel (%p330) target = $region28
      $region27: #{tpu_custom_call.1} parent=11 // pred_region
        _
      $region28: #{tpu_custom_call.1} parent=11 // pred_fallthru
        _
      // Predicated region
      $region29: #{tpu_custom_call.1} parent=11 // pred_check
        %p333 = pneg %p175
      $region30: #{tpu_custom_call.1} parent=11 // pred_check_branch
        %335 = sbr.rel (%p333) target = $region32
      $region31: #{tpu_custom_call.1} parent=11 // pred_region
        _
      $region32: #{tpu_custom_call.1} parent=11 // pred_fallthru
        _
      // Predicated region
      $region33: #{tpu_custom_call.1} parent=11 // pred_check
        %p336 = pneg %p196
      $region34: #{tpu_custom_call.1} parent=11 // pred_check_branch
        %338 = sbr.rel (%p336) target = $region36
      $region35: #{tpu_custom_call.1} parent=11 // pred_region
        _
      $region36: #{tpu_custom_call.1} parent=11 // pred_fallthru
        _
      // Predicated region
      $region37: #{tpu_custom_call.1} parent=11 // pred_check
        %p339 = pneg %p217
      $region38: #{tpu_custom_call.1} parent=11 // pred_check_branch
        %341 = sbr.rel (%p339) target = $region40
      $region39: #{tpu_custom_call.1} parent=11 // pred_region
        _
      $region40: #{tpu_custom_call.1} parent=11 // pred_fallthru
        _
      // Predicated region
      $region41: #{tpu_custom_call.1} parent=11 // pred_check
        %p342 = pneg %p238
      $region42: #{tpu_custom_call.1} parent=11 // pred_check_branch
        %344 = sbr.rel (%p342) target = $region44
      $region43: #{tpu_custom_call.1} parent=11 // pred_region
        _
      $region44: #{tpu_custom_call.1} parent=11 // pred_fallthru
        _
      // Predicated region
      $region45: #{tpu_custom_call.1} parent=11 // pred_check
        %p345 = pneg %p259
      $region46: #{tpu_custom_call.1} parent=11 // pred_check_branch
        %347 = sbr.rel (%p345) target = $region48
      $region47: #{tpu_custom_call.1} parent=11 // pred_region
        _
      $region48: #{tpu_custom_call.1} parent=11 // pred_fallthru
        _
      // Predicated region
      $region49: #{tpu_custom_call.1} parent=11 // pred_check
        %p348 = pneg %p280
      $region50: #{tpu_custom_call.1} parent=11 // pred_check_branch
        %350 = sbr.rel (%p348) target = $region52
      $region51: #{tpu_custom_call.1} parent=11 // pred_region
        _
      $region52: #{tpu_custom_call.1} parent=11 // pred_fallthru
        _
    $region12: #{tpu_custom_call.1} parent=5 // pred_fallthru
      _
    %p351 = scmp.lt.s32.totalorder %s18, 8
    // Predicated region
    $region53: #{tpu_custom_call.1} parent=5 // pred_check
      %p352 = pneg %p351
    $region54: #{tpu_custom_call.1} parent=5 // pred_check_branch
      %354 = sbr.rel (%p352) target = $region56
    $region55: #{tpu_custom_call.1} parent=5 // pred_region
      // Predicated region
      $region57: #{tpu_custom_call.1} parent=55 // pred_check
        %p355 = pneg %p38
      $region58: #{tpu_custom_call.1} parent=55 // pred_check_branch
        %357 = sbr.rel (%p355) target = $region60
      $region59: #{tpu_custom_call.1} parent=55 // pred_region
        %s358 = smul.u32 64, %s18
        %p359 = scmp.lt.s32.totalorder %s358, 511
        %s360 = scalar_select %p359, %s358, 511
        %s361 = smul.addr %s360, 8
        %s362 = scalar_lea.vmem %s0, %s361
        %s363 = smul.u32 64, %s18
      $region60: #{tpu_custom_call.1} parent=55 // pred_fallthru
        _
      // Predicated region
      $region61: #{tpu_custom_call.1} parent=55 // pred_check
        %p364 = pneg %p64
      $region62: #{tpu_custom_call.1} parent=55 // pred_check_branch
        %366 = sbr.rel (%p364) target = $region64
      $region63: #{tpu_custom_call.1} parent=55 // pred_region
        %s367 = smul.u32 64, %s18
        %p368 = scmp.lt.s32.totalorder %s367, 511
        %s369 = scalar_select %p368, %s367, 511
        %s370 = smul.addr %s369, 4
        %s371 = scalar_lea.vmem %s1, %s370
        %s372 = smul.u32 64, %s18
      $region64: #{tpu_custom_call.1} parent=55 // pred_fallthru
        _
    $region56: #{tpu_custom_call.1} parent=5 // pred_fallthru
      _
    %p373 = scmp.le.s32.totalorder 1, %s18
    %p374 = scmp.lt.s32.totalorder %s18, 9
    %p375 = pnand %p373, %p374
    %p376 = pneg %p375
    // Predicated region
    $region65: #{tpu_custom_call.1} parent=5 // pred_check
      _
    $region66: #{tpu_custom_call.1} parent=5 // pred_check_branch
      %378 = sbr.rel (%p375) target = $region68
    $region67: #{tpu_custom_call.1} parent=5 // pred_region
      %s379 = ssub.s32 %s18, 1
      %s380 = smul.u32 64, %s23
      %p381 = scmp.lt.s32.totalorder %s380, 511
      %s382 = scalar_select %p381, %s380, 511
      %s383 = smul.addr %s382, 8
      %s384 = scalar_lea.vmem %s0, %s383
      %p385 = pneg %p44
      %p386 = pneg %p41
      %s387 = smul.u32 64, %s23
      %p388 = scmp.lt.s32.totalorder %s387, 511
      %s389 = scalar_select %p388, %s387, 511
      %s390 = smul.addr %s389, 4
      %s391 = scalar_lea.vmem %s1, %s390
      %p392 = pneg %p70
      %p393 = pneg %p67
      %p394 = pneg %p91
      %p395 = pneg %p88
      %p396 = pneg %p112
      %p397 = pneg %p109
      %p398 = pneg %p133
      %p399 = pneg %p130
      %p400 = pneg %p154
      %p401 = pneg %p151
      %p402 = pneg %p175
      %p403 = pneg %p172
      %p404 = pneg %p196
      %p405 = pneg %p193
      %p406 = pneg %p217
      %p407 = pneg %p214
      %p408 = pneg %p238
      %p409 = pneg %p235
      %p410 = pneg %p259
      %p411 = pneg %p256
      %p412 = pneg %p280
      %p413 = pneg %p277
      %p414 = pneg %p306
      %p415 = pneg %p303
      %s416 = smul.u32 64, %s23
      %p417 = scmp.lt.s32.totalorder %s416, 511
      %s418 = scalar_select %p417, %s416, 511
      %s419 = smul.addr %s418, 8
      %s420 = scalar_lea.vmem %s12, %s419
      %s421 = smul.u32 64, %s23
      %p422 = scmp.lt.s32.totalorder %s421, 511
      %s423 = scalar_select %p422, %s421, 511
      %s424 = smul.addr %s423, 8
      %s425 = scalar_lea.vmem %s0, %s424
      %s426 = smul.u32 64, %s23
      %s427 = smul.u32 64, %s23
      %p428 = scmp.lt.s32.totalorder %s427, 511
      %s429 = scalar_select %p428, %s427, 511
      %s430 = smul.addr %s429, 4
      %s431 = scalar_lea.vmem %s1, %s430
      %s432 = smul.u32 64, %s23
      %s433 = smul.u32 64, %s23
      %p434 = scmp.lt.s32.totalorder %s433, 511
      %s435 = scalar_select %p434, %s433, 511
      %s436 = smul.addr %s435, 8
      %s437 = scalar_lea.vmem %s12, %s436
      %s438 = smul.u32 64, %s23
      %v440 = vld [vmem:[%s425] sm:$0xff]
      %v441 = vld [vmem:[%s425 + $0x8] sm:$0xff]
      %v442 = vld [vmem:[%s425 + $0x10] sm:$0xff]
      %v443 = vld [vmem:[%s425 + $0x18] sm:$0xff]
      %v444 = vld [vmem:[%s425 + $0x20] sm:$0xff]
      %v445 = vld [vmem:[%s425 + $0x28] sm:$0xff]
      %v446 = vld [vmem:[%s425 + $0x30] sm:$0xff]
      %v447 = vld [vmem:[%s425 + $0x38] sm:$0xff]
      %v448 = vld [vmem:[%s425 + $0x40] sm:$0xff]
      %v449 = vld [vmem:[%s425 + $0x48] sm:$0xff]
      %v450 = vld [vmem:[%s425 + $0x50] sm:$0xff]
      %v451 = vld [vmem:[%s425 + $0x58] sm:$0xff]
      %v452 = vld [vmem:[%s425 + $0x60] sm:$0xff]
      %v453 = vld [vmem:[%s425 + $0x68] sm:$0xff]
      %v454 = vld [vmem:[%s425 + $0x70] sm:$0xff]
      %v455 = vld [vmem:[%s425 + $0x78] sm:$0xff]
      %v456 = vld [vmem:[%s425 + $0x80] sm:$0xff]
      %v457 = vld [vmem:[%s425 + $0x88] sm:$0xff]
      %v458 = vld [vmem:[%s425 + $0x90] sm:$0xff]
      %v459 = vld [vmem:[%s425 + $0x98] sm:$0xff]
      %v460 = vld [vmem:[%s425 + $0xa0] sm:$0xff]
      %v461 = vld [vmem:[%s425 + $0xa8] sm:$0xff]
      %v462 = vld [vmem:[%s425 + $0xb0] sm:$0xff]
      %v463 = vld [vmem:[%s425 + $0xb8] sm:$0xff]
      %v464 = vld [vmem:[%s425 + $0xc0] sm:$0xff]
      %v465 = vld [vmem:[%s425 + $0xc8] sm:$0xff]
      %v466 = vld [vmem:[%s425 + $0xd0] sm:$0xff]
      %v467 = vld [vmem:[%s425 + $0xd8] sm:$0xff]
      %v468 = vld [vmem:[%s425 + $0xe0] sm:$0xff]
      %v469 = vld [vmem:[%s425 + $0xe8] sm:$0xff]
      %v470 = vld [vmem:[%s425 + $0xf0] sm:$0xff]
      %v471 = vld [vmem:[%s425 + $0xf8] sm:$0xff]
      %v472 = vld [vmem:[%s425 + $0x100] sm:$0xff]
      %v473 = vld [vmem:[%s425 + $0x108] sm:$0xff]
      %v474 = vld [vmem:[%s425 + $0x110] sm:$0xff]
      %v475 = vld [vmem:[%s425 + $0x118] sm:$0xff]
      %v476 = vld [vmem:[%s425 + $0x120] sm:$0xff]
      %v477 = vld [vmem:[%s425 + $0x128] sm:$0xff]
      %v478 = vld [vmem:[%s425 + $0x130] sm:$0xff]
      %v479 = vld [vmem:[%s425 + $0x138] sm:$0xff]
      %v480 = vld [vmem:[%s425 + $0x140] sm:$0xff]
      %v481 = vld [vmem:[%s425 + $0x148] sm:$0xff]
      %v482 = vld [vmem:[%s425 + $0x150] sm:$0xff]
      %v483 = vld [vmem:[%s425 + $0x158] sm:$0xff]
      %v484 = vld [vmem:[%s425 + $0x160] sm:$0xff]
      %v485 = vld [vmem:[%s425 + $0x168] sm:$0xff]
      %v486 = vld [vmem:[%s425 + $0x170] sm:$0xff]
      %v487 = vld [vmem:[%s425 + $0x178] sm:$0xff]
      %v488 = vld [vmem:[%s425 + $0x180] sm:$0xff]
      %v489 = vld [vmem:[%s425 + $0x188] sm:$0xff]
      %v490 = vld [vmem:[%s425 + $0x190] sm:$0xff]
      %v491 = vld [vmem:[%s425 + $0x198] sm:$0xff]
      %v492 = vld [vmem:[%s425 + $0x1a0] sm:$0xff]
      %v493 = vld [vmem:[%s425 + $0x1a8] sm:$0xff]
      %v494 = vld [vmem:[%s425 + $0x1b0] sm:$0xff]
      %v495 = vld [vmem:[%s425 + $0x1b8] sm:$0xff]
      %v496 = vld [vmem:[%s425 + $0x1c0] sm:$0xff]
      %v497 = vld [vmem:[%s425 + $0x1c8] sm:$0xff]
      %v498 = vld [vmem:[%s425 + $0x1d0] sm:$0xff]
      %v499 = vld [vmem:[%s425 + $0x1d8] sm:$0xff]
      %v500 = vld [vmem:[%s425 + $0x1e0] sm:$0xff]
      %v501 = vld [vmem:[%s425 + $0x1e8] sm:$0xff]
      %v502 = vld [vmem:[%s425 + $0x1f0] sm:$0xff]
      %v503 = vld [vmem:[%s425 + $0x1f8] sm:$0xff]
      %v504 = vld [vmem:[%s2] sm:$0x3f]
      %v505 = vld [vmem:[%s3] sm:$0x1]
      %v507 = vlaneseq
      %v508 = vshrl.u32 %v507, 7
      %v509 = vsub.s32 0, %v508
      %v510 = vrot.slane %v505, %v509
      %vm512 = vcmask 48128
      %v514 = vsel %vm512, %v440, 0
      %v517 = vsel %vm512, %v441, 0
      %v520 = vsel %vm512, %v442, 0
      %v523 = vsel %vm512, %v443, 0
      %v526 = vsel %vm512, %v444, 0
      %v529 = vsel %vm512, %v445, 0
      %v532 = vsel %vm512, %v446, 0
      %v535 = vsel %vm512, %v447, 0
      %v538 = vsel %vm512, %v448, 0
      %v541 = vsel %vm512, %v449, 0
      %v544 = vsel %vm512, %v450, 0
      %v547 = vsel %vm512, %v451, 0
      %v550 = vsel %vm512, %v452, 0
      %v553 = vsel %vm512, %v453, 0
      %v556 = vsel %vm512, %v454, 0
      %v559 = vsel %vm512, %v455, 0
      %v562 = vsel %vm512, %v456, 0
      %v565 = vsel %vm512, %v457, 0
      %v568 = vsel %vm512, %v458, 0
      %v571 = vsel %vm512, %v459, 0
      %v574 = vsel %vm512, %v460, 0
      %v577 = vsel %vm512, %v461, 0
      %v580 = vsel %vm512, %v462, 0
      %v583 = vsel %vm512, %v463, 0
      %v586 = vsel %vm512, %v464, 0
      %v589 = vsel %vm512, %v465, 0
      %v592 = vsel %vm512, %v466, 0
      %v595 = vsel %vm512, %v467, 0
      %v598 = vsel %vm512, %v468, 0
      %v601 = vsel %vm512, %v469, 0
      %v604 = vsel %vm512, %v470, 0
      %v607 = vsel %vm512, %v471, 0
      %v610 = vsel %vm512, %v472, 0
      %v613 = vsel %vm512, %v473, 0
      %v616 = vsel %vm512, %v474, 0
      %v619 = vsel %vm512, %v475, 0
      %v622 = vsel %vm512, %v476, 0
      %v625 = vsel %vm512, %v477, 0
      %v628 = vsel %vm512, %v478, 0
      %v631 = vsel %vm512, %v479, 0
      %v634 = vsel %vm512, %v480, 0
      %v637 = vsel %vm512, %v481, 0
      %v640 = vsel %vm512, %v482, 0
      %v643 = vsel %vm512, %v483, 0
      %v646 = vsel %vm512, %v484, 0
      %v649 = vsel %vm512, %v485, 0
      %v652 = vsel %vm512, %v486, 0
      %v655 = vsel %vm512, %v487, 0
      %v658 = vsel %vm512, %v488, 0
      %v661 = vsel %vm512, %v489, 0
      %v664 = vsel %vm512, %v490, 0
      %v667 = vsel %vm512, %v491, 0
      %v670 = vsel %vm512, %v492, 0
      %v673 = vsel %vm512, %v493, 0
      %v676 = vsel %vm512, %v494, 0
      %v679 = vsel %vm512, %v495, 0
      %v682 = vsel %vm512, %v496, 0
      %v685 = vsel %vm512, %v497, 0
      %v688 = vsel %vm512, %v498, 0
      %v691 = vsel %vm512, %v499, 0
      %v694 = vsel %vm512, %v500, 0
      %v697 = vsel %vm512, %v501, 0
      %v700 = vsel %vm512, %v502, 0
      %v703 = vsel %vm512, %v503, 0
      %vm705 = vcmask 1045504
      %v707 = vsel %vm705, %v504, 0
      %709 = vmatprep.subr.mxu0 0.0
      %710 = vmatpush1.msra.mxu0 %v707
      %711 = vmatprep.subr.mxu0 0.0
      %712 = vmatpush1.msra.mxu0 0.0
      %713 = vmatprep.subr.mxu0 0.0
      %714 = vmatpush1.msra.mxu0 0.0
      %715 = vmatprep.subr.mxu0 0.0
      %716 = vmatpush1.msra.mxu0 0.0
      %717 = vmatprep.subr.mxu0 0.0
      %718 = vmatpush1.msra.mxu0 0.0
      %719 = vmatprep.subr.mxu0 0.0
      %720 = vmatpush1.msra.mxu0 0.0
      %721 = vmatprep.subr.mxu0 0.0
      %722 = vmatpush1.msra.mxu0 0.0
      %723 = vmatprep.subr.mxu0 0.0
      %724 = vmatpush1.msra.mxu0 0.0
      %725 = vmatprep.subr.mxu0 0.0
      %726 = vmatpush1.msra.mxu0 0.0
      %727 = vmatprep.subr.mxu0 0.0
      %728 = vmatpush1.msra.mxu0 0.0
      %729 = vmatprep.subr.mxu0 0.0
      %730 = vmatpush1.msra.mxu0 0.0
      %731 = vmatprep.subr.mxu0 0.0
      %732 = vmatpush1.msra.mxu0 0.0
      %733 = vmatprep.subr.mxu0 0.0
      %734 = vmatpush1.msra.mxu0 0.0
      %735 = vmatprep.subr.mxu0 0.0
      %736 = vmatpush1.msra.mxu0 0.0
      %737 = vmatprep.subr.mxu0 0.0
      %738 = vmatpush1.msra.mxu0 0.0
      %739 = vmatprep.subr.mxu0 0.0
      %740 = vmatpush1.msra.mxu0 0.0
      %741 = vmatprep.subr.mxu0 0.0
      %742 = vmatpush1.msra.mxu0 0.0
      %743 = vmatprep.subr.mxu0 0.0
      %744 = vmatpush1.msra.mxu0 0.0
      %745 = vmatprep.subr.mxu0 0.0
      %746 = vmatpush1.msra.mxu0 0.0
      %747 = vmatprep.subr.mxu0 0.0
      %748 = vmatpush1.msra.mxu0 0.0
      %749 = vmatprep.subr.mxu0 0.0
      %750 = vmatpush1.msra.mxu0 0.0
      %751 = vmatprep.subr.mxu0 0.0
      %752 = vmatpush1.msra.mxu0 0.0
      %753 = vmatprep.subr.mxu0 0.0
      %754 = vmatpush1.msra.mxu0 0.0
      %755 = vmatprep.subr.mxu0 0.0
      %756 = vmatpush1.msra.mxu0 0.0
      %757 = vmatprep.subr.mxu0 0.0
      %758 = vmatpush1.msra.mxu0 0.0
      %759 = vmatprep.subr.mxu0 0.0
      %760 = vmatpush1.msra.mxu0 0.0
      %761 = vmatprep.subr.mxu0 0.0
      %762 = vmatpush1.msra.mxu0 0.0
      %763 = vmatprep.subr.mxu0 0.0
      %764 = vmatpush1.msra.mxu0 0.0
      %765 = vmatprep.subr.mxu0 0.0
      %766 = vmatpush1.msra.mxu0 0.0
      %767 = vmatprep.subr.mxu0 0.0
      %768 = vmatpush1.msra.mxu0 0.0
      %769 = vmatprep.subr.mxu0 0.0
      %770 = vmatpush1.msra.mxu0 0.0
      %771 = vmatprep.subr.mxu0 0.0
      %772 = vmatpush1.msra.mxu0 0.0
      %773 = vmatprep.mubr.f32.mxu0 0.0
      %774 = vmatmul.mubr.f32.gmra.mrb[0].mxu0 %v514
      %v775 = vpop.f32.mrb[0].mxu0
      %v776 = vadd.f32 %v510, %v775
      %v777 = vpop.f32.mrb[0].mxu0
      %778 = vmatprep.mubr.f32.mxu0 0.0
      %779 = vmatmul.mubr.f32.gmra.mrb[0].mxu0 %v517
      %v780 = vpop.f32.mrb[0].mxu0
      %v781 = vadd.f32 %v510, %v780
      %v782 = vpop.f32.mrb[0].mxu0
      %783 = vmatprep.mubr.f32.mxu0 0.0
      %784 = vmatmul.mubr.f32.gmra.mrb[0].mxu0 %v520
      %v785 = vpop.f32.mrb[0].mxu0
      %v786 = vadd.f32 %v510, %v785
      %v787 = vpop.f32.mrb[0].mxu0
      %788 = vmatprep.mubr.f32.mxu0 0.0
      %789 = vmatmul.mubr.f32.gmra.mrb[0].mxu0 %v523
      %v790 = vpop.f32.mrb[0].mxu0
      %v791 = vadd.f32 %v510, %v790
      %v792 = vpop.f32.mrb[0].mxu0
      %793 = vmatprep.mubr.f32.mxu0 0.0
      %794 = vmatmul.mubr.f32.gmra.mrb[0].mxu0 %v526
      %v795 = vpop.f32.mrb[0].mxu0
      %v796 = vadd.f32 %v510, %v795
      %v797 = vpop.f32.mrb[0].mxu0
      %798 = vmatprep.mubr.f32.mxu0 0.0
      %799 = vmatmul.mubr.f32.gmra.mrb[0].mxu0 %v529
      %v800 = vpop.f32.mrb[0].mxu0
      %v801 = vadd.f32 %v510, %v800
      %v802 = vpop.f32.mrb[0].mxu0
      %803 = vmatprep.mubr.f32.mxu0 0.0
      %804 = vmatmul.mubr.f32.gmra.mrb[0].mxu0 %v532
      %v805 = vpop.f32.mrb[0].mxu0
      %v806 = vadd.f32 %v510, %v805
      %v807 = vpop.f32.mrb[0].mxu0
      %808 = vmatprep.mubr.f32.mxu0 0.0
      %809 = vmatmul.mubr.f32.gmra.mrb[0].mxu0 %v535
      %v810 = vpop.f32.mrb[0].mxu0
      %v811 = vadd.f32 %v510, %v810
      %v812 = vpop.f32.mrb[0].mxu0
      %813 = vmatprep.mubr.f32.mxu0 0.0
      %814 = vmatmul.mubr.f32.gmra.mrb[0].mxu0 %v538
      %v815 = vpop.f32.mrb[0].mxu0
      %v816 = vadd.f32 %v510, %v815
      %v817 = vpop.f32.mrb[0].mxu0
      %818 = vmatprep.mubr.f32.mxu0 0.0
      %819 = vmatmul.mubr.f32.gmra.mrb[0].mxu0 %v541
      %v820 = vpop.f32.mrb[0].mxu0
      %v821 = vadd.f32 %v510, %v820
      %v822 = vpop.f32.mrb[0].mxu0
      %823 = vmatprep.mubr.f32.mxu0 0.0
      %824 = vmatmul.mubr.f32.gmra.mrb[0].mxu0 %v544
      %v825 = vpop.f32.mrb[0].mxu0
      %v826 = vadd.f32 %v510, %v825
      %v827 = vpop.f32.mrb[0].mxu0
      %828 = vmatprep.mubr.f32.mxu0 0.0
      %829 = vmatmul.mubr.f32.gmra.mrb[0].mxu0 %v547
      %v830 = vpop.f32.mrb[0].mxu0
      %v831 = vadd.f32 %v510, %v830
      %v832 = vpop.f32.mrb[0].mxu0
      %833 = vmatprep.mubr.f32.mxu0 0.0
      %834 = vmatmul.mubr.f32.gmra.mrb[0].mxu0 %v550
      %v835 = vpop.f32.mrb[0].mxu0
      %v836 = vadd.f32 %v510, %v835
      %v837 = vpop.f32.mrb[0].mxu0
      %838 = vmatprep.mubr.f32.mxu0 0.0
      %839 = vmatmul.mubr.f32.gmra.mrb[0].mxu0 %v553
      %v840 = vpop.f32.mrb[0].mxu0
      %v841 = vadd.f32 %v510, %v840
      %v842 = vpop.f32.mrb[0].mxu0
      %843 = vmatprep.mubr.f32.mxu0 0.0
      %844 = vmatmul.mubr.f32.gmra.mrb[0].mxu0 %v556
      %v845 = vpop.f32.mrb[0].mxu0
      %v846 = vadd.f32 %v510, %v845
      %v847 = vpop.f32.mrb[0].mxu0
      %848 = vmatprep.mubr.f32.mxu0 0.0
      %849 = vmatmul.mubr.f32.gmra.mrb[0].mxu0 %v559
      %v850 = vpop.f32.mrb[0].mxu0
      %v851 = vadd.f32 %v510, %v850
      %v852 = vpop.f32.mrb[0].mxu0
      %853 = vmatprep.mubr.f32.mxu0 0.0
      %854 = vmatmul.mubr.f32.gmra.mrb[0].mxu0 %v562
      %v855 = vpop.f32.mrb[0].mxu0
      %v856 = vadd.f32 %v510, %v855
      %v857 = vpop.f32.mrb[0].mxu0
      %858 = vmatprep.mubr.f32.mxu0 0.0
      %859 = vmatmul.mubr.f32.gmra.mrb[0].mxu0 %v565
      %v860 = vpop.f32.mrb[0].mxu0
      %v861 = vadd.f32 %v510, %v860
      %v862 = vpop.f32.mrb[0].mxu0
      %863 = vmatprep.mubr.f32.mxu0 0.0
      %864 = vmatmul.mubr.f32.gmra.mrb[0].mxu0 %v568
      %v865 = vpop.f32.mrb[0].mxu0
      %v866 = vadd.f32 %v510, %v865
      %v867 = vpop.f32.mrb[0].mxu0
      %868 = vmatprep.mubr.f32.mxu0 0.0
      %869 = vmatmul.mubr.f32.gmra.mrb[0].mxu0 %v571
      %v870 = vpop.f32.mrb[0].mxu0
      %v871 = vadd.f32 %v510, %v870
      %v872 = vpop.f32.mrb[0].mxu0
      %873 = vmatprep.mubr.f32.mxu0 0.0
      %874 = vmatmul.mubr.f32.gmra.mrb[0].mxu0 %v574
      %v875 = vpop.f32.mrb[0].mxu0
      %v876 = vadd.f32 %v510, %v875
      %v877 = vpop.f32.mrb[0].mxu0
      %878 = vmatprep.mubr.f32.mxu0 0.0
      %879 = vmatmul.mubr.f32.gmra.mrb[0].mxu0 %v577
      %v880 = vpop.f32.mrb[0].mxu0
      %v881 = vadd.f32 %v510, %v880
      %v882 = vpop.f32.mrb[0].mxu0
      %883 = vmatprep.mubr.f32.mxu0 0.0
      %884 = vmatmul.mubr.f32.gmra.mrb[0].mxu0 %v580
      %v885 = vpop.f32.mrb[0].mxu0
      %v886 = vadd.f32 %v510, %v885
      %v887 = vpop.f32.mrb[0].mxu0
      %888 = vmatprep.mubr.f32.mxu0 0.0
      %889 = vmatmul.mubr.f32.gmra.mrb[0].mxu0 %v583
      %v890 = vpop.f32.mrb[0].mxu0
      %v891 = vadd.f32 %v510, %v890
      %v892 = vpop.f32.mrb[0].mxu0
      %893 = vmatprep.mubr.f32.mxu0 0.0
      %894 = vmatmul.mubr.f32.gmra.mrb[0].mxu0 %v586
      %v895 = vpop.f32.mrb[0].mxu0
      %v896 = vadd.f32 %v510, %v895
      %v897 = vpop.f32.mrb[0].mxu0
      %898 = vmatprep.mubr.f32.mxu0 0.0
      %899 = vmatmul.mubr.f32.gmra.mrb[0].mxu0 %v589
      %v900 = vpop.f32.mrb[0].mxu0
      %v901 = vadd.f32 %v510, %v900
      %v902 = vpop.f32.mrb[0].mxu0
      %903 = vmatprep.mubr.f32.mxu0 0.0
      %904 = vmatmul.mubr.f32.gmra.mrb[0].mxu0 %v592
      %v905 = vpop.f32.mrb[0].mxu0
      %v906 = vadd.f32 %v510, %v905
      %v907 = vpop.f32.mrb[0].mxu0
      %908 = vmatprep.mubr.f32.mxu0 0.0
      %909 = vmatmul.mubr.f32.gmra.mrb[0].mxu0 %v595
      %v910 = vpop.f32.mrb[0].mxu0
      %v911 = vadd.f32 %v510, %v910
      %v912 = vpop.f32.mrb[0].mxu0
      %913 = vmatprep.mubr.f32.mxu0 0.0
      %914 = vmatmul.mubr.f32.gmra.mrb[0].mxu0 %v598
      %v915 = vpop.f32.mrb[0].mxu0
      %v916 = vadd.f32 %v510, %v915
      %v917 = vpop.f32.mrb[0].mxu0
      %918 = vmatprep.mubr.f32.mxu0 0.0
      %919 = vmatmul.mubr.f32.gmra.mrb[0].mxu0 %v601
      %v920 = vpop.f32.mrb[0].mxu0
      %v921 = vadd.f32 %v510, %v920
      %v922 = vpop.f32.mrb[0].mxu0
      %923 = vmatprep.mubr.f32.mxu0 0.0
      %924 = vmatmul.mubr.f32.gmra.mrb[0].mxu0 %v604
      %v925 = vpop.f32.mrb[0].mxu0
      %v926 = vadd.f32 %v510, %v925
      %v927 = vpop.f32.mrb[0].mxu0
      %928 = vmatprep.mubr.f32.mxu0 0.0
      %929 = vmatmul.mubr.f32.gmra.mrb[0].mxu0 %v607
      %v930 = vpop.f32.mrb[0].mxu0
      %v931 = vadd.f32 %v510, %v930
      %v932 = vpop.f32.mrb[0].mxu0
      %933 = vmatprep.mubr.f32.mxu0 0.0
      %934 = vmatmul.mubr.f32.gmra.mrb[0].mxu0 %v610
      %v935 = vpop.f32.mrb[0].mxu0
      %v936 = vadd.f32 %v510, %v935
      %v937 = vpop.f32.mrb[0].mxu0
      %938 = vmatprep.mubr.f32.mxu0 0.0
      %939 = vmatmul.mubr.f32.gmra.mrb[0].mxu0 %v613
      %v940 = vpop.f32.mrb[0].mxu0
      %v941 = vadd.f32 %v510, %v940
      %v942 = vpop.f32.mrb[0].mxu0
      %943 = vmatprep.mubr.f32.mxu0 0.0
      %944 = vmatmul.mubr.f32.gmra.mrb[0].mxu0 %v616
      %v945 = vpop.f32.mrb[0].mxu0
      %v946 = vadd.f32 %v510, %v945
      %v947 = vpop.f32.mrb[0].mxu0
      %948 = vmatprep.mubr.f32.mxu0 0.0
      %949 = vmatmul.mubr.f32.gmra.mrb[0].mxu0 %v619
      %v950 = vpop.f32.mrb[0].mxu0
      %v951 = vadd.f32 %v510, %v950
      %v952 = vpop.f32.mrb[0].mxu0
      %953 = vmatprep.mubr.f32.mxu0 0.0
      %954 = vmatmul.mubr.f32.gmra.mrb[0].mxu0 %v622
      %v955 = vpop.f32.mrb[0].mxu0
      %v956 = vadd.f32 %v510, %v955
      %v957 = vpop.f32.mrb[0].mxu0
      %958 = vmatprep.mubr.f32.mxu0 0.0
      %959 = vmatmul.mubr.f32.gmra.mrb[0].mxu0 %v625
      %v960 = vpop.f32.mrb[0].mxu0
      %v961 = vadd.f32 %v510, %v960
      %v962 = vpop.f32.mrb[0].mxu0
      %963 = vmatprep.mubr.f32.mxu0 0.0
      %964 = vmatmul.mubr.f32.gmra.mrb[0].mxu0 %v628
      %v965 = vpop.f32.mrb[0].mxu0
      %v966 = vadd.f32 %v510, %v965
      %v967 = vpop.f32.mrb[0].mxu0
      %968 = vmatprep.mubr.f32.mxu0 0.0
      %969 = vmatmul.mubr.f32.gmra.mrb[0].mxu0 %v631
      %v970 = vpop.f32.mrb[0].mxu0
      %v971 = vadd.f32 %v510, %v970
      %v972 = vpop.f32.mrb[0].mxu0
      %973 = vmatprep.mubr.f32.mxu0 0.0
      %974 = vmatmul.mubr.f32.gmra.mrb[0].mxu0 %v634
      %v975 = vpop.f32.mrb[0].mxu0
      %v976 = vadd.f32 %v510, %v975
      %v977 = vpop.f32.mrb[0].mxu0
      %978 = vmatprep.mubr.f32.mxu0 0.0
      %979 = vmatmul.mubr.f32.gmra.mrb[0].mxu0 %v637
      %v980 = vpop.f32.mrb[0].mxu0
      %v981 = vadd.f32 %v510, %v980
      %v982 = vpop.f32.mrb[0].mxu0
      %983 = vmatprep.mubr.f32.mxu0 0.0
      %984 = vmatmul.mubr.f32.gmra.mrb[0].mxu0 %v640
      %v985 = vpop.f32.mrb[0].mxu0
      %v986 = vadd.f32 %v510, %v985
      %v987 = vpop.f32.mrb[0].mxu0
      %988 = vmatprep.mubr.f32.mxu0 0.0
      %989 = vmatmul.mubr.f32.gmra.mrb[0].mxu0 %v643
      %v990 = vpop.f32.mrb[0].mxu0
      %v991 = vadd.f32 %v510, %v990
      %v992 = vpop.f32.mrb[0].mxu0
      %993 = vmatprep.mubr.f32.mxu0 0.0
      %994 = vmatmul.mubr.f32.gmra.mrb[0].mxu0 %v646
      %v995 = vpop.f32.mrb[0].mxu0
      %v996 = vadd.f32 %v510, %v995
      %v997 = vpop.f32.mrb[0].mxu0
      %998 = vmatprep.mubr.f32.mxu0 0.0
      %999 = vmatmul.mubr.f32.gmra.mrb[0].mxu0 %v649
      %v1000 = vpop.f32.mrb[0].mxu0
      %v1001 = vadd.f32 %v510, %v1000
      %v1002 = vpop.f32.mrb[0].mxu0
      %1003 = vmatprep.mubr.f32.mxu0 0.0
      %1004 = vmatmul.mubr.f32.gmra.mrb[0].mxu0 %v652
      %v1005 = vpop.f32.mrb[0].mxu0
      %v1006 = vadd.f32 %v510, %v1005
      %v1007 = vpop.f32.mrb[0].mxu0
      %1008 = vmatprep.mubr.f32.mxu0 0.0
      %1009 = vmatmul.mubr.f32.gmra.mrb[0].mxu0 %v655
      %v1010 = vpop.f32.mrb[0].mxu0
      %v1011 = vadd.f32 %v510, %v1010
      %v1012 = vpop.f32.mrb[0].mxu0
      %1013 = vmatprep.mubr.f32.mxu0 0.0
      %1014 = vmatmul.mubr.f32.gmra.mrb[0].mxu0 %v658
      %v1015 = vpop.f32.mrb[0].mxu0
      %v1016 = vadd.f32 %v510, %v1015
      %v1017 = vpop.f32.mrb[0].mxu0
      %1018 = vmatprep.mubr.f32.mxu0 0.0
      %1019 = vmatmul.mubr.f32.gmra.mrb[0].mxu0 %v661
      %v1020 = vpop.f32.mrb[0].mxu0
      %v1021 = vadd.f32 %v510, %v1020
      %v1022 = vpop.f32.mrb[0].mxu0
      %1023 = vmatprep.mubr.f32.mxu0 0.0
      %1024 = vmatmul.mubr.f32.gmra.mrb[0].mxu0 %v664
      %v1025 = vpop.f32.mrb[0].mxu0
      %v1026 = vadd.f32 %v510, %v1025
      %v1027 = vpop.f32.mrb[0].mxu0
      %1028 = vmatprep.mubr.f32.mxu0 0.0
      %1029 = vmatmul.mubr.f32.gmra.mrb[0].mxu0 %v667
      %v1030 = vpop.f32.mrb[0].mxu0
      %v1031 = vadd.f32 %v510, %v1030
      %v1032 = vpop.f32.mrb[0].mxu0
      %1033 = vmatprep.mubr.f32.mxu0 0.0
      %1034 = vmatmul.mubr.f32.gmra.mrb[0].mxu0 %v670
      %v1035 = vpop.f32.mrb[0].mxu0
      %v1036 = vadd.f32 %v510, %v1035
      %v1037 = vpop.f32.mrb[0].mxu0
      %1038 = vmatprep.mubr.f32.mxu0 0.0
      %1039 = vmatmul.mubr.f32.gmra.mrb[0].mxu0 %v673
      %v1040 = vpop.f32.mrb[0].mxu0
      %v1041 = vadd.f32 %v510, %v1040
      %v1042 = vpop.f32.mrb[0].mxu0
      %1043 = vmatprep.mubr.f32.mxu0 0.0
      %1044 = vmatmul.mubr.f32.gmra.mrb[0].mxu0 %v676
      %v1045 = vpop.f32.mrb[0].mxu0
      %v1046 = vadd.f32 %v510, %v1045
      %v1047 = vpop.f32.mrb[0].mxu0
      %1048 = vmatprep.mubr.f32.mxu0 0.0
      %1049 = vmatmul.mubr.f32.gmra.mrb[0].mxu0 %v679
      %v1050 = vpop.f32.mrb[0].mxu0
      %v1051 = vadd.f32 %v510, %v1050
      %v1052 = vpop.f32.mrb[0].mxu0
      %1053 = vmatprep.mubr.f32.mxu0 0.0
      %1054 = vmatmul.mubr.f32.gmra.mrb[0].mxu0 %v682
      %v1055 = vpop.f32.mrb[0].mxu0
      %v1056 = vadd.f32 %v510, %v1055
      %v1057 = vpop.f32.mrb[0].mxu0
      %1058 = vmatprep.mubr.f32.mxu0 0.0
      %1059 = vmatmul.mubr.f32.gmra.mrb[0].mxu0 %v685
      %v1060 = vpop.f32.mrb[0].mxu0
      %v1061 = vadd.f32 %v510, %v1060
      %v1062 = vpop.f32.mrb[0].mxu0
      %1063 = vmatprep.mubr.f32.mxu0 0.0
      %1064 = vmatmul.mubr.f32.gmra.mrb[0].mxu0 %v688
      %v1065 = vpop.f32.mrb[0].mxu0
      %v1066 = vadd.f32 %v510, %v1065
      %v1067 = vpop.f32.mrb[0].mxu0
      %1068 = vmatprep.mubr.f32.mxu0 0.0
      %1069 = vmatmul.mubr.f32.gmra.mrb[0].mxu0 %v691
      %v1070 = vpop.f32.mrb[0].mxu0
      %v1071 = vadd.f32 %v510, %v1070
      %v1072 = vpop.f32.mrb[0].mxu0
      %1073 = vmatprep.mubr.f32.mxu0 0.0
      %1074 = vmatmul.mubr.f32.gmra.mrb[0].mxu0 %v694
      %v1075 = vpop.f32.mrb[0].mxu0
      %v1076 = vadd.f32 %v510, %v1075
      %v1077 = vpop.f32.mrb[0].mxu0
      %1078 = vmatprep.mubr.f32.mxu0 0.0
      %1079 = vmatmul.mubr.f32.gmra.mrb[0].mxu0 %v697
      %v1080 = vpop.f32.mrb[0].mxu0
      %v1081 = vadd.f32 %v510, %v1080
      %v1082 = vpop.f32.mrb[0].mxu0
      %1083 = vmatprep.mubr.f32.mxu0 0.0
      %1084 = vmatmul.mubr.f32.gmra.mrb[0].mxu0 %v700
      %v1085 = vpop.f32.mrb[0].mxu0
      %v1086 = vadd.f32 %v510, %v1085
      %v1087 = vpop.f32.mrb[0].mxu0
      %1088 = vmatprep.mubr.f32.mxu0 0.0
      %1089 = vmatmul.mubr.f32.gmra.mrb[0].mxu0 %v703
      %v1090 = vpop.f32.mrb[0].mxu0
      %v1091 = vadd.f32 %v510, %v1090
      %v1092 = vpop.f32.mrb[0].mxu0
      %1093 = vdwg.mxu0
      %v1094 = vand.u32 2147483647, %v776
      %vm1095 = vcmp.le.f32.partialorder %v1094, 0.7853982
      %vm1096 = vcmp.lt.s32.totalorder %v776, 0
      %v1097 = vand.u32 %v776, 2139095040
      %v1098 = vshrl.u32 %v1097, 23
      %v1099 = vsub.s32 %v1098, 127
      %v1100 = vand.u32 2147483647, %v776
      %v1101 = vand.u32 %v1100, 8388607
      %v1102 = vor.u32 %v1101, 8388608
      %v1103 = vsub.s32 0, %v1102
      %v1104 = vadd.s32 %v1099, 1
      %vm1105 = vcmp.gt.s32.totalorder %v1104, 0
      %v1106 = vsel %vm1105, %v1104, 0
      %v1107 = vshrl.u32 %v1106, 5
      %v1108 = vand.u32 %v1106, 31
      %v1109 = vsub.s32 32, %v1108
      %v1110 = vshrl.u32 683565275, %v1109
      %v1111 = vshll.u32 683565275, %v1108
      %v1112 = vshrl.u32 2475754826, %v1109
      %v1113 = vor.u32 %v1111, %v1112
      %v1114 = vshll.u32 2475754826, %v1108
      %v1115 = vshrl.u32 2131351028, %v1109
      %v1116 = vor.u32 %v1114, %v1115
      %v1117 = vshll.u32 2131351028, %v1108
      %v1118 = vshrl.u32 2102212464, %v1109
      %v1119 = vor.u32 %v1117, %v1118
      %v1120 = vshll.u32 2102212464, %v1108
      %v1121 = vshrl.u32 920167782, %v1109
      %v1122 = vor.u32 %v1120, %v1121
      %v1123 = vshll.u32 920167782, %v1108
      %v1124 = vshrl.u32 1326507024, %v1109
      %v1125 = vor.u32 %v1123, %v1124
      %vm1126 = vcmp.lt.s32.totalorder %v1107, 1
      %vm1127 = vcmp.lt.s32.totalorder %v1107, 2
      %vm1128 = vcmp.lt.s32.totalorder %v1107, 3
      %vm1129 = vcmp.lt.s32.totalorder %v1107, 4
      %v1130 = vsel %vm1126, %v1110, %v1113
      %v1131 = vsel %vm1129, %v1119, 2102212464
      %v1132 = vsel %vm1128, %v1116, %v1131
      %v1133 = vsel %vm1127, %v1130, %v1132
      %v1134 = vsel %vm1126, %v1113, %v1116
      %v1135 = vsel %vm1129, %v1122, 920167782
      %v1136 = vsel %vm1128, %v1119, %v1135
      %v1137 = vsel %vm1127, %v1134, %v1136
      %v1138 = vsel %vm1126, %v1116, %v1119
      %v1139 = vsel %vm1129, %v1125, 1326507024
      %v1140 = vsel %vm1128, %v1122, %v1139
      %v1141 = vsel %vm1127, %v1138, %v1140
      %v1142 = vshll.u32 %v1102, 8
      %v1143 = vmul.u32.u64.compose %v1142, %v1141
      %v1144 = vextract.low.u32 %v1143
      %v1145 = vextract.high.u32 %v1143
      %v1146 = vmul.u32.u64.compose %v1142, %v1137
      %v1147 = vextract.low.u32 %v1146
      %v1148 = vextract.high.u32 %v1146
      %v1149 = vmul.u32 %v1142, %v1133
      %v1150 = vadd.s32 %v1145, %v1147
      %vm1151 = vc.u32 %v1145, %v1147
      %v1152 = vadd.s32 %v1148, 1
      %v1153 = vsel %vm1151, %v1152, %v1148
      %v1154 = vadd.s32 %v1149, %v1153
      %v1155 = vadd.s32 %v1154, 536870912
      %v1156 = vshrl.u32 %v1155, 30
      %v1157 = vshll.u32 %v1156, 30
      %v1158 = vsub.s32 %v1154, %v1157
      %vm1159 = vcmp.lt.s32.totalorder %v1158, 0
      %v1160 = vsub.s32 0, %v1158
      %v1161 = vsel %vm1159, %v1160, %v1158
      %v1162 = vclz %v1161
      %v1163 = vsub.s32 %v1162, 2
      %vm1164 = vcmp.gt.s32.totalorder 0, %v1163
      %v1165 = vsel %vm1164, 0, %v1163
      %v1166 = vsub.s32 32, %v1165
      %v1167 = vshll.u32 %v1158, %v1165
      %v1168 = vshrl.u32 %v1150, %v1166
      %v1169 = vor.u32 %v1167, %v1168
      %v1170 = vsub.s32 4294967266, %v1165
      %v1171 = vadd.s32 %v1170, 127
      %v1172 = vshll.u32 %v1171, 23
      %v1173 = vor.u32 4788187, %v1172
      %v1174 = vand.u32 2147483647, %v1173
      %v1176 = vcvt.s32.f32 %v1169
      %v1177 = vmul.f32 %v1176, %v1174
      %v1178 = vxor.u32 %v1177, 2147483648
      %v1179 = vsel %vm1096, %v1178, %v1177
      %v1180 = vsub.s32 4, %v1156
      %v1181 = vsel %vm1096, %v1180, %v1156
      %v1182 = vsel %vm1095, %v776, %v1179
      %v1183 = vsel %vm1095, 0, %v1181
      %v1184 = vcosq.f32.pop %v1182
      %v1185 = vsinq.f32.pop %v1182
      %vm1186 = vweird.f32 %v776
      %v1187 = vadd.s32 %v1183, 3
      %v1188 = vand.u32 %v1187, 3
      %vm1189 = vcmp.lt.s32.totalorder %v1188, 2
      %vm1190 = vcmp.eq.s32.totalorder %v1188, 0
      %v1191 = vxor.u32 %v1185, 2147483648
      %v1192 = vsel %vm1190, %v1184, %v1191
      %vm1193 = vcmp.eq.s32.totalorder %v1188, 2
      %v1194 = vxor.u32 %v1184, 2147483648
      %v1195 = vsel %vm1193, %v1194, %v1185
      %v1196 = vsel %vm1189, %v1192, %v1195
      %v1197 = vsel %vm1186, nan, %v1196
      %v1198 = vand.u32 2147483647, %v781
      %vm1199 = vcmp.le.f32.partialorder %v1198, 0.7853982
      %vm1200 = vcmp.lt.s32.totalorder %v781, 0
      %v1201 = vand.u32 %v781, 2139095040
      %v1202 = vshrl.u32 %v1201, 23
      %v1203 = vsub.s32 %v1202, 127
      %v1204 = vand.u32 2147483647, %v781
      %v1205 = vand.u32 %v1204, 8388607
      %v1206 = vor.u32 %v1205, 8388608
      %v1207 = vsub.s32 0, %v1206
      %v1208 = vadd.s32 %v1203, 1
      %vm1209 = vcmp.gt.s32.totalorder %v1208, 0
      %v1210 = vsel %vm1209, %v1208, 0
      %v1211 = vshrl.u32 %v1210, 5
      %v1212 = vand.u32 %v1210, 31
      %v1213 = vsub.s32 32, %v1212
      %v1214 = vshrl.u32 683565275, %v1213
      %v1215 = vshll.u32 683565275, %v1212
      %v1216 = vshrl.u32 2475754826, %v1213
      %v1217 = vor.u32 %v1215, %v1216
      %v1218 = vshll.u32 2475754826, %v1212
      %v1219 = vshrl.u32 2131351028, %v1213
      %v1220 = vor.u32 %v1218, %v1219
      %v1221 = vshll.u32 2131351028, %v1212
      %v1222 = vshrl.u32 2102212464, %v1213
      %v1223 = vor.u32 %v1221, %v1222
      %v1224 = vshll.u32 2102212464, %v1212
      %v1225 = vshrl.u32 920167782, %v1213
      %v1226 = vor.u32 %v1224, %v1225
      %v1227 = vshll.u32 920167782, %v1212
      %v1228 = vshrl.u32 1326507024, %v1213
      %v1229 = vor.u32 %v1227, %v1228
      %vm1230 = vcmp.lt.s32.totalorder %v1211, 1
      %vm1231 = vcmp.lt.s32.totalorder %v1211, 2
      %vm1232 = vcmp.lt.s32.totalorder %v1211, 3
      %vm1233 = vcmp.lt.s32.totalorder %v1211, 4
      %v1234 = vsel %vm1230, %v1214, %v1217
      %v1235 = vsel %vm1233, %v1223, 2102212464
      %v1236 = vsel %vm1232, %v1220, %v1235
      %v1237 = vsel %vm1231, %v1234, %v1236
      %v1238 = vsel %vm1230, %v1217, %v1220
      %v1239 = vsel %vm1233, %v1226, 920167782
      %v1240 = vsel %vm1232, %v1223, %v1239
      %v1241 = vsel %vm1231, %v1238, %v1240
      %v1242 = vsel %vm1230, %v1220, %v1223
      %v1243 = vsel %vm1233, %v1229, 1326507024
      %v1244 = vsel %vm1232, %v1226, %v1243
      %v1245 = vsel %vm1231, %v1242, %v1244
      %v1246 = vshll.u32 %v1206, 8
      %v1247 = vmul.u32.u64.compose %v1246, %v1245
      %v1248 = vextract.low.u32 %v1247
      %v1249 = vextract.high.u32 %v1247
      %v1250 = vmul.u32.u64.compose %v1246, %v1241
      %v1251 = vextract.low.u32 %v1250
      %v1252 = vextract.high.u32 %v1250
      %v1253 = vmul.u32 %v1246, %v1237
      %v1254 = vadd.s32 %v1249, %v1251
      %vm1255 = vc.u32 %v1249, %v1251
      %v1256 = vadd.s32 %v1252, 1
      %v1257 = vsel %vm1255, %v1256, %v1252
      %v1258 = vadd.s32 %v1253, %v1257
      %v1259 = vadd.s32 %v1258, 536870912
      %v1260 = vshrl.u32 %v1259, 30
      %v1261 = vshll.u32 %v1260, 30
      %v1262 = vsub.s32 %v1258, %v1261
      %vm1263 = vcmp.lt.s32.totalorder %v1262, 0
      %v1264 = vsub.s32 0, %v1262
      %v1265 = vsel %vm1263, %v1264, %v1262
      %v1266 = vclz %v1265
      %v1267 = vsub.s32 %v1266, 2
      %vm1268 = vcmp.gt.s32.totalorder 0, %v1267
      %v1269 = vsel %vm1268, 0, %v1267
      %v1270 = vsub.s32 32, %v1269
      %v1271 = vshll.u32 %v1262, %v1269
      %v1272 = vshrl.u32 %v1254, %v1270
      %v1273 = vor.u32 %v1271, %v1272
      %v1274 = vsub.s32 4294967266, %v1269
      %v1275 = vadd.s32 %v1274, 127
      %v1276 = vshll.u32 %v1275, 23
      %v1277 = vor.u32 4788187, %v1276
      %v1278 = vand.u32 2147483647, %v1277
      %v1280 = vcvt.s32.f32 %v1273
      %v1281 = vmul.f32 %v1280, %v1278
      %v1282 = vxor.u32 %v1281, 2147483648
      %v1283 = vsel %vm1200, %v1282, %v1281
      %v1284 = vsub.s32 4, %v1260
      %v1285 = vsel %vm1200, %v1284, %v1260
      %v1286 = vsel %vm1199, %v781, %v1283
      %v1287 = vsel %vm1199, 0, %v1285
      %v1288 = vcosq.f32.pop %v1286
      %v1289 = vsinq.f32.pop %v1286
      %vm1290 = vweird.f32 %v781
      %v1291 = vadd.s32 %v1287, 3
      %v1292 = vand.u32 %v1291, 3
      %vm1293 = vcmp.lt.s32.totalorder %v1292, 2
      %vm1294 = vcmp.eq.s32.totalorder %v1292, 0
      %v1295 = vxor.u32 %v1289, 2147483648
      %v1296 = vsel %vm1294, %v1288, %v1295
      %vm1297 = vcmp.eq.s32.totalorder %v1292, 2
      %v1298 = vxor.u32 %v1288, 2147483648
      %v1299 = vsel %vm1297, %v1298, %v1289
      %v1300 = vsel %vm1293, %v1296, %v1299
      %v1301 = vsel %vm1290, nan, %v1300
      %v1302 = vand.u32 2147483647, %v786
      %vm1303 = vcmp.le.f32.partialorder %v1302, 0.7853982
      %vm1304 = vcmp.lt.s32.totalorder %v786, 0
      %v1305 = vand.u32 %v786, 2139095040
      %v1306 = vshrl.u32 %v1305, 23
      %v1307 = vsub.s32 %v1306, 127
      %v1308 = vand.u32 2147483647, %v786
      %v1309 = vand.u32 %v1308, 8388607
      %v1310 = vor.u32 %v1309, 8388608
      %v1311 = vsub.s32 0, %v1310
      %v1312 = vadd.s32 %v1307, 1
      %vm1313 = vcmp.gt.s32.totalorder %v1312, 0
      %v1314 = vsel %vm1313, %v1312, 0
      %v1315 = vshrl.u32 %v1314, 5
      %v1316 = vand.u32 %v1314, 31
      %v1317 = vsub.s32 32, %v1316
      %v1318 = vshrl.u32 683565275, %v1317
      %v1319 = vshll.u32 683565275, %v1316
      %v1320 = vshrl.u32 2475754826, %v1317
      %v1321 = vor.u32 %v1319, %v1320
      %v1322 = vshll.u32 2475754826, %v1316
      %v1323 = vshrl.u32 2131351028, %v1317
      %v1324 = vor.u32 %v1322, %v1323
      %v1325 = vshll.u32 2131351028, %v1316
      %v1326 = vshrl.u32 2102212464, %v1317
      %v1327 = vor.u32 %v1325, %v1326
      %v1328 = vshll.u32 2102212464, %v1316
      %v1329 = vshrl.u32 920167782, %v1317
      %v1330 = vor.u32 %v1328, %v1329
      %v1331 = vshll.u32 920167782, %v1316
      %v1332 = vshrl.u32 1326507024, %v1317
      %v1333 = vor.u32 %v1331, %v1332
      %vm1334 = vcmp.lt.s32.totalorder %v1315, 1
      %vm1335 = vcmp.lt.s32.totalorder %v1315, 2
      %vm1336 = vcmp.lt.s32.totalorder %v1315, 3
      %vm1337 = vcmp.lt.s32.totalorder %v1315, 4
      %v1338 = vsel %vm1334, %v1318, %v1321
      %v1339 = vsel %vm1337, %v1327, 2102212464
      %v1340 = vsel %vm1336, %v1324, %v1339
      %v1341 = vsel %vm1335, %v1338, %v1340
      %v1342 = vsel %vm1334, %v1321, %v1324
      %v1343 = vsel %vm1337, %v1330, 920167782
      %v1344 = vsel %vm1336, %v1327, %v1343
      %v1345 = vsel %vm1335, %v1342, %v1344
      %v1346 = vsel %vm1334, %v1324, %v1327
      %v1347 = vsel %vm1337, %v1333, 1326507024
      %v1348 = vsel %vm1336, %v1330, %v1347
      %v1349 = vsel %vm1335, %v1346, %v1348
      %v1350 = vshll.u32 %v1310, 8
      %v1351 = vmul.u32.u64.compose %v1350, %v1349
      %v1352 = vextract.low.u32 %v1351
      %v1353 = vextract.high.u32 %v1351
      %v1354 = vmul.u32.u64.compose %v1350, %v1345
      %v1355 = vextract.low.u32 %v1354
      %v1356 = vextract.high.u32 %v1354
      %v1357 = vmul.u32 %v1350, %v1341
      %v1358 = vadd.s32 %v1353, %v1355
      %vm1359 = vc.u32 %v1353, %v1355
      %v1360 = vadd.s32 %v1356, 1
      %v1361 = vsel %vm1359, %v1360, %v1356
      %v1362 = vadd.s32 %v1357, %v1361
      %v1363 = vadd.s32 %v1362, 536870912
      %v1364 = vshrl.u32 %v1363, 30
      %v1365 = vshll.u32 %v1364, 30
      %v1366 = vsub.s32 %v1362, %v1365
      %vm1367 = vcmp.lt.s32.totalorder %v1366, 0
      %v1368 = vsub.s32 0, %v1366
      %v1369 = vsel %vm1367, %v1368, %v1366
      %v1370 = vclz %v1369
      %v1371 = vsub.s32 %v1370, 2
      %vm1372 = vcmp.gt.s32.totalorder 0, %v1371
      %v1373 = vsel %vm1372, 0, %v1371
      %v1374 = vsub.s32 32, %v1373
      %v1375 = vshll.u32 %v1366, %v1373
      %v1376 = vshrl.u32 %v1358, %v1374
      %v1377 = vor.u32 %v1375, %v1376
      %v1378 = vsub.s32 4294967266, %v1373
      %v1379 = vadd.s32 %v1378, 127
      %v1380 = vshll.u32 %v1379, 23
      %v1381 = vor.u32 4788187, %v1380
      %v1382 = vand.u32 2147483647, %v1381
      %v1384 = vcvt.s32.f32 %v1377
      %v1385 = vmul.f32 %v1384, %v1382
      %v1386 = vxor.u32 %v1385, 2147483648
      %v1387 = vsel %vm1304, %v1386, %v1385
      %v1388 = vsub.s32 4, %v1364
      %v1389 = vsel %vm1304, %v1388, %v1364
      %v1390 = vsel %vm1303, %v786, %v1387
      %v1391 = vsel %vm1303, 0, %v1389
      %v1392 = vcosq.f32.pop %v1390
      %v1393 = vsinq.f32.pop %v1390
      %vm1394 = vweird.f32 %v786
      %v1395 = vadd.s32 %v1391, 3
      %v1396 = vand.u32 %v1395, 3
      %vm1397 = vcmp.lt.s32.totalorder %v1396, 2
      %vm1398 = vcmp.eq.s32.totalorder %v1396, 0
      %v1399 = vxor.u32 %v1393, 2147483648
      %v1400 = vsel %vm1398, %v1392, %v1399
      %vm1401 = vcmp.eq.s32.totalorder %v1396, 2
      %v1402 = vxor.u32 %v1392, 2147483648
      %v1403 = vsel %vm1401, %v1402, %v1393
      %v1404 = vsel %vm1397, %v1400, %v1403
      %v1405 = vsel %vm1394, nan, %v1404
      %v1406 = vand.u32 2147483647, %v791
      %vm1407 = vcmp.le.f32.partialorder %v1406, 0.7853982
      %vm1408 = vcmp.lt.s32.totalorder %v791, 0
      %v1409 = vand.u32 %v791, 2139095040
      %v1410 = vshrl.u32 %v1409, 23
      %v1411 = vsub.s32 %v1410, 127
      %v1412 = vand.u32 2147483647, %v791
      %v1413 = vand.u32 %v1412, 8388607
      %v1414 = vor.u32 %v1413, 8388608
      %v1415 = vsub.s32 0, %v1414
      %v1416 = vadd.s32 %v1411, 1
      %vm1417 = vcmp.gt.s32.totalorder %v1416, 0
      %v1418 = vsel %vm1417, %v1416, 0
      %v1419 = vshrl.u32 %v1418, 5
      %v1420 = vand.u32 %v1418, 31
      %v1421 = vsub.s32 32, %v1420
      %v1422 = vshrl.u32 683565275, %v1421
      %v1423 = vshll.u32 683565275, %v1420
      %v1424 = vshrl.u32 2475754826, %v1421
      %v1425 = vor.u32 %v1423, %v1424
      %v1426 = vshll.u32 2475754826, %v1420
      %v1427 = vshrl.u32 2131351028, %v1421
      %v1428 = vor.u32 %v1426, %v1427
      %v1429 = vshll.u32 2131351028, %v1420
      %v1430 = vshrl.u32 2102212464, %v1421
      %v1431 = vor.u32 %v1429, %v1430
      %v1432 = vshll.u32 2102212464, %v1420
      %v1433 = vshrl.u32 920167782, %v1421
      %v1434 = vor.u32 %v1432, %v1433
      %v1435 = vshll.u32 920167782, %v1420
      %v1436 = vshrl.u32 1326507024, %v1421
      %v1437 = vor.u32 %v1435, %v1436
      %vm1438 = vcmp.lt.s32.totalorder %v1419, 1
      %vm1439 = vcmp.lt.s32.totalorder %v1419, 2
      %vm1440 = vcmp.lt.s32.totalorder %v1419, 3
      %vm1441 = vcmp.lt.s32.totalorder %v1419, 4
      %v1442 = vsel %vm1438, %v1422, %v1425
      %v1443 = vsel %vm1441, %v1431, 2102212464
      %v1444 = vsel %vm1440, %v1428, %v1443
      %v1445 = vsel %vm1439, %v1442, %v1444
      %v1446 = vsel %vm1438, %v1425, %v1428
      %v1447 = vsel %vm1441, %v1434, 920167782
      %v1448 = vsel %vm1440, %v1431, %v1447
      %v1449 = vsel %vm1439, %v1446, %v1448
      %v1450 = vsel %vm1438, %v1428, %v1431
      %v1451 = vsel %vm1441, %v1437, 1326507024
      %v1452 = vsel %vm1440, %v1434, %v1451
      %v1453 = vsel %vm1439, %v1450, %v1452
      %v1454 = vshll.u32 %v1414, 8
      %v1455 = vmul.u32.u64.compose %v1454, %v1453
      %v1456 = vextract.low.u32 %v1455
      %v1457 = vextract.high.u32 %v1455
      %v1458 = vmul.u32.u64.compose %v1454, %v1449
      %v1459 = vextract.low.u32 %v1458
      %v1460 = vextract.high.u32 %v1458
      %v1461 = vmul.u32 %v1454, %v1445
      %v1462 = vadd.s32 %v1457, %v1459
      %vm1463 = vc.u32 %v1457, %v1459
      %v1464 = vadd.s32 %v1460, 1
      %v1465 = vsel %vm1463, %v1464, %v1460
      %v1466 = vadd.s32 %v1461, %v1465
      %v1467 = vadd.s32 %v1466, 536870912
      %v1468 = vshrl.u32 %v1467, 30
      %v1469 = vshll.u32 %v1468, 30
      %v1470 = vsub.s32 %v1466, %v1469
      %vm1471 = vcmp.lt.s32.totalorder %v1470, 0
      %v1472 = vsub.s32 0, %v1470
      %v1473 = vsel %vm1471, %v1472, %v1470
      %v1474 = vclz %v1473
      %v1475 = vsub.s32 %v1474, 2
      %vm1476 = vcmp.gt.s32.totalorder 0, %v1475
      %v1477 = vsel %vm1476, 0, %v1475
      %v1478 = vsub.s32 32, %v1477
      %v1479 = vshll.u32 %v1470, %v1477
      %v1480 = vshrl.u32 %v1462, %v1478
      %v1481 = vor.u32 %v1479, %v1480
      %v1482 = vsub.s32 4294967266, %v1477
      %v1483 = vadd.s32 %v1482, 127
      %v1484 = vshll.u32 %v1483, 23
      %v1485 = vor.u32 4788187, %v1484
      %v1486 = vand.u32 2147483647, %v1485
      %v1488 = vcvt.s32.f32 %v1481
      %v1489 = vmul.f32 %v1488, %v1486
      %v1490 = vxor.u32 %v1489, 2147483648
      %v1491 = vsel %vm1408, %v1490, %v1489
      %v1492 = vsub.s32 4, %v1468
      %v1493 = vsel %vm1408, %v1492, %v1468
      %v1494 = vsel %vm1407, %v791, %v1491
      %v1495 = vsel %vm1407, 0, %v1493
      %v1496 = vcosq.f32.pop %v1494
      %v1497 = vsinq.f32.pop %v1494
      %vm1498 = vweird.f32 %v791
      %v1499 = vadd.s32 %v1495, 3
      %v1500 = vand.u32 %v1499, 3
      %vm1501 = vcmp.lt.s32.totalorder %v1500, 2
      %vm1502 = vcmp.eq.s32.totalorder %v1500, 0
      %v1503 = vxor.u32 %v1497, 2147483648
      %v1504 = vsel %vm1502, %v1496, %v1503
      %vm1505 = vcmp.eq.s32.totalorder %v1500, 2
      %v1506 = vxor.u32 %v1496, 2147483648
      %v1507 = vsel %vm1505, %v1506, %v1497
      %v1508 = vsel %vm1501, %v1504, %v1507
      %v1509 = vsel %vm1498, nan, %v1508
      %v1510 = vand.u32 2147483647, %v796
      %vm1511 = vcmp.le.f32.partialorder %v1510, 0.7853982
      %vm1512 = vcmp.lt.s32.totalorder %v796, 0
      %v1513 = vand.u32 %v796, 2139095040
      %v1514 = vshrl.u32 %v1513, 23
      %v1515 = vsub.s32 %v1514, 127
      %v1516 = vand.u32 2147483647, %v796
      %v1517 = vand.u32 %v1516, 8388607
      %v1518 = vor.u32 %v1517, 8388608
      %v1519 = vsub.s32 0, %v1518
      %v1520 = vadd.s32 %v1515, 1
      %vm1521 = vcmp.gt.s32.totalorder %v1520, 0
      %v1522 = vsel %vm1521, %v1520, 0
      %v1523 = vshrl.u32 %v1522, 5
      %v1524 = vand.u32 %v1522, 31
      %v1525 = vsub.s32 32, %v1524
      %v1526 = vshrl.u32 683565275, %v1525
      %v1527 = vshll.u32 683565275, %v1524
      %v1528 = vshrl.u32 2475754826, %v1525
      %v1529 = vor.u32 %v1527, %v1528
      %v1530 = vshll.u32 2475754826, %v1524
      %v1531 = vshrl.u32 2131351028, %v1525
      %v1532 = vor.u32 %v1530, %v1531
      %v1533 = vshll.u32 2131351028, %v1524
      %v1534 = vshrl.u32 2102212464, %v1525
      %v1535 = vor.u32 %v1533, %v1534
      %v1536 = vshll.u32 2102212464, %v1524
      %v1537 = vshrl.u32 920167782, %v1525
      %v1538 = vor.u32 %v1536, %v1537
      %v1539 = vshll.u32 920167782, %v1524
      %v1540 = vshrl.u32 1326507024, %v1525
      %v1541 = vor.u32 %v1539, %v1540
      %vm1542 = vcmp.lt.s32.totalorder %v1523, 1
      %vm1543 = vcmp.lt.s32.totalorder %v1523, 2
      %vm1544 = vcmp.lt.s32.totalorder %v1523, 3
      %vm1545 = vcmp.lt.s32.totalorder %v1523, 4
      %v1546 = vsel %vm1542, %v1526, %v1529
      %v1547 = vsel %vm1545, %v1535, 2102212464
      %v1548 = vsel %vm1544, %v1532, %v1547
      %v1549 = vsel %vm1543, %v1546, %v1548
      %v1550 = vsel %vm1542, %v1529, %v1532
      %v1551 = vsel %vm1545, %v1538, 920167782
      %v1552 = vsel %vm1544, %v1535, %v1551
      %v1553 = vsel %vm1543, %v1550, %v1552
      %v1554 = vsel %vm1542, %v1532, %v1535
      %v1555 = vsel %vm1545, %v1541, 1326507024
      %v1556 = vsel %vm1544, %v1538, %v1555
      %v1557 = vsel %vm1543, %v1554, %v1556
      %v1558 = vshll.u32 %v1518, 8
      %v1559 = vmul.u32.u64.compose %v1558, %v1557
      %v1560 = vextract.low.u32 %v1559
      %v1561 = vextract.high.u32 %v1559
      %v1562 = vmul.u32.u64.compose %v1558, %v1553
      %v1563 = vextract.low.u32 %v1562
      %v1564 = vextract.high.u32 %v1562
      %v1565 = vmul.u32 %v1558, %v1549
      %v1566 = vadd.s32 %v1561, %v1563
      %vm1567 = vc.u32 %v1561, %v1563
      %v1568 = vadd.s32 %v1564, 1
      %v1569 = vsel %vm1567, %v1568, %v1564
      %v1570 = vadd.s32 %v1565, %v1569
      %v1571 = vadd.s32 %v1570, 536870912
      %v1572 = vshrl.u32 %v1571, 30
      %v1573 = vshll.u32 %v1572, 30
      %v1574 = vsub.s32 %v1570, %v1573
      %vm1575 = vcmp.lt.s32.totalorder %v1574, 0
      %v1576 = vsub.s32 0, %v1574
      %v1577 = vsel %vm1575, %v1576, %v1574
      %v1578 = vclz %v1577
      %v1579 = vsub.s32 %v1578, 2
      %vm1580 = vcmp.gt.s32.totalorder 0, %v1579
      %v1581 = vsel %vm1580, 0, %v1579
      %v1582 = vsub.s32 32, %v1581
      %v1583 = vshll.u32 %v1574, %v1581
      %v1584 = vshrl.u32 %v1566, %v1582
      %v1585 = vor.u32 %v1583, %v1584
      %v1586 = vsub.s32 4294967266, %v1581
      %v1587 = vadd.s32 %v1586, 127
      %v1588 = vshll.u32 %v1587, 23
      %v1589 = vor.u32 4788187, %v1588
      %v1590 = vand.u32 2147483647, %v1589
      %v1592 = vcvt.s32.f32 %v1585
      %v1593 = vmul.f32 %v1592, %v1590
      %v1594 = vxor.u32 %v1593, 2147483648
      %v1595 = vsel %vm1512, %v1594, %v1593
      %v1596 = vsub.s32 4, %v1572
      %v1597 = vsel %vm1512, %v1596, %v1572
      %v1598 = vsel %vm1511, %v796, %v1595
      %v1599 = vsel %vm1511, 0, %v1597
      %v1600 = vcosq.f32.pop %v1598
      %v1601 = vsinq.f32.pop %v1598
      %vm1602 = vweird.f32 %v796
      %v1603 = vadd.s32 %v1599, 3
      %v1604 = vand.u32 %v1603, 3
      %vm1605 = vcmp.lt.s32.totalorder %v1604, 2
      %vm1606 = vcmp.eq.s32.totalorder %v1604, 0
      %v1607 = vxor.u32 %v1601, 2147483648
      %v1608 = vsel %vm1606, %v1600, %v1607
      %vm1609 = vcmp.eq.s32.totalorder %v1604, 2
      %v1610 = vxor.u32 %v1600, 2147483648
      %v1611 = vsel %vm1609, %v1610, %v1601
      %v1612 = vsel %vm1605, %v1608, %v1611
      %v1613 = vsel %vm1602, nan, %v1612
      %v1614 = vand.u32 2147483647, %v801
      %vm1615 = vcmp.le.f32.partialorder %v1614, 0.7853982
      %vm1616 = vcmp.lt.s32.totalorder %v801, 0
      %v1617 = vand.u32 %v801, 2139095040
      %v1618 = vshrl.u32 %v1617, 23
      %v1619 = vsub.s32 %v1618, 127
      %v1620 = vand.u32 2147483647, %v801
      %v1621 = vand.u32 %v1620, 8388607
      %v1622 = vor.u32 %v1621, 8388608
      %v1623 = vsub.s32 0, %v1622
      %v1624 = vadd.s32 %v1619, 1
      %vm1625 = vcmp.gt.s32.totalorder %v1624, 0
      %v1626 = vsel %vm1625, %v1624, 0
      %v1627 = vshrl.u32 %v1626, 5
      %v1628 = vand.u32 %v1626, 31
      %v1629 = vsub.s32 32, %v1628
      %v1630 = vshrl.u32 683565275, %v1629
      %v1631 = vshll.u32 683565275, %v1628
      %v1632 = vshrl.u32 2475754826, %v1629
      %v1633 = vor.u32 %v1631, %v1632
      %v1634 = vshll.u32 2475754826, %v1628
      %v1635 = vshrl.u32 2131351028, %v1629
      %v1636 = vor.u32 %v1634, %v1635
      %v1637 = vshll.u32 2131351028, %v1628
      %v1638 = vshrl.u32 2102212464, %v1629
      %v1639 = vor.u32 %v1637, %v1638
      %v1640 = vshll.u32 2102212464, %v1628
      %v1641 = vshrl.u32 920167782, %v1629
      %v1642 = vor.u32 %v1640, %v1641
      %v1643 = vshll.u32 920167782, %v1628
      %v1644 = vshrl.u32 1326507024, %v1629
      %v1645 = vor.u32 %v1643, %v1644
      %vm1646 = vcmp.lt.s32.totalorder %v1627, 1
      %vm1647 = vcmp.lt.s32.totalorder %v1627, 2
      %vm1648 = vcmp.lt.s32.totalorder %v1627, 3
      %vm1649 = vcmp.lt.s32.totalorder %v1627, 4
      %v1650 = vsel %vm1646, %v1630, %v1633
      %v1651 = vsel %vm1649, %v1639, 2102212464
      %v1652 = vsel %vm1648, %v1636, %v1651
      %v1653 = vsel %vm1647, %v1650, %v1652
      %v1654 = vsel %vm1646, %v1633, %v1636
      %v1655 = vsel %vm1649, %v1642, 920167782
      %v1656 = vsel %vm1648, %v1639, %v1655
      %v1657 = vsel %vm1647, %v1654, %v1656
      %v1658 = vsel %vm1646, %v1636, %v1639
      %v1659 = vsel %vm1649, %v1645, 1326507024
      %v1660 = vsel %vm1648, %v1642, %v1659
      %v1661 = vsel %vm1647, %v1658, %v1660
      %v1662 = vshll.u32 %v1622, 8
      %v1663 = vmul.u32.u64.compose %v1662, %v1661
      %v1664 = vextract.low.u32 %v1663
      %v1665 = vextract.high.u32 %v1663
      %v1666 = vmul.u32.u64.compose %v1662, %v1657
      %v1667 = vextract.low.u32 %v1666
      %v1668 = vextract.high.u32 %v1666
      %v1669 = vmul.u32 %v1662, %v1653
      %v1670 = vadd.s32 %v1665, %v1667
      %vm1671 = vc.u32 %v1665, %v1667
      %v1672 = vadd.s32 %v1668, 1
      %v1673 = vsel %vm1671, %v1672, %v1668
      %v1674 = vadd.s32 %v1669, %v1673
      %v1675 = vadd.s32 %v1674, 536870912
      %v1676 = vshrl.u32 %v1675, 30
      %v1677 = vshll.u32 %v1676, 30
      %v1678 = vsub.s32 %v1674, %v1677
      %vm1679 = vcmp.lt.s32.totalorder %v1678, 0
      %v1680 = vsub.s32 0, %v1678
      %v1681 = vsel %vm1679, %v1680, %v1678
      %v1682 = vclz %v1681
      %v1683 = vsub.s32 %v1682, 2
      %vm1684 = vcmp.gt.s32.totalorder 0, %v1683
      %v1685 = vsel %vm1684, 0, %v1683
      %v1686 = vsub.s32 32, %v1685
      %v1687 = vshll.u32 %v1678, %v1685
      %v1688 = vshrl.u32 %v1670, %v1686
      %v1689 = vor.u32 %v1687, %v1688
      %v1690 = vsub.s32 4294967266, %v1685
      %v1691 = vadd.s32 %v1690, 127
      %v1692 = vshll.u32 %v1691, 23
      %v1693 = vor.u32 4788187, %v1692
      %v1694 = vand.u32 2147483647, %v1693
      %v1696 = vcvt.s32.f32 %v1689
      %v1697 = vmul.f32 %v1696, %v1694
      %v1698 = vxor.u32 %v1697, 2147483648
      %v1699 = vsel %vm1616, %v1698, %v1697
      %v1700 = vsub.s32 4, %v1676
      %v1701 = vsel %vm1616, %v1700, %v1676
      %v1702 = vsel %vm1615, %v801, %v1699
      %v1703 = vsel %vm1615, 0, %v1701
      %v1704 = vcosq.f32.pop %v1702
      %v1705 = vsinq.f32.pop %v1702
      %vm1706 = vweird.f32 %v801
      %v1707 = vadd.s32 %v1703, 3
      %v1708 = vand.u32 %v1707, 3
      %vm1709 = vcmp.lt.s32.totalorder %v1708, 2
      %vm1710 = vcmp.eq.s32.totalorder %v1708, 0
      %v1711 = vxor.u32 %v1705, 2147483648
      %v1712 = vsel %vm1710, %v1704, %v1711
      %vm1713 = vcmp.eq.s32.totalorder %v1708, 2
      %v1714 = vxor.u32 %v1704, 2147483648
      %v1715 = vsel %vm1713, %v1714, %v1705
      %v1716 = vsel %vm1709, %v1712, %v1715
      %v1717 = vsel %vm1706, nan, %v1716
      %v1718 = vand.u32 2147483647, %v806
      %vm1719 = vcmp.le.f32.partialorder %v1718, 0.7853982
      %vm1720 = vcmp.lt.s32.totalorder %v806, 0
      %v1721 = vand.u32 %v806, 2139095040
      %v1722 = vshrl.u32 %v1721, 23
      %v1723 = vsub.s32 %v1722, 127
      %v1724 = vand.u32 2147483647, %v806
      %v1725 = vand.u32 %v1724, 8388607
      %v1726 = vor.u32 %v1725, 8388608
      %v1727 = vsub.s32 0, %v1726
      %v1728 = vadd.s32 %v1723, 1
      %vm1729 = vcmp.gt.s32.totalorder %v1728, 0
      %v1730 = vsel %vm1729, %v1728, 0
      %v1731 = vshrl.u32 %v1730, 5
      %v1732 = vand.u32 %v1730, 31
      %v1733 = vsub.s32 32, %v1732
      %v1734 = vshrl.u32 683565275, %v1733
      %v1735 = vshll.u32 683565275, %v1732
      %v1736 = vshrl.u32 2475754826, %v1733
      %v1737 = vor.u32 %v1735, %v1736
      %v1738 = vshll.u32 2475754826, %v1732
      %v1739 = vshrl.u32 2131351028, %v1733
      %v1740 = vor.u32 %v1738, %v1739
      %v1741 = vshll.u32 2131351028, %v1732
      %v1742 = vshrl.u32 2102212464, %v1733
      %v1743 = vor.u32 %v1741, %v1742
      %v1744 = vshll.u32 2102212464, %v1732
      %v1745 = vshrl.u32 920167782, %v1733
      %v1746 = vor.u32 %v1744, %v1745
      %v1747 = vshll.u32 920167782, %v1732
      %v1748 = vshrl.u32 1326507024, %v1733
      %v1749 = vor.u32 %v1747, %v1748
      %vm1750 = vcmp.lt.s32.totalorder %v1731, 1
      %vm1751 = vcmp.lt.s32.totalorder %v1731, 2
      %vm1752 = vcmp.lt.s32.totalorder %v1731, 3
      %vm1753 = vcmp.lt.s32.totalorder %v1731, 4
      %v1754 = vsel %vm1750, %v1734, %v1737
      %v1755 = vsel %vm1753, %v1743, 2102212464
      %v1756 = vsel %vm1752, %v1740, %v1755
      %v1757 = vsel %vm1751, %v1754, %v1756
      %v1758 = vsel %vm1750, %v1737, %v1740
      %v1759 = vsel %vm1753, %v1746, 920167782
      %v1760 = vsel %vm1752, %v1743, %v1759
      %v1761 = vsel %vm1751, %v1758, %v1760
      %v1762 = vsel %vm1750, %v1740, %v1743
      %v1763 = vsel %vm1753, %v1749, 1326507024
      %v1764 = vsel %vm1752, %v1746, %v1763
      %v1765 = vsel %vm1751, %v1762, %v1764
      %v1766 = vshll.u32 %v1726, 8
      %v1767 = vmul.u32.u64.compose %v1766, %v1765
      %v1768 = vextract.low.u32 %v1767
      %v1769 = vextract.high.u32 %v1767
      %v1770 = vmul.u32.u64.compose %v1766, %v1761
      %v1771 = vextract.low.u32 %v1770
      %v1772 = vextract.high.u32 %v1770
      %v1773 = vmul.u32 %v1766, %v1757
      %v1774 = vadd.s32 %v1769, %v1771
      %vm1775 = vc.u32 %v1769, %v1771
      %v1776 = vadd.s32 %v1772, 1
      %v1777 = vsel %vm1775, %v1776, %v1772
      %v1778 = vadd.s32 %v1773, %v1777
      %v1779 = vadd.s32 %v1778, 536870912
      %v1780 = vshrl.u32 %v1779, 30
      %v1781 = vshll.u32 %v1780, 30
      %v1782 = vsub.s32 %v1778, %v1781
      %vm1783 = vcmp.lt.s32.totalorder %v1782, 0
      %v1784 = vsub.s32 0, %v1782
      %v1785 = vsel %vm1783, %v1784, %v1782
      %v1786 = vclz %v1785
      %v1787 = vsub.s32 %v1786, 2
      %vm1788 = vcmp.gt.s32.totalorder 0, %v1787
      %v1789 = vsel %vm1788, 0, %v1787
      %v1790 = vsub.s32 32, %v1789
      %v1791 = vshll.u32 %v1782, %v1789
      %v1792 = vshrl.u32 %v1774, %v1790
      %v1793 = vor.u32 %v1791, %v1792
      %v1794 = vsub.s32 4294967266, %v1789
      %v1795 = vadd.s32 %v1794, 127
      %v1796 = vshll.u32 %v1795, 23
      %v1797 = vor.u32 4788187, %v1796
      %v1798 = vand.u32 2147483647, %v1797
      %v1800 = vcvt.s32.f32 %v1793
      %v1801 = vmul.f32 %v1800, %v1798
      %v1802 = vxor.u32 %v1801, 2147483648
      %v1803 = vsel %vm1720, %v1802, %v1801
      %v1804 = vsub.s32 4, %v1780
      %v1805 = vsel %vm1720, %v1804, %v1780
      %v1806 = vsel %vm1719, %v806, %v1803
      %v1807 = vsel %vm1719, 0, %v1805
      %v1808 = vcosq.f32.pop %v1806
      %v1809 = vsinq.f32.pop %v1806
      %vm1810 = vweird.f32 %v806
      %v1811 = vadd.s32 %v1807, 3
      %v1812 = vand.u32 %v1811, 3
      %vm1813 = vcmp.lt.s32.totalorder %v1812, 2
      %vm1814 = vcmp.eq.s32.totalorder %v1812, 0
      %v1815 = vxor.u32 %v1809, 2147483648
      %v1816 = vsel %vm1814, %v1808, %v1815
      %vm1817 = vcmp.eq.s32.totalorder %v1812, 2
      %v1818 = vxor.u32 %v1808, 2147483648
      %v1819 = vsel %vm1817, %v1818, %v1809
      %v1820 = vsel %vm1813, %v1816, %v1819
      %v1821 = vsel %vm1810, nan, %v1820
      %v1822 = vand.u32 2147483647, %v811
      %vm1823 = vcmp.le.f32.partialorder %v1822, 0.7853982
      %vm1824 = vcmp.lt.s32.totalorder %v811, 0
      %v1825 = vand.u32 %v811, 2139095040
      %v1826 = vshrl.u32 %v1825, 23
      %v1827 = vsub.s32 %v1826, 127
      %v1828 = vand.u32 2147483647, %v811
      %v1829 = vand.u32 %v1828, 8388607
      %v1830 = vor.u32 %v1829, 8388608
      %v1831 = vsub.s32 0, %v1830
      %v1832 = vadd.s32 %v1827, 1
      %vm1833 = vcmp.gt.s32.totalorder %v1832, 0
      %v1834 = vsel %vm1833, %v1832, 0
      %v1835 = vshrl.u32 %v1834, 5
      %v1836 = vand.u32 %v1834, 31
      %v1837 = vsub.s32 32, %v1836
      %v1838 = vshrl.u32 683565275, %v1837
      %v1839 = vshll.u32 683565275, %v1836
      %v1840 = vshrl.u32 2475754826, %v1837
      %v1841 = vor.u32 %v1839, %v1840
      %v1842 = vshll.u32 2475754826, %v1836
      %v1843 = vshrl.u32 2131351028, %v1837
      %v1844 = vor.u32 %v1842, %v1843
      %v1845 = vshll.u32 2131351028, %v1836
      %v1846 = vshrl.u32 2102212464, %v1837
      %v1847 = vor.u32 %v1845, %v1846
      %v1848 = vshll.u32 2102212464, %v1836
      %v1849 = vshrl.u32 920167782, %v1837
      %v1850 = vor.u32 %v1848, %v1849
      %v1851 = vshll.u32 920167782, %v1836
      %v1852 = vshrl.u32 1326507024, %v1837
      %v1853 = vor.u32 %v1851, %v1852
      %vm1854 = vcmp.lt.s32.totalorder %v1835, 1
      %vm1855 = vcmp.lt.s32.totalorder %v1835, 2
      %vm1856 = vcmp.lt.s32.totalorder %v1835, 3
      %vm1857 = vcmp.lt.s32.totalorder %v1835, 4
      %v1858 = vsel %vm1854, %v1838, %v1841
      %v1859 = vsel %vm1857, %v1847, 2102212464
      %v1860 = vsel %vm1856, %v1844, %v1859
      %v1861 = vsel %vm1855, %v1858, %v1860
      %v1862 = vsel %vm1854, %v1841, %v1844
      %v1863 = vsel %vm1857, %v1850, 920167782
      %v1864 = vsel %vm1856, %v1847, %v1863
      %v1865 = vsel %vm1855, %v1862, %v1864
      %v1866 = vsel %vm1854, %v1844, %v1847
      %v1867 = vsel %vm1857, %v1853, 1326507024
      %v1868 = vsel %vm1856, %v1850, %v1867
      %v1869 = vsel %vm1855, %v1866, %v1868
      %v1870 = vshll.u32 %v1830, 8
      %v1871 = vmul.u32.u64.compose %v1870, %v1869
      %v1872 = vextract.low.u32 %v1871
      %v1873 = vextract.high.u32 %v1871
      %v1874 = vmul.u32.u64.compose %v1870, %v1865
      %v1875 = vextract.low.u32 %v1874
      %v1876 = vextract.high.u32 %v1874
      %v1877 = vmul.u32 %v1870, %v1861
      %v1878 = vadd.s32 %v1873, %v1875
      %vm1879 = vc.u32 %v1873, %v1875
      %v1880 = vadd.s32 %v1876, 1
      %v1881 = vsel %vm1879, %v1880, %v1876
      %v1882 = vadd.s32 %v1877, %v1881
      %v1883 = vadd.s32 %v1882, 536870912
      %v1884 = vshrl.u32 %v1883, 30
      %v1885 = vshll.u32 %v1884, 30
      %v1886 = vsub.s32 %v1882, %v1885
      %vm1887 = vcmp.lt.s32.totalorder %v1886, 0
      %v1888 = vsub.s32 0, %v1886
      %v1889 = vsel %vm1887, %v1888, %v1886
      %v1890 = vclz %v1889
      %v1891 = vsub.s32 %v1890, 2
      %vm1892 = vcmp.gt.s32.totalorder 0, %v1891
      %v1893 = vsel %vm1892, 0, %v1891
      %v1894 = vsub.s32 32, %v1893
      %v1895 = vshll.u32 %v1886, %v1893
      %v1896 = vshrl.u32 %v1878, %v1894
      %v1897 = vor.u32 %v1895, %v1896
      %v1898 = vsub.s32 4294967266, %v1893
      %v1899 = vadd.s32 %v1898, 127
      %v1900 = vshll.u32 %v1899, 23
      %v1901 = vor.u32 4788187, %v1900
      %v1902 = vand.u32 2147483647, %v1901
      %v1904 = vcvt.s32.f32 %v1897
      %v1905 = vmul.f32 %v1904, %v1902
      %v1906 = vxor.u32 %v1905, 2147483648
      %v1907 = vsel %vm1824, %v1906, %v1905
      %v1908 = vsub.s32 4, %v1884
      %v1909 = vsel %vm1824, %v1908, %v1884
      %v1910 = vsel %vm1823, %v811, %v1907
      %v1911 = vsel %vm1823, 0, %v1909
      %v1912 = vcosq.f32.pop %v1910
      %v1913 = vsinq.f32.pop %v1910
      %vm1914 = vweird.f32 %v811
      %v1915 = vadd.s32 %v1911, 3
      %v1916 = vand.u32 %v1915, 3
      %vm1917 = vcmp.lt.s32.totalorder %v1916, 2
      %vm1918 = vcmp.eq.s32.totalorder %v1916, 0
      %v1919 = vxor.u32 %v1913, 2147483648
      %v1920 = vsel %vm1918, %v1912, %v1919
      %vm1921 = vcmp.eq.s32.totalorder %v1916, 2
      %v1922 = vxor.u32 %v1912, 2147483648
      %v1923 = vsel %vm1921, %v1922, %v1913
      %v1924 = vsel %vm1917, %v1920, %v1923
      %v1925 = vsel %vm1914, nan, %v1924
      %v1926 = vand.u32 2147483647, %v816
      %vm1927 = vcmp.le.f32.partialorder %v1926, 0.7853982
      %vm1928 = vcmp.lt.s32.totalorder %v816, 0
      %v1929 = vand.u32 %v816, 2139095040
      %v1930 = vshrl.u32 %v1929, 23
      %v1931 = vsub.s32 %v1930, 127
      %v1932 = vand.u32 2147483647, %v816
      %v1933 = vand.u32 %v1932, 8388607
      %v1934 = vor.u32 %v1933, 8388608
      %v1935 = vsub.s32 0, %v1934
      %v1936 = vadd.s32 %v1931, 1
      %vm1937 = vcmp.gt.s32.totalorder %v1936, 0
      %v1938 = vsel %vm1937, %v1936, 0
      %v1939 = vshrl.u32 %v1938, 5
      %v1940 = vand.u32 %v1938, 31
      %v1941 = vsub.s32 32, %v1940
      %v1942 = vshrl.u32 683565275, %v1941
      %v1943 = vshll.u32 683565275, %v1940
      %v1944 = vshrl.u32 2475754826, %v1941
      %v1945 = vor.u32 %v1943, %v1944
      %v1946 = vshll.u32 2475754826, %v1940
      %v1947 = vshrl.u32 2131351028, %v1941
      %v1948 = vor.u32 %v1946, %v1947
      %v1949 = vshll.u32 2131351028, %v1940
      %v1950 = vshrl.u32 2102212464, %v1941
      %v1951 = vor.u32 %v1949, %v1950
      %v1952 = vshll.u32 2102212464, %v1940
      %v1953 = vshrl.u32 920167782, %v1941
      %v1954 = vor.u32 %v1952, %v1953
      %v1955 = vshll.u32 920167782, %v1940
      %v1956 = vshrl.u32 1326507024, %v1941
      %v1957 = vor.u32 %v1955, %v1956
      %vm1958 = vcmp.lt.s32.totalorder %v1939, 1
      %vm1959 = vcmp.lt.s32.totalorder %v1939, 2
      %vm1960 = vcmp.lt.s32.totalorder %v1939, 3
      %vm1961 = vcmp.lt.s32.totalorder %v1939, 4
      %v1962 = vsel %vm1958, %v1942, %v1945
      %v1963 = vsel %vm1961, %v1951, 2102212464
      %v1964 = vsel %vm1960, %v1948, %v1963
      %v1965 = vsel %vm1959, %v1962, %v1964
      %v1966 = vsel %vm1958, %v1945, %v1948
      %v1967 = vsel %vm1961, %v1954, 920167782
      %v1968 = vsel %vm1960, %v1951, %v1967
      %v1969 = vsel %vm1959, %v1966, %v1968
      %v1970 = vsel %vm1958, %v1948, %v1951
      %v1971 = vsel %vm1961, %v1957, 1326507024
      %v1972 = vsel %vm1960, %v1954, %v1971
      %v1973 = vsel %vm1959, %v1970, %v1972
      %v1974 = vshll.u32 %v1934, 8
      %v1975 = vmul.u32.u64.compose %v1974, %v1973
      %v1976 = vextract.low.u32 %v1975
      %v1977 = vextract.high.u32 %v1975
      %v1978 = vmul.u32.u64.compose %v1974, %v1969
      %v1979 = vextract.low.u32 %v1978
      %v1980 = vextract.high.u32 %v1978
      %v1981 = vmul.u32 %v1974, %v1965
      %v1982 = vadd.s32 %v1977, %v1979
      %vm1983 = vc.u32 %v1977, %v1979
      %v1984 = vadd.s32 %v1980, 1
      %v1985 = vsel %vm1983, %v1984, %v1980
      %v1986 = vadd.s32 %v1981, %v1985
      %v1987 = vadd.s32 %v1986, 536870912
      %v1988 = vshrl.u32 %v1987, 30
      %v1989 = vshll.u32 %v1988, 30
      %v1990 = vsub.s32 %v1986, %v1989
      %vm1991 = vcmp.lt.s32.totalorder %v1990, 0
      %v1992 = vsub.s32 0, %v1990
      %v1993 = vsel %vm1991, %v1992, %v1990
      %v1994 = vclz %v1993
      %v1995 = vsub.s32 %v1994, 2
      %vm1996 = vcmp.gt.s32.totalorder 0, %v1995
      %v1997 = vsel %vm1996, 0, %v1995
      %v1998 = vsub.s32 32, %v1997
      %v1999 = vshll.u32 %v1990, %v1997
      %v2000 = vshrl.u32 %v1982, %v1998
      %v2001 = vor.u32 %v1999, %v2000
      %v2002 = vsub.s32 4294967266, %v1997
      %v2003 = vadd.s32 %v2002, 127
      %v2004 = vshll.u32 %v2003, 23
      %v2005 = vor.u32 4788187, %v2004
      %v2006 = vand.u32 2147483647, %v2005
      %v2008 = vcvt.s32.f32 %v2001
      %v2009 = vmul.f32 %v2008, %v2006
      %v2010 = vxor.u32 %v2009, 2147483648
      %v2011 = vsel %vm1928, %v2010, %v2009
      %v2012 = vsub.s32 4, %v1988
      %v2013 = vsel %vm1928, %v2012, %v1988
      %v2014 = vsel %vm1927, %v816, %v2011
      %v2015 = vsel %vm1927, 0, %v2013
      %v2016 = vcosq.f32.pop %v2014
      %v2017 = vsinq.f32.pop %v2014
      %vm2018 = vweird.f32 %v816
      %v2019 = vadd.s32 %v2015, 3
      %v2020 = vand.u32 %v2019, 3
      %vm2021 = vcmp.lt.s32.totalorder %v2020, 2
      %vm2022 = vcmp.eq.s32.totalorder %v2020, 0
      %v2023 = vxor.u32 %v2017, 2147483648
      %v2024 = vsel %vm2022, %v2016, %v2023
      %vm2025 = vcmp.eq.s32.totalorder %v2020, 2
      %v2026 = vxor.u32 %v2016, 2147483648
      %v2027 = vsel %vm2025, %v2026, %v2017
      %v2028 = vsel %vm2021, %v2024, %v2027
      %v2029 = vsel %vm2018, nan, %v2028
      %v2030 = vand.u32 2147483647, %v821
      %vm2031 = vcmp.le.f32.partialorder %v2030, 0.7853982
      %vm2032 = vcmp.lt.s32.totalorder %v821, 0
      %v2033 = vand.u32 %v821, 2139095040
      %v2034 = vshrl.u32 %v2033, 23
      %v2035 = vsub.s32 %v2034, 127
      %v2036 = vand.u32 2147483647, %v821
      %v2037 = vand.u32 %v2036, 8388607
      %v2038 = vor.u32 %v2037, 8388608
      %v2039 = vsub.s32 0, %v2038
      %v2040 = vadd.s32 %v2035, 1
      %vm2041 = vcmp.gt.s32.totalorder %v2040, 0
      %v2042 = vsel %vm2041, %v2040, 0
      %v2043 = vshrl.u32 %v2042, 5
      %v2044 = vand.u32 %v2042, 31
      %v2045 = vsub.s32 32, %v2044
      %v2046 = vshrl.u32 683565275, %v2045
      %v2047 = vshll.u32 683565275, %v2044
      %v2048 = vshrl.u32 2475754826, %v2045
      %v2049 = vor.u32 %v2047, %v2048
      %v2050 = vshll.u32 2475754826, %v2044
      %v2051 = vshrl.u32 2131351028, %v2045
      %v2052 = vor.u32 %v2050, %v2051
      %v2053 = vshll.u32 2131351028, %v2044
      %v2054 = vshrl.u32 2102212464, %v2045
      %v2055 = vor.u32 %v2053, %v2054
      %v2056 = vshll.u32 2102212464, %v2044
      %v2057 = vshrl.u32 920167782, %v2045
      %v2058 = vor.u32 %v2056, %v2057
      %v2059 = vshll.u32 920167782, %v2044
      %v2060 = vshrl.u32 1326507024, %v2045
      %v2061 = vor.u32 %v2059, %v2060
      %vm2062 = vcmp.lt.s32.totalorder %v2043, 1
      %vm2063 = vcmp.lt.s32.totalorder %v2043, 2
      %vm2064 = vcmp.lt.s32.totalorder %v2043, 3
      %vm2065 = vcmp.lt.s32.totalorder %v2043, 4
      %v2066 = vsel %vm2062, %v2046, %v2049
      %v2067 = vsel %vm2065, %v2055, 2102212464
      %v2068 = vsel %vm2064, %v2052, %v2067
      %v2069 = vsel %vm2063, %v2066, %v2068
      %v2070 = vsel %vm2062, %v2049, %v2052
      %v2071 = vsel %vm2065, %v2058, 920167782
      %v2072 = vsel %vm2064, %v2055, %v2071
      %v2073 = vsel %vm2063, %v2070, %v2072
      %v2074 = vsel %vm2062, %v2052, %v2055
      %v2075 = vsel %vm2065, %v2061, 1326507024
      %v2076 = vsel %vm2064, %v2058, %v2075
      %v2077 = vsel %vm2063, %v2074, %v2076
      %v2078 = vshll.u32 %v2038, 8
      %v2079 = vmul.u32.u64.compose %v2078, %v2077
      %v2080 = vextract.low.u32 %v2079
      %v2081 = vextract.high.u32 %v2079
      %v2082 = vmul.u32.u64.compose %v2078, %v2073
      %v2083 = vextract.low.u32 %v2082
      %v2084 = vextract.high.u32 %v2082
      %v2085 = vmul.u32 %v2078, %v2069
      %v2086 = vadd.s32 %v2081, %v2083
      %vm2087 = vc.u32 %v2081, %v2083
      %v2088 = vadd.s32 %v2084, 1
      %v2089 = vsel %vm2087, %v2088, %v2084
      %v2090 = vadd.s32 %v2085, %v2089
      %v2091 = vadd.s32 %v2090, 536870912
      %v2092 = vshrl.u32 %v2091, 30
      %v2093 = vshll.u32 %v2092, 30
      %v2094 = vsub.s32 %v2090, %v2093
      %vm2095 = vcmp.lt.s32.totalorder %v2094, 0
      %v2096 = vsub.s32 0, %v2094
      %v2097 = vsel %vm2095, %v2096, %v2094
      %v2098 = vclz %v2097
      %v2099 = vsub.s32 %v2098, 2
      %vm2100 = vcmp.gt.s32.totalorder 0, %v2099
      %v2101 = vsel %vm2100, 0, %v2099
      %v2102 = vsub.s32 32, %v2101
      %v2103 = vshll.u32 %v2094, %v2101
      %v2104 = vshrl.u32 %v2086, %v2102
      %v2105 = vor.u32 %v2103, %v2104
      %v2106 = vsub.s32 4294967266, %v2101
      %v2107 = vadd.s32 %v2106, 127
      %v2108 = vshll.u32 %v2107, 23
      %v2109 = vor.u32 4788187, %v2108
      %v2110 = vand.u32 2147483647, %v2109
      %v2112 = vcvt.s32.f32 %v2105
      %v2113 = vmul.f32 %v2112, %v2110
      %v2114 = vxor.u32 %v2113, 2147483648
      %v2115 = vsel %vm2032, %v2114, %v2113
      %v2116 = vsub.s32 4, %v2092
      %v2117 = vsel %vm2032, %v2116, %v2092
      %v2118 = vsel %vm2031, %v821, %v2115
      %v2119 = vsel %vm2031, 0, %v2117
      %v2120 = vcosq.f32.pop %v2118
      %v2121 = vsinq.f32.pop %v2118
      %vm2122 = vweird.f32 %v821
      %v2123 = vadd.s32 %v2119, 3
      %v2124 = vand.u32 %v2123, 3
      %vm2125 = vcmp.lt.s32.totalorder %v2124, 2
      %vm2126 = vcmp.eq.s32.totalorder %v2124, 0
      %v2127 = vxor.u32 %v2121, 2147483648
      %v2128 = vsel %vm2126, %v2120, %v2127
      %vm2129 = vcmp.eq.s32.totalorder %v2124, 2
      %v2130 = vxor.u32 %v2120, 2147483648
      %v2131 = vsel %vm2129, %v2130, %v2121
      %v2132 = vsel %vm2125, %v2128, %v2131
      %v2133 = vsel %vm2122, nan, %v2132
      %v2134 = vand.u32 2147483647, %v826
      %vm2135 = vcmp.le.f32.partialorder %v2134, 0.7853982
      %vm2136 = vcmp.lt.s32.totalorder %v826, 0
      %v2137 = vand.u32 %v826, 2139095040
      %v2138 = vshrl.u32 %v2137, 23
      %v2139 = vsub.s32 %v2138, 127
      %v2140 = vand.u32 2147483647, %v826
      %v2141 = vand.u32 %v2140, 8388607
      %v2142 = vor.u32 %v2141, 8388608
      %v2143 = vsub.s32 0, %v2142
      %v2144 = vadd.s32 %v2139, 1
      %vm2145 = vcmp.gt.s32.totalorder %v2144, 0
      %v2146 = vsel %vm2145, %v2144, 0
      %v2147 = vshrl.u32 %v2146, 5
      %v2148 = vand.u32 %v2146, 31
      %v2149 = vsub.s32 32, %v2148
      %v2150 = vshrl.u32 683565275, %v2149
      %v2151 = vshll.u32 683565275, %v2148
      %v2152 = vshrl.u32 2475754826, %v2149
      %v2153 = vor.u32 %v2151, %v2152
      %v2154 = vshll.u32 2475754826, %v2148
      %v2155 = vshrl.u32 2131351028, %v2149
      %v2156 = vor.u32 %v2154, %v2155
      %v2157 = vshll.u32 2131351028, %v2148
      %v2158 = vshrl.u32 2102212464, %v2149
      %v2159 = vor.u32 %v2157, %v2158
      %v2160 = vshll.u32 2102212464, %v2148
      %v2161 = vshrl.u32 920167782, %v2149
      %v2162 = vor.u32 %v2160, %v2161
      %v2163 = vshll.u32 920167782, %v2148
      %v2164 = vshrl.u32 1326507024, %v2149
      %v2165 = vor.u32 %v2163, %v2164
      %vm2166 = vcmp.lt.s32.totalorder %v2147, 1
      %vm2167 = vcmp.lt.s32.totalorder %v2147, 2
      %vm2168 = vcmp.lt.s32.totalorder %v2147, 3
      %vm2169 = vcmp.lt.s32.totalorder %v2147, 4
      %v2170 = vsel %vm2166, %v2150, %v2153
      %v2171 = vsel %vm2169, %v2159, 2102212464
      %v2172 = vsel %vm2168, %v2156, %v2171
      %v2173 = vsel %vm2167, %v2170, %v2172
      %v2174 = vsel %vm2166, %v2153, %v2156
      %v2175 = vsel %vm2169, %v2162, 920167782
      %v2176 = vsel %vm2168, %v2159, %v2175
      %v2177 = vsel %vm2167, %v2174, %v2176
      %v2178 = vsel %vm2166, %v2156, %v2159
      %v2179 = vsel %vm2169, %v2165, 1326507024
      %v2180 = vsel %vm2168, %v2162, %v2179
      %v2181 = vsel %vm2167, %v2178, %v2180
      %v2182 = vshll.u32 %v2142, 8
      %v2183 = vmul.u32.u64.compose %v2182, %v2181
      %v2184 = vextract.low.u32 %v2183
      %v2185 = vextract.high.u32 %v2183
      %v2186 = vmul.u32.u64.compose %v2182, %v2177
      %v2187 = vextract.low.u32 %v2186
      %v2188 = vextract.high.u32 %v2186
      %v2189 = vmul.u32 %v2182, %v2173
      %v2190 = vadd.s32 %v2185, %v2187
      %vm2191 = vc.u32 %v2185, %v2187
      %v2192 = vadd.s32 %v2188, 1
      %v2193 = vsel %vm2191, %v2192, %v2188
      %v2194 = vadd.s32 %v2189, %v2193
      %v2195 = vadd.s32 %v2194, 536870912
      %v2196 = vshrl.u32 %v2195, 30
      %v2197 = vshll.u32 %v2196, 30
      %v2198 = vsub.s32 %v2194, %v2197
      %vm2199 = vcmp.lt.s32.totalorder %v2198, 0
      %v2200 = vsub.s32 0, %v2198
      %v2201 = vsel %vm2199, %v2200, %v2198
      %v2202 = vclz %v2201
      %v2203 = vsub.s32 %v2202, 2
      %vm2204 = vcmp.gt.s32.totalorder 0, %v2203
      %v2205 = vsel %vm2204, 0, %v2203
      %v2206 = vsub.s32 32, %v2205
      %v2207 = vshll.u32 %v2198, %v2205
      %v2208 = vshrl.u32 %v2190, %v2206
      %v2209 = vor.u32 %v2207, %v2208
      %v2210 = vsub.s32 4294967266, %v2205
      %v2211 = vadd.s32 %v2210, 127
      %v2212 = vshll.u32 %v2211, 23
      %v2213 = vor.u32 4788187, %v2212
      %v2214 = vand.u32 2147483647, %v2213
      %v2216 = vcvt.s32.f32 %v2209
      %v2217 = vmul.f32 %v2216, %v2214
      %v2218 = vxor.u32 %v2217, 2147483648
      %v2219 = vsel %vm2136, %v2218, %v2217
      %v2220 = vsub.s32 4, %v2196
      %v2221 = vsel %vm2136, %v2220, %v2196
      %v2222 = vsel %vm2135, %v826, %v2219
      %v2223 = vsel %vm2135, 0, %v2221
      %v2224 = vcosq.f32.pop %v2222
      %v2225 = vsinq.f32.pop %v2222
      %vm2226 = vweird.f32 %v826
      %v2227 = vadd.s32 %v2223, 3
      %v2228 = vand.u32 %v2227, 3
      %vm2229 = vcmp.lt.s32.totalorder %v2228, 2
      %vm2230 = vcmp.eq.s32.totalorder %v2228, 0
      %v2231 = vxor.u32 %v2225, 2147483648
      %v2232 = vsel %vm2230, %v2224, %v2231
      %vm2233 = vcmp.eq.s32.totalorder %v2228, 2
      %v2234 = vxor.u32 %v2224, 2147483648
      %v2235 = vsel %vm2233, %v2234, %v2225
      %v2236 = vsel %vm2229, %v2232, %v2235
      %v2237 = vsel %vm2226, nan, %v2236
      %v2238 = vand.u32 2147483647, %v831
      %vm2239 = vcmp.le.f32.partialorder %v2238, 0.7853982
      %vm2240 = vcmp.lt.s32.totalorder %v831, 0
      %v2241 = vand.u32 %v831, 2139095040
      %v2242 = vshrl.u32 %v2241, 23
      %v2243 = vsub.s32 %v2242, 127
      %v2244 = vand.u32 2147483647, %v831
      %v2245 = vand.u32 %v2244, 8388607
      %v2246 = vor.u32 %v2245, 8388608
      %v2247 = vsub.s32 0, %v2246
      %v2248 = vadd.s32 %v2243, 1
      %vm2249 = vcmp.gt.s32.totalorder %v2248, 0
      %v2250 = vsel %vm2249, %v2248, 0
      %v2251 = vshrl.u32 %v2250, 5
      %v2252 = vand.u32 %v2250, 31
      %v2253 = vsub.s32 32, %v2252
      %v2254 = vshrl.u32 683565275, %v2253
      %v2255 = vshll.u32 683565275, %v2252
      %v2256 = vshrl.u32 2475754826, %v2253
      %v2257 = vor.u32 %v2255, %v2256
      %v2258 = vshll.u32 2475754826, %v2252
      %v2259 = vshrl.u32 2131351028, %v2253
      %v2260 = vor.u32 %v2258, %v2259
      %v2261 = vshll.u32 2131351028, %v2252
      %v2262 = vshrl.u32 2102212464, %v2253
      %v2263 = vor.u32 %v2261, %v2262
      %v2264 = vshll.u32 2102212464, %v2252
      %v2265 = vshrl.u32 920167782, %v2253
      %v2266 = vor.u32 %v2264, %v2265
      %v2267 = vshll.u32 920167782, %v2252
      %v2268 = vshrl.u32 1326507024, %v2253
      %v2269 = vor.u32 %v2267, %v2268
      %vm2270 = vcmp.lt.s32.totalorder %v2251, 1
      %vm2271 = vcmp.lt.s32.totalorder %v2251, 2
      %vm2272 = vcmp.lt.s32.totalorder %v2251, 3
      %vm2273 = vcmp.lt.s32.totalorder %v2251, 4
      %v2274 = vsel %vm2270, %v2254, %v2257
      %v2275 = vsel %vm2273, %v2263, 2102212464
      %v2276 = vsel %vm2272, %v2260, %v2275
      %v2277 = vsel %vm2271, %v2274, %v2276
      %v2278 = vsel %vm2270, %v2257, %v2260
      %v2279 = vsel %vm2273, %v2266, 920167782
      %v2280 = vsel %vm2272, %v2263, %v2279
      %v2281 = vsel %vm2271, %v2278, %v2280
      %v2282 = vsel %vm2270, %v2260, %v2263
      %v2283 = vsel %vm2273, %v2269, 1326507024
      %v2284 = vsel %vm2272, %v2266, %v2283
      %v2285 = vsel %vm2271, %v2282, %v2284
      %v2286 = vshll.u32 %v2246, 8
      %v2287 = vmul.u32.u64.compose %v2286, %v2285
      %v2288 = vextract.low.u32 %v2287
      %v2289 = vextract.high.u32 %v2287
      %v2290 = vmul.u32.u64.compose %v2286, %v2281
      %v2291 = vextract.low.u32 %v2290
      %v2292 = vextract.high.u32 %v2290
      %v2293 = vmul.u32 %v2286, %v2277
      %v2294 = vadd.s32 %v2289, %v2291
      %vm2295 = vc.u32 %v2289, %v2291
      %v2296 = vadd.s32 %v2292, 1
      %v2297 = vsel %vm2295, %v2296, %v2292
      %v2298 = vadd.s32 %v2293, %v2297
      %v2299 = vadd.s32 %v2298, 536870912
      %v2300 = vshrl.u32 %v2299, 30
      %v2301 = vshll.u32 %v2300, 30
      %v2302 = vsub.s32 %v2298, %v2301
      %vm2303 = vcmp.lt.s32.totalorder %v2302, 0
      %v2304 = vsub.s32 0, %v2302
      %v2305 = vsel %vm2303, %v2304, %v2302
      %v2306 = vclz %v2305
      %v2307 = vsub.s32 %v2306, 2
      %vm2308 = vcmp.gt.s32.totalorder 0, %v2307
      %v2309 = vsel %vm2308, 0, %v2307
      %v2310 = vsub.s32 32, %v2309
      %v2311 = vshll.u32 %v2302, %v2309
      %v2312 = vshrl.u32 %v2294, %v2310
      %v2313 = vor.u32 %v2311, %v2312
      %v2314 = vsub.s32 4294967266, %v2309
      %v2315 = vadd.s32 %v2314, 127
      %v2316 = vshll.u32 %v2315, 23
      %v2317 = vor.u32 4788187, %v2316
      %v2318 = vand.u32 2147483647, %v2317
      %v2320 = vcvt.s32.f32 %v2313
      %v2321 = vmul.f32 %v2320, %v2318
      %v2322 = vxor.u32 %v2321, 2147483648
      %v2323 = vsel %vm2240, %v2322, %v2321
      %v2324 = vsub.s32 4, %v2300
      %v2325 = vsel %vm2240, %v2324, %v2300
      %v2326 = vsel %vm2239, %v831, %v2323
      %v2327 = vsel %vm2239, 0, %v2325
      %v2328 = vcosq.f32.pop %v2326
      %v2329 = vsinq.f32.pop %v2326
      %vm2330 = vweird.f32 %v831
      %v2331 = vadd.s32 %v2327, 3
      %v2332 = vand.u32 %v2331, 3
      %vm2333 = vcmp.lt.s32.totalorder %v2332, 2
      %vm2334 = vcmp.eq.s32.totalorder %v2332, 0
      %v2335 = vxor.u32 %v2329, 2147483648
      %v2336 = vsel %vm2334, %v2328, %v2335
      %vm2337 = vcmp.eq.s32.totalorder %v2332, 2
      %v2338 = vxor.u32 %v2328, 2147483648
      %v2339 = vsel %vm2337, %v2338, %v2329
      %v2340 = vsel %vm2333, %v2336, %v2339
      %v2341 = vsel %vm2330, nan, %v2340
      %v2342 = vand.u32 2147483647, %v836
      %vm2343 = vcmp.le.f32.partialorder %v2342, 0.7853982
      %vm2344 = vcmp.lt.s32.totalorder %v836, 0
      %v2345 = vand.u32 %v836, 2139095040
      %v2346 = vshrl.u32 %v2345, 23
      %v2347 = vsub.s32 %v2346, 127
      %v2348 = vand.u32 2147483647, %v836
      %v2349 = vand.u32 %v2348, 8388607
      %v2350 = vor.u32 %v2349, 8388608
      %v2351 = vsub.s32 0, %v2350
      %v2352 = vadd.s32 %v2347, 1
      %vm2353 = vcmp.gt.s32.totalorder %v2352, 0
      %v2354 = vsel %vm2353, %v2352, 0
      %v2355 = vshrl.u32 %v2354, 5
      %v2356 = vand.u32 %v2354, 31
      %v2357 = vsub.s32 32, %v2356
      %v2358 = vshrl.u32 683565275, %v2357
      %v2359 = vshll.u32 683565275, %v2356
      %v2360 = vshrl.u32 2475754826, %v2357
      %v2361 = vor.u32 %v2359, %v2360
      %v2362 = vshll.u32 2475754826, %v2356
      %v2363 = vshrl.u32 2131351028, %v2357
      %v2364 = vor.u32 %v2362, %v2363
      %v2365 = vshll.u32 2131351028, %v2356
      %v2366 = vshrl.u32 2102212464, %v2357
      %v2367 = vor.u32 %v2365, %v2366
      %v2368 = vshll.u32 2102212464, %v2356
      %v2369 = vshrl.u32 920167782, %v2357
      %v2370 = vor.u32 %v2368, %v2369
      %v2371 = vshll.u32 920167782, %v2356
      %v2372 = vshrl.u32 1326507024, %v2357
      %v2373 = vor.u32 %v2371, %v2372
      %vm2374 = vcmp.lt.s32.totalorder %v2355, 1
      %vm2375 = vcmp.lt.s32.totalorder %v2355, 2
      %vm2376 = vcmp.lt.s32.totalorder %v2355, 3
      %vm2377 = vcmp.lt.s32.totalorder %v2355, 4
      %v2378 = vsel %vm2374, %v2358, %v2361
      %v2379 = vsel %vm2377, %v2367, 2102212464
      %v2380 = vsel %vm2376, %v2364, %v2379
      %v2381 = vsel %vm2375, %v2378, %v2380
      %v2382 = vsel %vm2374, %v2361, %v2364
      %v2383 = vsel %vm2377, %v2370, 920167782
      %v2384 = vsel %vm2376, %v2367, %v2383
      %v2385 = vsel %vm2375, %v2382, %v2384
      %v2386 = vsel %vm2374, %v2364, %v2367
      %v2387 = vsel %vm2377, %v2373, 1326507024
      %v2388 = vsel %vm2376, %v2370, %v2387
      %v2389 = vsel %vm2375, %v2386, %v2388
      %v2390 = vshll.u32 %v2350, 8
      %v2391 = vmul.u32.u64.compose %v2390, %v2389
      %v2392 = vextract.low.u32 %v2391
      %v2393 = vextract.high.u32 %v2391
      %v2394 = vmul.u32.u64.compose %v2390, %v2385
      %v2395 = vextract.low.u32 %v2394
      %v2396 = vextract.high.u32 %v2394
      %v2397 = vmul.u32 %v2390, %v2381
      %v2398 = vadd.s32 %v2393, %v2395
      %vm2399 = vc.u32 %v2393, %v2395
      %v2400 = vadd.s32 %v2396, 1
      %v2401 = vsel %vm2399, %v2400, %v2396
      %v2402 = vadd.s32 %v2397, %v2401
      %v2403 = vadd.s32 %v2402, 536870912
      %v2404 = vshrl.u32 %v2403, 30
      %v2405 = vshll.u32 %v2404, 30
      %v2406 = vsub.s32 %v2402, %v2405
      %vm2407 = vcmp.lt.s32.totalorder %v2406, 0
      %v2408 = vsub.s32 0, %v2406
      %v2409 = vsel %vm2407, %v2408, %v2406
      %v2410 = vclz %v2409
      %v2411 = vsub.s32 %v2410, 2
      %vm2412 = vcmp.gt.s32.totalorder 0, %v2411
      %v2413 = vsel %vm2412, 0, %v2411
      %v2414 = vsub.s32 32, %v2413
      %v2415 = vshll.u32 %v2406, %v2413
      %v2416 = vshrl.u32 %v2398, %v2414
      %v2417 = vor.u32 %v2415, %v2416
      %v2418 = vsub.s32 4294967266, %v2413
      %v2419 = vadd.s32 %v2418, 127
      %v2420 = vshll.u32 %v2419, 23
      %v2421 = vor.u32 4788187, %v2420
      %v2422 = vand.u32 2147483647, %v2421
      %v2424 = vcvt.s32.f32 %v2417
      %v2425 = vmul.f32 %v2424, %v2422
      %v2426 = vxor.u32 %v2425, 2147483648
      %v2427 = vsel %vm2344, %v2426, %v2425
      %v2428 = vsub.s32 4, %v2404
      %v2429 = vsel %vm2344, %v2428, %v2404
      %v2430 = vsel %vm2343, %v836, %v2427
      %v2431 = vsel %vm2343, 0, %v2429
      %v2432 = vcosq.f32.pop %v2430
      %v2433 = vsinq.f32.pop %v2430
      %vm2434 = vweird.f32 %v836
      %v2435 = vadd.s32 %v2431, 3
      %v2436 = vand.u32 %v2435, 3
      %vm2437 = vcmp.lt.s32.totalorder %v2436, 2
      %vm2438 = vcmp.eq.s32.totalorder %v2436, 0
      %v2439 = vxor.u32 %v2433, 2147483648
      %v2440 = vsel %vm2438, %v2432, %v2439
      %vm2441 = vcmp.eq.s32.totalorder %v2436, 2
      %v2442 = vxor.u32 %v2432, 2147483648
      %v2443 = vsel %vm2441, %v2442, %v2433
      %v2444 = vsel %vm2437, %v2440, %v2443
      %v2445 = vsel %vm2434, nan, %v2444
      %v2446 = vand.u32 2147483647, %v841
      %vm2447 = vcmp.le.f32.partialorder %v2446, 0.7853982
      %vm2448 = vcmp.lt.s32.totalorder %v841, 0
      %v2449 = vand.u32 %v841, 2139095040
      %v2450 = vshrl.u32 %v2449, 23
      %v2451 = vsub.s32 %v2450, 127
      %v2452 = vand.u32 2147483647, %v841
      %v2453 = vand.u32 %v2452, 8388607
      %v2454 = vor.u32 %v2453, 8388608
      %v2455 = vsub.s32 0, %v2454
      %v2456 = vadd.s32 %v2451, 1
      %vm2457 = vcmp.gt.s32.totalorder %v2456, 0
      %v2458 = vsel %vm2457, %v2456, 0
      %v2459 = vshrl.u32 %v2458, 5
      %v2460 = vand.u32 %v2458, 31
      %v2461 = vsub.s32 32, %v2460
      %v2462 = vshrl.u32 683565275, %v2461
      %v2463 = vshll.u32 683565275, %v2460
      %v2464 = vshrl.u32 2475754826, %v2461
      %v2465 = vor.u32 %v2463, %v2464
      %v2466 = vshll.u32 2475754826, %v2460
      %v2467 = vshrl.u32 2131351028, %v2461
      %v2468 = vor.u32 %v2466, %v2467
      %v2469 = vshll.u32 2131351028, %v2460
      %v2470 = vshrl.u32 2102212464, %v2461
      %v2471 = vor.u32 %v2469, %v2470
      %v2472 = vshll.u32 2102212464, %v2460
      %v2473 = vshrl.u32 920167782, %v2461
      %v2474 = vor.u32 %v2472, %v2473
      %v2475 = vshll.u32 920167782, %v2460
      %v2476 = vshrl.u32 1326507024, %v2461
      %v2477 = vor.u32 %v2475, %v2476
      %vm2478 = vcmp.lt.s32.totalorder %v2459, 1
      %vm2479 = vcmp.lt.s32.totalorder %v2459, 2
      %vm2480 = vcmp.lt.s32.totalorder %v2459, 3
      %vm2481 = vcmp.lt.s32.totalorder %v2459, 4
      %v2482 = vsel %vm2478, %v2462, %v2465
      %v2483 = vsel %vm2481, %v2471, 2102212464
      %v2484 = vsel %vm2480, %v2468, %v2483
      %v2485 = vsel %vm2479, %v2482, %v2484
      %v2486 = vsel %vm2478, %v2465, %v2468
      %v2487 = vsel %vm2481, %v2474, 920167782
      %v2488 = vsel %vm2480, %v2471, %v2487
      %v2489 = vsel %vm2479, %v2486, %v2488
      %v2490 = vsel %vm2478, %v2468, %v2471
      %v2491 = vsel %vm2481, %v2477, 1326507024
      %v2492 = vsel %vm2480, %v2474, %v2491
      %v2493 = vsel %vm2479, %v2490, %v2492
      %v2494 = vshll.u32 %v2454, 8
      %v2495 = vmul.u32.u64.compose %v2494, %v2493
      %v2496 = vextract.low.u32 %v2495
      %v2497 = vextract.high.u32 %v2495
      %v2498 = vmul.u32.u64.compose %v2494, %v2489
      %v2499 = vextract.low.u32 %v2498
      %v2500 = vextract.high.u32 %v2498
      %v2501 = vmul.u32 %v2494, %v2485
      %v2502 = vadd.s32 %v2497, %v2499
      %vm2503 = vc.u32 %v2497, %v2499
      %v2504 = vadd.s32 %v2500, 1
      %v2505 = vsel %vm2503, %v2504, %v2500
      %v2506 = vadd.s32 %v2501, %v2505
      %v2507 = vadd.s32 %v2506, 536870912
      %v2508 = vshrl.u32 %v2507, 30
      %v2509 = vshll.u32 %v2508, 30
      %v2510 = vsub.s32 %v2506, %v2509
      %vm2511 = vcmp.lt.s32.totalorder %v2510, 0
      %v2512 = vsub.s32 0, %v2510
      %v2513 = vsel %vm2511, %v2512, %v2510
      %v2514 = vclz %v2513
      %v2515 = vsub.s32 %v2514, 2
      %vm2516 = vcmp.gt.s32.totalorder 0, %v2515
      %v2517 = vsel %vm2516, 0, %v2515
      %v2518 = vsub.s32 32, %v2517
      %v2519 = vshll.u32 %v2510, %v2517
      %v2520 = vshrl.u32 %v2502, %v2518
      %v2521 = vor.u32 %v2519, %v2520
      %v2522 = vsub.s32 4294967266, %v2517
      %v2523 = vadd.s32 %v2522, 127
      %v2524 = vshll.u32 %v2523, 23
      %v2525 = vor.u32 4788187, %v2524
      %v2526 = vand.u32 2147483647, %v2525
      %v2528 = vcvt.s32.f32 %v2521
      %v2529 = vmul.f32 %v2528, %v2526
      %v2530 = vxor.u32 %v2529, 2147483648
      %v2531 = vsel %vm2448, %v2530, %v2529
      %v2532 = vsub.s32 4, %v2508
      %v2533 = vsel %vm2448, %v2532, %v2508
      %v2534 = vsel %vm2447, %v841, %v2531
      %v2535 = vsel %vm2447, 0, %v2533
      %v2536 = vcosq.f32.pop %v2534
      %v2537 = vsinq.f32.pop %v2534
      %vm2538 = vweird.f32 %v841
      %v2539 = vadd.s32 %v2535, 3
      %v2540 = vand.u32 %v2539, 3
      %vm2541 = vcmp.lt.s32.totalorder %v2540, 2
      %vm2542 = vcmp.eq.s32.totalorder %v2540, 0
      %v2543 = vxor.u32 %v2537, 2147483648
      %v2544 = vsel %vm2542, %v2536, %v2543
      %vm2545 = vcmp.eq.s32.totalorder %v2540, 2
      %v2546 = vxor.u32 %v2536, 2147483648
      %v2547 = vsel %vm2545, %v2546, %v2537
      %v2548 = vsel %vm2541, %v2544, %v2547
      %v2549 = vsel %vm2538, nan, %v2548
      %v2550 = vand.u32 2147483647, %v846
      %vm2551 = vcmp.le.f32.partialorder %v2550, 0.7853982
      %vm2552 = vcmp.lt.s32.totalorder %v846, 0
      %v2553 = vand.u32 %v846, 2139095040
      %v2554 = vshrl.u32 %v2553, 23
      %v2555 = vsub.s32 %v2554, 127
      %v2556 = vand.u32 2147483647, %v846
      %v2557 = vand.u32 %v2556, 8388607
      %v2558 = vor.u32 %v2557, 8388608
      %v2559 = vsub.s32 0, %v2558
      %v2560 = vadd.s32 %v2555, 1
      %vm2561 = vcmp.gt.s32.totalorder %v2560, 0
      %v2562 = vsel %vm2561, %v2560, 0
      %v2563 = vshrl.u32 %v2562, 5
      %v2564 = vand.u32 %v2562, 31
      %v2565 = vsub.s32 32, %v2564
      %v2566 = vshrl.u32 683565275, %v2565
      %v2567 = vshll.u32 683565275, %v2564
      %v2568 = vshrl.u32 2475754826, %v2565
      %v2569 = vor.u32 %v2567, %v2568
      %v2570 = vshll.u32 2475754826, %v2564
      %v2571 = vshrl.u32 2131351028, %v2565
      %v2572 = vor.u32 %v2570, %v2571
      %v2573 = vshll.u32 2131351028, %v2564
      %v2574 = vshrl.u32 2102212464, %v2565
      %v2575 = vor.u32 %v2573, %v2574
      %v2576 = vshll.u32 2102212464, %v2564
      %v2577 = vshrl.u32 920167782, %v2565
      %v2578 = vor.u32 %v2576, %v2577
      %v2579 = vshll.u32 920167782, %v2564
      %v2580 = vshrl.u32 1326507024, %v2565
      %v2581 = vor.u32 %v2579, %v2580
      %vm2582 = vcmp.lt.s32.totalorder %v2563, 1
      %vm2583 = vcmp.lt.s32.totalorder %v2563, 2
      %vm2584 = vcmp.lt.s32.totalorder %v2563, 3
      %vm2585 = vcmp.lt.s32.totalorder %v2563, 4
      %v2586 = vsel %vm2582, %v2566, %v2569
      %v2587 = vsel %vm2585, %v2575, 2102212464
      %v2588 = vsel %vm2584, %v2572, %v2587
      %v2589 = vsel %vm2583, %v2586, %v2588
      %v2590 = vsel %vm2582, %v2569, %v2572
      %v2591 = vsel %vm2585, %v2578, 920167782
      %v2592 = vsel %vm2584, %v2575, %v2591
      %v2593 = vsel %vm2583, %v2590, %v2592
      %v2594 = vsel %vm2582, %v2572, %v2575
      %v2595 = vsel %vm2585, %v2581, 1326507024
      %v2596 = vsel %vm2584, %v2578, %v2595
      %v2597 = vsel %vm2583, %v2594, %v2596
      %v2598 = vshll.u32 %v2558, 8
      %v2599 = vmul.u32.u64.compose %v2598, %v2597
      %v2600 = vextract.low.u32 %v2599
      %v2601 = vextract.high.u32 %v2599
      %v2602 = vmul.u32.u64.compose %v2598, %v2593
      %v2603 = vextract.low.u32 %v2602
      %v2604 = vextract.high.u32 %v2602
      %v2605 = vmul.u32 %v2598, %v2589
      %v2606 = vadd.s32 %v2601, %v2603
      %vm2607 = vc.u32 %v2601, %v2603
      %v2608 = vadd.s32 %v2604, 1
      %v2609 = vsel %vm2607, %v2608, %v2604
      %v2610 = vadd.s32 %v2605, %v2609
      %v2611 = vadd.s32 %v2610, 536870912
      %v2612 = vshrl.u32 %v2611, 30
      %v2613 = vshll.u32 %v2612, 30
      %v2614 = vsub.s32 %v2610, %v2613
      %vm2615 = vcmp.lt.s32.totalorder %v2614, 0
      %v2616 = vsub.s32 0, %v2614
      %v2617 = vsel %vm2615, %v2616, %v2614
      %v2618 = vclz %v2617
      %v2619 = vsub.s32 %v2618, 2
      %vm2620 = vcmp.gt.s32.totalorder 0, %v2619
      %v2621 = vsel %vm2620, 0, %v2619
      %v2622 = vsub.s32 32, %v2621
      %v2623 = vshll.u32 %v2614, %v2621
      %v2624 = vshrl.u32 %v2606, %v2622
      %v2625 = vor.u32 %v2623, %v2624
      %v2626 = vsub.s32 4294967266, %v2621
      %v2627 = vadd.s32 %v2626, 127
      %v2628 = vshll.u32 %v2627, 23
      %v2629 = vor.u32 4788187, %v2628
      %v2630 = vand.u32 2147483647, %v2629
      %v2632 = vcvt.s32.f32 %v2625
      %v2633 = vmul.f32 %v2632, %v2630
      %v2634 = vxor.u32 %v2633, 2147483648
      %v2635 = vsel %vm2552, %v2634, %v2633
      %v2636 = vsub.s32 4, %v2612
      %v2637 = vsel %vm2552, %v2636, %v2612
      %v2638 = vsel %vm2551, %v846, %v2635
      %v2639 = vsel %vm2551, 0, %v2637
      %v2640 = vcosq.f32.pop %v2638
      %v2641 = vsinq.f32.pop %v2638
      %vm2642 = vweird.f32 %v846
      %v2643 = vadd.s32 %v2639, 3
      %v2644 = vand.u32 %v2643, 3
      %vm2645 = vcmp.lt.s32.totalorder %v2644, 2
      %vm2646 = vcmp.eq.s32.totalorder %v2644, 0
      %v2647 = vxor.u32 %v2641, 2147483648
      %v2648 = vsel %vm2646, %v2640, %v2647
      %vm2649 = vcmp.eq.s32.totalorder %v2644, 2
      %v2650 = vxor.u32 %v2640, 2147483648
      %v2651 = vsel %vm2649, %v2650, %v2641
      %v2652 = vsel %vm2645, %v2648, %v2651
      %v2653 = vsel %vm2642, nan, %v2652
      %v2654 = vand.u32 2147483647, %v851
      %vm2655 = vcmp.le.f32.partialorder %v2654, 0.7853982
      %vm2656 = vcmp.lt.s32.totalorder %v851, 0
      %v2657 = vand.u32 %v851, 2139095040
      %v2658 = vshrl.u32 %v2657, 23
      %v2659 = vsub.s32 %v2658, 127
      %v2660 = vand.u32 2147483647, %v851
      %v2661 = vand.u32 %v2660, 8388607
      %v2662 = vor.u32 %v2661, 8388608
      %v2663 = vsub.s32 0, %v2662
      %v2664 = vadd.s32 %v2659, 1
      %vm2665 = vcmp.gt.s32.totalorder %v2664, 0
      %v2666 = vsel %vm2665, %v2664, 0
      %v2667 = vshrl.u32 %v2666, 5
      %v2668 = vand.u32 %v2666, 31
      %v2669 = vsub.s32 32, %v2668
      %v2670 = vshrl.u32 683565275, %v2669
      %v2671 = vshll.u32 683565275, %v2668
      %v2672 = vshrl.u32 2475754826, %v2669
      %v2673 = vor.u32 %v2671, %v2672
      %v2674 = vshll.u32 2475754826, %v2668
      %v2675 = vshrl.u32 2131351028, %v2669
      %v2676 = vor.u32 %v2674, %v2675
      %v2677 = vshll.u32 2131351028, %v2668
      %v2678 = vshrl.u32 2102212464, %v2669
      %v2679 = vor.u32 %v2677, %v2678
      %v2680 = vshll.u32 2102212464, %v2668
      %v2681 = vshrl.u32 920167782, %v2669
      %v2682 = vor.u32 %v2680, %v2681
      %v2683 = vshll.u32 920167782, %v2668
      %v2684 = vshrl.u32 1326507024, %v2669
      %v2685 = vor.u32 %v2683, %v2684
      %vm2686 = vcmp.lt.s32.totalorder %v2667, 1
      %vm2687 = vcmp.lt.s32.totalorder %v2667, 2
      %vm2688 = vcmp.lt.s32.totalorder %v2667, 3
      %vm2689 = vcmp.lt.s32.totalorder %v2667, 4
      %v2690 = vsel %vm2686, %v2670, %v2673
      %v2691 = vsel %vm2689, %v2679, 2102212464
      %v2692 = vsel %vm2688, %v2676, %v2691
      %v2693 = vsel %vm2687, %v2690, %v2692
      %v2694 = vsel %vm2686, %v2673, %v2676
      %v2695 = vsel %vm2689, %v2682, 920167782
      %v2696 = vsel %vm2688, %v2679, %v2695
      %v2697 = vsel %vm2687, %v2694, %v2696
      %v2698 = vsel %vm2686, %v2676, %v2679
      %v2699 = vsel %vm2689, %v2685, 1326507024
      %v2700 = vsel %vm2688, %v2682, %v2699
      %v2701 = vsel %vm2687, %v2698, %v2700
      %v2702 = vshll.u32 %v2662, 8
      %v2703 = vmul.u32.u64.compose %v2702, %v2701
      %v2704 = vextract.low.u32 %v2703
      %v2705 = vextract.high.u32 %v2703
      %v2706 = vmul.u32.u64.compose %v2702, %v2697
      %v2707 = vextract.low.u32 %v2706
      %v2708 = vextract.high.u32 %v2706
      %v2709 = vmul.u32 %v2702, %v2693
      %v2710 = vadd.s32 %v2705, %v2707
      %vm2711 = vc.u32 %v2705, %v2707
      %v2712 = vadd.s32 %v2708, 1
      %v2713 = vsel %vm2711, %v2712, %v2708
      %v2714 = vadd.s32 %v2709, %v2713
      %v2715 = vadd.s32 %v2714, 536870912
      %v2716 = vshrl.u32 %v2715, 30
      %v2717 = vshll.u32 %v2716, 30
      %v2718 = vsub.s32 %v2714, %v2717
      %vm2719 = vcmp.lt.s32.totalorder %v2718, 0
      %v2720 = vsub.s32 0, %v2718
      %v2721 = vsel %vm2719, %v2720, %v2718
      %v2722 = vclz %v2721
      %v2723 = vsub.s32 %v2722, 2
      %vm2724 = vcmp.gt.s32.totalorder 0, %v2723
      %v2725 = vsel %vm2724, 0, %v2723
      %v2726 = vsub.s32 32, %v2725
      %v2727 = vshll.u32 %v2718, %v2725
      %v2728 = vshrl.u32 %v2710, %v2726
      %v2729 = vor.u32 %v2727, %v2728
      %v2730 = vsub.s32 4294967266, %v2725
      %v2731 = vadd.s32 %v2730, 127
      %v2732 = vshll.u32 %v2731, 23
      %v2733 = vor.u32 4788187, %v2732
      %v2734 = vand.u32 2147483647, %v2733
      %v2736 = vcvt.s32.f32 %v2729
      %v2737 = vmul.f32 %v2736, %v2734
      %v2738 = vxor.u32 %v2737, 2147483648
      %v2739 = vsel %vm2656, %v2738, %v2737
      %v2740 = vsub.s32 4, %v2716
      %v2741 = vsel %vm2656, %v2740, %v2716
      %v2742 = vsel %vm2655, %v851, %v2739
      %v2743 = vsel %vm2655, 0, %v2741
      %v2744 = vcosq.f32.pop %v2742
      %v2745 = vsinq.f32.pop %v2742
      %vm2746 = vweird.f32 %v851
      %v2747 = vadd.s32 %v2743, 3
      %v2748 = vand.u32 %v2747, 3
      %vm2749 = vcmp.lt.s32.totalorder %v2748, 2
      %vm2750 = vcmp.eq.s32.totalorder %v2748, 0
      %v2751 = vxor.u32 %v2745, 2147483648
      %v2752 = vsel %vm2750, %v2744, %v2751
      %vm2753 = vcmp.eq.s32.totalorder %v2748, 2
      %v2754 = vxor.u32 %v2744, 2147483648
      %v2755 = vsel %vm2753, %v2754, %v2745
      %v2756 = vsel %vm2749, %v2752, %v2755
      %v2757 = vsel %vm2746, nan, %v2756
      %v2758 = vand.u32 2147483647, %v856
      %vm2759 = vcmp.le.f32.partialorder %v2758, 0.7853982
      %vm2760 = vcmp.lt.s32.totalorder %v856, 0
      %v2761 = vand.u32 %v856, 2139095040
      %v2762 = vshrl.u32 %v2761, 23
      %v2763 = vsub.s32 %v2762, 127
      %v2764 = vand.u32 2147483647, %v856
      %v2765 = vand.u32 %v2764, 8388607
      %v2766 = vor.u32 %v2765, 8388608
      %v2767 = vsub.s32 0, %v2766
      %v2768 = vadd.s32 %v2763, 1
      %vm2769 = vcmp.gt.s32.totalorder %v2768, 0
      %v2770 = vsel %vm2769, %v2768, 0
      %v2771 = vshrl.u32 %v2770, 5
      %v2772 = vand.u32 %v2770, 31
      %v2773 = vsub.s32 32, %v2772
      %v2774 = vshrl.u32 683565275, %v2773
      %v2775 = vshll.u32 683565275, %v2772
      %v2776 = vshrl.u32 2475754826, %v2773
      %v2777 = vor.u32 %v2775, %v2776
      %v2778 = vshll.u32 2475754826, %v2772
      %v2779 = vshrl.u32 2131351028, %v2773
      %v2780 = vor.u32 %v2778, %v2779
      %v2781 = vshll.u32 2131351028, %v2772
      %v2782 = vshrl.u32 2102212464, %v2773
      %v2783 = vor.u32 %v2781, %v2782
      %v2784 = vshll.u32 2102212464, %v2772
      %v2785 = vshrl.u32 920167782, %v2773
      %v2786 = vor.u32 %v2784, %v2785
      %v2787 = vshll.u32 920167782, %v2772
      %v2788 = vshrl.u32 1326507024, %v2773
      %v2789 = vor.u32 %v2787, %v2788
      %vm2790 = vcmp.lt.s32.totalorder %v2771, 1
      %vm2791 = vcmp.lt.s32.totalorder %v2771, 2
      %vm2792 = vcmp.lt.s32.totalorder %v2771, 3
      %vm2793 = vcmp.lt.s32.totalorder %v2771, 4
      %v2794 = vsel %vm2790, %v2774, %v2777
      %v2795 = vsel %vm2793, %v2783, 2102212464
      %v2796 = vsel %vm2792, %v2780, %v2795
      %v2797 = vsel %vm2791, %v2794, %v2796
      %v2798 = vsel %vm2790, %v2777, %v2780
      %v2799 = vsel %vm2793, %v2786, 920167782
      %v2800 = vsel %vm2792, %v2783, %v2799
      %v2801 = vsel %vm2791, %v2798, %v2800
      %v2802 = vsel %vm2790, %v2780, %v2783
      %v2803 = vsel %vm2793, %v2789, 1326507024
      %v2804 = vsel %vm2792, %v2786, %v2803
      %v2805 = vsel %vm2791, %v2802, %v2804
      %v2806 = vshll.u32 %v2766, 8
      %v2807 = vmul.u32.u64.compose %v2806, %v2805
      %v2808 = vextract.low.u32 %v2807
      %v2809 = vextract.high.u32 %v2807
      %v2810 = vmul.u32.u64.compose %v2806, %v2801
      %v2811 = vextract.low.u32 %v2810
      %v2812 = vextract.high.u32 %v2810
      %v2813 = vmul.u32 %v2806, %v2797
      %v2814 = vadd.s32 %v2809, %v2811
      %vm2815 = vc.u32 %v2809, %v2811
      %v2816 = vadd.s32 %v2812, 1
      %v2817 = vsel %vm2815, %v2816, %v2812
      %v2818 = vadd.s32 %v2813, %v2817
      %v2819 = vadd.s32 %v2818, 536870912
      %v2820 = vshrl.u32 %v2819, 30
      %v2821 = vshll.u32 %v2820, 30
      %v2822 = vsub.s32 %v2818, %v2821
      %vm2823 = vcmp.lt.s32.totalorder %v2822, 0
      %v2824 = vsub.s32 0, %v2822
      %v2825 = vsel %vm2823, %v2824, %v2822
      %v2826 = vclz %v2825
      %v2827 = vsub.s32 %v2826, 2
      %vm2828 = vcmp.gt.s32.totalorder 0, %v2827
      %v2829 = vsel %vm2828, 0, %v2827
      %v2830 = vsub.s32 32, %v2829
      %v2831 = vshll.u32 %v2822, %v2829
      %v2832 = vshrl.u32 %v2814, %v2830
      %v2833 = vor.u32 %v2831, %v2832
      %v2834 = vsub.s32 4294967266, %v2829
      %v2835 = vadd.s32 %v2834, 127
      %v2836 = vshll.u32 %v2835, 23
      %v2837 = vor.u32 4788187, %v2836
      %v2838 = vand.u32 2147483647, %v2837
      %v2840 = vcvt.s32.f32 %v2833
      %v2841 = vmul.f32 %v2840, %v2838
      %v2842 = vxor.u32 %v2841, 2147483648
      %v2843 = vsel %vm2760, %v2842, %v2841
      %v2844 = vsub.s32 4, %v2820
      %v2845 = vsel %vm2760, %v2844, %v2820
      %v2846 = vsel %vm2759, %v856, %v2843
      %v2847 = vsel %vm2759, 0, %v2845
      %v2848 = vcosq.f32.pop %v2846
      %v2849 = vsinq.f32.pop %v2846
      %vm2850 = vweird.f32 %v856
      %v2851 = vadd.s32 %v2847, 3
      %v2852 = vand.u32 %v2851, 3
      %vm2853 = vcmp.lt.s32.totalorder %v2852, 2
      %vm2854 = vcmp.eq.s32.totalorder %v2852, 0
      %v2855 = vxor.u32 %v2849, 2147483648
      %v2856 = vsel %vm2854, %v2848, %v2855
      %vm2857 = vcmp.eq.s32.totalorder %v2852, 2
      %v2858 = vxor.u32 %v2848, 2147483648
      %v2859 = vsel %vm2857, %v2858, %v2849
      %v2860 = vsel %vm2853, %v2856, %v2859
      %v2861 = vsel %vm2850, nan, %v2860
      %v2862 = vand.u32 2147483647, %v861
      %vm2863 = vcmp.le.f32.partialorder %v2862, 0.7853982
      %vm2864 = vcmp.lt.s32.totalorder %v861, 0
      %v2865 = vand.u32 %v861, 2139095040
      %v2866 = vshrl.u32 %v2865, 23
      %v2867 = vsub.s32 %v2866, 127
      %v2868 = vand.u32 2147483647, %v861
      %v2869 = vand.u32 %v2868, 8388607
      %v2870 = vor.u32 %v2869, 8388608
      %v2871 = vsub.s32 0, %v2870
      %v2872 = vadd.s32 %v2867, 1
      %vm2873 = vcmp.gt.s32.totalorder %v2872, 0
      %v2874 = vsel %vm2873, %v2872, 0
      %v2875 = vshrl.u32 %v2874, 5
      %v2876 = vand.u32 %v2874, 31
      %v2877 = vsub.s32 32, %v2876
      %v2878 = vshrl.u32 683565275, %v2877
      %v2879 = vshll.u32 683565275, %v2876
      %v2880 = vshrl.u32 2475754826, %v2877
      %v2881 = vor.u32 %v2879, %v2880
      %v2882 = vshll.u32 2475754826, %v2876
      %v2883 = vshrl.u32 2131351028, %v2877
      %v2884 = vor.u32 %v2882, %v2883
      %v2885 = vshll.u32 2131351028, %v2876
      %v2886 = vshrl.u32 2102212464, %v2877
      %v2887 = vor.u32 %v2885, %v2886
      %v2888 = vshll.u32 2102212464, %v2876
      %v2889 = vshrl.u32 920167782, %v2877
      %v2890 = vor.u32 %v2888, %v2889
      %v2891 = vshll.u32 920167782, %v2876
      %v2892 = vshrl.u32 1326507024, %v2877
      %v2893 = vor.u32 %v2891, %v2892
      %vm2894 = vcmp.lt.s32.totalorder %v2875, 1
      %vm2895 = vcmp.lt.s32.totalorder %v2875, 2
      %vm2896 = vcmp.lt.s32.totalorder %v2875, 3
      %vm2897 = vcmp.lt.s32.totalorder %v2875, 4
      %v2898 = vsel %vm2894, %v2878, %v2881
      %v2899 = vsel %vm2897, %v2887, 2102212464
      %v2900 = vsel %vm2896, %v2884, %v2899
      %v2901 = vsel %vm2895, %v2898, %v2900
      %v2902 = vsel %vm2894, %v2881, %v2884
      %v2903 = vsel %vm2897, %v2890, 920167782
      %v2904 = vsel %vm2896, %v2887, %v2903
      %v2905 = vsel %vm2895, %v2902, %v2904
      %v2906 = vsel %vm2894, %v2884, %v2887
      %v2907 = vsel %vm2897, %v2893, 1326507024
      %v2908 = vsel %vm2896, %v2890, %v2907
      %v2909 = vsel %vm2895, %v2906, %v2908
      %v2910 = vshll.u32 %v2870, 8
      %v2911 = vmul.u32.u64.compose %v2910, %v2909
      %v2912 = vextract.low.u32 %v2911
      %v2913 = vextract.high.u32 %v2911
      %v2914 = vmul.u32.u64.compose %v2910, %v2905
      %v2915 = vextract.low.u32 %v2914
      %v2916 = vextract.high.u32 %v2914
      %v2917 = vmul.u32 %v2910, %v2901
      %v2918 = vadd.s32 %v2913, %v2915
      %vm2919 = vc.u32 %v2913, %v2915
      %v2920 = vadd.s32 %v2916, 1
      %v2921 = vsel %vm2919, %v2920, %v2916
      %v2922 = vadd.s32 %v2917, %v2921
      %v2923 = vadd.s32 %v2922, 536870912
      %v2924 = vshrl.u32 %v2923, 30
      %v2925 = vshll.u32 %v2924, 30
      %v2926 = vsub.s32 %v2922, %v2925
      %vm2927 = vcmp.lt.s32.totalorder %v2926, 0
      %v2928 = vsub.s32 0, %v2926
      %v2929 = vsel %vm2927, %v2928, %v2926
      %v2930 = vclz %v2929
      %v2931 = vsub.s32 %v2930, 2
      %vm2932 = vcmp.gt.s32.totalorder 0, %v2931
      %v2933 = vsel %vm2932, 0, %v2931
      %v2934 = vsub.s32 32, %v2933
      %v2935 = vshll.u32 %v2926, %v2933
      %v2936 = vshrl.u32 %v2918, %v2934
      %v2937 = vor.u32 %v2935, %v2936
      %v2938 = vsub.s32 4294967266, %v2933
      %v2939 = vadd.s32 %v2938, 127
      %v2940 = vshll.u32 %v2939, 23
      %v2941 = vor.u32 4788187, %v2940
      %v2942 = vand.u32 2147483647, %v2941
      %v2944 = vcvt.s32.f32 %v2937
      %v2945 = vmul.f32 %v2944, %v2942
      %v2946 = vxor.u32 %v2945, 2147483648
      %v2947 = vsel %vm2864, %v2946, %v2945
      %v2948 = vsub.s32 4, %v2924
      %v2949 = vsel %vm2864, %v2948, %v2924
      %v2950 = vsel %vm2863, %v861, %v2947
      %v2951 = vsel %vm2863, 0, %v2949
      %v2952 = vcosq.f32.pop %v2950
      %v2953 = vsinq.f32.pop %v2950
      %vm2954 = vweird.f32 %v861
      %v2955 = vadd.s32 %v2951, 3
      %v2956 = vand.u32 %v2955, 3
      %vm2957 = vcmp.lt.s32.totalorder %v2956, 2
      %vm2958 = vcmp.eq.s32.totalorder %v2956, 0
      %v2959 = vxor.u32 %v2953, 2147483648
      %v2960 = vsel %vm2958, %v2952, %v2959
      %vm2961 = vcmp.eq.s32.totalorder %v2956, 2
      %v2962 = vxor.u32 %v2952, 2147483648
      %v2963 = vsel %vm2961, %v2962, %v2953
      %v2964 = vsel %vm2957, %v2960, %v2963
      %v2965 = vsel %vm2954, nan, %v2964
      %v2966 = vand.u32 2147483647, %v866
      %vm2967 = vcmp.le.f32.partialorder %v2966, 0.7853982
      %vm2968 = vcmp.lt.s32.totalorder %v866, 0
      %v2969 = vand.u32 %v866, 2139095040
      %v2970 = vshrl.u32 %v2969, 23
      %v2971 = vsub.s32 %v2970, 127
      %v2972 = vand.u32 2147483647, %v866
      %v2973 = vand.u32 %v2972, 8388607
      %v2974 = vor.u32 %v2973, 8388608
      %v2975 = vsub.s32 0, %v2974
      %v2976 = vadd.s32 %v2971, 1
      %vm2977 = vcmp.gt.s32.totalorder %v2976, 0
      %v2978 = vsel %vm2977, %v2976, 0
      %v2979 = vshrl.u32 %v2978, 5
      %v2980 = vand.u32 %v2978, 31
      %v2981 = vsub.s32 32, %v2980
      %v2982 = vshrl.u32 683565275, %v2981
      %v2983 = vshll.u32 683565275, %v2980
      %v2984 = vshrl.u32 2475754826, %v2981
      %v2985 = vor.u32 %v2983, %v2984
      %v2986 = vshll.u32 2475754826, %v2980
      %v2987 = vshrl.u32 2131351028, %v2981
      %v2988 = vor.u32 %v2986, %v2987
      %v2989 = vshll.u32 2131351028, %v2980
      %v2990 = vshrl.u32 2102212464, %v2981
      %v2991 = vor.u32 %v2989, %v2990
      %v2992 = vshll.u32 2102212464, %v2980
      %v2993 = vshrl.u32 920167782, %v2981
      %v2994 = vor.u32 %v2992, %v2993
      %v2995 = vshll.u32 920167782, %v2980
      %v2996 = vshrl.u32 1326507024, %v2981
      %v2997 = vor.u32 %v2995, %v2996
      %vm2998 = vcmp.lt.s32.totalorder %v2979, 1
      %vm2999 = vcmp.lt.s32.totalorder %v2979, 2
      %vm3000 = vcmp.lt.s32.totalorder %v2979, 3
      %vm3001 = vcmp.lt.s32.totalorder %v2979, 4
      %v3002 = vsel %vm2998, %v2982, %v2985
      %v3003 = vsel %vm3001, %v2991, 2102212464
      %v3004 = vsel %vm3000, %v2988, %v3003
      %v3005 = vsel %vm2999, %v3002, %v3004
      %v3006 = vsel %vm2998, %v2985, %v2988
      %v3007 = vsel %vm3001, %v2994, 920167782
      %v3008 = vsel %vm3000, %v2991, %v3007
      %v3009 = vsel %vm2999, %v3006, %v3008
      %v3010 = vsel %vm2998, %v2988, %v2991
      %v3011 = vsel %vm3001, %v2997, 1326507024
      %v3012 = vsel %vm3000, %v2994, %v3011
      %v3013 = vsel %vm2999, %v3010, %v3012
      %v3014 = vshll.u32 %v2974, 8
      %v3015 = vmul.u32.u64.compose %v3014, %v3013
      %v3016 = vextract.low.u32 %v3015
      %v3017 = vextract.high.u32 %v3015
      %v3018 = vmul.u32.u64.compose %v3014, %v3009
      %v3019 = vextract.low.u32 %v3018
      %v3020 = vextract.high.u32 %v3018
      %v3021 = vmul.u32 %v3014, %v3005
      %v3022 = vadd.s32 %v3017, %v3019
      %vm3023 = vc.u32 %v3017, %v3019
      %v3024 = vadd.s32 %v3020, 1
      %v3025 = vsel %vm3023, %v3024, %v3020
      %v3026 = vadd.s32 %v3021, %v3025
      %v3027 = vadd.s32 %v3026, 536870912
      %v3028 = vshrl.u32 %v3027, 30
      %v3029 = vshll.u32 %v3028, 30
      %v3030 = vsub.s32 %v3026, %v3029
      %vm3031 = vcmp.lt.s32.totalorder %v3030, 0
      %v3032 = vsub.s32 0, %v3030
      %v3033 = vsel %vm3031, %v3032, %v3030
      %v3034 = vclz %v3033
      %v3035 = vsub.s32 %v3034, 2
      %vm3036 = vcmp.gt.s32.totalorder 0, %v3035
      %v3037 = vsel %vm3036, 0, %v3035
      %v3038 = vsub.s32 32, %v3037
      %v3039 = vshll.u32 %v3030, %v3037
      %v3040 = vshrl.u32 %v3022, %v3038
      %v3041 = vor.u32 %v3039, %v3040
      %v3042 = vsub.s32 4294967266, %v3037
      %v3043 = vadd.s32 %v3042, 127
      %v3044 = vshll.u32 %v3043, 23
      %v3045 = vor.u32 4788187, %v3044
      %v3046 = vand.u32 2147483647, %v3045
      %v3048 = vcvt.s32.f32 %v3041
      %v3049 = vmul.f32 %v3048, %v3046
      %v3050 = vxor.u32 %v3049, 2147483648
      %v3051 = vsel %vm2968, %v3050, %v3049
      %v3052 = vsub.s32 4, %v3028
      %v3053 = vsel %vm2968, %v3052, %v3028
      %v3054 = vsel %vm2967, %v866, %v3051
      %v3055 = vsel %vm2967, 0, %v3053
      %v3056 = vcosq.f32.pop %v3054
      %v3057 = vsinq.f32.pop %v3054
      %vm3058 = vweird.f32 %v866
      %v3059 = vadd.s32 %v3055, 3
      %v3060 = vand.u32 %v3059, 3
      %vm3061 = vcmp.lt.s32.totalorder %v3060, 2
      %vm3062 = vcmp.eq.s32.totalorder %v3060, 0
      %v3063 = vxor.u32 %v3057, 2147483648
      %v3064 = vsel %vm3062, %v3056, %v3063
      %vm3065 = vcmp.eq.s32.totalorder %v3060, 2
      %v3066 = vxor.u32 %v3056, 2147483648
      %v3067 = vsel %vm3065, %v3066, %v3057
      %v3068 = vsel %vm3061, %v3064, %v3067
      %v3069 = vsel %vm3058, nan, %v3068
      %v3070 = vand.u32 2147483647, %v871
      %vm3071 = vcmp.le.f32.partialorder %v3070, 0.7853982
      %vm3072 = vcmp.lt.s32.totalorder %v871, 0
      %v3073 = vand.u32 %v871, 2139095040
      %v3074 = vshrl.u32 %v3073, 23
      %v3075 = vsub.s32 %v3074, 127
      %v3076 = vand.u32 2147483647, %v871
      %v3077 = vand.u32 %v3076, 8388607
      %v3078 = vor.u32 %v3077, 8388608
      %v3079 = vsub.s32 0, %v3078
      %v3080 = vadd.s32 %v3075, 1
      %vm3081 = vcmp.gt.s32.totalorder %v3080, 0
      %v3082 = vsel %vm3081, %v3080, 0
      %v3083 = vshrl.u32 %v3082, 5
      %v3084 = vand.u32 %v3082, 31
      %v3085 = vsub.s32 32, %v3084
      %v3086 = vshrl.u32 683565275, %v3085
      %v3087 = vshll.u32 683565275, %v3084
      %v3088 = vshrl.u32 2475754826, %v3085
      %v3089 = vor.u32 %v3087, %v3088
      %v3090 = vshll.u32 2475754826, %v3084
      %v3091 = vshrl.u32 2131351028, %v3085
      %v3092 = vor.u32 %v3090, %v3091
      %v3093 = vshll.u32 2131351028, %v3084
      %v3094 = vshrl.u32 2102212464, %v3085
      %v3095 = vor.u32 %v3093, %v3094
      %v3096 = vshll.u32 2102212464, %v3084
      %v3097 = vshrl.u32 920167782, %v3085
      %v3098 = vor.u32 %v3096, %v3097
      %v3099 = vshll.u32 920167782, %v3084
      %v3100 = vshrl.u32 1326507024, %v3085
      %v3101 = vor.u32 %v3099, %v3100
      %vm3102 = vcmp.lt.s32.totalorder %v3083, 1
      %vm3103 = vcmp.lt.s32.totalorder %v3083, 2
      %vm3104 = vcmp.lt.s32.totalorder %v3083, 3
      %vm3105 = vcmp.lt.s32.totalorder %v3083, 4
      %v3106 = vsel %vm3102, %v3086, %v3089
      %v3107 = vsel %vm3105, %v3095, 2102212464
      %v3108 = vsel %vm3104, %v3092, %v3107
      %v3109 = vsel %vm3103, %v3106, %v3108
      %v3110 = vsel %vm3102, %v3089, %v3092
      %v3111 = vsel %vm3105, %v3098, 920167782
      %v3112 = vsel %vm3104, %v3095, %v3111
      %v3113 = vsel %vm3103, %v3110, %v3112
      %v3114 = vsel %vm3102, %v3092, %v3095
      %v3115 = vsel %vm3105, %v3101, 1326507024
      %v3116 = vsel %vm3104, %v3098, %v3115
      %v3117 = vsel %vm3103, %v3114, %v3116
      %v3118 = vshll.u32 %v3078, 8
      %v3119 = vmul.u32.u64.compose %v3118, %v3117
      %v3120 = vextract.low.u32 %v3119
      %v3121 = vextract.high.u32 %v3119
      %v3122 = vmul.u32.u64.compose %v3118, %v3113
      %v3123 = vextract.low.u32 %v3122
      %v3124 = vextract.high.u32 %v3122
      %v3125 = vmul.u32 %v3118, %v3109
      %v3126 = vadd.s32 %v3121, %v3123
      %vm3127 = vc.u32 %v3121, %v3123
      %v3128 = vadd.s32 %v3124, 1
      %v3129 = vsel %vm3127, %v3128, %v3124
      %v3130 = vadd.s32 %v3125, %v3129
      %v3131 = vadd.s32 %v3130, 536870912
      %v3132 = vshrl.u32 %v3131, 30
      %v3133 = vshll.u32 %v3132, 30
      %v3134 = vsub.s32 %v3130, %v3133
      %vm3135 = vcmp.lt.s32.totalorder %v3134, 0
      %v3136 = vsub.s32 0, %v3134
      %v3137 = vsel %vm3135, %v3136, %v3134
      %v3138 = vclz %v3137
      %v3139 = vsub.s32 %v3138, 2
      %vm3140 = vcmp.gt.s32.totalorder 0, %v3139
      %v3141 = vsel %vm3140, 0, %v3139
      %v3142 = vsub.s32 32, %v3141
      %v3143 = vshll.u32 %v3134, %v3141
      %v3144 = vshrl.u32 %v3126, %v3142
      %v3145 = vor.u32 %v3143, %v3144
      %v3146 = vsub.s32 4294967266, %v3141
      %v3147 = vadd.s32 %v3146, 127
      %v3148 = vshll.u32 %v3147, 23
      %v3149 = vor.u32 4788187, %v3148
      %v3150 = vand.u32 2147483647, %v3149
      %v3152 = vcvt.s32.f32 %v3145
      %v3153 = vmul.f32 %v3152, %v3150
      %v3154 = vxor.u32 %v3153, 2147483648
      %v3155 = vsel %vm3072, %v3154, %v3153
      %v3156 = vsub.s32 4, %v3132
      %v3157 = vsel %vm3072, %v3156, %v3132
      %v3158 = vsel %vm3071, %v871, %v3155
      %v3159 = vsel %vm3071, 0, %v3157
      %v3160 = vcosq.f32.pop %v3158
      %v3161 = vsinq.f32.pop %v3158
      %vm3162 = vweird.f32 %v871
      %v3163 = vadd.s32 %v3159, 3
      %v3164 = vand.u32 %v3163, 3
      %vm3165 = vcmp.lt.s32.totalorder %v3164, 2
      %vm3166 = vcmp.eq.s32.totalorder %v3164, 0
      %v3167 = vxor.u32 %v3161, 2147483648
      %v3168 = vsel %vm3166, %v3160, %v3167
      %vm3169 = vcmp.eq.s32.totalorder %v3164, 2
      %v3170 = vxor.u32 %v3160, 2147483648
      %v3171 = vsel %vm3169, %v3170, %v3161
      %v3172 = vsel %vm3165, %v3168, %v3171
      %v3173 = vsel %vm3162, nan, %v3172
      %v3174 = vand.u32 2147483647, %v876
      %vm3175 = vcmp.le.f32.partialorder %v3174, 0.7853982
      %vm3176 = vcmp.lt.s32.totalorder %v876, 0
      %v3177 = vand.u32 %v876, 2139095040
      %v3178 = vshrl.u32 %v3177, 23
      %v3179 = vsub.s32 %v3178, 127
      %v3180 = vand.u32 2147483647, %v876
      %v3181 = vand.u32 %v3180, 8388607
      %v3182 = vor.u32 %v3181, 8388608
      %v3183 = vsub.s32 0, %v3182
      %v3184 = vadd.s32 %v3179, 1
      %vm3185 = vcmp.gt.s32.totalorder %v3184, 0
      %v3186 = vsel %vm3185, %v3184, 0
      %v3187 = vshrl.u32 %v3186, 5
      %v3188 = vand.u32 %v3186, 31
      %v3189 = vsub.s32 32, %v3188
      %v3190 = vshrl.u32 683565275, %v3189
      %v3191 = vshll.u32 683565275, %v3188
      %v3192 = vshrl.u32 2475754826, %v3189
      %v3193 = vor.u32 %v3191, %v3192
      %v3194 = vshll.u32 2475754826, %v3188
      %v3195 = vshrl.u32 2131351028, %v3189
      %v3196 = vor.u32 %v3194, %v3195
      %v3197 = vshll.u32 2131351028, %v3188
      %v3198 = vshrl.u32 2102212464, %v3189
      %v3199 = vor.u32 %v3197, %v3198
      %v3200 = vshll.u32 2102212464, %v3188
      %v3201 = vshrl.u32 920167782, %v3189
      %v3202 = vor.u32 %v3200, %v3201
      %v3203 = vshll.u32 920167782, %v3188
      %v3204 = vshrl.u32 1326507024, %v3189
      %v3205 = vor.u32 %v3203, %v3204
      %vm3206 = vcmp.lt.s32.totalorder %v3187, 1
      %vm3207 = vcmp.lt.s32.totalorder %v3187, 2
      %vm3208 = vcmp.lt.s32.totalorder %v3187, 3
      %vm3209 = vcmp.lt.s32.totalorder %v3187, 4
      %v3210 = vsel %vm3206, %v3190, %v3193
      %v3211 = vsel %vm3209, %v3199, 2102212464
      %v3212 = vsel %vm3208, %v3196, %v3211
      %v3213 = vsel %vm3207, %v3210, %v3212
      %v3214 = vsel %vm3206, %v3193, %v3196
      %v3215 = vsel %vm3209, %v3202, 920167782
      %v3216 = vsel %vm3208, %v3199, %v3215
      %v3217 = vsel %vm3207, %v3214, %v3216
      %v3218 = vsel %vm3206, %v3196, %v3199
      %v3219 = vsel %vm3209, %v3205, 1326507024
      %v3220 = vsel %vm3208, %v3202, %v3219
      %v3221 = vsel %vm3207, %v3218, %v3220
      %v3222 = vshll.u32 %v3182, 8
      %v3223 = vmul.u32.u64.compose %v3222, %v3221
      %v3224 = vextract.low.u32 %v3223
      %v3225 = vextract.high.u32 %v3223
      %v3226 = vmul.u32.u64.compose %v3222, %v3217
      %v3227 = vextract.low.u32 %v3226
      %v3228 = vextract.high.u32 %v3226
      %v3229 = vmul.u32 %v3222, %v3213
      %v3230 = vadd.s32 %v3225, %v3227
      %vm3231 = vc.u32 %v3225, %v3227
      %v3232 = vadd.s32 %v3228, 1
      %v3233 = vsel %vm3231, %v3232, %v3228
      %v3234 = vadd.s32 %v3229, %v3233
      %v3235 = vadd.s32 %v3234, 536870912
      %v3236 = vshrl.u32 %v3235, 30
      %v3237 = vshll.u32 %v3236, 30
      %v3238 = vsub.s32 %v3234, %v3237
      %vm3239 = vcmp.lt.s32.totalorder %v3238, 0
      %v3240 = vsub.s32 0, %v3238
      %v3241 = vsel %vm3239, %v3240, %v3238
      %v3242 = vclz %v3241
      %v3243 = vsub.s32 %v3242, 2
      %vm3244 = vcmp.gt.s32.totalorder 0, %v3243
      %v3245 = vsel %vm3244, 0, %v3243
      %v3246 = vsub.s32 32, %v3245
      %v3247 = vshll.u32 %v3238, %v3245
      %v3248 = vshrl.u32 %v3230, %v3246
      %v3249 = vor.u32 %v3247, %v3248
      %v3250 = vsub.s32 4294967266, %v3245
      %v3251 = vadd.s32 %v3250, 127
      %v3252 = vshll.u32 %v3251, 23
      %v3253 = vor.u32 4788187, %v3252
      %v3254 = vand.u32 2147483647, %v3253
      %v3256 = vcvt.s32.f32 %v3249
      %v3257 = vmul.f32 %v3256, %v3254
      %v3258 = vxor.u32 %v3257, 2147483648
      %v3259 = vsel %vm3176, %v3258, %v3257
      %v3260 = vsub.s32 4, %v3236
      %v3261 = vsel %vm3176, %v3260, %v3236
      %v3262 = vsel %vm3175, %v876, %v3259
      %v3263 = vsel %vm3175, 0, %v3261
      %v3264 = vcosq.f32.pop %v3262
      %v3265 = vsinq.f32.pop %v3262
      %vm3266 = vweird.f32 %v876
      %v3267 = vadd.s32 %v3263, 3
      %v3268 = vand.u32 %v3267, 3
      %vm3269 = vcmp.lt.s32.totalorder %v3268, 2
      %vm3270 = vcmp.eq.s32.totalorder %v3268, 0
      %v3271 = vxor.u32 %v3265, 2147483648
      %v3272 = vsel %vm3270, %v3264, %v3271
      %vm3273 = vcmp.eq.s32.totalorder %v3268, 2
      %v3274 = vxor.u32 %v3264, 2147483648
      %v3275 = vsel %vm3273, %v3274, %v3265
      %v3276 = vsel %vm3269, %v3272, %v3275
      %v3277 = vsel %vm3266, nan, %v3276
      %v3278 = vand.u32 2147483647, %v881
      %vm3279 = vcmp.le.f32.partialorder %v3278, 0.7853982
      %vm3280 = vcmp.lt.s32.totalorder %v881, 0
      %v3281 = vand.u32 %v881, 2139095040
      %v3282 = vshrl.u32 %v3281, 23
      %v3283 = vsub.s32 %v3282, 127
      %v3284 = vand.u32 2147483647, %v881
      %v3285 = vand.u32 %v3284, 8388607
      %v3286 = vor.u32 %v3285, 8388608
      %v3287 = vsub.s32 0, %v3286
      %v3288 = vadd.s32 %v3283, 1
      %vm3289 = vcmp.gt.s32.totalorder %v3288, 0
      %v3290 = vsel %vm3289, %v3288, 0
      %v3291 = vshrl.u32 %v3290, 5
      %v3292 = vand.u32 %v3290, 31
      %v3293 = vsub.s32 32, %v3292
      %v3294 = vshrl.u32 683565275, %v3293
      %v3295 = vshll.u32 683565275, %v3292
      %v3296 = vshrl.u32 2475754826, %v3293
      %v3297 = vor.u32 %v3295, %v3296
      %v3298 = vshll.u32 2475754826, %v3292
      %v3299 = vshrl.u32 2131351028, %v3293
      %v3300 = vor.u32 %v3298, %v3299
      %v3301 = vshll.u32 2131351028, %v3292
      %v3302 = vshrl.u32 2102212464, %v3293
      %v3303 = vor.u32 %v3301, %v3302
      %v3304 = vshll.u32 2102212464, %v3292
      %v3305 = vshrl.u32 920167782, %v3293
      %v3306 = vor.u32 %v3304, %v3305
      %v3307 = vshll.u32 920167782, %v3292
      %v3308 = vshrl.u32 1326507024, %v3293
      %v3309 = vor.u32 %v3307, %v3308
      %vm3310 = vcmp.lt.s32.totalorder %v3291, 1
      %vm3311 = vcmp.lt.s32.totalorder %v3291, 2
      %vm3312 = vcmp.lt.s32.totalorder %v3291, 3
      %vm3313 = vcmp.lt.s32.totalorder %v3291, 4
      %v3314 = vsel %vm3310, %v3294, %v3297
      %v3315 = vsel %vm3313, %v3303, 2102212464
      %v3316 = vsel %vm3312, %v3300, %v3315
      %v3317 = vsel %vm3311, %v3314, %v3316
      %v3318 = vsel %vm3310, %v3297, %v3300
      %v3319 = vsel %vm3313, %v3306, 920167782
      %v3320 = vsel %vm3312, %v3303, %v3319
      %v3321 = vsel %vm3311, %v3318, %v3320
      %v3322 = vsel %vm3310, %v3300, %v3303
      %v3323 = vsel %vm3313, %v3309, 1326507024
      %v3324 = vsel %vm3312, %v3306, %v3323
      %v3325 = vsel %vm3311, %v3322, %v3324
      %v3326 = vshll.u32 %v3286, 8
      %v3327 = vmul.u32.u64.compose %v3326, %v3325
      %v3328 = vextract.low.u32 %v3327
      %v3329 = vextract.high.u32 %v3327
      %v3330 = vmul.u32.u64.compose %v3326, %v3321
      %v3331 = vextract.low.u32 %v3330
      %v3332 = vextract.high.u32 %v3330
      %v3333 = vmul.u32 %v3326, %v3317
      %v3334 = vadd.s32 %v3329, %v3331
      %vm3335 = vc.u32 %v3329, %v3331
      %v3336 = vadd.s32 %v3332, 1
      %v3337 = vsel %vm3335, %v3336, %v3332
      %v3338 = vadd.s32 %v3333, %v3337
      %v3339 = vadd.s32 %v3338, 536870912
      %v3340 = vshrl.u32 %v3339, 30
      %v3341 = vshll.u32 %v3340, 30
      %v3342 = vsub.s32 %v3338, %v3341
      %vm3343 = vcmp.lt.s32.totalorder %v3342, 0
      %v3344 = vsub.s32 0, %v3342
      %v3345 = vsel %vm3343, %v3344, %v3342
      %v3346 = vclz %v3345
      %v3347 = vsub.s32 %v3346, 2
      %vm3348 = vcmp.gt.s32.totalorder 0, %v3347
      %v3349 = vsel %vm3348, 0, %v3347
      %v3350 = vsub.s32 32, %v3349
      %v3351 = vshll.u32 %v3342, %v3349
      %v3352 = vshrl.u32 %v3334, %v3350
      %v3353 = vor.u32 %v3351, %v3352
      %v3354 = vsub.s32 4294967266, %v3349
      %v3355 = vadd.s32 %v3354, 127
      %v3356 = vshll.u32 %v3355, 23
      %v3357 = vor.u32 4788187, %v3356
      %v3358 = vand.u32 2147483647, %v3357
      %v3360 = vcvt.s32.f32 %v3353
      %v3361 = vmul.f32 %v3360, %v3358
      %v3362 = vxor.u32 %v3361, 2147483648
      %v3363 = vsel %vm3280, %v3362, %v3361
      %v3364 = vsub.s32 4, %v3340
      %v3365 = vsel %vm3280, %v3364, %v3340
      %v3366 = vsel %vm3279, %v881, %v3363
      %v3367 = vsel %vm3279, 0, %v3365
      %v3368 = vcosq.f32.pop %v3366
      %v3369 = vsinq.f32.pop %v3366
      %vm3370 = vweird.f32 %v881
      %v3371 = vadd.s32 %v3367, 3
      %v3372 = vand.u32 %v3371, 3
      %vm3373 = vcmp.lt.s32.totalorder %v3372, 2
      %vm3374 = vcmp.eq.s32.totalorder %v3372, 0
      %v3375 = vxor.u32 %v3369, 2147483648
      %v3376 = vsel %vm3374, %v3368, %v3375
      %vm3377 = vcmp.eq.s32.totalorder %v3372, 2
      %v3378 = vxor.u32 %v3368, 2147483648
      %v3379 = vsel %vm3377, %v3378, %v3369
      %v3380 = vsel %vm3373, %v3376, %v3379
      %v3381 = vsel %vm3370, nan, %v3380
      %v3382 = vand.u32 2147483647, %v886
      %vm3383 = vcmp.le.f32.partialorder %v3382, 0.7853982
      %vm3384 = vcmp.lt.s32.totalorder %v886, 0
      %v3385 = vand.u32 %v886, 2139095040
      %v3386 = vshrl.u32 %v3385, 23
      %v3387 = vsub.s32 %v3386, 127
      %v3388 = vand.u32 2147483647, %v886
      %v3389 = vand.u32 %v3388, 8388607
      %v3390 = vor.u32 %v3389, 8388608
      %v3391 = vsub.s32 0, %v3390
      %v3392 = vadd.s32 %v3387, 1
      %vm3393 = vcmp.gt.s32.totalorder %v3392, 0
      %v3394 = vsel %vm3393, %v3392, 0
      %v3395 = vshrl.u32 %v3394, 5
      %v3396 = vand.u32 %v3394, 31
      %v3397 = vsub.s32 32, %v3396
      %v3398 = vshrl.u32 683565275, %v3397
      %v3399 = vshll.u32 683565275, %v3396
      %v3400 = vshrl.u32 2475754826, %v3397
      %v3401 = vor.u32 %v3399, %v3400
      %v3402 = vshll.u32 2475754826, %v3396
      %v3403 = vshrl.u32 2131351028, %v3397
      %v3404 = vor.u32 %v3402, %v3403
      %v3405 = vshll.u32 2131351028, %v3396
      %v3406 = vshrl.u32 2102212464, %v3397
      %v3407 = vor.u32 %v3405, %v3406
      %v3408 = vshll.u32 2102212464, %v3396
      %v3409 = vshrl.u32 920167782, %v3397
      %v3410 = vor.u32 %v3408, %v3409
      %v3411 = vshll.u32 920167782, %v3396
      %v3412 = vshrl.u32 1326507024, %v3397
      %v3413 = vor.u32 %v3411, %v3412
      %vm3414 = vcmp.lt.s32.totalorder %v3395, 1
      %vm3415 = vcmp.lt.s32.totalorder %v3395, 2
      %vm3416 = vcmp.lt.s32.totalorder %v3395, 3
      %vm3417 = vcmp.lt.s32.totalorder %v3395, 4
      %v3418 = vsel %vm3414, %v3398, %v3401
      %v3419 = vsel %vm3417, %v3407, 2102212464
      %v3420 = vsel %vm3416, %v3404, %v3419
      %v3421 = vsel %vm3415, %v3418, %v3420
      %v3422 = vsel %vm3414, %v3401, %v3404
      %v3423 = vsel %vm3417, %v3410, 920167782
      %v3424 = vsel %vm3416, %v3407, %v3423
      %v3425 = vsel %vm3415, %v3422, %v3424
      %v3426 = vsel %vm3414, %v3404, %v3407
      %v3427 = vsel %vm3417, %v3413, 1326507024
      %v3428 = vsel %vm3416, %v3410, %v3427
      %v3429 = vsel %vm3415, %v3426, %v3428
      %v3430 = vshll.u32 %v3390, 8
      %v3431 = vmul.u32.u64.compose %v3430, %v3429
      %v3432 = vextract.low.u32 %v3431
      %v3433 = vextract.high.u32 %v3431
      %v3434 = vmul.u32.u64.compose %v3430, %v3425
      %v3435 = vextract.low.u32 %v3434
      %v3436 = vextract.high.u32 %v3434
      %v3437 = vmul.u32 %v3430, %v3421
      %v3438 = vadd.s32 %v3433, %v3435
      %vm3439 = vc.u32 %v3433, %v3435
      %v3440 = vadd.s32 %v3436, 1
      %v3441 = vsel %vm3439, %v3440, %v3436
      %v3442 = vadd.s32 %v3437, %v3441
      %v3443 = vadd.s32 %v3442, 536870912
      %v3444 = vshrl.u32 %v3443, 30
      %v3445 = vshll.u32 %v3444, 30
      %v3446 = vsub.s32 %v3442, %v3445
      %vm3447 = vcmp.lt.s32.totalorder %v3446, 0
      %v3448 = vsub.s32 0, %v3446
      %v3449 = vsel %vm3447, %v3448, %v3446
      %v3450 = vclz %v3449
      %v3451 = vsub.s32 %v3450, 2
      %vm3452 = vcmp.gt.s32.totalorder 0, %v3451
      %v3453 = vsel %vm3452, 0, %v3451
      %v3454 = vsub.s32 32, %v3453
      %v3455 = vshll.u32 %v3446, %v3453
      %v3456 = vshrl.u32 %v3438, %v3454
      %v3457 = vor.u32 %v3455, %v3456
      %v3458 = vsub.s32 4294967266, %v3453
      %v3459 = vadd.s32 %v3458, 127
      %v3460 = vshll.u32 %v3459, 23
      %v3461 = vor.u32 4788187, %v3460
      %v3462 = vand.u32 2147483647, %v3461
      %v3464 = vcvt.s32.f32 %v3457
      %v3465 = vmul.f32 %v3464, %v3462
      %v3466 = vxor.u32 %v3465, 2147483648
      %v3467 = vsel %vm3384, %v3466, %v3465
      %v3468 = vsub.s32 4, %v3444
      %v3469 = vsel %vm3384, %v3468, %v3444
      %v3470 = vsel %vm3383, %v886, %v3467
      %v3471 = vsel %vm3383, 0, %v3469
      %v3472 = vcosq.f32.pop %v3470
      %v3473 = vsinq.f32.pop %v3470
      %vm3474 = vweird.f32 %v886
      %v3475 = vadd.s32 %v3471, 3
      %v3476 = vand.u32 %v3475, 3
      %vm3477 = vcmp.lt.s32.totalorder %v3476, 2
      %vm3478 = vcmp.eq.s32.totalorder %v3476, 0
      %v3479 = vxor.u32 %v3473, 2147483648
      %v3480 = vsel %vm3478, %v3472, %v3479
      %vm3481 = vcmp.eq.s32.totalorder %v3476, 2
      %v3482 = vxor.u32 %v3472, 2147483648
      %v3483 = vsel %vm3481, %v3482, %v3473
      %v3484 = vsel %vm3477, %v3480, %v3483
      %v3485 = vsel %vm3474, nan, %v3484
      %v3486 = vand.u32 2147483647, %v891
      %vm3487 = vcmp.le.f32.partialorder %v3486, 0.7853982
      %vm3488 = vcmp.lt.s32.totalorder %v891, 0
      %v3489 = vand.u32 %v891, 2139095040
      %v3490 = vshrl.u32 %v3489, 23
      %v3491 = vsub.s32 %v3490, 127
      %v3492 = vand.u32 2147483647, %v891
      %v3493 = vand.u32 %v3492, 8388607
      %v3494 = vor.u32 %v3493, 8388608
      %v3495 = vsub.s32 0, %v3494
      %v3496 = vadd.s32 %v3491, 1
      %vm3497 = vcmp.gt.s32.totalorder %v3496, 0
      %v3498 = vsel %vm3497, %v3496, 0
      %v3499 = vshrl.u32 %v3498, 5
      %v3500 = vand.u32 %v3498, 31
      %v3501 = vsub.s32 32, %v3500
      %v3502 = vshrl.u32 683565275, %v3501
      %v3503 = vshll.u32 683565275, %v3500
      %v3504 = vshrl.u32 2475754826, %v3501
      %v3505 = vor.u32 %v3503, %v3504
      %v3506 = vshll.u32 2475754826, %v3500
      %v3507 = vshrl.u32 2131351028, %v3501
      %v3508 = vor.u32 %v3506, %v3507
      %v3509 = vshll.u32 2131351028, %v3500
      %v3510 = vshrl.u32 2102212464, %v3501
      %v3511 = vor.u32 %v3509, %v3510
      %v3512 = vshll.u32 2102212464, %v3500
      %v3513 = vshrl.u32 920167782, %v3501
      %v3514 = vor.u32 %v3512, %v3513
      %v3515 = vshll.u32 920167782, %v3500
      %v3516 = vshrl.u32 1326507024, %v3501
      %v3517 = vor.u32 %v3515, %v3516
      %vm3518 = vcmp.lt.s32.totalorder %v3499, 1
      %vm3519 = vcmp.lt.s32.totalorder %v3499, 2
      %vm3520 = vcmp.lt.s32.totalorder %v3499, 3
      %vm3521 = vcmp.lt.s32.totalorder %v3499, 4
      %v3522 = vsel %vm3518, %v3502, %v3505
      %v3523 = vsel %vm3521, %v3511, 2102212464
      %v3524 = vsel %vm3520, %v3508, %v3523
      %v3525 = vsel %vm3519, %v3522, %v3524
      %v3526 = vsel %vm3518, %v3505, %v3508
      %v3527 = vsel %vm3521, %v3514, 920167782
      %v3528 = vsel %vm3520, %v3511, %v3527
      %v3529 = vsel %vm3519, %v3526, %v3528
      %v3530 = vsel %vm3518, %v3508, %v3511
      %v3531 = vsel %vm3521, %v3517, 1326507024
      %v3532 = vsel %vm3520, %v3514, %v3531
      %v3533 = vsel %vm3519, %v3530, %v3532
      %v3534 = vshll.u32 %v3494, 8
      %v3535 = vmul.u32.u64.compose %v3534, %v3533
      %v3536 = vextract.low.u32 %v3535
      %v3537 = vextract.high.u32 %v3535
      %v3538 = vmul.u32.u64.compose %v3534, %v3529
      %v3539 = vextract.low.u32 %v3538
      %v3540 = vextract.high.u32 %v3538
      %v3541 = vmul.u32 %v3534, %v3525
      %v3542 = vadd.s32 %v3537, %v3539
      %vm3543 = vc.u32 %v3537, %v3539
      %v3544 = vadd.s32 %v3540, 1
      %v3545 = vsel %vm3543, %v3544, %v3540
      %v3546 = vadd.s32 %v3541, %v3545
      %v3547 = vadd.s32 %v3546, 536870912
      %v3548 = vshrl.u32 %v3547, 30
      %v3549 = vshll.u32 %v3548, 30
      %v3550 = vsub.s32 %v3546, %v3549
      %vm3551 = vcmp.lt.s32.totalorder %v3550, 0
      %v3552 = vsub.s32 0, %v3550
      %v3553 = vsel %vm3551, %v3552, %v3550
      %v3554 = vclz %v3553
      %v3555 = vsub.s32 %v3554, 2
      %vm3556 = vcmp.gt.s32.totalorder 0, %v3555
      %v3557 = vsel %vm3556, 0, %v3555
      %v3558 = vsub.s32 32, %v3557
      %v3559 = vshll.u32 %v3550, %v3557
      %v3560 = vshrl.u32 %v3542, %v3558
      %v3561 = vor.u32 %v3559, %v3560
      %v3562 = vsub.s32 4294967266, %v3557
      %v3563 = vadd.s32 %v3562, 127
      %v3564 = vshll.u32 %v3563, 23
      %v3565 = vor.u32 4788187, %v3564
      %v3566 = vand.u32 2147483647, %v3565
      %v3568 = vcvt.s32.f32 %v3561
      %v3569 = vmul.f32 %v3568, %v3566
      %v3570 = vxor.u32 %v3569, 2147483648
      %v3571 = vsel %vm3488, %v3570, %v3569
      %v3572 = vsub.s32 4, %v3548
      %v3573 = vsel %vm3488, %v3572, %v3548
      %v3574 = vsel %vm3487, %v891, %v3571
      %v3575 = vsel %vm3487, 0, %v3573
      %v3576 = vcosq.f32.pop %v3574
      %v3577 = vsinq.f32.pop %v3574
      %vm3578 = vweird.f32 %v891
      %v3579 = vadd.s32 %v3575, 3
      %v3580 = vand.u32 %v3579, 3
      %vm3581 = vcmp.lt.s32.totalorder %v3580, 2
      %vm3582 = vcmp.eq.s32.totalorder %v3580, 0
      %v3583 = vxor.u32 %v3577, 2147483648
      %v3584 = vsel %vm3582, %v3576, %v3583
      %vm3585 = vcmp.eq.s32.totalorder %v3580, 2
      %v3586 = vxor.u32 %v3576, 2147483648
      %v3587 = vsel %vm3585, %v3586, %v3577
      %v3588 = vsel %vm3581, %v3584, %v3587
      %v3589 = vsel %vm3578, nan, %v3588
      %v3590 = vand.u32 2147483647, %v896
      %vm3591 = vcmp.le.f32.partialorder %v3590, 0.7853982
      %vm3592 = vcmp.lt.s32.totalorder %v896, 0
      %v3593 = vand.u32 %v896, 2139095040
      %v3594 = vshrl.u32 %v3593, 23
      %v3595 = vsub.s32 %v3594, 127
      %v3596 = vand.u32 2147483647, %v896
      %v3597 = vand.u32 %v3596, 8388607
      %v3598 = vor.u32 %v3597, 8388608
      %v3599 = vsub.s32 0, %v3598
      %v3600 = vadd.s32 %v3595, 1
      %vm3601 = vcmp.gt.s32.totalorder %v3600, 0
      %v3602 = vsel %vm3601, %v3600, 0
      %v3603 = vshrl.u32 %v3602, 5
      %v3604 = vand.u32 %v3602, 31
      %v3605 = vsub.s32 32, %v3604
      %v3606 = vshrl.u32 683565275, %v3605
      %v3607 = vshll.u32 683565275, %v3604
      %v3608 = vshrl.u32 2475754826, %v3605
      %v3609 = vor.u32 %v3607, %v3608
      %v3610 = vshll.u32 2475754826, %v3604
      %v3611 = vshrl.u32 2131351028, %v3605
      %v3612 = vor.u32 %v3610, %v3611
      %v3613 = vshll.u32 2131351028, %v3604
      %v3614 = vshrl.u32 2102212464, %v3605
      %v3615 = vor.u32 %v3613, %v3614
      %v3616 = vshll.u32 2102212464, %v3604
      %v3617 = vshrl.u32 920167782, %v3605
      %v3618 = vor.u32 %v3616, %v3617
      %v3619 = vshll.u32 920167782, %v3604
      %v3620 = vshrl.u32 1326507024, %v3605
      %v3621 = vor.u32 %v3619, %v3620
      %vm3622 = vcmp.lt.s32.totalorder %v3603, 1
      %vm3623 = vcmp.lt.s32.totalorder %v3603, 2
      %vm3624 = vcmp.lt.s32.totalorder %v3603, 3
      %vm3625 = vcmp.lt.s32.totalorder %v3603, 4
      %v3626 = vsel %vm3622, %v3606, %v3609
      %v3627 = vsel %vm3625, %v3615, 2102212464
      %v3628 = vsel %vm3624, %v3612, %v3627
      %v3629 = vsel %vm3623, %v3626, %v3628
      %v3630 = vsel %vm3622, %v3609, %v3612
      %v3631 = vsel %vm3625, %v3618, 920167782
      %v3632 = vsel %vm3624, %v3615, %v3631
      %v3633 = vsel %vm3623, %v3630, %v3632
      %v3634 = vsel %vm3622, %v3612, %v3615
      %v3635 = vsel %vm3625, %v3621, 1326507024
      %v3636 = vsel %vm3624, %v3618, %v3635
      %v3637 = vsel %vm3623, %v3634, %v3636
      %v3638 = vshll.u32 %v3598, 8
      %v3639 = vmul.u32.u64.compose %v3638, %v3637
      %v3640 = vextract.low.u32 %v3639
      %v3641 = vextract.high.u32 %v3639
      %v3642 = vmul.u32.u64.compose %v3638, %v3633
      %v3643 = vextract.low.u32 %v3642
      %v3644 = vextract.high.u32 %v3642
      %v3645 = vmul.u32 %v3638, %v3629
      %v3646 = vadd.s32 %v3641, %v3643
      %vm3647 = vc.u32 %v3641, %v3643
      %v3648 = vadd.s32 %v3644, 1
      %v3649 = vsel %vm3647, %v3648, %v3644
      %v3650 = vadd.s32 %v3645, %v3649
      %v3651 = vadd.s32 %v3650, 536870912
      %v3652 = vshrl.u32 %v3651, 30
      %v3653 = vshll.u32 %v3652, 30
      %v3654 = vsub.s32 %v3650, %v3653
      %vm3655 = vcmp.lt.s32.totalorder %v3654, 0
      %v3656 = vsub.s32 0, %v3654
      %v3657 = vsel %vm3655, %v3656, %v3654
      %v3658 = vclz %v3657
      %v3659 = vsub.s32 %v3658, 2
      %vm3660 = vcmp.gt.s32.totalorder 0, %v3659
      %v3661 = vsel %vm3660, 0, %v3659
      %v3662 = vsub.s32 32, %v3661
      %v3663 = vshll.u32 %v3654, %v3661
      %v3664 = vshrl.u32 %v3646, %v3662
      %v3665 = vor.u32 %v3663, %v3664
      %v3666 = vsub.s32 4294967266, %v3661
      %v3667 = vadd.s32 %v3666, 127
      %v3668 = vshll.u32 %v3667, 23
      %v3669 = vor.u32 4788187, %v3668
      %v3670 = vand.u32 2147483647, %v3669
      %v3672 = vcvt.s32.f32 %v3665
      %v3673 = vmul.f32 %v3672, %v3670
      %v3674 = vxor.u32 %v3673, 2147483648
      %v3675 = vsel %vm3592, %v3674, %v3673
      %v3676 = vsub.s32 4, %v3652
      %v3677 = vsel %vm3592, %v3676, %v3652
      %v3678 = vsel %vm3591, %v896, %v3675
      %v3679 = vsel %vm3591, 0, %v3677
      %v3680 = vcosq.f32.pop %v3678
      %v3681 = vsinq.f32.pop %v3678
      %vm3682 = vweird.f32 %v896
      %v3683 = vadd.s32 %v3679, 3
      %v3684 = vand.u32 %v3683, 3
      %vm3685 = vcmp.lt.s32.totalorder %v3684, 2
      %vm3686 = vcmp.eq.s32.totalorder %v3684, 0
      %v3687 = vxor.u32 %v3681, 2147483648
      %v3688 = vsel %vm3686, %v3680, %v3687
      %vm3689 = vcmp.eq.s32.totalorder %v3684, 2
      %v3690 = vxor.u32 %v3680, 2147483648
      %v3691 = vsel %vm3689, %v3690, %v3681
      %v3692 = vsel %vm3685, %v3688, %v3691
      %v3693 = vsel %vm3682, nan, %v3692
      %v3694 = vand.u32 2147483647, %v901
      %vm3695 = vcmp.le.f32.partialorder %v3694, 0.7853982
      %vm3696 = vcmp.lt.s32.totalorder %v901, 0
      %v3697 = vand.u32 %v901, 2139095040
      %v3698 = vshrl.u32 %v3697, 23
      %v3699 = vsub.s32 %v3698, 127
      %v3700 = vand.u32 2147483647, %v901
      %v3701 = vand.u32 %v3700, 8388607
      %v3702 = vor.u32 %v3701, 8388608
      %v3703 = vsub.s32 0, %v3702
      %v3704 = vadd.s32 %v3699, 1
      %vm3705 = vcmp.gt.s32.totalorder %v3704, 0
      %v3706 = vsel %vm3705, %v3704, 0
      %v3707 = vshrl.u32 %v3706, 5
      %v3708 = vand.u32 %v3706, 31
      %v3709 = vsub.s32 32, %v3708
      %v3710 = vshrl.u32 683565275, %v3709
      %v3711 = vshll.u32 683565275, %v3708
      %v3712 = vshrl.u32 2475754826, %v3709
      %v3713 = vor.u32 %v3711, %v3712
      %v3714 = vshll.u32 2475754826, %v3708
      %v3715 = vshrl.u32 2131351028, %v3709
      %v3716 = vor.u32 %v3714, %v3715
      %v3717 = vshll.u32 2131351028, %v3708
      %v3718 = vshrl.u32 2102212464, %v3709
      %v3719 = vor.u32 %v3717, %v3718
      %v3720 = vshll.u32 2102212464, %v3708
      %v3721 = vshrl.u32 920167782, %v3709
      %v3722 = vor.u32 %v3720, %v3721
      %v3723 = vshll.u32 920167782, %v3708
      %v3724 = vshrl.u32 1326507024, %v3709
      %v3725 = vor.u32 %v3723, %v3724
      %vm3726 = vcmp.lt.s32.totalorder %v3707, 1
      %vm3727 = vcmp.lt.s32.totalorder %v3707, 2
      %vm3728 = vcmp.lt.s32.totalorder %v3707, 3
      %vm3729 = vcmp.lt.s32.totalorder %v3707, 4
      %v3730 = vsel %vm3726, %v3710, %v3713
      %v3731 = vsel %vm3729, %v3719, 2102212464
      %v3732 = vsel %vm3728, %v3716, %v3731
      %v3733 = vsel %vm3727, %v3730, %v3732
      %v3734 = vsel %vm3726, %v3713, %v3716
      %v3735 = vsel %vm3729, %v3722, 920167782
      %v3736 = vsel %vm3728, %v3719, %v3735
      %v3737 = vsel %vm3727, %v3734, %v3736
      %v3738 = vsel %vm3726, %v3716, %v3719
      %v3739 = vsel %vm3729, %v3725, 1326507024
      %v3740 = vsel %vm3728, %v3722, %v3739
      %v3741 = vsel %vm3727, %v3738, %v3740
      %v3742 = vshll.u32 %v3702, 8
      %v3743 = vmul.u32.u64.compose %v3742, %v3741
      %v3744 = vextract.low.u32 %v3743
      %v3745 = vextract.high.u32 %v3743
      %v3746 = vmul.u32.u64.compose %v3742, %v3737
      %v3747 = vextract.low.u32 %v3746
      %v3748 = vextract.high.u32 %v3746
      %v3749 = vmul.u32 %v3742, %v3733
      %v3750 = vadd.s32 %v3745, %v3747
      %vm3751 = vc.u32 %v3745, %v3747
      %v3752 = vadd.s32 %v3748, 1
      %v3753 = vsel %vm3751, %v3752, %v3748
      %v3754 = vadd.s32 %v3749, %v3753
      %v3755 = vadd.s32 %v3754, 536870912
      %v3756 = vshrl.u32 %v3755, 30
      %v3757 = vshll.u32 %v3756, 30
      %v3758 = vsub.s32 %v3754, %v3757
      %vm3759 = vcmp.lt.s32.totalorder %v3758, 0
      %v3760 = vsub.s32 0, %v3758
      %v3761 = vsel %vm3759, %v3760, %v3758
      %v3762 = vclz %v3761
      %v3763 = vsub.s32 %v3762, 2
      %vm3764 = vcmp.gt.s32.totalorder 0, %v3763
      %v3765 = vsel %vm3764, 0, %v3763
      %v3766 = vsub.s32 32, %v3765
      %v3767 = vshll.u32 %v3758, %v3765
      %v3768 = vshrl.u32 %v3750, %v3766
      %v3769 = vor.u32 %v3767, %v3768
      %v3770 = vsub.s32 4294967266, %v3765
      %v3771 = vadd.s32 %v3770, 127
      %v3772 = vshll.u32 %v3771, 23
      %v3773 = vor.u32 4788187, %v3772
      %v3774 = vand.u32 2147483647, %v3773
      %v3776 = vcvt.s32.f32 %v3769
      %v3777 = vmul.f32 %v3776, %v3774
      %v3778 = vxor.u32 %v3777, 2147483648
      %v3779 = vsel %vm3696, %v3778, %v3777
      %v3780 = vsub.s32 4, %v3756
      %v3781 = vsel %vm3696, %v3780, %v3756
      %v3782 = vsel %vm3695, %v901, %v3779
      %v3783 = vsel %vm3695, 0, %v3781
      %v3784 = vcosq.f32.pop %v3782
      %v3785 = vsinq.f32.pop %v3782
      %vm3786 = vweird.f32 %v901
      %v3787 = vadd.s32 %v3783, 3
      %v3788 = vand.u32 %v3787, 3
      %vm3789 = vcmp.lt.s32.totalorder %v3788, 2
      %vm3790 = vcmp.eq.s32.totalorder %v3788, 0
      %v3791 = vxor.u32 %v3785, 2147483648
      %v3792 = vsel %vm3790, %v3784, %v3791
      %vm3793 = vcmp.eq.s32.totalorder %v3788, 2
      %v3794 = vxor.u32 %v3784, 2147483648
      %v3795 = vsel %vm3793, %v3794, %v3785
      %v3796 = vsel %vm3789, %v3792, %v3795
      %v3797 = vsel %vm3786, nan, %v3796
      %v3798 = vand.u32 2147483647, %v906
      %vm3799 = vcmp.le.f32.partialorder %v3798, 0.7853982
      %vm3800 = vcmp.lt.s32.totalorder %v906, 0
      %v3801 = vand.u32 %v906, 2139095040
      %v3802 = vshrl.u32 %v3801, 23
      %v3803 = vsub.s32 %v3802, 127
      %v3804 = vand.u32 2147483647, %v906
      %v3805 = vand.u32 %v3804, 8388607
      %v3806 = vor.u32 %v3805, 8388608
      %v3807 = vsub.s32 0, %v3806
      %v3808 = vadd.s32 %v3803, 1
      %vm3809 = vcmp.gt.s32.totalorder %v3808, 0
      %v3810 = vsel %vm3809, %v3808, 0
      %v3811 = vshrl.u32 %v3810, 5
      %v3812 = vand.u32 %v3810, 31
      %v3813 = vsub.s32 32, %v3812
      %v3814 = vshrl.u32 683565275, %v3813
      %v3815 = vshll.u32 683565275, %v3812
      %v3816 = vshrl.u32 2475754826, %v3813
      %v3817 = vor.u32 %v3815, %v3816
      %v3818 = vshll.u32 2475754826, %v3812
      %v3819 = vshrl.u32 2131351028, %v3813
      %v3820 = vor.u32 %v3818, %v3819
      %v3821 = vshll.u32 2131351028, %v3812
      %v3822 = vshrl.u32 2102212464, %v3813
      %v3823 = vor.u32 %v3821, %v3822
      %v3824 = vshll.u32 2102212464, %v3812
      %v3825 = vshrl.u32 920167782, %v3813
      %v3826 = vor.u32 %v3824, %v3825
      %v3827 = vshll.u32 920167782, %v3812
      %v3828 = vshrl.u32 1326507024, %v3813
      %v3829 = vor.u32 %v3827, %v3828
      %vm3830 = vcmp.lt.s32.totalorder %v3811, 1
      %vm3831 = vcmp.lt.s32.totalorder %v3811, 2
      %vm3832 = vcmp.lt.s32.totalorder %v3811, 3
      %vm3833 = vcmp.lt.s32.totalorder %v3811, 4
      %v3834 = vsel %vm3830, %v3814, %v3817
      %v3835 = vsel %vm3833, %v3823, 2102212464
      %v3836 = vsel %vm3832, %v3820, %v3835
      %v3837 = vsel %vm3831, %v3834, %v3836
      %v3838 = vsel %vm3830, %v3817, %v3820
      %v3839 = vsel %vm3833, %v3826, 920167782
      %v3840 = vsel %vm3832, %v3823, %v3839
      %v3841 = vsel %vm3831, %v3838, %v3840
      %v3842 = vsel %vm3830, %v3820, %v3823
      %v3843 = vsel %vm3833, %v3829, 1326507024
      %v3844 = vsel %vm3832, %v3826, %v3843
      %v3845 = vsel %vm3831, %v3842, %v3844
      %v3846 = vshll.u32 %v3806, 8
      %v3847 = vmul.u32.u64.compose %v3846, %v3845
      %v3848 = vextract.low.u32 %v3847
      %v3849 = vextract.high.u32 %v3847
      %v3850 = vmul.u32.u64.compose %v3846, %v3841
      %v3851 = vextract.low.u32 %v3850
      %v3852 = vextract.high.u32 %v3850
      %v3853 = vmul.u32 %v3846, %v3837
      %v3854 = vadd.s32 %v3849, %v3851
      %vm3855 = vc.u32 %v3849, %v3851
      %v3856 = vadd.s32 %v3852, 1
      %v3857 = vsel %vm3855, %v3856, %v3852
      %v3858 = vadd.s32 %v3853, %v3857
      %v3859 = vadd.s32 %v3858, 536870912
      %v3860 = vshrl.u32 %v3859, 30
      %v3861 = vshll.u32 %v3860, 30
      %v3862 = vsub.s32 %v3858, %v3861
      %vm3863 = vcmp.lt.s32.totalorder %v3862, 0
      %v3864 = vsub.s32 0, %v3862
      %v3865 = vsel %vm3863, %v3864, %v3862
      %v3866 = vclz %v3865
      %v3867 = vsub.s32 %v3866, 2
      %vm3868 = vcmp.gt.s32.totalorder 0, %v3867
      %v3869 = vsel %vm3868, 0, %v3867
      %v3870 = vsub.s32 32, %v3869
      %v3871 = vshll.u32 %v3862, %v3869
      %v3872 = vshrl.u32 %v3854, %v3870
      %v3873 = vor.u32 %v3871, %v3872
      %v3874 = vsub.s32 4294967266, %v3869
      %v3875 = vadd.s32 %v3874, 127
      %v3876 = vshll.u32 %v3875, 23
      %v3877 = vor.u32 4788187, %v3876
      %v3878 = vand.u32 2147483647, %v3877
      %v3880 = vcvt.s32.f32 %v3873
      %v3881 = vmul.f32 %v3880, %v3878
      %v3882 = vxor.u32 %v3881, 2147483648
      %v3883 = vsel %vm3800, %v3882, %v3881
      %v3884 = vsub.s32 4, %v3860
      %v3885 = vsel %vm3800, %v3884, %v3860
      %v3886 = vsel %vm3799, %v906, %v3883
      %v3887 = vsel %vm3799, 0, %v3885
      %v3888 = vcosq.f32.pop %v3886
      %v3889 = vsinq.f32.pop %v3886
      %vm3890 = vweird.f32 %v906
      %v3891 = vadd.s32 %v3887, 3
      %v3892 = vand.u32 %v3891, 3
      %vm3893 = vcmp.lt.s32.totalorder %v3892, 2
      %vm3894 = vcmp.eq.s32.totalorder %v3892, 0
      %v3895 = vxor.u32 %v3889, 2147483648
      %v3896 = vsel %vm3894, %v3888, %v3895
      %vm3897 = vcmp.eq.s32.totalorder %v3892, 2
      %v3898 = vxor.u32 %v3888, 2147483648
      %v3899 = vsel %vm3897, %v3898, %v3889
      %v3900 = vsel %vm3893, %v3896, %v3899
      %v3901 = vsel %vm3890, nan, %v3900
      %v3902 = vand.u32 2147483647, %v911
      %vm3903 = vcmp.le.f32.partialorder %v3902, 0.7853982
      %vm3904 = vcmp.lt.s32.totalorder %v911, 0
      %v3905 = vand.u32 %v911, 2139095040
      %v3906 = vshrl.u32 %v3905, 23
      %v3907 = vsub.s32 %v3906, 127
      %v3908 = vand.u32 2147483647, %v911
      %v3909 = vand.u32 %v3908, 8388607
      %v3910 = vor.u32 %v3909, 8388608
      %v3911 = vsub.s32 0, %v3910
      %v3912 = vadd.s32 %v3907, 1
      %vm3913 = vcmp.gt.s32.totalorder %v3912, 0
      %v3914 = vsel %vm3913, %v3912, 0
      %v3915 = vshrl.u32 %v3914, 5
      %v3916 = vand.u32 %v3914, 31
      %v3917 = vsub.s32 32, %v3916
      %v3918 = vshrl.u32 683565275, %v3917
      %v3919 = vshll.u32 683565275, %v3916
      %v3920 = vshrl.u32 2475754826, %v3917
      %v3921 = vor.u32 %v3919, %v3920
      %v3922 = vshll.u32 2475754826, %v3916
      %v3923 = vshrl.u32 2131351028, %v3917
      %v3924 = vor.u32 %v3922, %v3923
      %v3925 = vshll.u32 2131351028, %v3916
      %v3926 = vshrl.u32 2102212464, %v3917
      %v3927 = vor.u32 %v3925, %v3926
      %v3928 = vshll.u32 2102212464, %v3916
      %v3929 = vshrl.u32 920167782, %v3917
      %v3930 = vor.u32 %v3928, %v3929
      %v3931 = vshll.u32 920167782, %v3916
      %v3932 = vshrl.u32 1326507024, %v3917
      %v3933 = vor.u32 %v3931, %v3932
      %vm3934 = vcmp.lt.s32.totalorder %v3915, 1
      %vm3935 = vcmp.lt.s32.totalorder %v3915, 2
      %vm3936 = vcmp.lt.s32.totalorder %v3915, 3
      %vm3937 = vcmp.lt.s32.totalorder %v3915, 4
      %v3938 = vsel %vm3934, %v3918, %v3921
      %v3939 = vsel %vm3937, %v3927, 2102212464
      %v3940 = vsel %vm3936, %v3924, %v3939
      %v3941 = vsel %vm3935, %v3938, %v3940
      %v3942 = vsel %vm3934, %v3921, %v3924
      %v3943 = vsel %vm3937, %v3930, 920167782
      %v3944 = vsel %vm3936, %v3927, %v3943
      %v3945 = vsel %vm3935, %v3942, %v3944
      %v3946 = vsel %vm3934, %v3924, %v3927
      %v3947 = vsel %vm3937, %v3933, 1326507024
      %v3948 = vsel %vm3936, %v3930, %v3947
      %v3949 = vsel %vm3935, %v3946, %v3948
      %v3950 = vshll.u32 %v3910, 8
      %v3951 = vmul.u32.u64.compose %v3950, %v3949
      %v3952 = vextract.low.u32 %v3951
      %v3953 = vextract.high.u32 %v3951
      %v3954 = vmul.u32.u64.compose %v3950, %v3945
      %v3955 = vextract.low.u32 %v3954
      %v3956 = vextract.high.u32 %v3954
      %v3957 = vmul.u32 %v3950, %v3941
      %v3958 = vadd.s32 %v3953, %v3955
      %vm3959 = vc.u32 %v3953, %v3955
      %v3960 = vadd.s32 %v3956, 1
      %v3961 = vsel %vm3959, %v3960, %v3956
      %v3962 = vadd.s32 %v3957, %v3961
      %v3963 = vadd.s32 %v3962, 536870912
      %v3964 = vshrl.u32 %v3963, 30
      %v3965 = vshll.u32 %v3964, 30
      %v3966 = vsub.s32 %v3962, %v3965
      %vm3967 = vcmp.lt.s32.totalorder %v3966, 0
      %v3968 = vsub.s32 0, %v3966
      %v3969 = vsel %vm3967, %v3968, %v3966
      %v3970 = vclz %v3969
      %v3971 = vsub.s32 %v3970, 2
      %vm3972 = vcmp.gt.s32.totalorder 0, %v3971
      %v3973 = vsel %vm3972, 0, %v3971
      %v3974 = vsub.s32 32, %v3973
      %v3975 = vshll.u32 %v3966, %v3973
      %v3976 = vshrl.u32 %v3958, %v3974
      %v3977 = vor.u32 %v3975, %v3976
      %v3978 = vsub.s32 4294967266, %v3973
      %v3979 = vadd.s32 %v3978, 127
      %v3980 = vshll.u32 %v3979, 23
      %v3981 = vor.u32 4788187, %v3980
      %v3982 = vand.u32 2147483647, %v3981
      %v3984 = vcvt.s32.f32 %v3977
      %v3985 = vmul.f32 %v3984, %v3982
      %v3986 = vxor.u32 %v3985, 2147483648
      %v3987 = vsel %vm3904, %v3986, %v3985
      %v3988 = vsub.s32 4, %v3964
      %v3989 = vsel %vm3904, %v3988, %v3964
      %v3990 = vsel %vm3903, %v911, %v3987
      %v3991 = vsel %vm3903, 0, %v3989
      %v3992 = vcosq.f32.pop %v3990
      %v3993 = vsinq.f32.pop %v3990
      %vm3994 = vweird.f32 %v911
      %v3995 = vadd.s32 %v3991, 3
      %v3996 = vand.u32 %v3995, 3
      %vm3997 = vcmp.lt.s32.totalorder %v3996, 2
      %vm3998 = vcmp.eq.s32.totalorder %v3996, 0
      %v3999 = vxor.u32 %v3993, 2147483648
      %v4000 = vsel %vm3998, %v3992, %v3999
      %vm4001 = vcmp.eq.s32.totalorder %v3996, 2
      %v4002 = vxor.u32 %v3992, 2147483648
      %v4003 = vsel %vm4001, %v4002, %v3993
      %v4004 = vsel %vm3997, %v4000, %v4003
      %v4005 = vsel %vm3994, nan, %v4004
      %v4006 = vand.u32 2147483647, %v916
      %vm4007 = vcmp.le.f32.partialorder %v4006, 0.7853982
      %vm4008 = vcmp.lt.s32.totalorder %v916, 0
      %v4009 = vand.u32 %v916, 2139095040
      %v4010 = vshrl.u32 %v4009, 23
      %v4011 = vsub.s32 %v4010, 127
      %v4012 = vand.u32 2147483647, %v916
      %v4013 = vand.u32 %v4012, 8388607
      %v4014 = vor.u32 %v4013, 8388608
      %v4015 = vsub.s32 0, %v4014
      %v4016 = vadd.s32 %v4011, 1
      %vm4017 = vcmp.gt.s32.totalorder %v4016, 0
      %v4018 = vsel %vm4017, %v4016, 0
      %v4019 = vshrl.u32 %v4018, 5
      %v4020 = vand.u32 %v4018, 31
      %v4021 = vsub.s32 32, %v4020
      %v4022 = vshrl.u32 683565275, %v4021
      %v4023 = vshll.u32 683565275, %v4020
      %v4024 = vshrl.u32 2475754826, %v4021
      %v4025 = vor.u32 %v4023, %v4024
      %v4026 = vshll.u32 2475754826, %v4020
      %v4027 = vshrl.u32 2131351028, %v4021
      %v4028 = vor.u32 %v4026, %v4027
      %v4029 = vshll.u32 2131351028, %v4020
      %v4030 = vshrl.u32 2102212464, %v4021
      %v4031 = vor.u32 %v4029, %v4030
      %v4032 = vshll.u32 2102212464, %v4020
      %v4033 = vshrl.u32 920167782, %v4021
      %v4034 = vor.u32 %v4032, %v4033
      %v4035 = vshll.u32 920167782, %v4020
      %v4036 = vshrl.u32 1326507024, %v4021
      %v4037 = vor.u32 %v4035, %v4036
      %vm4038 = vcmp.lt.s32.totalorder %v4019, 1
      %vm4039 = vcmp.lt.s32.totalorder %v4019, 2
      %vm4040 = vcmp.lt.s32.totalorder %v4019, 3
      %vm4041 = vcmp.lt.s32.totalorder %v4019, 4
      %v4042 = vsel %vm4038, %v4022, %v4025
      %v4043 = vsel %vm4041, %v4031, 2102212464
      %v4044 = vsel %vm4040, %v4028, %v4043
      %v4045 = vsel %vm4039, %v4042, %v4044
      %v4046 = vsel %vm4038, %v4025, %v4028
      %v4047 = vsel %vm4041, %v4034, 920167782
      %v4048 = vsel %vm4040, %v4031, %v4047
      %v4049 = vsel %vm4039, %v4046, %v4048
      %v4050 = vsel %vm4038, %v4028, %v4031
      %v4051 = vsel %vm4041, %v4037, 1326507024
      %v4052 = vsel %vm4040, %v4034, %v4051
      %v4053 = vsel %vm4039, %v4050, %v4052
      %v4054 = vshll.u32 %v4014, 8
      %v4055 = vmul.u32.u64.compose %v4054, %v4053
      %v4056 = vextract.low.u32 %v4055
      %v4057 = vextract.high.u32 %v4055
      %v4058 = vmul.u32.u64.compose %v4054, %v4049
      %v4059 = vextract.low.u32 %v4058
      %v4060 = vextract.high.u32 %v4058
      %v4061 = vmul.u32 %v4054, %v4045
      %v4062 = vadd.s32 %v4057, %v4059
      %vm4063 = vc.u32 %v4057, %v4059
      %v4064 = vadd.s32 %v4060, 1
      %v4065 = vsel %vm4063, %v4064, %v4060
      %v4066 = vadd.s32 %v4061, %v4065
      %v4067 = vadd.s32 %v4066, 536870912
      %v4068 = vshrl.u32 %v4067, 30
      %v4069 = vshll.u32 %v4068, 30
      %v4070 = vsub.s32 %v4066, %v4069
      %vm4071 = vcmp.lt.s32.totalorder %v4070, 0
      %v4072 = vsub.s32 0, %v4070
      %v4073 = vsel %vm4071, %v4072, %v4070
      %v4074 = vclz %v4073
      %v4075 = vsub.s32 %v4074, 2
      %vm4076 = vcmp.gt.s32.totalorder 0, %v4075
      %v4077 = vsel %vm4076, 0, %v4075
      %v4078 = vsub.s32 32, %v4077
      %v4079 = vshll.u32 %v4070, %v4077
      %v4080 = vshrl.u32 %v4062, %v4078
      %v4081 = vor.u32 %v4079, %v4080
      %v4082 = vsub.s32 4294967266, %v4077
      %v4083 = vadd.s32 %v4082, 127
      %v4084 = vshll.u32 %v4083, 23
      %v4085 = vor.u32 4788187, %v4084
      %v4086 = vand.u32 2147483647, %v4085
      %v4088 = vcvt.s32.f32 %v4081
      %v4089 = vmul.f32 %v4088, %v4086
      %v4090 = vxor.u32 %v4089, 2147483648
      %v4091 = vsel %vm4008, %v4090, %v4089
      %v4092 = vsub.s32 4, %v4068
      %v4093 = vsel %vm4008, %v4092, %v4068
      %v4094 = vsel %vm4007, %v916, %v4091
      %v4095 = vsel %vm4007, 0, %v4093
      %v4096 = vcosq.f32.pop %v4094
      %v4097 = vsinq.f32.pop %v4094
      %vm4098 = vweird.f32 %v916
      %v4099 = vadd.s32 %v4095, 3
      %v4100 = vand.u32 %v4099, 3
      %vm4101 = vcmp.lt.s32.totalorder %v4100, 2
      %vm4102 = vcmp.eq.s32.totalorder %v4100, 0
      %v4103 = vxor.u32 %v4097, 2147483648
      %v4104 = vsel %vm4102, %v4096, %v4103
      %vm4105 = vcmp.eq.s32.totalorder %v4100, 2
      %v4106 = vxor.u32 %v4096, 2147483648
      %v4107 = vsel %vm4105, %v4106, %v4097
      %v4108 = vsel %vm4101, %v4104, %v4107
      %v4109 = vsel %vm4098, nan, %v4108
      %v4110 = vand.u32 2147483647, %v921
      %vm4111 = vcmp.le.f32.partialorder %v4110, 0.7853982
      %vm4112 = vcmp.lt.s32.totalorder %v921, 0
      %v4113 = vand.u32 %v921, 2139095040
      %v4114 = vshrl.u32 %v4113, 23
      %v4115 = vsub.s32 %v4114, 127
      %v4116 = vand.u32 2147483647, %v921
      %v4117 = vand.u32 %v4116, 8388607
      %v4118 = vor.u32 %v4117, 8388608
      %v4119 = vsub.s32 0, %v4118
      %v4120 = vadd.s32 %v4115, 1
      %vm4121 = vcmp.gt.s32.totalorder %v4120, 0
      %v4122 = vsel %vm4121, %v4120, 0
      %v4123 = vshrl.u32 %v4122, 5
      %v4124 = vand.u32 %v4122, 31
      %v4125 = vsub.s32 32, %v4124
      %v4126 = vshrl.u32 683565275, %v4125
      %v4127 = vshll.u32 683565275, %v4124
      %v4128 = vshrl.u32 2475754826, %v4125
      %v4129 = vor.u32 %v4127, %v4128
      %v4130 = vshll.u32 2475754826, %v4124
      %v4131 = vshrl.u32 2131351028, %v4125
      %v4132 = vor.u32 %v4130, %v4131
      %v4133 = vshll.u32 2131351028, %v4124
      %v4134 = vshrl.u32 2102212464, %v4125
      %v4135 = vor.u32 %v4133, %v4134
      %v4136 = vshll.u32 2102212464, %v4124
      %v4137 = vshrl.u32 920167782, %v4125
      %v4138 = vor.u32 %v4136, %v4137
      %v4139 = vshll.u32 920167782, %v4124
      %v4140 = vshrl.u32 1326507024, %v4125
      %v4141 = vor.u32 %v4139, %v4140
      %vm4142 = vcmp.lt.s32.totalorder %v4123, 1
      %vm4143 = vcmp.lt.s32.totalorder %v4123, 2
      %vm4144 = vcmp.lt.s32.totalorder %v4123, 3
      %vm4145 = vcmp.lt.s32.totalorder %v4123, 4
      %v4146 = vsel %vm4142, %v4126, %v4129
      %v4147 = vsel %vm4145, %v4135, 2102212464
      %v4148 = vsel %vm4144, %v4132, %v4147
      %v4149 = vsel %vm4143, %v4146, %v4148
      %v4150 = vsel %vm4142, %v4129, %v4132
      %v4151 = vsel %vm4145, %v4138, 920167782
      %v4152 = vsel %vm4144, %v4135, %v4151
      %v4153 = vsel %vm4143, %v4150, %v4152
      %v4154 = vsel %vm4142, %v4132, %v4135
      %v4155 = vsel %vm4145, %v4141, 1326507024
      %v4156 = vsel %vm4144, %v4138, %v4155
      %v4157 = vsel %vm4143, %v4154, %v4156
      %v4158 = vshll.u32 %v4118, 8
      %v4159 = vmul.u32.u64.compose %v4158, %v4157
      %v4160 = vextract.low.u32 %v4159
      %v4161 = vextract.high.u32 %v4159
      %v4162 = vmul.u32.u64.compose %v4158, %v4153
      %v4163 = vextract.low.u32 %v4162
      %v4164 = vextract.high.u32 %v4162
      %v4165 = vmul.u32 %v4158, %v4149
      %v4166 = vadd.s32 %v4161, %v4163
      %vm4167 = vc.u32 %v4161, %v4163
      %v4168 = vadd.s32 %v4164, 1
      %v4169 = vsel %vm4167, %v4168, %v4164
      %v4170 = vadd.s32 %v4165, %v4169
      %v4171 = vadd.s32 %v4170, 536870912
      %v4172 = vshrl.u32 %v4171, 30
      %v4173 = vshll.u32 %v4172, 30
      %v4174 = vsub.s32 %v4170, %v4173
      %vm4175 = vcmp.lt.s32.totalorder %v4174, 0
      %v4176 = vsub.s32 0, %v4174
      %v4177 = vsel %vm4175, %v4176, %v4174
      %v4178 = vclz %v4177
      %v4179 = vsub.s32 %v4178, 2
      %vm4180 = vcmp.gt.s32.totalorder 0, %v4179
      %v4181 = vsel %vm4180, 0, %v4179
      %v4182 = vsub.s32 32, %v4181
      %v4183 = vshll.u32 %v4174, %v4181
      %v4184 = vshrl.u32 %v4166, %v4182
      %v4185 = vor.u32 %v4183, %v4184
      %v4186 = vsub.s32 4294967266, %v4181
      %v4187 = vadd.s32 %v4186, 127
      %v4188 = vshll.u32 %v4187, 23
      %v4189 = vor.u32 4788187, %v4188
      %v4190 = vand.u32 2147483647, %v4189
      %v4192 = vcvt.s32.f32 %v4185
      %v4193 = vmul.f32 %v4192, %v4190
      %v4194 = vxor.u32 %v4193, 2147483648
      %v4195 = vsel %vm4112, %v4194, %v4193
      %v4196 = vsub.s32 4, %v4172
      %v4197 = vsel %vm4112, %v4196, %v4172
      %v4198 = vsel %vm4111, %v921, %v4195
      %v4199 = vsel %vm4111, 0, %v4197
      %v4200 = vcosq.f32.pop %v4198
      %v4201 = vsinq.f32.pop %v4198
      %vm4202 = vweird.f32 %v921
      %v4203 = vadd.s32 %v4199, 3
      %v4204 = vand.u32 %v4203, 3
      %vm4205 = vcmp.lt.s32.totalorder %v4204, 2
      %vm4206 = vcmp.eq.s32.totalorder %v4204, 0
      %v4207 = vxor.u32 %v4201, 2147483648
      %v4208 = vsel %vm4206, %v4200, %v4207
      %vm4209 = vcmp.eq.s32.totalorder %v4204, 2
      %v4210 = vxor.u32 %v4200, 2147483648
      %v4211 = vsel %vm4209, %v4210, %v4201
      %v4212 = vsel %vm4205, %v4208, %v4211
      %v4213 = vsel %vm4202, nan, %v4212
      %v4214 = vand.u32 2147483647, %v926
      %vm4215 = vcmp.le.f32.partialorder %v4214, 0.7853982
      %vm4216 = vcmp.lt.s32.totalorder %v926, 0
      %v4217 = vand.u32 %v926, 2139095040
      %v4218 = vshrl.u32 %v4217, 23
      %v4219 = vsub.s32 %v4218, 127
      %v4220 = vand.u32 2147483647, %v926
      %v4221 = vand.u32 %v4220, 8388607
      %v4222 = vor.u32 %v4221, 8388608
      %v4223 = vsub.s32 0, %v4222
      %v4224 = vadd.s32 %v4219, 1
      %vm4225 = vcmp.gt.s32.totalorder %v4224, 0
      %v4226 = vsel %vm4225, %v4224, 0
      %v4227 = vshrl.u32 %v4226, 5
      %v4228 = vand.u32 %v4226, 31
      %v4229 = vsub.s32 32, %v4228
      %v4230 = vshrl.u32 683565275, %v4229
      %v4231 = vshll.u32 683565275, %v4228
      %v4232 = vshrl.u32 2475754826, %v4229
      %v4233 = vor.u32 %v4231, %v4232
      %v4234 = vshll.u32 2475754826, %v4228
      %v4235 = vshrl.u32 2131351028, %v4229
      %v4236 = vor.u32 %v4234, %v4235
      %v4237 = vshll.u32 2131351028, %v4228
      %v4238 = vshrl.u32 2102212464, %v4229
      %v4239 = vor.u32 %v4237, %v4238
      %v4240 = vshll.u32 2102212464, %v4228
      %v4241 = vshrl.u32 920167782, %v4229
      %v4242 = vor.u32 %v4240, %v4241
      %v4243 = vshll.u32 920167782, %v4228
      %v4244 = vshrl.u32 1326507024, %v4229
      %v4245 = vor.u32 %v4243, %v4244
      %vm4246 = vcmp.lt.s32.totalorder %v4227, 1
      %vm4247 = vcmp.lt.s32.totalorder %v4227, 2
      %vm4248 = vcmp.lt.s32.totalorder %v4227, 3
      %vm4249 = vcmp.lt.s32.totalorder %v4227, 4
      %v4250 = vsel %vm4246, %v4230, %v4233
      %v4251 = vsel %vm4249, %v4239, 2102212464
      %v4252 = vsel %vm4248, %v4236, %v4251
      %v4253 = vsel %vm4247, %v4250, %v4252
      %v4254 = vsel %vm4246, %v4233, %v4236
      %v4255 = vsel %vm4249, %v4242, 920167782
      %v4256 = vsel %vm4248, %v4239, %v4255
      %v4257 = vsel %vm4247, %v4254, %v4256
      %v4258 = vsel %vm4246, %v4236, %v4239
      %v4259 = vsel %vm4249, %v4245, 1326507024
      %v4260 = vsel %vm4248, %v4242, %v4259
      %v4261 = vsel %vm4247, %v4258, %v4260
      %v4262 = vshll.u32 %v4222, 8
      %v4263 = vmul.u32.u64.compose %v4262, %v4261
      %v4264 = vextract.low.u32 %v4263
      %v4265 = vextract.high.u32 %v4263
      %v4266 = vmul.u32.u64.compose %v4262, %v4257
      %v4267 = vextract.low.u32 %v4266
      %v4268 = vextract.high.u32 %v4266
      %v4269 = vmul.u32 %v4262, %v4253
      %v4270 = vadd.s32 %v4265, %v4267
      %vm4271 = vc.u32 %v4265, %v4267
      %v4272 = vadd.s32 %v4268, 1
      %v4273 = vsel %vm4271, %v4272, %v4268
      %v4274 = vadd.s32 %v4269, %v4273
      %v4275 = vadd.s32 %v4274, 536870912
      %v4276 = vshrl.u32 %v4275, 30
      %v4277 = vshll.u32 %v4276, 30
      %v4278 = vsub.s32 %v4274, %v4277
      %vm4279 = vcmp.lt.s32.totalorder %v4278, 0
      %v4280 = vsub.s32 0, %v4278
      %v4281 = vsel %vm4279, %v4280, %v4278
      %v4282 = vclz %v4281
      %v4283 = vsub.s32 %v4282, 2
      %vm4284 = vcmp.gt.s32.totalorder 0, %v4283
      %v4285 = vsel %vm4284, 0, %v4283
      %v4286 = vsub.s32 32, %v4285
      %v4287 = vshll.u32 %v4278, %v4285
      %v4288 = vshrl.u32 %v4270, %v4286
      %v4289 = vor.u32 %v4287, %v4288
      %v4290 = vsub.s32 4294967266, %v4285
      %v4291 = vadd.s32 %v4290, 127
      %v4292 = vshll.u32 %v4291, 23
      %v4293 = vor.u32 4788187, %v4292
      %v4294 = vand.u32 2147483647, %v4293
      %v4296 = vcvt.s32.f32 %v4289
      %v4297 = vmul.f32 %v4296, %v4294
      %v4298 = vxor.u32 %v4297, 2147483648
      %v4299 = vsel %vm4216, %v4298, %v4297
      %v4300 = vsub.s32 4, %v4276
      %v4301 = vsel %vm4216, %v4300, %v4276
      %v4302 = vsel %vm4215, %v926, %v4299
      %v4303 = vsel %vm4215, 0, %v4301
      %v4304 = vcosq.f32.pop %v4302
      %v4305 = vsinq.f32.pop %v4302
      %vm4306 = vweird.f32 %v926
      %v4307 = vadd.s32 %v4303, 3
      %v4308 = vand.u32 %v4307, 3
      %vm4309 = vcmp.lt.s32.totalorder %v4308, 2
      %vm4310 = vcmp.eq.s32.totalorder %v4308, 0
      %v4311 = vxor.u32 %v4305, 2147483648
      %v4312 = vsel %vm4310, %v4304, %v4311
      %vm4313 = vcmp.eq.s32.totalorder %v4308, 2
      %v4314 = vxor.u32 %v4304, 2147483648
      %v4315 = vsel %vm4313, %v4314, %v4305
      %v4316 = vsel %vm4309, %v4312, %v4315
      %v4317 = vsel %vm4306, nan, %v4316
      %v4318 = vand.u32 2147483647, %v931
      %vm4319 = vcmp.le.f32.partialorder %v4318, 0.7853982
      %vm4320 = vcmp.lt.s32.totalorder %v931, 0
      %v4321 = vand.u32 %v931, 2139095040
      %v4322 = vshrl.u32 %v4321, 23
      %v4323 = vsub.s32 %v4322, 127
      %v4324 = vand.u32 2147483647, %v931
      %v4325 = vand.u32 %v4324, 8388607
      %v4326 = vor.u32 %v4325, 8388608
      %v4327 = vsub.s32 0, %v4326
      %v4328 = vadd.s32 %v4323, 1
      %vm4329 = vcmp.gt.s32.totalorder %v4328, 0
      %v4330 = vsel %vm4329, %v4328, 0
      %v4331 = vshrl.u32 %v4330, 5
      %v4332 = vand.u32 %v4330, 31
      %v4333 = vsub.s32 32, %v4332
      %v4334 = vshrl.u32 683565275, %v4333
      %v4335 = vshll.u32 683565275, %v4332
      %v4336 = vshrl.u32 2475754826, %v4333
      %v4337 = vor.u32 %v4335, %v4336
      %v4338 = vshll.u32 2475754826, %v4332
      %v4339 = vshrl.u32 2131351028, %v4333
      %v4340 = vor.u32 %v4338, %v4339
      %v4341 = vshll.u32 2131351028, %v4332
      %v4342 = vshrl.u32 2102212464, %v4333
      %v4343 = vor.u32 %v4341, %v4342
      %v4344 = vshll.u32 2102212464, %v4332
      %v4345 = vshrl.u32 920167782, %v4333
      %v4346 = vor.u32 %v4344, %v4345
      %v4347 = vshll.u32 920167782, %v4332
      %v4348 = vshrl.u32 1326507024, %v4333
      %v4349 = vor.u32 %v4347, %v4348
      %vm4350 = vcmp.lt.s32.totalorder %v4331, 1
      %vm4351 = vcmp.lt.s32.totalorder %v4331, 2
      %vm4352 = vcmp.lt.s32.totalorder %v4331, 3
      %vm4353 = vcmp.lt.s32.totalorder %v4331, 4
      %v4354 = vsel %vm4350, %v4334, %v4337
      %v4355 = vsel %vm4353, %v4343, 2102212464
      %v4356 = vsel %vm4352, %v4340, %v4355
      %v4357 = vsel %vm4351, %v4354, %v4356
      %v4358 = vsel %vm4350, %v4337, %v4340
      %v4359 = vsel %vm4353, %v4346, 920167782
      %v4360 = vsel %vm4352, %v4343, %v4359
      %v4361 = vsel %vm4351, %v4358, %v4360
      %v4362 = vsel %vm4350, %v4340, %v4343
      %v4363 = vsel %vm4353, %v4349, 1326507024
      %v4364 = vsel %vm4352, %v4346, %v4363
      %v4365 = vsel %vm4351, %v4362, %v4364
      %v4366 = vshll.u32 %v4326, 8
      %v4367 = vmul.u32.u64.compose %v4366, %v4365
      %v4368 = vextract.low.u32 %v4367
      %v4369 = vextract.high.u32 %v4367
      %v4370 = vmul.u32.u64.compose %v4366, %v4361
      %v4371 = vextract.low.u32 %v4370
      %v4372 = vextract.high.u32 %v4370
      %v4373 = vmul.u32 %v4366, %v4357
      %v4374 = vadd.s32 %v4369, %v4371
      %vm4375 = vc.u32 %v4369, %v4371
      %v4376 = vadd.s32 %v4372, 1
      %v4377 = vsel %vm4375, %v4376, %v4372
      %v4378 = vadd.s32 %v4373, %v4377
      %v4379 = vadd.s32 %v4378, 536870912
      %v4380 = vshrl.u32 %v4379, 30
      %v4381 = vshll.u32 %v4380, 30
      %v4382 = vsub.s32 %v4378, %v4381
      %vm4383 = vcmp.lt.s32.totalorder %v4382, 0
      %v4384 = vsub.s32 0, %v4382
      %v4385 = vsel %vm4383, %v4384, %v4382
      %v4386 = vclz %v4385
      %v4387 = vsub.s32 %v4386, 2
      %vm4388 = vcmp.gt.s32.totalorder 0, %v4387
      %v4389 = vsel %vm4388, 0, %v4387
      %v4390 = vsub.s32 32, %v4389
      %v4391 = vshll.u32 %v4382, %v4389
      %v4392 = vshrl.u32 %v4374, %v4390
      %v4393 = vor.u32 %v4391, %v4392
      %v4394 = vsub.s32 4294967266, %v4389
      %v4395 = vadd.s32 %v4394, 127
      %v4396 = vshll.u32 %v4395, 23
      %v4397 = vor.u32 4788187, %v4396
      %v4398 = vand.u32 2147483647, %v4397
      %v4400 = vcvt.s32.f32 %v4393
      %v4401 = vmul.f32 %v4400, %v4398
      %v4402 = vxor.u32 %v4401, 2147483648
      %v4403 = vsel %vm4320, %v4402, %v4401
      %v4404 = vsub.s32 4, %v4380
      %v4405 = vsel %vm4320, %v4404, %v4380
      %v4406 = vsel %vm4319, %v931, %v4403
      %v4407 = vsel %vm4319, 0, %v4405
      %v4408 = vcosq.f32.pop %v4406
      %v4409 = vsinq.f32.pop %v4406
      %vm4410 = vweird.f32 %v931
      %v4411 = vadd.s32 %v4407, 3
      %v4412 = vand.u32 %v4411, 3
      %vm4413 = vcmp.lt.s32.totalorder %v4412, 2
      %vm4414 = vcmp.eq.s32.totalorder %v4412, 0
      %v4415 = vxor.u32 %v4409, 2147483648
      %v4416 = vsel %vm4414, %v4408, %v4415
      %vm4417 = vcmp.eq.s32.totalorder %v4412, 2
      %v4418 = vxor.u32 %v4408, 2147483648
      %v4419 = vsel %vm4417, %v4418, %v4409
      %v4420 = vsel %vm4413, %v4416, %v4419
      %v4421 = vsel %vm4410, nan, %v4420
      %v4422 = vand.u32 2147483647, %v936
      %vm4423 = vcmp.le.f32.partialorder %v4422, 0.7853982
      %vm4424 = vcmp.lt.s32.totalorder %v936, 0
      %v4425 = vand.u32 %v936, 2139095040
      %v4426 = vshrl.u32 %v4425, 23
      %v4427 = vsub.s32 %v4426, 127
      %v4428 = vand.u32 2147483647, %v936
      %v4429 = vand.u32 %v4428, 8388607
      %v4430 = vor.u32 %v4429, 8388608
      %v4431 = vsub.s32 0, %v4430
      %v4432 = vadd.s32 %v4427, 1
      %vm4433 = vcmp.gt.s32.totalorder %v4432, 0
      %v4434 = vsel %vm4433, %v4432, 0
      %v4435 = vshrl.u32 %v4434, 5
      %v4436 = vand.u32 %v4434, 31
      %v4437 = vsub.s32 32, %v4436
      %v4438 = vshrl.u32 683565275, %v4437
      %v4439 = vshll.u32 683565275, %v4436
      %v4440 = vshrl.u32 2475754826, %v4437
      %v4441 = vor.u32 %v4439, %v4440
      %v4442 = vshll.u32 2475754826, %v4436
      %v4443 = vshrl.u32 2131351028, %v4437
      %v4444 = vor.u32 %v4442, %v4443
      %v4445 = vshll.u32 2131351028, %v4436
      %v4446 = vshrl.u32 2102212464, %v4437
      %v4447 = vor.u32 %v4445, %v4446
      %v4448 = vshll.u32 2102212464, %v4436
      %v4449 = vshrl.u32 920167782, %v4437
      %v4450 = vor.u32 %v4448, %v4449
      %v4451 = vshll.u32 920167782, %v4436
      %v4452 = vshrl.u32 1326507024, %v4437
      %v4453 = vor.u32 %v4451, %v4452
      %vm4454 = vcmp.lt.s32.totalorder %v4435, 1
      %vm4455 = vcmp.lt.s32.totalorder %v4435, 2
      %vm4456 = vcmp.lt.s32.totalorder %v4435, 3
      %vm4457 = vcmp.lt.s32.totalorder %v4435, 4
      %v4458 = vsel %vm4454, %v4438, %v4441
      %v4459 = vsel %vm4457, %v4447, 2102212464
      %v4460 = vsel %vm4456, %v4444, %v4459
      %v4461 = vsel %vm4455, %v4458, %v4460
      %v4462 = vsel %vm4454, %v4441, %v4444
      %v4463 = vsel %vm4457, %v4450, 920167782
      %v4464 = vsel %vm4456, %v4447, %v4463
      %v4465 = vsel %vm4455, %v4462, %v4464
      %v4466 = vsel %vm4454, %v4444, %v4447
      %v4467 = vsel %vm4457, %v4453, 1326507024
      %v4468 = vsel %vm4456, %v4450, %v4467
      %v4469 = vsel %vm4455, %v4466, %v4468
      %v4470 = vshll.u32 %v4430, 8
      %v4471 = vmul.u32.u64.compose %v4470, %v4469
      %v4472 = vextract.low.u32 %v4471
      %v4473 = vextract.high.u32 %v4471
      %v4474 = vmul.u32.u64.compose %v4470, %v4465
      %v4475 = vextract.low.u32 %v4474
      %v4476 = vextract.high.u32 %v4474
      %v4477 = vmul.u32 %v4470, %v4461
      %v4478 = vadd.s32 %v4473, %v4475
      %vm4479 = vc.u32 %v4473, %v4475
      %v4480 = vadd.s32 %v4476, 1
      %v4481 = vsel %vm4479, %v4480, %v4476
      %v4482 = vadd.s32 %v4477, %v4481
      %v4483 = vadd.s32 %v4482, 536870912
      %v4484 = vshrl.u32 %v4483, 30
      %v4485 = vshll.u32 %v4484, 30
      %v4486 = vsub.s32 %v4482, %v4485
      %vm4487 = vcmp.lt.s32.totalorder %v4486, 0
      %v4488 = vsub.s32 0, %v4486
      %v4489 = vsel %vm4487, %v4488, %v4486
      %v4490 = vclz %v4489
      %v4491 = vsub.s32 %v4490, 2
      %vm4492 = vcmp.gt.s32.totalorder 0, %v4491
      %v4493 = vsel %vm4492, 0, %v4491
      %v4494 = vsub.s32 32, %v4493
      %v4495 = vshll.u32 %v4486, %v4493
      %v4496 = vshrl.u32 %v4478, %v4494
      %v4497 = vor.u32 %v4495, %v4496
      %v4498 = vsub.s32 4294967266, %v4493
      %v4499 = vadd.s32 %v4498, 127
      %v4500 = vshll.u32 %v4499, 23
      %v4501 = vor.u32 4788187, %v4500
      %v4502 = vand.u32 2147483647, %v4501
      %v4504 = vcvt.s32.f32 %v4497
      %v4505 = vmul.f32 %v4504, %v4502
      %v4506 = vxor.u32 %v4505, 2147483648
      %v4507 = vsel %vm4424, %v4506, %v4505
      %v4508 = vsub.s32 4, %v4484
      %v4509 = vsel %vm4424, %v4508, %v4484
      %v4510 = vsel %vm4423, %v936, %v4507
      %v4511 = vsel %vm4423, 0, %v4509
      %v4512 = vcosq.f32.pop %v4510
      %v4513 = vsinq.f32.pop %v4510
      %vm4514 = vweird.f32 %v936
      %v4515 = vadd.s32 %v4511, 3
      %v4516 = vand.u32 %v4515, 3
      %vm4517 = vcmp.lt.s32.totalorder %v4516, 2
      %vm4518 = vcmp.eq.s32.totalorder %v4516, 0
      %v4519 = vxor.u32 %v4513, 2147483648
      %v4520 = vsel %vm4518, %v4512, %v4519
      %vm4521 = vcmp.eq.s32.totalorder %v4516, 2
      %v4522 = vxor.u32 %v4512, 2147483648
      %v4523 = vsel %vm4521, %v4522, %v4513
      %v4524 = vsel %vm4517, %v4520, %v4523
      %v4525 = vsel %vm4514, nan, %v4524
      %v4526 = vand.u32 2147483647, %v941
      %vm4527 = vcmp.le.f32.partialorder %v4526, 0.7853982
      %vm4528 = vcmp.lt.s32.totalorder %v941, 0
      %v4529 = vand.u32 %v941, 2139095040
      %v4530 = vshrl.u32 %v4529, 23
      %v4531 = vsub.s32 %v4530, 127
      %v4532 = vand.u32 2147483647, %v941
      %v4533 = vand.u32 %v4532, 8388607
      %v4534 = vor.u32 %v4533, 8388608
      %v4535 = vsub.s32 0, %v4534
      %v4536 = vadd.s32 %v4531, 1
      %vm4537 = vcmp.gt.s32.totalorder %v4536, 0
      %v4538 = vsel %vm4537, %v4536, 0
      %v4539 = vshrl.u32 %v4538, 5
      %v4540 = vand.u32 %v4538, 31
      %v4541 = vsub.s32 32, %v4540
      %v4542 = vshrl.u32 683565275, %v4541
      %v4543 = vshll.u32 683565275, %v4540
      %v4544 = vshrl.u32 2475754826, %v4541
      %v4545 = vor.u32 %v4543, %v4544
      %v4546 = vshll.u32 2475754826, %v4540
      %v4547 = vshrl.u32 2131351028, %v4541
      %v4548 = vor.u32 %v4546, %v4547
      %v4549 = vshll.u32 2131351028, %v4540
      %v4550 = vshrl.u32 2102212464, %v4541
      %v4551 = vor.u32 %v4549, %v4550
      %v4552 = vshll.u32 2102212464, %v4540
      %v4553 = vshrl.u32 920167782, %v4541
      %v4554 = vor.u32 %v4552, %v4553
      %v4555 = vshll.u32 920167782, %v4540
      %v4556 = vshrl.u32 1326507024, %v4541
      %v4557 = vor.u32 %v4555, %v4556
      %vm4558 = vcmp.lt.s32.totalorder %v4539, 1
      %vm4559 = vcmp.lt.s32.totalorder %v4539, 2
      %vm4560 = vcmp.lt.s32.totalorder %v4539, 3
      %vm4561 = vcmp.lt.s32.totalorder %v4539, 4
      %v4562 = vsel %vm4558, %v4542, %v4545
      %v4563 = vsel %vm4561, %v4551, 2102212464
      %v4564 = vsel %vm4560, %v4548, %v4563
      %v4565 = vsel %vm4559, %v4562, %v4564
      %v4566 = vsel %vm4558, %v4545, %v4548
      %v4567 = vsel %vm4561, %v4554, 920167782
      %v4568 = vsel %vm4560, %v4551, %v4567
      %v4569 = vsel %vm4559, %v4566, %v4568
      %v4570 = vsel %vm4558, %v4548, %v4551
      %v4571 = vsel %vm4561, %v4557, 1326507024
      %v4572 = vsel %vm4560, %v4554, %v4571
      %v4573 = vsel %vm4559, %v4570, %v4572
      %v4574 = vshll.u32 %v4534, 8
      %v4575 = vmul.u32.u64.compose %v4574, %v4573
      %v4576 = vextract.low.u32 %v4575
      %v4577 = vextract.high.u32 %v4575
      %v4578 = vmul.u32.u64.compose %v4574, %v4569
      %v4579 = vextract.low.u32 %v4578
      %v4580 = vextract.high.u32 %v4578
      %v4581 = vmul.u32 %v4574, %v4565
      %v4582 = vadd.s32 %v4577, %v4579
      %vm4583 = vc.u32 %v4577, %v4579
      %v4584 = vadd.s32 %v4580, 1
      %v4585 = vsel %vm4583, %v4584, %v4580
      %v4586 = vadd.s32 %v4581, %v4585
      %v4587 = vadd.s32 %v4586, 536870912
      %v4588 = vshrl.u32 %v4587, 30
      %v4589 = vshll.u32 %v4588, 30
      %v4590 = vsub.s32 %v4586, %v4589
      %vm4591 = vcmp.lt.s32.totalorder %v4590, 0
      %v4592 = vsub.s32 0, %v4590
      %v4593 = vsel %vm4591, %v4592, %v4590
      %v4594 = vclz %v4593
      %v4595 = vsub.s32 %v4594, 2
      %vm4596 = vcmp.gt.s32.totalorder 0, %v4595
      %v4597 = vsel %vm4596, 0, %v4595
      %v4598 = vsub.s32 32, %v4597
      %v4599 = vshll.u32 %v4590, %v4597
      %v4600 = vshrl.u32 %v4582, %v4598
      %v4601 = vor.u32 %v4599, %v4600
      %v4602 = vsub.s32 4294967266, %v4597
      %v4603 = vadd.s32 %v4602, 127
      %v4604 = vshll.u32 %v4603, 23
      %v4605 = vor.u32 4788187, %v4604
      %v4606 = vand.u32 2147483647, %v4605
      %v4608 = vcvt.s32.f32 %v4601
      %v4609 = vmul.f32 %v4608, %v4606
      %v4610 = vxor.u32 %v4609, 2147483648
      %v4611 = vsel %vm4528, %v4610, %v4609
      %v4612 = vsub.s32 4, %v4588
      %v4613 = vsel %vm4528, %v4612, %v4588
      %v4614 = vsel %vm4527, %v941, %v4611
      %v4615 = vsel %vm4527, 0, %v4613
      %v4616 = vcosq.f32.pop %v4614
      %v4617 = vsinq.f32.pop %v4614
      %vm4618 = vweird.f32 %v941
      %v4619 = vadd.s32 %v4615, 3
      %v4620 = vand.u32 %v4619, 3
      %vm4621 = vcmp.lt.s32.totalorder %v4620, 2
      %vm4622 = vcmp.eq.s32.totalorder %v4620, 0
      %v4623 = vxor.u32 %v4617, 2147483648
      %v4624 = vsel %vm4622, %v4616, %v4623
      %vm4625 = vcmp.eq.s32.totalorder %v4620, 2
      %v4626 = vxor.u32 %v4616, 2147483648
      %v4627 = vsel %vm4625, %v4626, %v4617
      %v4628 = vsel %vm4621, %v4624, %v4627
      %v4629 = vsel %vm4618, nan, %v4628
      %v4630 = vand.u32 2147483647, %v946
      %vm4631 = vcmp.le.f32.partialorder %v4630, 0.7853982
      %vm4632 = vcmp.lt.s32.totalorder %v946, 0
      %v4633 = vand.u32 %v946, 2139095040
      %v4634 = vshrl.u32 %v4633, 23
      %v4635 = vsub.s32 %v4634, 127
      %v4636 = vand.u32 2147483647, %v946
      %v4637 = vand.u32 %v4636, 8388607
      %v4638 = vor.u32 %v4637, 8388608
      %v4639 = vsub.s32 0, %v4638
      %v4640 = vadd.s32 %v4635, 1
      %vm4641 = vcmp.gt.s32.totalorder %v4640, 0
      %v4642 = vsel %vm4641, %v4640, 0
      %v4643 = vshrl.u32 %v4642, 5
      %v4644 = vand.u32 %v4642, 31
      %v4645 = vsub.s32 32, %v4644
      %v4646 = vshrl.u32 683565275, %v4645
      %v4647 = vshll.u32 683565275, %v4644
      %v4648 = vshrl.u32 2475754826, %v4645
      %v4649 = vor.u32 %v4647, %v4648
      %v4650 = vshll.u32 2475754826, %v4644
      %v4651 = vshrl.u32 2131351028, %v4645
      %v4652 = vor.u32 %v4650, %v4651
      %v4653 = vshll.u32 2131351028, %v4644
      %v4654 = vshrl.u32 2102212464, %v4645
      %v4655 = vor.u32 %v4653, %v4654
      %v4656 = vshll.u32 2102212464, %v4644
      %v4657 = vshrl.u32 920167782, %v4645
      %v4658 = vor.u32 %v4656, %v4657
      %v4659 = vshll.u32 920167782, %v4644
      %v4660 = vshrl.u32 1326507024, %v4645
      %v4661 = vor.u32 %v4659, %v4660
      %vm4662 = vcmp.lt.s32.totalorder %v4643, 1
      %vm4663 = vcmp.lt.s32.totalorder %v4643, 2
      %vm4664 = vcmp.lt.s32.totalorder %v4643, 3
      %vm4665 = vcmp.lt.s32.totalorder %v4643, 4
      %v4666 = vsel %vm4662, %v4646, %v4649
      %v4667 = vsel %vm4665, %v4655, 2102212464
      %v4668 = vsel %vm4664, %v4652, %v4667
      %v4669 = vsel %vm4663, %v4666, %v4668
      %v4670 = vsel %vm4662, %v4649, %v4652
      %v4671 = vsel %vm4665, %v4658, 920167782
      %v4672 = vsel %vm4664, %v4655, %v4671
      %v4673 = vsel %vm4663, %v4670, %v4672
      %v4674 = vsel %vm4662, %v4652, %v4655
      %v4675 = vsel %vm4665, %v4661, 1326507024
      %v4676 = vsel %vm4664, %v4658, %v4675
      %v4677 = vsel %vm4663, %v4674, %v4676
      %v4678 = vshll.u32 %v4638, 8
      %v4679 = vmul.u32.u64.compose %v4678, %v4677
      %v4680 = vextract.low.u32 %v4679
      %v4681 = vextract.high.u32 %v4679
      %v4682 = vmul.u32.u64.compose %v4678, %v4673
      %v4683 = vextract.low.u32 %v4682
      %v4684 = vextract.high.u32 %v4682
      %v4685 = vmul.u32 %v4678, %v4669
      %v4686 = vadd.s32 %v4681, %v4683
      %vm4687 = vc.u32 %v4681, %v4683
      %v4688 = vadd.s32 %v4684, 1
      %v4689 = vsel %vm4687, %v4688, %v4684
      %v4690 = vadd.s32 %v4685, %v4689
      %v4691 = vadd.s32 %v4690, 536870912
      %v4692 = vshrl.u32 %v4691, 30
      %v4693 = vshll.u32 %v4692, 30
      %v4694 = vsub.s32 %v4690, %v4693
      %vm4695 = vcmp.lt.s32.totalorder %v4694, 0
      %v4696 = vsub.s32 0, %v4694
      %v4697 = vsel %vm4695, %v4696, %v4694
      %v4698 = vclz %v4697
      %v4699 = vsub.s32 %v4698, 2
      %vm4700 = vcmp.gt.s32.totalorder 0, %v4699
      %v4701 = vsel %vm4700, 0, %v4699
      %v4702 = vsub.s32 32, %v4701
      %v4703 = vshll.u32 %v4694, %v4701
      %v4704 = vshrl.u32 %v4686, %v4702
      %v4705 = vor.u32 %v4703, %v4704
      %v4706 = vsub.s32 4294967266, %v4701
      %v4707 = vadd.s32 %v4706, 127
      %v4708 = vshll.u32 %v4707, 23
      %v4709 = vor.u32 4788187, %v4708
      %v4710 = vand.u32 2147483647, %v4709
      %v4712 = vcvt.s32.f32 %v4705
      %v4713 = vmul.f32 %v4712, %v4710
      %v4714 = vxor.u32 %v4713, 2147483648
      %v4715 = vsel %vm4632, %v4714, %v4713
      %v4716 = vsub.s32 4, %v4692
      %v4717 = vsel %vm4632, %v4716, %v4692
      %v4718 = vsel %vm4631, %v946, %v4715
      %v4719 = vsel %vm4631, 0, %v4717
      %v4720 = vcosq.f32.pop %v4718
      %v4721 = vsinq.f32.pop %v4718
      %vm4722 = vweird.f32 %v946
      %v4723 = vadd.s32 %v4719, 3
      %v4724 = vand.u32 %v4723, 3
      %vm4725 = vcmp.lt.s32.totalorder %v4724, 2
      %vm4726 = vcmp.eq.s32.totalorder %v4724, 0
      %v4727 = vxor.u32 %v4721, 2147483648
      %v4728 = vsel %vm4726, %v4720, %v4727
      %vm4729 = vcmp.eq.s32.totalorder %v4724, 2
      %v4730 = vxor.u32 %v4720, 2147483648
      %v4731 = vsel %vm4729, %v4730, %v4721
      %v4732 = vsel %vm4725, %v4728, %v4731
      %v4733 = vsel %vm4722, nan, %v4732
      %v4734 = vand.u32 2147483647, %v951
      %vm4735 = vcmp.le.f32.partialorder %v4734, 0.7853982
      %vm4736 = vcmp.lt.s32.totalorder %v951, 0
      %v4737 = vand.u32 %v951, 2139095040
      %v4738 = vshrl.u32 %v4737, 23
      %v4739 = vsub.s32 %v4738, 127
      %v4740 = vand.u32 2147483647, %v951
      %v4741 = vand.u32 %v4740, 8388607
      %v4742 = vor.u32 %v4741, 8388608
      %v4743 = vsub.s32 0, %v4742
      %v4744 = vadd.s32 %v4739, 1
      %vm4745 = vcmp.gt.s32.totalorder %v4744, 0
      %v4746 = vsel %vm4745, %v4744, 0
      %v4747 = vshrl.u32 %v4746, 5
      %v4748 = vand.u32 %v4746, 31
      %v4749 = vsub.s32 32, %v4748
      %v4750 = vshrl.u32 683565275, %v4749
      %v4751 = vshll.u32 683565275, %v4748
      %v4752 = vshrl.u32 2475754826, %v4749
      %v4753 = vor.u32 %v4751, %v4752
      %v4754 = vshll.u32 2475754826, %v4748
      %v4755 = vshrl.u32 2131351028, %v4749
      %v4756 = vor.u32 %v4754, %v4755
      %v4757 = vshll.u32 2131351028, %v4748
      %v4758 = vshrl.u32 2102212464, %v4749
      %v4759 = vor.u32 %v4757, %v4758
      %v4760 = vshll.u32 2102212464, %v4748
      %v4761 = vshrl.u32 920167782, %v4749
      %v4762 = vor.u32 %v4760, %v4761
      %v4763 = vshll.u32 920167782, %v4748
      %v4764 = vshrl.u32 1326507024, %v4749
      %v4765 = vor.u32 %v4763, %v4764
      %vm4766 = vcmp.lt.s32.totalorder %v4747, 1
      %vm4767 = vcmp.lt.s32.totalorder %v4747, 2
      %vm4768 = vcmp.lt.s32.totalorder %v4747, 3
      %vm4769 = vcmp.lt.s32.totalorder %v4747, 4
      %v4770 = vsel %vm4766, %v4750, %v4753
      %v4771 = vsel %vm4769, %v4759, 2102212464
      %v4772 = vsel %vm4768, %v4756, %v4771
      %v4773 = vsel %vm4767, %v4770, %v4772
      %v4774 = vsel %vm4766, %v4753, %v4756
      %v4775 = vsel %vm4769, %v4762, 920167782
      %v4776 = vsel %vm4768, %v4759, %v4775
      %v4777 = vsel %vm4767, %v4774, %v4776
      %v4778 = vsel %vm4766, %v4756, %v4759
      %v4779 = vsel %vm4769, %v4765, 1326507024
      %v4780 = vsel %vm4768, %v4762, %v4779
      %v4781 = vsel %vm4767, %v4778, %v4780
      %v4782 = vshll.u32 %v4742, 8
      %v4783 = vmul.u32.u64.compose %v4782, %v4781
      %v4784 = vextract.low.u32 %v4783
      %v4785 = vextract.high.u32 %v4783
      %v4786 = vmul.u32.u64.compose %v4782, %v4777
      %v4787 = vextract.low.u32 %v4786
      %v4788 = vextract.high.u32 %v4786
      %v4789 = vmul.u32 %v4782, %v4773
      %v4790 = vadd.s32 %v4785, %v4787
      %vm4791 = vc.u32 %v4785, %v4787
      %v4792 = vadd.s32 %v4788, 1
      %v4793 = vsel %vm4791, %v4792, %v4788
      %v4794 = vadd.s32 %v4789, %v4793
      %v4795 = vadd.s32 %v4794, 536870912
      %v4796 = vshrl.u32 %v4795, 30
      %v4797 = vshll.u32 %v4796, 30
      %v4798 = vsub.s32 %v4794, %v4797
      %vm4799 = vcmp.lt.s32.totalorder %v4798, 0
      %v4800 = vsub.s32 0, %v4798
      %v4801 = vsel %vm4799, %v4800, %v4798
      %v4802 = vclz %v4801
      %v4803 = vsub.s32 %v4802, 2
      %vm4804 = vcmp.gt.s32.totalorder 0, %v4803
      %v4805 = vsel %vm4804, 0, %v4803
      %v4806 = vsub.s32 32, %v4805
      %v4807 = vshll.u32 %v4798, %v4805
      %v4808 = vshrl.u32 %v4790, %v4806
      %v4809 = vor.u32 %v4807, %v4808
      %v4810 = vsub.s32 4294967266, %v4805
      %v4811 = vadd.s32 %v4810, 127
      %v4812 = vshll.u32 %v4811, 23
      %v4813 = vor.u32 4788187, %v4812
      %v4814 = vand.u32 2147483647, %v4813
      %v4816 = vcvt.s32.f32 %v4809
      %v4817 = vmul.f32 %v4816, %v4814
      %v4818 = vxor.u32 %v4817, 2147483648
      %v4819 = vsel %vm4736, %v4818, %v4817
      %v4820 = vsub.s32 4, %v4796
      %v4821 = vsel %vm4736, %v4820, %v4796
      %v4822 = vsel %vm4735, %v951, %v4819
      %v4823 = vsel %vm4735, 0, %v4821
      %v4824 = vcosq.f32.pop %v4822
      %v4825 = vsinq.f32.pop %v4822
      %vm4826 = vweird.f32 %v951
      %v4827 = vadd.s32 %v4823, 3
      %v4828 = vand.u32 %v4827, 3
      %vm4829 = vcmp.lt.s32.totalorder %v4828, 2
      %vm4830 = vcmp.eq.s32.totalorder %v4828, 0
      %v4831 = vxor.u32 %v4825, 2147483648
      %v4832 = vsel %vm4830, %v4824, %v4831
      %vm4833 = vcmp.eq.s32.totalorder %v4828, 2
      %v4834 = vxor.u32 %v4824, 2147483648
      %v4835 = vsel %vm4833, %v4834, %v4825
      %v4836 = vsel %vm4829, %v4832, %v4835
      %v4837 = vsel %vm4826, nan, %v4836
      %v4838 = vand.u32 2147483647, %v956
      %vm4839 = vcmp.le.f32.partialorder %v4838, 0.7853982
      %vm4840 = vcmp.lt.s32.totalorder %v956, 0
      %v4841 = vand.u32 %v956, 2139095040
      %v4842 = vshrl.u32 %v4841, 23
      %v4843 = vsub.s32 %v4842, 127
      %v4844 = vand.u32 2147483647, %v956
      %v4845 = vand.u32 %v4844, 8388607
      %v4846 = vor.u32 %v4845, 8388608
      %v4847 = vsub.s32 0, %v4846
      %v4848 = vadd.s32 %v4843, 1
      %vm4849 = vcmp.gt.s32.totalorder %v4848, 0
      %v4850 = vsel %vm4849, %v4848, 0
      %v4851 = vshrl.u32 %v4850, 5
      %v4852 = vand.u32 %v4850, 31
      %v4853 = vsub.s32 32, %v4852
      %v4854 = vshrl.u32 683565275, %v4853
      %v4855 = vshll.u32 683565275, %v4852
      %v4856 = vshrl.u32 2475754826, %v4853
      %v4857 = vor.u32 %v4855, %v4856
      %v4858 = vshll.u32 2475754826, %v4852
      %v4859 = vshrl.u32 2131351028, %v4853
      %v4860 = vor.u32 %v4858, %v4859
      %v4861 = vshll.u32 2131351028, %v4852
      %v4862 = vshrl.u32 2102212464, %v4853
      %v4863 = vor.u32 %v4861, %v4862
      %v4864 = vshll.u32 2102212464, %v4852
      %v4865 = vshrl.u32 920167782, %v4853
      %v4866 = vor.u32 %v4864, %v4865
      %v4867 = vshll.u32 920167782, %v4852
      %v4868 = vshrl.u32 1326507024, %v4853
      %v4869 = vor.u32 %v4867, %v4868
      %vm4870 = vcmp.lt.s32.totalorder %v4851, 1
      %vm4871 = vcmp.lt.s32.totalorder %v4851, 2
      %vm4872 = vcmp.lt.s32.totalorder %v4851, 3
      %vm4873 = vcmp.lt.s32.totalorder %v4851, 4
      %v4874 = vsel %vm4870, %v4854, %v4857
      %v4875 = vsel %vm4873, %v4863, 2102212464
      %v4876 = vsel %vm4872, %v4860, %v4875
      %v4877 = vsel %vm4871, %v4874, %v4876
      %v4878 = vsel %vm4870, %v4857, %v4860
      %v4879 = vsel %vm4873, %v4866, 920167782
      %v4880 = vsel %vm4872, %v4863, %v4879
      %v4881 = vsel %vm4871, %v4878, %v4880
      %v4882 = vsel %vm4870, %v4860, %v4863
      %v4883 = vsel %vm4873, %v4869, 1326507024
      %v4884 = vsel %vm4872, %v4866, %v4883
      %v4885 = vsel %vm4871, %v4882, %v4884
      %v4886 = vshll.u32 %v4846, 8
      %v4887 = vmul.u32.u64.compose %v4886, %v4885
      %v4888 = vextract.low.u32 %v4887
      %v4889 = vextract.high.u32 %v4887
      %v4890 = vmul.u32.u64.compose %v4886, %v4881
      %v4891 = vextract.low.u32 %v4890
      %v4892 = vextract.high.u32 %v4890
      %v4893 = vmul.u32 %v4886, %v4877
      %v4894 = vadd.s32 %v4889, %v4891
      %vm4895 = vc.u32 %v4889, %v4891
      %v4896 = vadd.s32 %v4892, 1
      %v4897 = vsel %vm4895, %v4896, %v4892
      %v4898 = vadd.s32 %v4893, %v4897
      %v4899 = vadd.s32 %v4898, 536870912
      %v4900 = vshrl.u32 %v4899, 30
      %v4901 = vshll.u32 %v4900, 30
      %v4902 = vsub.s32 %v4898, %v4901
      %vm4903 = vcmp.lt.s32.totalorder %v4902, 0
      %v4904 = vsub.s32 0, %v4902
      %v4905 = vsel %vm4903, %v4904, %v4902
      %v4906 = vclz %v4905
      %v4907 = vsub.s32 %v4906, 2
      %vm4908 = vcmp.gt.s32.totalorder 0, %v4907
      %v4909 = vsel %vm4908, 0, %v4907
      %v4910 = vsub.s32 32, %v4909
      %v4911 = vshll.u32 %v4902, %v4909
      %v4912 = vshrl.u32 %v4894, %v4910
      %v4913 = vor.u32 %v4911, %v4912
      %v4914 = vsub.s32 4294967266, %v4909
      %v4915 = vadd.s32 %v4914, 127
      %v4916 = vshll.u32 %v4915, 23
      %v4917 = vor.u32 4788187, %v4916
      %v4918 = vand.u32 2147483647, %v4917
      %v4920 = vcvt.s32.f32 %v4913
      %v4921 = vmul.f32 %v4920, %v4918
      %v4922 = vxor.u32 %v4921, 2147483648
      %v4923 = vsel %vm4840, %v4922, %v4921
      %v4924 = vsub.s32 4, %v4900
      %v4925 = vsel %vm4840, %v4924, %v4900
      %v4926 = vsel %vm4839, %v956, %v4923
      %v4927 = vsel %vm4839, 0, %v4925
      %v4928 = vcosq.f32.pop %v4926
      %v4929 = vsinq.f32.pop %v4926
      %vm4930 = vweird.f32 %v956
      %v4931 = vadd.s32 %v4927, 3
      %v4932 = vand.u32 %v4931, 3
      %vm4933 = vcmp.lt.s32.totalorder %v4932, 2
      %vm4934 = vcmp.eq.s32.totalorder %v4932, 0
      %v4935 = vxor.u32 %v4929, 2147483648
      %v4936 = vsel %vm4934, %v4928, %v4935
      %vm4937 = vcmp.eq.s32.totalorder %v4932, 2
      %v4938 = vxor.u32 %v4928, 2147483648
      %v4939 = vsel %vm4937, %v4938, %v4929
      %v4940 = vsel %vm4933, %v4936, %v4939
      %v4941 = vsel %vm4930, nan, %v4940
      %v4942 = vand.u32 2147483647, %v961
      %vm4943 = vcmp.le.f32.partialorder %v4942, 0.7853982
      %vm4944 = vcmp.lt.s32.totalorder %v961, 0
      %v4945 = vand.u32 %v961, 2139095040
      %v4946 = vshrl.u32 %v4945, 23
      %v4947 = vsub.s32 %v4946, 127
      %v4948 = vand.u32 2147483647, %v961
      %v4949 = vand.u32 %v4948, 8388607
      %v4950 = vor.u32 %v4949, 8388608
      %v4951 = vsub.s32 0, %v4950
      %v4952 = vadd.s32 %v4947, 1
      %vm4953 = vcmp.gt.s32.totalorder %v4952, 0
      %v4954 = vsel %vm4953, %v4952, 0
      %v4955 = vshrl.u32 %v4954, 5
      %v4956 = vand.u32 %v4954, 31
      %v4957 = vsub.s32 32, %v4956
      %v4958 = vshrl.u32 683565275, %v4957
      %v4959 = vshll.u32 683565275, %v4956
      %v4960 = vshrl.u32 2475754826, %v4957
      %v4961 = vor.u32 %v4959, %v4960
      %v4962 = vshll.u32 2475754826, %v4956
      %v4963 = vshrl.u32 2131351028, %v4957
      %v4964 = vor.u32 %v4962, %v4963
      %v4965 = vshll.u32 2131351028, %v4956
      %v4966 = vshrl.u32 2102212464, %v4957
      %v4967 = vor.u32 %v4965, %v4966
      %v4968 = vshll.u32 2102212464, %v4956
      %v4969 = vshrl.u32 920167782, %v4957
      %v4970 = vor.u32 %v4968, %v4969
      %v4971 = vshll.u32 920167782, %v4956
      %v4972 = vshrl.u32 1326507024, %v4957
      %v4973 = vor.u32 %v4971, %v4972
      %vm4974 = vcmp.lt.s32.totalorder %v4955, 1
      %vm4975 = vcmp.lt.s32.totalorder %v4955, 2
      %vm4976 = vcmp.lt.s32.totalorder %v4955, 3
      %vm4977 = vcmp.lt.s32.totalorder %v4955, 4
      %v4978 = vsel %vm4974, %v4958, %v4961
      %v4979 = vsel %vm4977, %v4967, 2102212464
      %v4980 = vsel %vm4976, %v4964, %v4979
      %v4981 = vsel %vm4975, %v4978, %v4980
      %v4982 = vsel %vm4974, %v4961, %v4964
      %v4983 = vsel %vm4977, %v4970, 920167782
      %v4984 = vsel %vm4976, %v4967, %v4983
      %v4985 = vsel %vm4975, %v4982, %v4984
      %v4986 = vsel %vm4974, %v4964, %v4967
      %v4987 = vsel %vm4977, %v4973, 1326507024
      %v4988 = vsel %vm4976, %v4970, %v4987
      %v4989 = vsel %vm4975, %v4986, %v4988
      %v4990 = vshll.u32 %v4950, 8
      %v4991 = vmul.u32.u64.compose %v4990, %v4989
      %v4992 = vextract.low.u32 %v4991
      %v4993 = vextract.high.u32 %v4991
      %v4994 = vmul.u32.u64.compose %v4990, %v4985
      %v4995 = vextract.low.u32 %v4994
      %v4996 = vextract.high.u32 %v4994
      %v4997 = vmul.u32 %v4990, %v4981
      %v4998 = vadd.s32 %v4993, %v4995
      %vm4999 = vc.u32 %v4993, %v4995
      %v5000 = vadd.s32 %v4996, 1
      %v5001 = vsel %vm4999, %v5000, %v4996
      %v5002 = vadd.s32 %v4997, %v5001
      %v5003 = vadd.s32 %v5002, 536870912
      %v5004 = vshrl.u32 %v5003, 30
      %v5005 = vshll.u32 %v5004, 30
      %v5006 = vsub.s32 %v5002, %v5005
      %vm5007 = vcmp.lt.s32.totalorder %v5006, 0
      %v5008 = vsub.s32 0, %v5006
      %v5009 = vsel %vm5007, %v5008, %v5006
      %v5010 = vclz %v5009
      %v5011 = vsub.s32 %v5010, 2
      %vm5012 = vcmp.gt.s32.totalorder 0, %v5011
      %v5013 = vsel %vm5012, 0, %v5011
      %v5014 = vsub.s32 32, %v5013
      %v5015 = vshll.u32 %v5006, %v5013
      %v5016 = vshrl.u32 %v4998, %v5014
      %v5017 = vor.u32 %v5015, %v5016
      %v5018 = vsub.s32 4294967266, %v5013
      %v5019 = vadd.s32 %v5018, 127
      %v5020 = vshll.u32 %v5019, 23
      %v5021 = vor.u32 4788187, %v5020
      %v5022 = vand.u32 2147483647, %v5021
      %v5024 = vcvt.s32.f32 %v5017
      %v5025 = vmul.f32 %v5024, %v5022
      %v5026 = vxor.u32 %v5025, 2147483648
      %v5027 = vsel %vm4944, %v5026, %v5025
      %v5028 = vsub.s32 4, %v5004
      %v5029 = vsel %vm4944, %v5028, %v5004
      %v5030 = vsel %vm4943, %v961, %v5027
      %v5031 = vsel %vm4943, 0, %v5029
      %v5032 = vcosq.f32.pop %v5030
      %v5033 = vsinq.f32.pop %v5030
      %vm5034 = vweird.f32 %v961
      %v5035 = vadd.s32 %v5031, 3
      %v5036 = vand.u32 %v5035, 3
      %vm5037 = vcmp.lt.s32.totalorder %v5036, 2
      %vm5038 = vcmp.eq.s32.totalorder %v5036, 0
      %v5039 = vxor.u32 %v5033, 2147483648
      %v5040 = vsel %vm5038, %v5032, %v5039
      %vm5041 = vcmp.eq.s32.totalorder %v5036, 2
      %v5042 = vxor.u32 %v5032, 2147483648
      %v5043 = vsel %vm5041, %v5042, %v5033
      %v5044 = vsel %vm5037, %v5040, %v5043
      %v5045 = vsel %vm5034, nan, %v5044
      %v5046 = vand.u32 2147483647, %v966
      %vm5047 = vcmp.le.f32.partialorder %v5046, 0.7853982
      %vm5048 = vcmp.lt.s32.totalorder %v966, 0
      %v5049 = vand.u32 %v966, 2139095040
      %v5050 = vshrl.u32 %v5049, 23
      %v5051 = vsub.s32 %v5050, 127
      %v5052 = vand.u32 2147483647, %v966
      %v5053 = vand.u32 %v5052, 8388607
      %v5054 = vor.u32 %v5053, 8388608
      %v5055 = vsub.s32 0, %v5054
      %v5056 = vadd.s32 %v5051, 1
      %vm5057 = vcmp.gt.s32.totalorder %v5056, 0
      %v5058 = vsel %vm5057, %v5056, 0
      %v5059 = vshrl.u32 %v5058, 5
      %v5060 = vand.u32 %v5058, 31
      %v5061 = vsub.s32 32, %v5060
      %v5062 = vshrl.u32 683565275, %v5061
      %v5063 = vshll.u32 683565275, %v5060
      %v5064 = vshrl.u32 2475754826, %v5061
      %v5065 = vor.u32 %v5063, %v5064
      %v5066 = vshll.u32 2475754826, %v5060
      %v5067 = vshrl.u32 2131351028, %v5061
      %v5068 = vor.u32 %v5066, %v5067
      %v5069 = vshll.u32 2131351028, %v5060
      %v5070 = vshrl.u32 2102212464, %v5061
      %v5071 = vor.u32 %v5069, %v5070
      %v5072 = vshll.u32 2102212464, %v5060
      %v5073 = vshrl.u32 920167782, %v5061
      %v5074 = vor.u32 %v5072, %v5073
      %v5075 = vshll.u32 920167782, %v5060
      %v5076 = vshrl.u32 1326507024, %v5061
      %v5077 = vor.u32 %v5075, %v5076
      %vm5078 = vcmp.lt.s32.totalorder %v5059, 1
      %vm5079 = vcmp.lt.s32.totalorder %v5059, 2
      %vm5080 = vcmp.lt.s32.totalorder %v5059, 3
      %vm5081 = vcmp.lt.s32.totalorder %v5059, 4
      %v5082 = vsel %vm5078, %v5062, %v5065
      %v5083 = vsel %vm5081, %v5071, 2102212464
      %v5084 = vsel %vm5080, %v5068, %v5083
      %v5085 = vsel %vm5079, %v5082, %v5084
      %v5086 = vsel %vm5078, %v5065, %v5068
      %v5087 = vsel %vm5081, %v5074, 920167782
      %v5088 = vsel %vm5080, %v5071, %v5087
      %v5089 = vsel %vm5079, %v5086, %v5088
      %v5090 = vsel %vm5078, %v5068, %v5071
      %v5091 = vsel %vm5081, %v5077, 1326507024
      %v5092 = vsel %vm5080, %v5074, %v5091
      %v5093 = vsel %vm5079, %v5090, %v5092
      %v5094 = vshll.u32 %v5054, 8
      %v5095 = vmul.u32.u64.compose %v5094, %v5093
      %v5096 = vextract.low.u32 %v5095
      %v5097 = vextract.high.u32 %v5095
      %v5098 = vmul.u32.u64.compose %v5094, %v5089
      %v5099 = vextract.low.u32 %v5098
      %v5100 = vextract.high.u32 %v5098
      %v5101 = vmul.u32 %v5094, %v5085
      %v5102 = vadd.s32 %v5097, %v5099
      %vm5103 = vc.u32 %v5097, %v5099
      %v5104 = vadd.s32 %v5100, 1
      %v5105 = vsel %vm5103, %v5104, %v5100
      %v5106 = vadd.s32 %v5101, %v5105
      %v5107 = vadd.s32 %v5106, 536870912
      %v5108 = vshrl.u32 %v5107, 30
      %v5109 = vshll.u32 %v5108, 30
      %v5110 = vsub.s32 %v5106, %v5109
      %vm5111 = vcmp.lt.s32.totalorder %v5110, 0
      %v5112 = vsub.s32 0, %v5110
      %v5113 = vsel %vm5111, %v5112, %v5110
      %v5114 = vclz %v5113
      %v5115 = vsub.s32 %v5114, 2
      %vm5116 = vcmp.gt.s32.totalorder 0, %v5115
      %v5117 = vsel %vm5116, 0, %v5115
      %v5118 = vsub.s32 32, %v5117
      %v5119 = vshll.u32 %v5110, %v5117
      %v5120 = vshrl.u32 %v5102, %v5118
      %v5121 = vor.u32 %v5119, %v5120
      %v5122 = vsub.s32 4294967266, %v5117
      %v5123 = vadd.s32 %v5122, 127
      %v5124 = vshll.u32 %v5123, 23
      %v5125 = vor.u32 4788187, %v5124
      %v5126 = vand.u32 2147483647, %v5125
      %v5128 = vcvt.s32.f32 %v5121
      %v5129 = vmul.f32 %v5128, %v5126
      %v5130 = vxor.u32 %v5129, 2147483648
      %v5131 = vsel %vm5048, %v5130, %v5129
      %v5132 = vsub.s32 4, %v5108
      %v5133 = vsel %vm5048, %v5132, %v5108
      %v5134 = vsel %vm5047, %v966, %v5131
      %v5135 = vsel %vm5047, 0, %v5133
      %v5136 = vcosq.f32.pop %v5134
      %v5137 = vsinq.f32.pop %v5134
      %vm5138 = vweird.f32 %v966
      %v5139 = vadd.s32 %v5135, 3
      %v5140 = vand.u32 %v5139, 3
      %vm5141 = vcmp.lt.s32.totalorder %v5140, 2
      %vm5142 = vcmp.eq.s32.totalorder %v5140, 0
      %v5143 = vxor.u32 %v5137, 2147483648
      %v5144 = vsel %vm5142, %v5136, %v5143
      %vm5145 = vcmp.eq.s32.totalorder %v5140, 2
      %v5146 = vxor.u32 %v5136, 2147483648
      %v5147 = vsel %vm5145, %v5146, %v5137
      %v5148 = vsel %vm5141, %v5144, %v5147
      %v5149 = vsel %vm5138, nan, %v5148
      %v5150 = vand.u32 2147483647, %v971
      %vm5151 = vcmp.le.f32.partialorder %v5150, 0.7853982
      %vm5152 = vcmp.lt.s32.totalorder %v971, 0
      %v5153 = vand.u32 %v971, 2139095040
      %v5154 = vshrl.u32 %v5153, 23
      %v5155 = vsub.s32 %v5154, 127
      %v5156 = vand.u32 2147483647, %v971
      %v5157 = vand.u32 %v5156, 8388607
      %v5158 = vor.u32 %v5157, 8388608
      %v5159 = vsub.s32 0, %v5158
      %v5160 = vadd.s32 %v5155, 1
      %vm5161 = vcmp.gt.s32.totalorder %v5160, 0
      %v5162 = vsel %vm5161, %v5160, 0
      %v5163 = vshrl.u32 %v5162, 5
      %v5164 = vand.u32 %v5162, 31
      %v5165 = vsub.s32 32, %v5164
      %v5166 = vshrl.u32 683565275, %v5165
      %v5167 = vshll.u32 683565275, %v5164
      %v5168 = vshrl.u32 2475754826, %v5165
      %v5169 = vor.u32 %v5167, %v5168
      %v5170 = vshll.u32 2475754826, %v5164
      %v5171 = vshrl.u32 2131351028, %v5165
      %v5172 = vor.u32 %v5170, %v5171
      %v5173 = vshll.u32 2131351028, %v5164
      %v5174 = vshrl.u32 2102212464, %v5165
      %v5175 = vor.u32 %v5173, %v5174
      %v5176 = vshll.u32 2102212464, %v5164
      %v5177 = vshrl.u32 920167782, %v5165
      %v5178 = vor.u32 %v5176, %v5177
      %v5179 = vshll.u32 920167782, %v5164
      %v5180 = vshrl.u32 1326507024, %v5165
      %v5181 = vor.u32 %v5179, %v5180
      %vm5182 = vcmp.lt.s32.totalorder %v5163, 1
      %vm5183 = vcmp.lt.s32.totalorder %v5163, 2
      %vm5184 = vcmp.lt.s32.totalorder %v5163, 3
      %vm5185 = vcmp.lt.s32.totalorder %v5163, 4
      %v5186 = vsel %vm5182, %v5166, %v5169
      %v5187 = vsel %vm5185, %v5175, 2102212464
      %v5188 = vsel %vm5184, %v5172, %v5187
      %v5189 = vsel %vm5183, %v5186, %v5188
      %v5190 = vsel %vm5182, %v5169, %v5172
      %v5191 = vsel %vm5185, %v5178, 920167782
      %v5192 = vsel %vm5184, %v5175, %v5191
      %v5193 = vsel %vm5183, %v5190, %v5192
      %v5194 = vsel %vm5182, %v5172, %v5175
      %v5195 = vsel %vm5185, %v5181, 1326507024
      %v5196 = vsel %vm5184, %v5178, %v5195
      %v5197 = vsel %vm5183, %v5194, %v5196
      %v5198 = vshll.u32 %v5158, 8
      %v5199 = vmul.u32.u64.compose %v5198, %v5197
      %v5200 = vextract.low.u32 %v5199
      %v5201 = vextract.high.u32 %v5199
      %v5202 = vmul.u32.u64.compose %v5198, %v5193
      %v5203 = vextract.low.u32 %v5202
      %v5204 = vextract.high.u32 %v5202
      %v5205 = vmul.u32 %v5198, %v5189
      %v5206 = vadd.s32 %v5201, %v5203
      %vm5207 = vc.u32 %v5201, %v5203
      %v5208 = vadd.s32 %v5204, 1
      %v5209 = vsel %vm5207, %v5208, %v5204
      %v5210 = vadd.s32 %v5205, %v5209
      %v5211 = vadd.s32 %v5210, 536870912
      %v5212 = vshrl.u32 %v5211, 30
      %v5213 = vshll.u32 %v5212, 30
      %v5214 = vsub.s32 %v5210, %v5213
      %vm5215 = vcmp.lt.s32.totalorder %v5214, 0
      %v5216 = vsub.s32 0, %v5214
      %v5217 = vsel %vm5215, %v5216, %v5214
      %v5218 = vclz %v5217
      %v5219 = vsub.s32 %v5218, 2
      %vm5220 = vcmp.gt.s32.totalorder 0, %v5219
      %v5221 = vsel %vm5220, 0, %v5219
      %v5222 = vsub.s32 32, %v5221
      %v5223 = vshll.u32 %v5214, %v5221
      %v5224 = vshrl.u32 %v5206, %v5222
      %v5225 = vor.u32 %v5223, %v5224
      %v5226 = vsub.s32 4294967266, %v5221
      %v5227 = vadd.s32 %v5226, 127
      %v5228 = vshll.u32 %v5227, 23
      %v5229 = vor.u32 4788187, %v5228
      %v5230 = vand.u32 2147483647, %v5229
      %v5232 = vcvt.s32.f32 %v5225
      %v5233 = vmul.f32 %v5232, %v5230
      %v5234 = vxor.u32 %v5233, 2147483648
      %v5235 = vsel %vm5152, %v5234, %v5233
      %v5236 = vsub.s32 4, %v5212
      %v5237 = vsel %vm5152, %v5236, %v5212
      %v5238 = vsel %vm5151, %v971, %v5235
      %v5239 = vsel %vm5151, 0, %v5237
      %v5240 = vcosq.f32.pop %v5238
      %v5241 = vsinq.f32.pop %v5238
      %vm5242 = vweird.f32 %v971
      %v5243 = vadd.s32 %v5239, 3
      %v5244 = vand.u32 %v5243, 3
      %vm5245 = vcmp.lt.s32.totalorder %v5244, 2
      %vm5246 = vcmp.eq.s32.totalorder %v5244, 0
      %v5247 = vxor.u32 %v5241, 2147483648
      %v5248 = vsel %vm5246, %v5240, %v5247
      %vm5249 = vcmp.eq.s32.totalorder %v5244, 2
      %v5250 = vxor.u32 %v5240, 2147483648
      %v5251 = vsel %vm5249, %v5250, %v5241
      %v5252 = vsel %vm5245, %v5248, %v5251
      %v5253 = vsel %vm5242, nan, %v5252
      %v5254 = vand.u32 2147483647, %v976
      %vm5255 = vcmp.le.f32.partialorder %v5254, 0.7853982
      %vm5256 = vcmp.lt.s32.totalorder %v976, 0
      %v5257 = vand.u32 %v976, 2139095040
      %v5258 = vshrl.u32 %v5257, 23
      %v5259 = vsub.s32 %v5258, 127
      %v5260 = vand.u32 2147483647, %v976
      %v5261 = vand.u32 %v5260, 8388607
      %v5262 = vor.u32 %v5261, 8388608
      %v5263 = vsub.s32 0, %v5262
      %v5264 = vadd.s32 %v5259, 1
      %vm5265 = vcmp.gt.s32.totalorder %v5264, 0
      %v5266 = vsel %vm5265, %v5264, 0
      %v5267 = vshrl.u32 %v5266, 5
      %v5268 = vand.u32 %v5266, 31
      %v5269 = vsub.s32 32, %v5268
      %v5270 = vshrl.u32 683565275, %v5269
      %v5271 = vshll.u32 683565275, %v5268
      %v5272 = vshrl.u32 2475754826, %v5269
      %v5273 = vor.u32 %v5271, %v5272
      %v5274 = vshll.u32 2475754826, %v5268
      %v5275 = vshrl.u32 2131351028, %v5269
      %v5276 = vor.u32 %v5274, %v5275
      %v5277 = vshll.u32 2131351028, %v5268
      %v5278 = vshrl.u32 2102212464, %v5269
      %v5279 = vor.u32 %v5277, %v5278
      %v5280 = vshll.u32 2102212464, %v5268
      %v5281 = vshrl.u32 920167782, %v5269
      %v5282 = vor.u32 %v5280, %v5281
      %v5283 = vshll.u32 920167782, %v5268
      %v5284 = vshrl.u32 1326507024, %v5269
      %v5285 = vor.u32 %v5283, %v5284
      %vm5286 = vcmp.lt.s32.totalorder %v5267, 1
      %vm5287 = vcmp.lt.s32.totalorder %v5267, 2
      %vm5288 = vcmp.lt.s32.totalorder %v5267, 3
      %vm5289 = vcmp.lt.s32.totalorder %v5267, 4
      %v5290 = vsel %vm5286, %v5270, %v5273
      %v5291 = vsel %vm5289, %v5279, 2102212464
      %v5292 = vsel %vm5288, %v5276, %v5291
      %v5293 = vsel %vm5287, %v5290, %v5292
      %v5294 = vsel %vm5286, %v5273, %v5276
      %v5295 = vsel %vm5289, %v5282, 920167782
      %v5296 = vsel %vm5288, %v5279, %v5295
      %v5297 = vsel %vm5287, %v5294, %v5296
      %v5298 = vsel %vm5286, %v5276, %v5279
      %v5299 = vsel %vm5289, %v5285, 1326507024
      %v5300 = vsel %vm5288, %v5282, %v5299
      %v5301 = vsel %vm5287, %v5298, %v5300
      %v5302 = vshll.u32 %v5262, 8
      %v5303 = vmul.u32.u64.compose %v5302, %v5301
      %v5304 = vextract.low.u32 %v5303
      %v5305 = vextract.high.u32 %v5303
      %v5306 = vmul.u32.u64.compose %v5302, %v5297
      %v5307 = vextract.low.u32 %v5306
      %v5308 = vextract.high.u32 %v5306
      %v5309 = vmul.u32 %v5302, %v5293
      %v5310 = vadd.s32 %v5305, %v5307
      %vm5311 = vc.u32 %v5305, %v5307
      %v5312 = vadd.s32 %v5308, 1
      %v5313 = vsel %vm5311, %v5312, %v5308
      %v5314 = vadd.s32 %v5309, %v5313
      %v5315 = vadd.s32 %v5314, 536870912
      %v5316 = vshrl.u32 %v5315, 30
      %v5317 = vshll.u32 %v5316, 30
      %v5318 = vsub.s32 %v5314, %v5317
      %vm5319 = vcmp.lt.s32.totalorder %v5318, 0
      %v5320 = vsub.s32 0, %v5318
      %v5321 = vsel %vm5319, %v5320, %v5318
      %v5322 = vclz %v5321
      %v5323 = vsub.s32 %v5322, 2
      %vm5324 = vcmp.gt.s32.totalorder 0, %v5323
      %v5325 = vsel %vm5324, 0, %v5323
      %v5326 = vsub.s32 32, %v5325
      %v5327 = vshll.u32 %v5318, %v5325
      %v5328 = vshrl.u32 %v5310, %v5326
      %v5329 = vor.u32 %v5327, %v5328
      %v5330 = vsub.s32 4294967266, %v5325
      %v5331 = vadd.s32 %v5330, 127
      %v5332 = vshll.u32 %v5331, 23
      %v5333 = vor.u32 4788187, %v5332
      %v5334 = vand.u32 2147483647, %v5333
      %v5336 = vcvt.s32.f32 %v5329
      %v5337 = vmul.f32 %v5336, %v5334
      %v5338 = vxor.u32 %v5337, 2147483648
      %v5339 = vsel %vm5256, %v5338, %v5337
      %v5340 = vsub.s32 4, %v5316
      %v5341 = vsel %vm5256, %v5340, %v5316
      %v5342 = vsel %vm5255, %v976, %v5339
      %v5343 = vsel %vm5255, 0, %v5341
      %v5344 = vcosq.f32.pop %v5342
      %v5345 = vsinq.f32.pop %v5342
      %vm5346 = vweird.f32 %v976
      %v5347 = vadd.s32 %v5343, 3
      %v5348 = vand.u32 %v5347, 3
      %vm5349 = vcmp.lt.s32.totalorder %v5348, 2
      %vm5350 = vcmp.eq.s32.totalorder %v5348, 0
      %v5351 = vxor.u32 %v5345, 2147483648
      %v5352 = vsel %vm5350, %v5344, %v5351
      %vm5353 = vcmp.eq.s32.totalorder %v5348, 2
      %v5354 = vxor.u32 %v5344, 2147483648
      %v5355 = vsel %vm5353, %v5354, %v5345
      %v5356 = vsel %vm5349, %v5352, %v5355
      %v5357 = vsel %vm5346, nan, %v5356
      %v5358 = vand.u32 2147483647, %v981
      %vm5359 = vcmp.le.f32.partialorder %v5358, 0.7853982
      %vm5360 = vcmp.lt.s32.totalorder %v981, 0
      %v5361 = vand.u32 %v981, 2139095040
      %v5362 = vshrl.u32 %v5361, 23
      %v5363 = vsub.s32 %v5362, 127
      %v5364 = vand.u32 2147483647, %v981
      %v5365 = vand.u32 %v5364, 8388607
      %v5366 = vor.u32 %v5365, 8388608
      %v5367 = vsub.s32 0, %v5366
      %v5368 = vadd.s32 %v5363, 1
      %vm5369 = vcmp.gt.s32.totalorder %v5368, 0
      %v5370 = vsel %vm5369, %v5368, 0
      %v5371 = vshrl.u32 %v5370, 5
      %v5372 = vand.u32 %v5370, 31
      %v5373 = vsub.s32 32, %v5372
      %v5374 = vshrl.u32 683565275, %v5373
      %v5375 = vshll.u32 683565275, %v5372
      %v5376 = vshrl.u32 2475754826, %v5373
      %v5377 = vor.u32 %v5375, %v5376
      %v5378 = vshll.u32 2475754826, %v5372
      %v5379 = vshrl.u32 2131351028, %v5373
      %v5380 = vor.u32 %v5378, %v5379
      %v5381 = vshll.u32 2131351028, %v5372
      %v5382 = vshrl.u32 2102212464, %v5373
      %v5383 = vor.u32 %v5381, %v5382
      %v5384 = vshll.u32 2102212464, %v5372
      %v5385 = vshrl.u32 920167782, %v5373
      %v5386 = vor.u32 %v5384, %v5385
      %v5387 = vshll.u32 920167782, %v5372
      %v5388 = vshrl.u32 1326507024, %v5373
      %v5389 = vor.u32 %v5387, %v5388
      %vm5390 = vcmp.lt.s32.totalorder %v5371, 1
      %vm5391 = vcmp.lt.s32.totalorder %v5371, 2
      %vm5392 = vcmp.lt.s32.totalorder %v5371, 3
      %vm5393 = vcmp.lt.s32.totalorder %v5371, 4
      %v5394 = vsel %vm5390, %v5374, %v5377
      %v5395 = vsel %vm5393, %v5383, 2102212464
      %v5396 = vsel %vm5392, %v5380, %v5395
      %v5397 = vsel %vm5391, %v5394, %v5396
      %v5398 = vsel %vm5390, %v5377, %v5380
      %v5399 = vsel %vm5393, %v5386, 920167782
      %v5400 = vsel %vm5392, %v5383, %v5399
      %v5401 = vsel %vm5391, %v5398, %v5400
      %v5402 = vsel %vm5390, %v5380, %v5383
      %v5403 = vsel %vm5393, %v5389, 1326507024
      %v5404 = vsel %vm5392, %v5386, %v5403
      %v5405 = vsel %vm5391, %v5402, %v5404
      %v5406 = vshll.u32 %v5366, 8
      %v5407 = vmul.u32.u64.compose %v5406, %v5405
      %v5408 = vextract.low.u32 %v5407
      %v5409 = vextract.high.u32 %v5407
      %v5410 = vmul.u32.u64.compose %v5406, %v5401
      %v5411 = vextract.low.u32 %v5410
      %v5412 = vextract.high.u32 %v5410
      %v5413 = vmul.u32 %v5406, %v5397
      %v5414 = vadd.s32 %v5409, %v5411
      %vm5415 = vc.u32 %v5409, %v5411
      %v5416 = vadd.s32 %v5412, 1
      %v5417 = vsel %vm5415, %v5416, %v5412
      %v5418 = vadd.s32 %v5413, %v5417
      %v5419 = vadd.s32 %v5418, 536870912
      %v5420 = vshrl.u32 %v5419, 30
      %v5421 = vshll.u32 %v5420, 30
      %v5422 = vsub.s32 %v5418, %v5421
      %vm5423 = vcmp.lt.s32.totalorder %v5422, 0
      %v5424 = vsub.s32 0, %v5422
      %v5425 = vsel %vm5423, %v5424, %v5422
      %v5426 = vclz %v5425
      %v5427 = vsub.s32 %v5426, 2
      %vm5428 = vcmp.gt.s32.totalorder 0, %v5427
      %v5429 = vsel %vm5428, 0, %v5427
      %v5430 = vsub.s32 32, %v5429
      %v5431 = vshll.u32 %v5422, %v5429
      %v5432 = vshrl.u32 %v5414, %v5430
      %v5433 = vor.u32 %v5431, %v5432
      %v5434 = vsub.s32 4294967266, %v5429
      %v5435 = vadd.s32 %v5434, 127
      %v5436 = vshll.u32 %v5435, 23
      %v5437 = vor.u32 4788187, %v5436
      %v5438 = vand.u32 2147483647, %v5437
      %v5440 = vcvt.s32.f32 %v5433
      %v5441 = vmul.f32 %v5440, %v5438
      %v5442 = vxor.u32 %v5441, 2147483648
      %v5443 = vsel %vm5360, %v5442, %v5441
      %v5444 = vsub.s32 4, %v5420
      %v5445 = vsel %vm5360, %v5444, %v5420
      %v5446 = vsel %vm5359, %v981, %v5443
      %v5447 = vsel %vm5359, 0, %v5445
      %v5448 = vcosq.f32.pop %v5446
      %v5449 = vsinq.f32.pop %v5446
      %vm5450 = vweird.f32 %v981
      %v5451 = vadd.s32 %v5447, 3
      %v5452 = vand.u32 %v5451, 3
      %vm5453 = vcmp.lt.s32.totalorder %v5452, 2
      %vm5454 = vcmp.eq.s32.totalorder %v5452, 0
      %v5455 = vxor.u32 %v5449, 2147483648
      %v5456 = vsel %vm5454, %v5448, %v5455
      %vm5457 = vcmp.eq.s32.totalorder %v5452, 2
      %v5458 = vxor.u32 %v5448, 2147483648
      %v5459 = vsel %vm5457, %v5458, %v5449
      %v5460 = vsel %vm5453, %v5456, %v5459
      %v5461 = vsel %vm5450, nan, %v5460
      %v5462 = vand.u32 2147483647, %v986
      %vm5463 = vcmp.le.f32.partialorder %v5462, 0.7853982
      %vm5464 = vcmp.lt.s32.totalorder %v986, 0
      %v5465 = vand.u32 %v986, 2139095040
      %v5466 = vshrl.u32 %v5465, 23
      %v5467 = vsub.s32 %v5466, 127
      %v5468 = vand.u32 2147483647, %v986
      %v5469 = vand.u32 %v5468, 8388607
      %v5470 = vor.u32 %v5469, 8388608
      %v5471 = vsub.s32 0, %v5470
      %v5472 = vadd.s32 %v5467, 1
      %vm5473 = vcmp.gt.s32.totalorder %v5472, 0
      %v5474 = vsel %vm5473, %v5472, 0
      %v5475 = vshrl.u32 %v5474, 5
      %v5476 = vand.u32 %v5474, 31
      %v5477 = vsub.s32 32, %v5476
      %v5478 = vshrl.u32 683565275, %v5477
      %v5479 = vshll.u32 683565275, %v5476
      %v5480 = vshrl.u32 2475754826, %v5477
      %v5481 = vor.u32 %v5479, %v5480
      %v5482 = vshll.u32 2475754826, %v5476
      %v5483 = vshrl.u32 2131351028, %v5477
      %v5484 = vor.u32 %v5482, %v5483
      %v5485 = vshll.u32 2131351028, %v5476
      %v5486 = vshrl.u32 2102212464, %v5477
      %v5487 = vor.u32 %v5485, %v5486
      %v5488 = vshll.u32 2102212464, %v5476
      %v5489 = vshrl.u32 920167782, %v5477
      %v5490 = vor.u32 %v5488, %v5489
      %v5491 = vshll.u32 920167782, %v5476
      %v5492 = vshrl.u32 1326507024, %v5477
      %v5493 = vor.u32 %v5491, %v5492
      %vm5494 = vcmp.lt.s32.totalorder %v5475, 1
      %vm5495 = vcmp.lt.s32.totalorder %v5475, 2
      %vm5496 = vcmp.lt.s32.totalorder %v5475, 3
      %vm5497 = vcmp.lt.s32.totalorder %v5475, 4
      %v5498 = vsel %vm5494, %v5478, %v5481
      %v5499 = vsel %vm5497, %v5487, 2102212464
      %v5500 = vsel %vm5496, %v5484, %v5499
      %v5501 = vsel %vm5495, %v5498, %v5500
      %v5502 = vsel %vm5494, %v5481, %v5484
      %v5503 = vsel %vm5497, %v5490, 920167782
      %v5504 = vsel %vm5496, %v5487, %v5503
      %v5505 = vsel %vm5495, %v5502, %v5504
      %v5506 = vsel %vm5494, %v5484, %v5487
      %v5507 = vsel %vm5497, %v5493, 1326507024
      %v5508 = vsel %vm5496, %v5490, %v5507
      %v5509 = vsel %vm5495, %v5506, %v5508
      %v5510 = vshll.u32 %v5470, 8
      %v5511 = vmul.u32.u64.compose %v5510, %v5509
      %v5512 = vextract.low.u32 %v5511
      %v5513 = vextract.high.u32 %v5511
      %v5514 = vmul.u32.u64.compose %v5510, %v5505
      %v5515 = vextract.low.u32 %v5514
      %v5516 = vextract.high.u32 %v5514
      %v5517 = vmul.u32 %v5510, %v5501
      %v5518 = vadd.s32 %v5513, %v5515
      %vm5519 = vc.u32 %v5513, %v5515
      %v5520 = vadd.s32 %v5516, 1
      %v5521 = vsel %vm5519, %v5520, %v5516
      %v5522 = vadd.s32 %v5517, %v5521
      %v5523 = vadd.s32 %v5522, 536870912
      %v5524 = vshrl.u32 %v5523, 30
      %v5525 = vshll.u32 %v5524, 30
      %v5526 = vsub.s32 %v5522, %v5525
      %vm5527 = vcmp.lt.s32.totalorder %v5526, 0
      %v5528 = vsub.s32 0, %v5526
      %v5529 = vsel %vm5527, %v5528, %v5526
      %v5530 = vclz %v5529
      %v5531 = vsub.s32 %v5530, 2
      %vm5532 = vcmp.gt.s32.totalorder 0, %v5531
      %v5533 = vsel %vm5532, 0, %v5531
      %v5534 = vsub.s32 32, %v5533
      %v5535 = vshll.u32 %v5526, %v5533
      %v5536 = vshrl.u32 %v5518, %v5534
      %v5537 = vor.u32 %v5535, %v5536
      %v5538 = vsub.s32 4294967266, %v5533
      %v5539 = vadd.s32 %v5538, 127
      %v5540 = vshll.u32 %v5539, 23
      %v5541 = vor.u32 4788187, %v5540
      %v5542 = vand.u32 2147483647, %v5541
      %v5544 = vcvt.s32.f32 %v5537
      %v5545 = vmul.f32 %v5544, %v5542
      %v5546 = vxor.u32 %v5545, 2147483648
      %v5547 = vsel %vm5464, %v5546, %v5545
      %v5548 = vsub.s32 4, %v5524
      %v5549 = vsel %vm5464, %v5548, %v5524
      %v5550 = vsel %vm5463, %v986, %v5547
      %v5551 = vsel %vm5463, 0, %v5549
      %v5552 = vcosq.f32.pop %v5550
      %v5553 = vsinq.f32.pop %v5550
      %vm5554 = vweird.f32 %v986
      %v5555 = vadd.s32 %v5551, 3
      %v5556 = vand.u32 %v5555, 3
      %vm5557 = vcmp.lt.s32.totalorder %v5556, 2
      %vm5558 = vcmp.eq.s32.totalorder %v5556, 0
      %v5559 = vxor.u32 %v5553, 2147483648
      %v5560 = vsel %vm5558, %v5552, %v5559
      %vm5561 = vcmp.eq.s32.totalorder %v5556, 2
      %v5562 = vxor.u32 %v5552, 2147483648
      %v5563 = vsel %vm5561, %v5562, %v5553
      %v5564 = vsel %vm5557, %v5560, %v5563
      %v5565 = vsel %vm5554, nan, %v5564
      %v5566 = vand.u32 2147483647, %v991
      %vm5567 = vcmp.le.f32.partialorder %v5566, 0.7853982
      %vm5568 = vcmp.lt.s32.totalorder %v991, 0
      %v5569 = vand.u32 %v991, 2139095040
      %v5570 = vshrl.u32 %v5569, 23
      %v5571 = vsub.s32 %v5570, 127
      %v5572 = vand.u32 2147483647, %v991
      %v5573 = vand.u32 %v5572, 8388607
      %v5574 = vor.u32 %v5573, 8388608
      %v5575 = vsub.s32 0, %v5574
      %v5576 = vadd.s32 %v5571, 1
      %vm5577 = vcmp.gt.s32.totalorder %v5576, 0
      %v5578 = vsel %vm5577, %v5576, 0
      %v5579 = vshrl.u32 %v5578, 5
      %v5580 = vand.u32 %v5578, 31
      %v5581 = vsub.s32 32, %v5580
      %v5582 = vshrl.u32 683565275, %v5581
      %v5583 = vshll.u32 683565275, %v5580
      %v5584 = vshrl.u32 2475754826, %v5581
      %v5585 = vor.u32 %v5583, %v5584
      %v5586 = vshll.u32 2475754826, %v5580
      %v5587 = vshrl.u32 2131351028, %v5581
      %v5588 = vor.u32 %v5586, %v5587
      %v5589 = vshll.u32 2131351028, %v5580
      %v5590 = vshrl.u32 2102212464, %v5581
      %v5591 = vor.u32 %v5589, %v5590
      %v5592 = vshll.u32 2102212464, %v5580
      %v5593 = vshrl.u32 920167782, %v5581
      %v5594 = vor.u32 %v5592, %v5593
      %v5595 = vshll.u32 920167782, %v5580
      %v5596 = vshrl.u32 1326507024, %v5581
      %v5597 = vor.u32 %v5595, %v5596
      %vm5598 = vcmp.lt.s32.totalorder %v5579, 1
      %vm5599 = vcmp.lt.s32.totalorder %v5579, 2
      %vm5600 = vcmp.lt.s32.totalorder %v5579, 3
      %vm5601 = vcmp.lt.s32.totalorder %v5579, 4
      %v5602 = vsel %vm5598, %v5582, %v5585
      %v5603 = vsel %vm5601, %v5591, 2102212464
      %v5604 = vsel %vm5600, %v5588, %v5603
      %v5605 = vsel %vm5599, %v5602, %v5604
      %v5606 = vsel %vm5598, %v5585, %v5588
      %v5607 = vsel %vm5601, %v5594, 920167782
      %v5608 = vsel %vm5600, %v5591, %v5607
      %v5609 = vsel %vm5599, %v5606, %v5608
      %v5610 = vsel %vm5598, %v5588, %v5591
      %v5611 = vsel %vm5601, %v5597, 1326507024
      %v5612 = vsel %vm5600, %v5594, %v5611
      %v5613 = vsel %vm5599, %v5610, %v5612
      %v5614 = vshll.u32 %v5574, 8
      %v5615 = vmul.u32.u64.compose %v5614, %v5613
      %v5616 = vextract.low.u32 %v5615
      %v5617 = vextract.high.u32 %v5615
      %v5618 = vmul.u32.u64.compose %v5614, %v5609
      %v5619 = vextract.low.u32 %v5618
      %v5620 = vextract.high.u32 %v5618
      %v5621 = vmul.u32 %v5614, %v5605
      %v5622 = vadd.s32 %v5617, %v5619
      %vm5623 = vc.u32 %v5617, %v5619
      %v5624 = vadd.s32 %v5620, 1
      %v5625 = vsel %vm5623, %v5624, %v5620
      %v5626 = vadd.s32 %v5621, %v5625
      %v5627 = vadd.s32 %v5626, 536870912
      %v5628 = vshrl.u32 %v5627, 30
      %v5629 = vshll.u32 %v5628, 30
      %v5630 = vsub.s32 %v5626, %v5629
      %vm5631 = vcmp.lt.s32.totalorder %v5630, 0
      %v5632 = vsub.s32 0, %v5630
      %v5633 = vsel %vm5631, %v5632, %v5630
      %v5634 = vclz %v5633
      %v5635 = vsub.s32 %v5634, 2
      %vm5636 = vcmp.gt.s32.totalorder 0, %v5635
      %v5637 = vsel %vm5636, 0, %v5635
      %v5638 = vsub.s32 32, %v5637
      %v5639 = vshll.u32 %v5630, %v5637
      %v5640 = vshrl.u32 %v5622, %v5638
      %v5641 = vor.u32 %v5639, %v5640
      %v5642 = vsub.s32 4294967266, %v5637
      %v5643 = vadd.s32 %v5642, 127
      %v5644 = vshll.u32 %v5643, 23
      %v5645 = vor.u32 4788187, %v5644
      %v5646 = vand.u32 2147483647, %v5645
      %v5648 = vcvt.s32.f32 %v5641
      %v5649 = vmul.f32 %v5648, %v5646
      %v5650 = vxor.u32 %v5649, 2147483648
      %v5651 = vsel %vm5568, %v5650, %v5649
      %v5652 = vsub.s32 4, %v5628
      %v5653 = vsel %vm5568, %v5652, %v5628
      %v5654 = vsel %vm5567, %v991, %v5651
      %v5655 = vsel %vm5567, 0, %v5653
      %v5656 = vcosq.f32.pop %v5654
      %v5657 = vsinq.f32.pop %v5654
      %vm5658 = vweird.f32 %v991
      %v5659 = vadd.s32 %v5655, 3
      %v5660 = vand.u32 %v5659, 3
      %vm5661 = vcmp.lt.s32.totalorder %v5660, 2
      %vm5662 = vcmp.eq.s32.totalorder %v5660, 0
      %v5663 = vxor.u32 %v5657, 2147483648
      %v5664 = vsel %vm5662, %v5656, %v5663
      %vm5665 = vcmp.eq.s32.totalorder %v5660, 2
      %v5666 = vxor.u32 %v5656, 2147483648
      %v5667 = vsel %vm5665, %v5666, %v5657
      %v5668 = vsel %vm5661, %v5664, %v5667
      %v5669 = vsel %vm5658, nan, %v5668
      %v5670 = vand.u32 2147483647, %v996
      %vm5671 = vcmp.le.f32.partialorder %v5670, 0.7853982
      %vm5672 = vcmp.lt.s32.totalorder %v996, 0
      %v5673 = vand.u32 %v996, 2139095040
      %v5674 = vshrl.u32 %v5673, 23
      %v5675 = vsub.s32 %v5674, 127
      %v5676 = vand.u32 2147483647, %v996
      %v5677 = vand.u32 %v5676, 8388607
      %v5678 = vor.u32 %v5677, 8388608
      %v5679 = vsub.s32 0, %v5678
      %v5680 = vadd.s32 %v5675, 1
      %vm5681 = vcmp.gt.s32.totalorder %v5680, 0
      %v5682 = vsel %vm5681, %v5680, 0
      %v5683 = vshrl.u32 %v5682, 5
      %v5684 = vand.u32 %v5682, 31
      %v5685 = vsub.s32 32, %v5684
      %v5686 = vshrl.u32 683565275, %v5685
      %v5687 = vshll.u32 683565275, %v5684
      %v5688 = vshrl.u32 2475754826, %v5685
      %v5689 = vor.u32 %v5687, %v5688
      %v5690 = vshll.u32 2475754826, %v5684
      %v5691 = vshrl.u32 2131351028, %v5685
      %v5692 = vor.u32 %v5690, %v5691
      %v5693 = vshll.u32 2131351028, %v5684
      %v5694 = vshrl.u32 2102212464, %v5685
      %v5695 = vor.u32 %v5693, %v5694
      %v5696 = vshll.u32 2102212464, %v5684
      %v5697 = vshrl.u32 920167782, %v5685
      %v5698 = vor.u32 %v5696, %v5697
      %v5699 = vshll.u32 920167782, %v5684
      %v5700 = vshrl.u32 1326507024, %v5685
      %v5701 = vor.u32 %v5699, %v5700
      %vm5702 = vcmp.lt.s32.totalorder %v5683, 1
      %vm5703 = vcmp.lt.s32.totalorder %v5683, 2
      %vm5704 = vcmp.lt.s32.totalorder %v5683, 3
      %vm5705 = vcmp.lt.s32.totalorder %v5683, 4
      %v5706 = vsel %vm5702, %v5686, %v5689
      %v5707 = vsel %vm5705, %v5695, 2102212464
      %v5708 = vsel %vm5704, %v5692, %v5707
      %v5709 = vsel %vm5703, %v5706, %v5708
      %v5710 = vsel %vm5702, %v5689, %v5692
      %v5711 = vsel %vm5705, %v5698, 920167782
      %v5712 = vsel %vm5704, %v5695, %v5711
      %v5713 = vsel %vm5703, %v5710, %v5712
      %v5714 = vsel %vm5702, %v5692, %v5695
      %v5715 = vsel %vm5705, %v5701, 1326507024
      %v5716 = vsel %vm5704, %v5698, %v5715
      %v5717 = vsel %vm5703, %v5714, %v5716
      %v5718 = vshll.u32 %v5678, 8
      %v5719 = vmul.u32.u64.compose %v5718, %v5717
      %v5720 = vextract.low.u32 %v5719
      %v5721 = vextract.high.u32 %v5719
      %v5722 = vmul.u32.u64.compose %v5718, %v5713
      %v5723 = vextract.low.u32 %v5722
      %v5724 = vextract.high.u32 %v5722
      %v5725 = vmul.u32 %v5718, %v5709
      %v5726 = vadd.s32 %v5721, %v5723
      %vm5727 = vc.u32 %v5721, %v5723
      %v5728 = vadd.s32 %v5724, 1
      %v5729 = vsel %vm5727, %v5728, %v5724
      %v5730 = vadd.s32 %v5725, %v5729
      %v5731 = vadd.s32 %v5730, 536870912
      %v5732 = vshrl.u32 %v5731, 30
      %v5733 = vshll.u32 %v5732, 30
      %v5734 = vsub.s32 %v5730, %v5733
      %vm5735 = vcmp.lt.s32.totalorder %v5734, 0
      %v5736 = vsub.s32 0, %v5734
      %v5737 = vsel %vm5735, %v5736, %v5734
      %v5738 = vclz %v5737
      %v5739 = vsub.s32 %v5738, 2
      %vm5740 = vcmp.gt.s32.totalorder 0, %v5739
      %v5741 = vsel %vm5740, 0, %v5739
      %v5742 = vsub.s32 32, %v5741
      %v5743 = vshll.u32 %v5734, %v5741
      %v5744 = vshrl.u32 %v5726, %v5742
      %v5745 = vor.u32 %v5743, %v5744
      %v5746 = vsub.s32 4294967266, %v5741
      %v5747 = vadd.s32 %v5746, 127
      %v5748 = vshll.u32 %v5747, 23
      %v5749 = vor.u32 4788187, %v5748
      %v5750 = vand.u32 2147483647, %v5749
      %v5752 = vcvt.s32.f32 %v5745
      %v5753 = vmul.f32 %v5752, %v5750
      %v5754 = vxor.u32 %v5753, 2147483648
      %v5755 = vsel %vm5672, %v5754, %v5753
      %v5756 = vsub.s32 4, %v5732
      %v5757 = vsel %vm5672, %v5756, %v5732
      %v5758 = vsel %vm5671, %v996, %v5755
      %v5759 = vsel %vm5671, 0, %v5757
      %v5760 = vcosq.f32.pop %v5758
      %v5761 = vsinq.f32.pop %v5758
      %vm5762 = vweird.f32 %v996
      %v5763 = vadd.s32 %v5759, 3
      %v5764 = vand.u32 %v5763, 3
      %vm5765 = vcmp.lt.s32.totalorder %v5764, 2
      %vm5766 = vcmp.eq.s32.totalorder %v5764, 0
      %v5767 = vxor.u32 %v5761, 2147483648
      %v5768 = vsel %vm5766, %v5760, %v5767
      %vm5769 = vcmp.eq.s32.totalorder %v5764, 2
      %v5770 = vxor.u32 %v5760, 2147483648
      %v5771 = vsel %vm5769, %v5770, %v5761
      %v5772 = vsel %vm5765, %v5768, %v5771
      %v5773 = vsel %vm5762, nan, %v5772
      %v5774 = vand.u32 2147483647, %v1001
      %vm5775 = vcmp.le.f32.partialorder %v5774, 0.7853982
      %vm5776 = vcmp.lt.s32.totalorder %v1001, 0
      %v5777 = vand.u32 %v1001, 2139095040
      %v5778 = vshrl.u32 %v5777, 23
      %v5779 = vsub.s32 %v5778, 127
      %v5780 = vand.u32 2147483647, %v1001
      %v5781 = vand.u32 %v5780, 8388607
      %v5782 = vor.u32 %v5781, 8388608
      %v5783 = vsub.s32 0, %v5782
      %v5784 = vadd.s32 %v5779, 1
      %vm5785 = vcmp.gt.s32.totalorder %v5784, 0
      %v5786 = vsel %vm5785, %v5784, 0
      %v5787 = vshrl.u32 %v5786, 5
      %v5788 = vand.u32 %v5786, 31
      %v5789 = vsub.s32 32, %v5788
      %v5790 = vshrl.u32 683565275, %v5789
      %v5791 = vshll.u32 683565275, %v5788
      %v5792 = vshrl.u32 2475754826, %v5789
      %v5793 = vor.u32 %v5791, %v5792
      %v5794 = vshll.u32 2475754826, %v5788
      %v5795 = vshrl.u32 2131351028, %v5789
      %v5796 = vor.u32 %v5794, %v5795
      %v5797 = vshll.u32 2131351028, %v5788
      %v5798 = vshrl.u32 2102212464, %v5789
      %v5799 = vor.u32 %v5797, %v5798
      %v5800 = vshll.u32 2102212464, %v5788
      %v5801 = vshrl.u32 920167782, %v5789
      %v5802 = vor.u32 %v5800, %v5801
      %v5803 = vshll.u32 920167782, %v5788
      %v5804 = vshrl.u32 1326507024, %v5789
      %v5805 = vor.u32 %v5803, %v5804
      %vm5806 = vcmp.lt.s32.totalorder %v5787, 1
      %vm5807 = vcmp.lt.s32.totalorder %v5787, 2
      %vm5808 = vcmp.lt.s32.totalorder %v5787, 3
      %vm5809 = vcmp.lt.s32.totalorder %v5787, 4
      %v5810 = vsel %vm5806, %v5790, %v5793
      %v5811 = vsel %vm5809, %v5799, 2102212464
      %v5812 = vsel %vm5808, %v5796, %v5811
      %v5813 = vsel %vm5807, %v5810, %v5812
      %v5814 = vsel %vm5806, %v5793, %v5796
      %v5815 = vsel %vm5809, %v5802, 920167782
      %v5816 = vsel %vm5808, %v5799, %v5815
      %v5817 = vsel %vm5807, %v5814, %v5816
      %v5818 = vsel %vm5806, %v5796, %v5799
      %v5819 = vsel %vm5809, %v5805, 1326507024
      %v5820 = vsel %vm5808, %v5802, %v5819
      %v5821 = vsel %vm5807, %v5818, %v5820
      %v5822 = vshll.u32 %v5782, 8
      %v5823 = vmul.u32.u64.compose %v5822, %v5821
      %v5824 = vextract.low.u32 %v5823
      %v5825 = vextract.high.u32 %v5823
      %v5826 = vmul.u32.u64.compose %v5822, %v5817
      %v5827 = vextract.low.u32 %v5826
      %v5828 = vextract.high.u32 %v5826
      %v5829 = vmul.u32 %v5822, %v5813
      %v5830 = vadd.s32 %v5825, %v5827
      %vm5831 = vc.u32 %v5825, %v5827
      %v5832 = vadd.s32 %v5828, 1
      %v5833 = vsel %vm5831, %v5832, %v5828
      %v5834 = vadd.s32 %v5829, %v5833
      %v5835 = vadd.s32 %v5834, 536870912
      %v5836 = vshrl.u32 %v5835, 30
      %v5837 = vshll.u32 %v5836, 30
      %v5838 = vsub.s32 %v5834, %v5837
      %vm5839 = vcmp.lt.s32.totalorder %v5838, 0
      %v5840 = vsub.s32 0, %v5838
      %v5841 = vsel %vm5839, %v5840, %v5838
      %v5842 = vclz %v5841
      %v5843 = vsub.s32 %v5842, 2
      %vm5844 = vcmp.gt.s32.totalorder 0, %v5843
      %v5845 = vsel %vm5844, 0, %v5843
      %v5846 = vsub.s32 32, %v5845
      %v5847 = vshll.u32 %v5838, %v5845
      %v5848 = vshrl.u32 %v5830, %v5846
      %v5849 = vor.u32 %v5847, %v5848
      %v5850 = vsub.s32 4294967266, %v5845
      %v5851 = vadd.s32 %v5850, 127
      %v5852 = vshll.u32 %v5851, 23
      %v5853 = vor.u32 4788187, %v5852
      %v5854 = vand.u32 2147483647, %v5853
      %v5856 = vcvt.s32.f32 %v5849
      %v5857 = vmul.f32 %v5856, %v5854
      %v5858 = vxor.u32 %v5857, 2147483648
      %v5859 = vsel %vm5776, %v5858, %v5857
      %v5860 = vsub.s32 4, %v5836
      %v5861 = vsel %vm5776, %v5860, %v5836
      %v5862 = vsel %vm5775, %v1001, %v5859
      %v5863 = vsel %vm5775, 0, %v5861
      %v5864 = vcosq.f32.pop %v5862
      %v5865 = vsinq.f32.pop %v5862
      %vm5866 = vweird.f32 %v1001
      %v5867 = vadd.s32 %v5863, 3
      %v5868 = vand.u32 %v5867, 3
      %vm5869 = vcmp.lt.s32.totalorder %v5868, 2
      %vm5870 = vcmp.eq.s32.totalorder %v5868, 0
      %v5871 = vxor.u32 %v5865, 2147483648
      %v5872 = vsel %vm5870, %v5864, %v5871
      %vm5873 = vcmp.eq.s32.totalorder %v5868, 2
      %v5874 = vxor.u32 %v5864, 2147483648
      %v5875 = vsel %vm5873, %v5874, %v5865
      %v5876 = vsel %vm5869, %v5872, %v5875
      %v5877 = vsel %vm5866, nan, %v5876
      %v5878 = vand.u32 2147483647, %v1006
      %vm5879 = vcmp.le.f32.partialorder %v5878, 0.7853982
      %vm5880 = vcmp.lt.s32.totalorder %v1006, 0
      %v5881 = vand.u32 %v1006, 2139095040
      %v5882 = vshrl.u32 %v5881, 23
      %v5883 = vsub.s32 %v5882, 127
      %v5884 = vand.u32 2147483647, %v1006
      %v5885 = vand.u32 %v5884, 8388607
      %v5886 = vor.u32 %v5885, 8388608
      %v5887 = vsub.s32 0, %v5886
      %v5888 = vadd.s32 %v5883, 1
      %vm5889 = vcmp.gt.s32.totalorder %v5888, 0
      %v5890 = vsel %vm5889, %v5888, 0
      %v5891 = vshrl.u32 %v5890, 5
      %v5892 = vand.u32 %v5890, 31
      %v5893 = vsub.s32 32, %v5892
      %v5894 = vshrl.u32 683565275, %v5893
      %v5895 = vshll.u32 683565275, %v5892
      %v5896 = vshrl.u32 2475754826, %v5893
      %v5897 = vor.u32 %v5895, %v5896
      %v5898 = vshll.u32 2475754826, %v5892
      %v5899 = vshrl.u32 2131351028, %v5893
      %v5900 = vor.u32 %v5898, %v5899
      %v5901 = vshll.u32 2131351028, %v5892
      %v5902 = vshrl.u32 2102212464, %v5893
      %v5903 = vor.u32 %v5901, %v5902
      %v5904 = vshll.u32 2102212464, %v5892
      %v5905 = vshrl.u32 920167782, %v5893
      %v5906 = vor.u32 %v5904, %v5905
      %v5907 = vshll.u32 920167782, %v5892
      %v5908 = vshrl.u32 1326507024, %v5893
      %v5909 = vor.u32 %v5907, %v5908
      %vm5910 = vcmp.lt.s32.totalorder %v5891, 1
      %vm5911 = vcmp.lt.s32.totalorder %v5891, 2
      %vm5912 = vcmp.lt.s32.totalorder %v5891, 3
      %vm5913 = vcmp.lt.s32.totalorder %v5891, 4
      %v5914 = vsel %vm5910, %v5894, %v5897
      %v5915 = vsel %vm5913, %v5903, 2102212464
      %v5916 = vsel %vm5912, %v5900, %v5915
      %v5917 = vsel %vm5911, %v5914, %v5916
      %v5918 = vsel %vm5910, %v5897, %v5900
      %v5919 = vsel %vm5913, %v5906, 920167782
      %v5920 = vsel %vm5912, %v5903, %v5919
      %v5921 = vsel %vm5911, %v5918, %v5920
      %v5922 = vsel %vm5910, %v5900, %v5903
      %v5923 = vsel %vm5913, %v5909, 1326507024
      %v5924 = vsel %vm5912, %v5906, %v5923
      %v5925 = vsel %vm5911, %v5922, %v5924
      %v5926 = vshll.u32 %v5886, 8
      %v5927 = vmul.u32.u64.compose %v5926, %v5925
      %v5928 = vextract.low.u32 %v5927
      %v5929 = vextract.high.u32 %v5927
      %v5930 = vmul.u32.u64.compose %v5926, %v5921
      %v5931 = vextract.low.u32 %v5930
      %v5932 = vextract.high.u32 %v5930
      %v5933 = vmul.u32 %v5926, %v5917
      %v5934 = vadd.s32 %v5929, %v5931
      %vm5935 = vc.u32 %v5929, %v5931
      %v5936 = vadd.s32 %v5932, 1
      %v5937 = vsel %vm5935, %v5936, %v5932
      %v5938 = vadd.s32 %v5933, %v5937
      %v5939 = vadd.s32 %v5938, 536870912
      %v5940 = vshrl.u32 %v5939, 30
      %v5941 = vshll.u32 %v5940, 30
      %v5942 = vsub.s32 %v5938, %v5941
      %vm5943 = vcmp.lt.s32.totalorder %v5942, 0
      %v5944 = vsub.s32 0, %v5942
      %v5945 = vsel %vm5943, %v5944, %v5942
      %v5946 = vclz %v5945
      %v5947 = vsub.s32 %v5946, 2
      %vm5948 = vcmp.gt.s32.totalorder 0, %v5947
      %v5949 = vsel %vm5948, 0, %v5947
      %v5950 = vsub.s32 32, %v5949
      %v5951 = vshll.u32 %v5942, %v5949
      %v5952 = vshrl.u32 %v5934, %v5950
      %v5953 = vor.u32 %v5951, %v5952
      %v5954 = vsub.s32 4294967266, %v5949
      %v5955 = vadd.s32 %v5954, 127
      %v5956 = vshll.u32 %v5955, 23
      %v5957 = vor.u32 4788187, %v5956
      %v5958 = vand.u32 2147483647, %v5957
      %v5960 = vcvt.s32.f32 %v5953
      %v5961 = vmul.f32 %v5960, %v5958
      %v5962 = vxor.u32 %v5961, 2147483648
      %v5963 = vsel %vm5880, %v5962, %v5961
      %v5964 = vsub.s32 4, %v5940
      %v5965 = vsel %vm5880, %v5964, %v5940
      %v5966 = vsel %vm5879, %v1006, %v5963
      %v5967 = vsel %vm5879, 0, %v5965
      %v5968 = vcosq.f32.pop %v5966
      %v5969 = vsinq.f32.pop %v5966
      %vm5970 = vweird.f32 %v1006
      %v5971 = vadd.s32 %v5967, 3
      %v5972 = vand.u32 %v5971, 3
      %vm5973 = vcmp.lt.s32.totalorder %v5972, 2
      %vm5974 = vcmp.eq.s32.totalorder %v5972, 0
      %v5975 = vxor.u32 %v5969, 2147483648
      %v5976 = vsel %vm5974, %v5968, %v5975
      %vm5977 = vcmp.eq.s32.totalorder %v5972, 2
      %v5978 = vxor.u32 %v5968, 2147483648
      %v5979 = vsel %vm5977, %v5978, %v5969
      %v5980 = vsel %vm5973, %v5976, %v5979
      %v5981 = vsel %vm5970, nan, %v5980
      %v5982 = vand.u32 2147483647, %v1011
      %vm5983 = vcmp.le.f32.partialorder %v5982, 0.7853982
      %vm5984 = vcmp.lt.s32.totalorder %v1011, 0
      %v5985 = vand.u32 %v1011, 2139095040
      %v5986 = vshrl.u32 %v5985, 23
      %v5987 = vsub.s32 %v5986, 127
      %v5988 = vand.u32 2147483647, %v1011
      %v5989 = vand.u32 %v5988, 8388607
      %v5990 = vor.u32 %v5989, 8388608
      %v5991 = vsub.s32 0, %v5990
      %v5992 = vadd.s32 %v5987, 1
      %vm5993 = vcmp.gt.s32.totalorder %v5992, 0
      %v5994 = vsel %vm5993, %v5992, 0
      %v5995 = vshrl.u32 %v5994, 5
      %v5996 = vand.u32 %v5994, 31
      %v5997 = vsub.s32 32, %v5996
      %v5998 = vshrl.u32 683565275, %v5997
      %v5999 = vshll.u32 683565275, %v5996
      %v6000 = vshrl.u32 2475754826, %v5997
      %v6001 = vor.u32 %v5999, %v6000
      %v6002 = vshll.u32 2475754826, %v5996
      %v6003 = vshrl.u32 2131351028, %v5997
      %v6004 = vor.u32 %v6002, %v6003
      %v6005 = vshll.u32 2131351028, %v5996
      %v6006 = vshrl.u32 2102212464, %v5997
      %v6007 = vor.u32 %v6005, %v6006
      %v6008 = vshll.u32 2102212464, %v5996
      %v6009 = vshrl.u32 920167782, %v5997
      %v6010 = vor.u32 %v6008, %v6009
      %v6011 = vshll.u32 920167782, %v5996
      %v6012 = vshrl.u32 1326507024, %v5997
      %v6013 = vor.u32 %v6011, %v6012
      %vm6014 = vcmp.lt.s32.totalorder %v5995, 1
      %vm6015 = vcmp.lt.s32.totalorder %v5995, 2
      %vm6016 = vcmp.lt.s32.totalorder %v5995, 3
      %vm6017 = vcmp.lt.s32.totalorder %v5995, 4
      %v6018 = vsel %vm6014, %v5998, %v6001
      %v6019 = vsel %vm6017, %v6007, 2102212464
      %v6020 = vsel %vm6016, %v6004, %v6019
      %v6021 = vsel %vm6015, %v6018, %v6020
      %v6022 = vsel %vm6014, %v6001, %v6004
      %v6023 = vsel %vm6017, %v6010, 920167782
      %v6024 = vsel %vm6016, %v6007, %v6023
      %v6025 = vsel %vm6015, %v6022, %v6024
      %v6026 = vsel %vm6014, %v6004, %v6007
      %v6027 = vsel %vm6017, %v6013, 1326507024
      %v6028 = vsel %vm6016, %v6010, %v6027
      %v6029 = vsel %vm6015, %v6026, %v6028
      %v6030 = vshll.u32 %v5990, 8
      %v6031 = vmul.u32.u64.compose %v6030, %v6029
      %v6032 = vextract.low.u32 %v6031
      %v6033 = vextract.high.u32 %v6031
      %v6034 = vmul.u32.u64.compose %v6030, %v6025
      %v6035 = vextract.low.u32 %v6034
      %v6036 = vextract.high.u32 %v6034
      %v6037 = vmul.u32 %v6030, %v6021
      %v6038 = vadd.s32 %v6033, %v6035
      %vm6039 = vc.u32 %v6033, %v6035
      %v6040 = vadd.s32 %v6036, 1
      %v6041 = vsel %vm6039, %v6040, %v6036
      %v6042 = vadd.s32 %v6037, %v6041
      %v6043 = vadd.s32 %v6042, 536870912
      %v6044 = vshrl.u32 %v6043, 30
      %v6045 = vshll.u32 %v6044, 30
      %v6046 = vsub.s32 %v6042, %v6045
      %vm6047 = vcmp.lt.s32.totalorder %v6046, 0
      %v6048 = vsub.s32 0, %v6046
      %v6049 = vsel %vm6047, %v6048, %v6046
      %v6050 = vclz %v6049
      %v6051 = vsub.s32 %v6050, 2
      %vm6052 = vcmp.gt.s32.totalorder 0, %v6051
      %v6053 = vsel %vm6052, 0, %v6051
      %v6054 = vsub.s32 32, %v6053
      %v6055 = vshll.u32 %v6046, %v6053
      %v6056 = vshrl.u32 %v6038, %v6054
      %v6057 = vor.u32 %v6055, %v6056
      %v6058 = vsub.s32 4294967266, %v6053
      %v6059 = vadd.s32 %v6058, 127
      %v6060 = vshll.u32 %v6059, 23
      %v6061 = vor.u32 4788187, %v6060
      %v6062 = vand.u32 2147483647, %v6061
      %v6064 = vcvt.s32.f32 %v6057
      %v6065 = vmul.f32 %v6064, %v6062
      %v6066 = vxor.u32 %v6065, 2147483648
      %v6067 = vsel %vm5984, %v6066, %v6065
      %v6068 = vsub.s32 4, %v6044
      %v6069 = vsel %vm5984, %v6068, %v6044
      %v6070 = vsel %vm5983, %v1011, %v6067
      %v6071 = vsel %vm5983, 0, %v6069
      %v6072 = vcosq.f32.pop %v6070
      %v6073 = vsinq.f32.pop %v6070
      %vm6074 = vweird.f32 %v1011
      %v6075 = vadd.s32 %v6071, 3
      %v6076 = vand.u32 %v6075, 3
      %vm6077 = vcmp.lt.s32.totalorder %v6076, 2
      %vm6078 = vcmp.eq.s32.totalorder %v6076, 0
      %v6079 = vxor.u32 %v6073, 2147483648
      %v6080 = vsel %vm6078, %v6072, %v6079
      %vm6081 = vcmp.eq.s32.totalorder %v6076, 2
      %v6082 = vxor.u32 %v6072, 2147483648
      %v6083 = vsel %vm6081, %v6082, %v6073
      %v6084 = vsel %vm6077, %v6080, %v6083
      %v6085 = vsel %vm6074, nan, %v6084
      %v6086 = vand.u32 2147483647, %v1016
      %vm6087 = vcmp.le.f32.partialorder %v6086, 0.7853982
      %vm6088 = vcmp.lt.s32.totalorder %v1016, 0
      %v6089 = vand.u32 %v1016, 2139095040
      %v6090 = vshrl.u32 %v6089, 23
      %v6091 = vsub.s32 %v6090, 127
      %v6092 = vand.u32 2147483647, %v1016
      %v6093 = vand.u32 %v6092, 8388607
      %v6094 = vor.u32 %v6093, 8388608
      %v6095 = vsub.s32 0, %v6094
      %v6096 = vadd.s32 %v6091, 1
      %vm6097 = vcmp.gt.s32.totalorder %v6096, 0
      %v6098 = vsel %vm6097, %v6096, 0
      %v6099 = vshrl.u32 %v6098, 5
      %v6100 = vand.u32 %v6098, 31
      %v6101 = vsub.s32 32, %v6100
      %v6102 = vshrl.u32 683565275, %v6101
      %v6103 = vshll.u32 683565275, %v6100
      %v6104 = vshrl.u32 2475754826, %v6101
      %v6105 = vor.u32 %v6103, %v6104
      %v6106 = vshll.u32 2475754826, %v6100
      %v6107 = vshrl.u32 2131351028, %v6101
      %v6108 = vor.u32 %v6106, %v6107
      %v6109 = vshll.u32 2131351028, %v6100
      %v6110 = vshrl.u32 2102212464, %v6101
      %v6111 = vor.u32 %v6109, %v6110
      %v6112 = vshll.u32 2102212464, %v6100
      %v6113 = vshrl.u32 920167782, %v6101
      %v6114 = vor.u32 %v6112, %v6113
      %v6115 = vshll.u32 920167782, %v6100
      %v6116 = vshrl.u32 1326507024, %v6101
      %v6117 = vor.u32 %v6115, %v6116
      %vm6118 = vcmp.lt.s32.totalorder %v6099, 1
      %vm6119 = vcmp.lt.s32.totalorder %v6099, 2
      %vm6120 = vcmp.lt.s32.totalorder %v6099, 3
      %vm6121 = vcmp.lt.s32.totalorder %v6099, 4
      %v6122 = vsel %vm6118, %v6102, %v6105
      %v6123 = vsel %vm6121, %v6111, 2102212464
      %v6124 = vsel %vm6120, %v6108, %v6123
      %v6125 = vsel %vm6119, %v6122, %v6124
      %v6126 = vsel %vm6118, %v6105, %v6108
      %v6127 = vsel %vm6121, %v6114, 920167782
      %v6128 = vsel %vm6120, %v6111, %v6127
      %v6129 = vsel %vm6119, %v6126, %v6128
      %v6130 = vsel %vm6118, %v6108, %v6111
      %v6131 = vsel %vm6121, %v6117, 1326507024
      %v6132 = vsel %vm6120, %v6114, %v6131
      %v6133 = vsel %vm6119, %v6130, %v6132
      %v6134 = vshll.u32 %v6094, 8
      %v6135 = vmul.u32.u64.compose %v6134, %v6133
      %v6136 = vextract.low.u32 %v6135
      %v6137 = vextract.high.u32 %v6135
      %v6138 = vmul.u32.u64.compose %v6134, %v6129
      %v6139 = vextract.low.u32 %v6138
      %v6140 = vextract.high.u32 %v6138
      %v6141 = vmul.u32 %v6134, %v6125
      %v6142 = vadd.s32 %v6137, %v6139
      %vm6143 = vc.u32 %v6137, %v6139
      %v6144 = vadd.s32 %v6140, 1
      %v6145 = vsel %vm6143, %v6144, %v6140
      %v6146 = vadd.s32 %v6141, %v6145
      %v6147 = vadd.s32 %v6146, 536870912
      %v6148 = vshrl.u32 %v6147, 30
      %v6149 = vshll.u32 %v6148, 30
      %v6150 = vsub.s32 %v6146, %v6149
      %vm6151 = vcmp.lt.s32.totalorder %v6150, 0
      %v6152 = vsub.s32 0, %v6150
      %v6153 = vsel %vm6151, %v6152, %v6150
      %v6154 = vclz %v6153
      %v6155 = vsub.s32 %v6154, 2
      %vm6156 = vcmp.gt.s32.totalorder 0, %v6155
      %v6157 = vsel %vm6156, 0, %v6155
      %v6158 = vsub.s32 32, %v6157
      %v6159 = vshll.u32 %v6150, %v6157
      %v6160 = vshrl.u32 %v6142, %v6158
      %v6161 = vor.u32 %v6159, %v6160
      %v6162 = vsub.s32 4294967266, %v6157
      %v6163 = vadd.s32 %v6162, 127
      %v6164 = vshll.u32 %v6163, 23
      %v6165 = vor.u32 4788187, %v6164
      %v6166 = vand.u32 2147483647, %v6165
      %v6168 = vcvt.s32.f32 %v6161
      %v6169 = vmul.f32 %v6168, %v6166
      %v6170 = vxor.u32 %v6169, 2147483648
      %v6171 = vsel %vm6088, %v6170, %v6169
      %v6172 = vsub.s32 4, %v6148
      %v6173 = vsel %vm6088, %v6172, %v6148
      %v6174 = vsel %vm6087, %v1016, %v6171
      %v6175 = vsel %vm6087, 0, %v6173
      %v6176 = vcosq.f32.pop %v6174
      %v6177 = vsinq.f32.pop %v6174
      %vm6178 = vweird.f32 %v1016
      %v6179 = vadd.s32 %v6175, 3
      %v6180 = vand.u32 %v6179, 3
      %vm6181 = vcmp.lt.s32.totalorder %v6180, 2
      %vm6182 = vcmp.eq.s32.totalorder %v6180, 0
      %v6183 = vxor.u32 %v6177, 2147483648
      %v6184 = vsel %vm6182, %v6176, %v6183
      %vm6185 = vcmp.eq.s32.totalorder %v6180, 2
      %v6186 = vxor.u32 %v6176, 2147483648
      %v6187 = vsel %vm6185, %v6186, %v6177
      %v6188 = vsel %vm6181, %v6184, %v6187
      %v6189 = vsel %vm6178, nan, %v6188
      %v6190 = vand.u32 2147483647, %v1021
      %vm6191 = vcmp.le.f32.partialorder %v6190, 0.7853982
      %vm6192 = vcmp.lt.s32.totalorder %v1021, 0
      %v6193 = vand.u32 %v1021, 2139095040
      %v6194 = vshrl.u32 %v6193, 23
      %v6195 = vsub.s32 %v6194, 127
      %v6196 = vand.u32 2147483647, %v1021
      %v6197 = vand.u32 %v6196, 8388607
      %v6198 = vor.u32 %v6197, 8388608
      %v6199 = vsub.s32 0, %v6198
      %v6200 = vadd.s32 %v6195, 1
      %vm6201 = vcmp.gt.s32.totalorder %v6200, 0
      %v6202 = vsel %vm6201, %v6200, 0
      %v6203 = vshrl.u32 %v6202, 5
      %v6204 = vand.u32 %v6202, 31
      %v6205 = vsub.s32 32, %v6204
      %v6206 = vshrl.u32 683565275, %v6205
      %v6207 = vshll.u32 683565275, %v6204
      %v6208 = vshrl.u32 2475754826, %v6205
      %v6209 = vor.u32 %v6207, %v6208
      %v6210 = vshll.u32 2475754826, %v6204
      %v6211 = vshrl.u32 2131351028, %v6205
      %v6212 = vor.u32 %v6210, %v6211
      %v6213 = vshll.u32 2131351028, %v6204
      %v6214 = vshrl.u32 2102212464, %v6205
      %v6215 = vor.u32 %v6213, %v6214
      %v6216 = vshll.u32 2102212464, %v6204
      %v6217 = vshrl.u32 920167782, %v6205
      %v6218 = vor.u32 %v6216, %v6217
      %v6219 = vshll.u32 920167782, %v6204
      %v6220 = vshrl.u32 1326507024, %v6205
      %v6221 = vor.u32 %v6219, %v6220
      %vm6222 = vcmp.lt.s32.totalorder %v6203, 1
      %vm6223 = vcmp.lt.s32.totalorder %v6203, 2
      %vm6224 = vcmp.lt.s32.totalorder %v6203, 3
      %vm6225 = vcmp.lt.s32.totalorder %v6203, 4
      %v6226 = vsel %vm6222, %v6206, %v6209
      %v6227 = vsel %vm6225, %v6215, 2102212464
      %v6228 = vsel %vm6224, %v6212, %v6227
      %v6229 = vsel %vm6223, %v6226, %v6228
      %v6230 = vsel %vm6222, %v6209, %v6212
      %v6231 = vsel %vm6225, %v6218, 920167782
      %v6232 = vsel %vm6224, %v6215, %v6231
      %v6233 = vsel %vm6223, %v6230, %v6232
      %v6234 = vsel %vm6222, %v6212, %v6215
      %v6235 = vsel %vm6225, %v6221, 1326507024
      %v6236 = vsel %vm6224, %v6218, %v6235
      %v6237 = vsel %vm6223, %v6234, %v6236
      %v6238 = vshll.u32 %v6198, 8
      %v6239 = vmul.u32.u64.compose %v6238, %v6237
      %v6240 = vextract.low.u32 %v6239
      %v6241 = vextract.high.u32 %v6239
      %v6242 = vmul.u32.u64.compose %v6238, %v6233
      %v6243 = vextract.low.u32 %v6242
      %v6244 = vextract.high.u32 %v6242
      %v6245 = vmul.u32 %v6238, %v6229
      %v6246 = vadd.s32 %v6241, %v6243
      %vm6247 = vc.u32 %v6241, %v6243
      %v6248 = vadd.s32 %v6244, 1
      %v6249 = vsel %vm6247, %v6248, %v6244
      %v6250 = vadd.s32 %v6245, %v6249
      %v6251 = vadd.s32 %v6250, 536870912
      %v6252 = vshrl.u32 %v6251, 30
      %v6253 = vshll.u32 %v6252, 30
      %v6254 = vsub.s32 %v6250, %v6253
      %vm6255 = vcmp.lt.s32.totalorder %v6254, 0
      %v6256 = vsub.s32 0, %v6254
      %v6257 = vsel %vm6255, %v6256, %v6254
      %v6258 = vclz %v6257
      %v6259 = vsub.s32 %v6258, 2
      %vm6260 = vcmp.gt.s32.totalorder 0, %v6259
      %v6261 = vsel %vm6260, 0, %v6259
      %v6262 = vsub.s32 32, %v6261
      %v6263 = vshll.u32 %v6254, %v6261
      %v6264 = vshrl.u32 %v6246, %v6262
      %v6265 = vor.u32 %v6263, %v6264
      %v6266 = vsub.s32 4294967266, %v6261
      %v6267 = vadd.s32 %v6266, 127
      %v6268 = vshll.u32 %v6267, 23
      %v6269 = vor.u32 4788187, %v6268
      %v6270 = vand.u32 2147483647, %v6269
      %v6272 = vcvt.s32.f32 %v6265
      %v6273 = vmul.f32 %v6272, %v6270
      %v6274 = vxor.u32 %v6273, 2147483648
      %v6275 = vsel %vm6192, %v6274, %v6273
      %v6276 = vsub.s32 4, %v6252
      %v6277 = vsel %vm6192, %v6276, %v6252
      %v6278 = vsel %vm6191, %v1021, %v6275
      %v6279 = vsel %vm6191, 0, %v6277
      %v6280 = vcosq.f32.pop %v6278
      %v6281 = vsinq.f32.pop %v6278
      %vm6282 = vweird.f32 %v1021
      %v6283 = vadd.s32 %v6279, 3
      %v6284 = vand.u32 %v6283, 3
      %vm6285 = vcmp.lt.s32.totalorder %v6284, 2
      %vm6286 = vcmp.eq.s32.totalorder %v6284, 0
      %v6287 = vxor.u32 %v6281, 2147483648
      %v6288 = vsel %vm6286, %v6280, %v6287
      %vm6289 = vcmp.eq.s32.totalorder %v6284, 2
      %v6290 = vxor.u32 %v6280, 2147483648
      %v6291 = vsel %vm6289, %v6290, %v6281
      %v6292 = vsel %vm6285, %v6288, %v6291
      %v6293 = vsel %vm6282, nan, %v6292
      %v6294 = vand.u32 2147483647, %v1026
      %vm6295 = vcmp.le.f32.partialorder %v6294, 0.7853982
      %vm6296 = vcmp.lt.s32.totalorder %v1026, 0
      %v6297 = vand.u32 %v1026, 2139095040
      %v6298 = vshrl.u32 %v6297, 23
      %v6299 = vsub.s32 %v6298, 127
      %v6300 = vand.u32 2147483647, %v1026
      %v6301 = vand.u32 %v6300, 8388607
      %v6302 = vor.u32 %v6301, 8388608
      %v6303 = vsub.s32 0, %v6302
      %v6304 = vadd.s32 %v6299, 1
      %vm6305 = vcmp.gt.s32.totalorder %v6304, 0
      %v6306 = vsel %vm6305, %v6304, 0
      %v6307 = vshrl.u32 %v6306, 5
      %v6308 = vand.u32 %v6306, 31
      %v6309 = vsub.s32 32, %v6308
      %v6310 = vshrl.u32 683565275, %v6309
      %v6311 = vshll.u32 683565275, %v6308
      %v6312 = vshrl.u32 2475754826, %v6309
      %v6313 = vor.u32 %v6311, %v6312
      %v6314 = vshll.u32 2475754826, %v6308
      %v6315 = vshrl.u32 2131351028, %v6309
      %v6316 = vor.u32 %v6314, %v6315
      %v6317 = vshll.u32 2131351028, %v6308
      %v6318 = vshrl.u32 2102212464, %v6309
      %v6319 = vor.u32 %v6317, %v6318
      %v6320 = vshll.u32 2102212464, %v6308
      %v6321 = vshrl.u32 920167782, %v6309
      %v6322 = vor.u32 %v6320, %v6321
      %v6323 = vshll.u32 920167782, %v6308
      %v6324 = vshrl.u32 1326507024, %v6309
      %v6325 = vor.u32 %v6323, %v6324
      %vm6326 = vcmp.lt.s32.totalorder %v6307, 1
      %vm6327 = vcmp.lt.s32.totalorder %v6307, 2
      %vm6328 = vcmp.lt.s32.totalorder %v6307, 3
      %vm6329 = vcmp.lt.s32.totalorder %v6307, 4
      %v6330 = vsel %vm6326, %v6310, %v6313
      %v6331 = vsel %vm6329, %v6319, 2102212464
      %v6332 = vsel %vm6328, %v6316, %v6331
      %v6333 = vsel %vm6327, %v6330, %v6332
      %v6334 = vsel %vm6326, %v6313, %v6316
      %v6335 = vsel %vm6329, %v6322, 920167782
      %v6336 = vsel %vm6328, %v6319, %v6335
      %v6337 = vsel %vm6327, %v6334, %v6336
      %v6338 = vsel %vm6326, %v6316, %v6319
      %v6339 = vsel %vm6329, %v6325, 1326507024
      %v6340 = vsel %vm6328, %v6322, %v6339
      %v6341 = vsel %vm6327, %v6338, %v6340
      %v6342 = vshll.u32 %v6302, 8
      %v6343 = vmul.u32.u64.compose %v6342, %v6341
      %v6344 = vextract.low.u32 %v6343
      %v6345 = vextract.high.u32 %v6343
      %v6346 = vmul.u32.u64.compose %v6342, %v6337
      %v6347 = vextract.low.u32 %v6346
      %v6348 = vextract.high.u32 %v6346
      %v6349 = vmul.u32 %v6342, %v6333
      %v6350 = vadd.s32 %v6345, %v6347
      %vm6351 = vc.u32 %v6345, %v6347
      %v6352 = vadd.s32 %v6348, 1
      %v6353 = vsel %vm6351, %v6352, %v6348
      %v6354 = vadd.s32 %v6349, %v6353
      %v6355 = vadd.s32 %v6354, 536870912
      %v6356 = vshrl.u32 %v6355, 30
      %v6357 = vshll.u32 %v6356, 30
      %v6358 = vsub.s32 %v6354, %v6357
      %vm6359 = vcmp.lt.s32.totalorder %v6358, 0
      %v6360 = vsub.s32 0, %v6358
      %v6361 = vsel %vm6359, %v6360, %v6358
      %v6362 = vclz %v6361
      %v6363 = vsub.s32 %v6362, 2
      %vm6364 = vcmp.gt.s32.totalorder 0, %v6363
      %v6365 = vsel %vm6364, 0, %v6363
      %v6366 = vsub.s32 32, %v6365
      %v6367 = vshll.u32 %v6358, %v6365
      %v6368 = vshrl.u32 %v6350, %v6366
      %v6369 = vor.u32 %v6367, %v6368
      %v6370 = vsub.s32 4294967266, %v6365
      %v6371 = vadd.s32 %v6370, 127
      %v6372 = vshll.u32 %v6371, 23
      %v6373 = vor.u32 4788187, %v6372
      %v6374 = vand.u32 2147483647, %v6373
      %v6376 = vcvt.s32.f32 %v6369
      %v6377 = vmul.f32 %v6376, %v6374
      %v6378 = vxor.u32 %v6377, 2147483648
      %v6379 = vsel %vm6296, %v6378, %v6377
      %v6380 = vsub.s32 4, %v6356
      %v6381 = vsel %vm6296, %v6380, %v6356
      %v6382 = vsel %vm6295, %v1026, %v6379
      %v6383 = vsel %vm6295, 0, %v6381
      %v6384 = vcosq.f32.pop %v6382
      %v6385 = vsinq.f32.pop %v6382
      %vm6386 = vweird.f32 %v1026
      %v6387 = vadd.s32 %v6383, 3
      %v6388 = vand.u32 %v6387, 3
      %vm6389 = vcmp.lt.s32.totalorder %v6388, 2
      %vm6390 = vcmp.eq.s32.totalorder %v6388, 0
      %v6391 = vxor.u32 %v6385, 2147483648
      %v6392 = vsel %vm6390, %v6384, %v6391
      %vm6393 = vcmp.eq.s32.totalorder %v6388, 2
      %v6394 = vxor.u32 %v6384, 2147483648
      %v6395 = vsel %vm6393, %v6394, %v6385
      %v6396 = vsel %vm6389, %v6392, %v6395
      %v6397 = vsel %vm6386, nan, %v6396
      %v6398 = vand.u32 2147483647, %v1031
      %vm6399 = vcmp.le.f32.partialorder %v6398, 0.7853982
      %vm6400 = vcmp.lt.s32.totalorder %v1031, 0
      %v6401 = vand.u32 %v1031, 2139095040
      %v6402 = vshrl.u32 %v6401, 23
      %v6403 = vsub.s32 %v6402, 127
      %v6404 = vand.u32 2147483647, %v1031
      %v6405 = vand.u32 %v6404, 8388607
      %v6406 = vor.u32 %v6405, 8388608
      %v6407 = vsub.s32 0, %v6406
      %v6408 = vadd.s32 %v6403, 1
      %vm6409 = vcmp.gt.s32.totalorder %v6408, 0
      %v6410 = vsel %vm6409, %v6408, 0
      %v6411 = vshrl.u32 %v6410, 5
      %v6412 = vand.u32 %v6410, 31
      %v6413 = vsub.s32 32, %v6412
      %v6414 = vshrl.u32 683565275, %v6413
      %v6415 = vshll.u32 683565275, %v6412
      %v6416 = vshrl.u32 2475754826, %v6413
      %v6417 = vor.u32 %v6415, %v6416
      %v6418 = vshll.u32 2475754826, %v6412
      %v6419 = vshrl.u32 2131351028, %v6413
      %v6420 = vor.u32 %v6418, %v6419
      %v6421 = vshll.u32 2131351028, %v6412
      %v6422 = vshrl.u32 2102212464, %v6413
      %v6423 = vor.u32 %v6421, %v6422
      %v6424 = vshll.u32 2102212464, %v6412
      %v6425 = vshrl.u32 920167782, %v6413
      %v6426 = vor.u32 %v6424, %v6425
      %v6427 = vshll.u32 920167782, %v6412
      %v6428 = vshrl.u32 1326507024, %v6413
      %v6429 = vor.u32 %v6427, %v6428
      %vm6430 = vcmp.lt.s32.totalorder %v6411, 1
      %vm6431 = vcmp.lt.s32.totalorder %v6411, 2
      %vm6432 = vcmp.lt.s32.totalorder %v6411, 3
      %vm6433 = vcmp.lt.s32.totalorder %v6411, 4
      %v6434 = vsel %vm6430, %v6414, %v6417
      %v6435 = vsel %vm6433, %v6423, 2102212464
      %v6436 = vsel %vm6432, %v6420, %v6435
      %v6437 = vsel %vm6431, %v6434, %v6436
      %v6438 = vsel %vm6430, %v6417, %v6420
      %v6439 = vsel %vm6433, %v6426, 920167782
      %v6440 = vsel %vm6432, %v6423, %v6439
      %v6441 = vsel %vm6431, %v6438, %v6440
      %v6442 = vsel %vm6430, %v6420, %v6423
      %v6443 = vsel %vm6433, %v6429, 1326507024
      %v6444 = vsel %vm6432, %v6426, %v6443
      %v6445 = vsel %vm6431, %v6442, %v6444
      %v6446 = vshll.u32 %v6406, 8
      %v6447 = vmul.u32.u64.compose %v6446, %v6445
      %v6448 = vextract.low.u32 %v6447
      %v6449 = vextract.high.u32 %v6447
      %v6450 = vmul.u32.u64.compose %v6446, %v6441
      %v6451 = vextract.low.u32 %v6450
      %v6452 = vextract.high.u32 %v6450
      %v6453 = vmul.u32 %v6446, %v6437
      %v6454 = vadd.s32 %v6449, %v6451
      %vm6455 = vc.u32 %v6449, %v6451
      %v6456 = vadd.s32 %v6452, 1
      %v6457 = vsel %vm6455, %v6456, %v6452
      %v6458 = vadd.s32 %v6453, %v6457
      %v6459 = vadd.s32 %v6458, 536870912
      %v6460 = vshrl.u32 %v6459, 30
      %v6461 = vshll.u32 %v6460, 30
      %v6462 = vsub.s32 %v6458, %v6461
      %vm6463 = vcmp.lt.s32.totalorder %v6462, 0
      %v6464 = vsub.s32 0, %v6462
      %v6465 = vsel %vm6463, %v6464, %v6462
      %v6466 = vclz %v6465
      %v6467 = vsub.s32 %v6466, 2
      %vm6468 = vcmp.gt.s32.totalorder 0, %v6467
      %v6469 = vsel %vm6468, 0, %v6467
      %v6470 = vsub.s32 32, %v6469
      %v6471 = vshll.u32 %v6462, %v6469
      %v6472 = vshrl.u32 %v6454, %v6470
      %v6473 = vor.u32 %v6471, %v6472
      %v6474 = vsub.s32 4294967266, %v6469
      %v6475 = vadd.s32 %v6474, 127
      %v6476 = vshll.u32 %v6475, 23
      %v6477 = vor.u32 4788187, %v6476
      %v6478 = vand.u32 2147483647, %v6477
      %v6480 = vcvt.s32.f32 %v6473
      %v6481 = vmul.f32 %v6480, %v6478
      %v6482 = vxor.u32 %v6481, 2147483648
      %v6483 = vsel %vm6400, %v6482, %v6481
      %v6484 = vsub.s32 4, %v6460
      %v6485 = vsel %vm6400, %v6484, %v6460
      %v6486 = vsel %vm6399, %v1031, %v6483
      %v6487 = vsel %vm6399, 0, %v6485
      %v6488 = vcosq.f32.pop %v6486
      %v6489 = vsinq.f32.pop %v6486
      %vm6490 = vweird.f32 %v1031
      %v6491 = vadd.s32 %v6487, 3
      %v6492 = vand.u32 %v6491, 3
      %vm6493 = vcmp.lt.s32.totalorder %v6492, 2
      %vm6494 = vcmp.eq.s32.totalorder %v6492, 0
      %v6495 = vxor.u32 %v6489, 2147483648
      %v6496 = vsel %vm6494, %v6488, %v6495
      %vm6497 = vcmp.eq.s32.totalorder %v6492, 2
      %v6498 = vxor.u32 %v6488, 2147483648
      %v6499 = vsel %vm6497, %v6498, %v6489
      %v6500 = vsel %vm6493, %v6496, %v6499
      %v6501 = vsel %vm6490, nan, %v6500
      %v6502 = vand.u32 2147483647, %v1036
      %vm6503 = vcmp.le.f32.partialorder %v6502, 0.7853982
      %vm6504 = vcmp.lt.s32.totalorder %v1036, 0
      %v6505 = vand.u32 %v1036, 2139095040
      %v6506 = vshrl.u32 %v6505, 23
      %v6507 = vsub.s32 %v6506, 127
      %v6508 = vand.u32 2147483647, %v1036
      %v6509 = vand.u32 %v6508, 8388607
      %v6510 = vor.u32 %v6509, 8388608
      %v6511 = vsub.s32 0, %v6510
      %v6512 = vadd.s32 %v6507, 1
      %vm6513 = vcmp.gt.s32.totalorder %v6512, 0
      %v6514 = vsel %vm6513, %v6512, 0
      %v6515 = vshrl.u32 %v6514, 5
      %v6516 = vand.u32 %v6514, 31
      %v6517 = vsub.s32 32, %v6516
      %v6518 = vshrl.u32 683565275, %v6517
      %v6519 = vshll.u32 683565275, %v6516
      %v6520 = vshrl.u32 2475754826, %v6517
      %v6521 = vor.u32 %v6519, %v6520
      %v6522 = vshll.u32 2475754826, %v6516
      %v6523 = vshrl.u32 2131351028, %v6517
      %v6524 = vor.u32 %v6522, %v6523
      %v6525 = vshll.u32 2131351028, %v6516
      %v6526 = vshrl.u32 2102212464, %v6517
      %v6527 = vor.u32 %v6525, %v6526
      %v6528 = vshll.u32 2102212464, %v6516
      %v6529 = vshrl.u32 920167782, %v6517
      %v6530 = vor.u32 %v6528, %v6529
      %v6531 = vshll.u32 920167782, %v6516
      %v6532 = vshrl.u32 1326507024, %v6517
      %v6533 = vor.u32 %v6531, %v6532
      %vm6534 = vcmp.lt.s32.totalorder %v6515, 1
      %vm6535 = vcmp.lt.s32.totalorder %v6515, 2
      %vm6536 = vcmp.lt.s32.totalorder %v6515, 3
      %vm6537 = vcmp.lt.s32.totalorder %v6515, 4
      %v6538 = vsel %vm6534, %v6518, %v6521
      %v6539 = vsel %vm6537, %v6527, 2102212464
      %v6540 = vsel %vm6536, %v6524, %v6539
      %v6541 = vsel %vm6535, %v6538, %v6540
      %v6542 = vsel %vm6534, %v6521, %v6524
      %v6543 = vsel %vm6537, %v6530, 920167782
      %v6544 = vsel %vm6536, %v6527, %v6543
      %v6545 = vsel %vm6535, %v6542, %v6544
      %v6546 = vsel %vm6534, %v6524, %v6527
      %v6547 = vsel %vm6537, %v6533, 1326507024
      %v6548 = vsel %vm6536, %v6530, %v6547
      %v6549 = vsel %vm6535, %v6546, %v6548
      %v6550 = vshll.u32 %v6510, 8
      %v6551 = vmul.u32.u64.compose %v6550, %v6549
      %v6552 = vextract.low.u32 %v6551
      %v6553 = vextract.high.u32 %v6551
      %v6554 = vmul.u32.u64.compose %v6550, %v6545
      %v6555 = vextract.low.u32 %v6554
      %v6556 = vextract.high.u32 %v6554
      %v6557 = vmul.u32 %v6550, %v6541
      %v6558 = vadd.s32 %v6553, %v6555
      %vm6559 = vc.u32 %v6553, %v6555
      %v6560 = vadd.s32 %v6556, 1
      %v6561 = vsel %vm6559, %v6560, %v6556
      %v6562 = vadd.s32 %v6557, %v6561
      %v6563 = vadd.s32 %v6562, 536870912
      %v6564 = vshrl.u32 %v6563, 30
      %v6565 = vshll.u32 %v6564, 30
      %v6566 = vsub.s32 %v6562, %v6565
      %vm6567 = vcmp.lt.s32.totalorder %v6566, 0
      %v6568 = vsub.s32 0, %v6566
      %v6569 = vsel %vm6567, %v6568, %v6566
      %v6570 = vclz %v6569
      %v6571 = vsub.s32 %v6570, 2
      %vm6572 = vcmp.gt.s32.totalorder 0, %v6571
      %v6573 = vsel %vm6572, 0, %v6571
      %v6574 = vsub.s32 32, %v6573
      %v6575 = vshll.u32 %v6566, %v6573
      %v6576 = vshrl.u32 %v6558, %v6574
      %v6577 = vor.u32 %v6575, %v6576
      %v6578 = vsub.s32 4294967266, %v6573
      %v6579 = vadd.s32 %v6578, 127
      %v6580 = vshll.u32 %v6579, 23
      %v6581 = vor.u32 4788187, %v6580
      %v6582 = vand.u32 2147483647, %v6581
      %v6584 = vcvt.s32.f32 %v6577
      %v6585 = vmul.f32 %v6584, %v6582
      %v6586 = vxor.u32 %v6585, 2147483648
      %v6587 = vsel %vm6504, %v6586, %v6585
      %v6588 = vsub.s32 4, %v6564
      %v6589 = vsel %vm6504, %v6588, %v6564
      %v6590 = vsel %vm6503, %v1036, %v6587
      %v6591 = vsel %vm6503, 0, %v6589
      %v6592 = vcosq.f32.pop %v6590
      %v6593 = vsinq.f32.pop %v6590
      %vm6594 = vweird.f32 %v1036
      %v6595 = vadd.s32 %v6591, 3
      %v6596 = vand.u32 %v6595, 3
      %vm6597 = vcmp.lt.s32.totalorder %v6596, 2
      %vm6598 = vcmp.eq.s32.totalorder %v6596, 0
      %v6599 = vxor.u32 %v6593, 2147483648
      %v6600 = vsel %vm6598, %v6592, %v6599
      %vm6601 = vcmp.eq.s32.totalorder %v6596, 2
      %v6602 = vxor.u32 %v6592, 2147483648
      %v6603 = vsel %vm6601, %v6602, %v6593
      %v6604 = vsel %vm6597, %v6600, %v6603
      %v6605 = vsel %vm6594, nan, %v6604
      %v6606 = vand.u32 2147483647, %v1041
      %vm6607 = vcmp.le.f32.partialorder %v6606, 0.7853982
      %vm6608 = vcmp.lt.s32.totalorder %v1041, 0
      %v6609 = vand.u32 %v1041, 2139095040
      %v6610 = vshrl.u32 %v6609, 23
      %v6611 = vsub.s32 %v6610, 127
      %v6612 = vand.u32 2147483647, %v1041
      %v6613 = vand.u32 %v6612, 8388607
      %v6614 = vor.u32 %v6613, 8388608
      %v6615 = vsub.s32 0, %v6614
      %v6616 = vadd.s32 %v6611, 1
      %vm6617 = vcmp.gt.s32.totalorder %v6616, 0
      %v6618 = vsel %vm6617, %v6616, 0
      %v6619 = vshrl.u32 %v6618, 5
      %v6620 = vand.u32 %v6618, 31
      %v6621 = vsub.s32 32, %v6620
      %v6622 = vshrl.u32 683565275, %v6621
      %v6623 = vshll.u32 683565275, %v6620
      %v6624 = vshrl.u32 2475754826, %v6621
      %v6625 = vor.u32 %v6623, %v6624
      %v6626 = vshll.u32 2475754826, %v6620
      %v6627 = vshrl.u32 2131351028, %v6621
      %v6628 = vor.u32 %v6626, %v6627
      %v6629 = vshll.u32 2131351028, %v6620
      %v6630 = vshrl.u32 2102212464, %v6621
      %v6631 = vor.u32 %v6629, %v6630
      %v6632 = vshll.u32 2102212464, %v6620
      %v6633 = vshrl.u32 920167782, %v6621
      %v6634 = vor.u32 %v6632, %v6633
      %v6635 = vshll.u32 920167782, %v6620
      %v6636 = vshrl.u32 1326507024, %v6621
      %v6637 = vor.u32 %v6635, %v6636
      %vm6638 = vcmp.lt.s32.totalorder %v6619, 1
      %vm6639 = vcmp.lt.s32.totalorder %v6619, 2
      %vm6640 = vcmp.lt.s32.totalorder %v6619, 3
      %vm6641 = vcmp.lt.s32.totalorder %v6619, 4
      %v6642 = vsel %vm6638, %v6622, %v6625
      %v6643 = vsel %vm6641, %v6631, 2102212464
      %v6644 = vsel %vm6640, %v6628, %v6643
      %v6645 = vsel %vm6639, %v6642, %v6644
      %v6646 = vsel %vm6638, %v6625, %v6628
      %v6647 = vsel %vm6641, %v6634, 920167782
      %v6648 = vsel %vm6640, %v6631, %v6647
      %v6649 = vsel %vm6639, %v6646, %v6648
      %v6650 = vsel %vm6638, %v6628, %v6631
      %v6651 = vsel %vm6641, %v6637, 1326507024
      %v6652 = vsel %vm6640, %v6634, %v6651
      %v6653 = vsel %vm6639, %v6650, %v6652
      %v6654 = vshll.u32 %v6614, 8
      %v6655 = vmul.u32.u64.compose %v6654, %v6653
      %v6656 = vextract.low.u32 %v6655
      %v6657 = vextract.high.u32 %v6655
      %v6658 = vmul.u32.u64.compose %v6654, %v6649
      %v6659 = vextract.low.u32 %v6658
      %v6660 = vextract.high.u32 %v6658
      %v6661 = vmul.u32 %v6654, %v6645
      %v6662 = vadd.s32 %v6657, %v6659
      %vm6663 = vc.u32 %v6657, %v6659
      %v6664 = vadd.s32 %v6660, 1
      %v6665 = vsel %vm6663, %v6664, %v6660
      %v6666 = vadd.s32 %v6661, %v6665
      %v6667 = vadd.s32 %v6666, 536870912
      %v6668 = vshrl.u32 %v6667, 30
      %v6669 = vshll.u32 %v6668, 30
      %v6670 = vsub.s32 %v6666, %v6669
      %vm6671 = vcmp.lt.s32.totalorder %v6670, 0
      %v6672 = vsub.s32 0, %v6670
      %v6673 = vsel %vm6671, %v6672, %v6670
      %v6674 = vclz %v6673
      %v6675 = vsub.s32 %v6674, 2
      %vm6676 = vcmp.gt.s32.totalorder 0, %v6675
      %v6677 = vsel %vm6676, 0, %v6675
      %v6678 = vsub.s32 32, %v6677
      %v6679 = vshll.u32 %v6670, %v6677
      %v6680 = vshrl.u32 %v6662, %v6678
      %v6681 = vor.u32 %v6679, %v6680
      %v6682 = vsub.s32 4294967266, %v6677
      %v6683 = vadd.s32 %v6682, 127
      %v6684 = vshll.u32 %v6683, 23
      %v6685 = vor.u32 4788187, %v6684
      %v6686 = vand.u32 2147483647, %v6685
      %v6688 = vcvt.s32.f32 %v6681
      %v6689 = vmul.f32 %v6688, %v6686
      %v6690 = vxor.u32 %v6689, 2147483648
      %v6691 = vsel %vm6608, %v6690, %v6689
      %v6692 = vsub.s32 4, %v6668
      %v6693 = vsel %vm6608, %v6692, %v6668
      %v6694 = vsel %vm6607, %v1041, %v6691
      %v6695 = vsel %vm6607, 0, %v6693
      %v6696 = vcosq.f32.pop %v6694
      %v6697 = vsinq.f32.pop %v6694
      %vm6698 = vweird.f32 %v1041
      %v6699 = vadd.s32 %v6695, 3
      %v6700 = vand.u32 %v6699, 3
      %vm6701 = vcmp.lt.s32.totalorder %v6700, 2
      %vm6702 = vcmp.eq.s32.totalorder %v6700, 0
      %v6703 = vxor.u32 %v6697, 2147483648
      %v6704 = vsel %vm6702, %v6696, %v6703
      %vm6705 = vcmp.eq.s32.totalorder %v6700, 2
      %v6706 = vxor.u32 %v6696, 2147483648
      %v6707 = vsel %vm6705, %v6706, %v6697
      %v6708 = vsel %vm6701, %v6704, %v6707
      %v6709 = vsel %vm6698, nan, %v6708
      %v6710 = vand.u32 2147483647, %v1046
      %vm6711 = vcmp.le.f32.partialorder %v6710, 0.7853982
      %vm6712 = vcmp.lt.s32.totalorder %v1046, 0
      %v6713 = vand.u32 %v1046, 2139095040
      %v6714 = vshrl.u32 %v6713, 23
      %v6715 = vsub.s32 %v6714, 127
      %v6716 = vand.u32 2147483647, %v1046
      %v6717 = vand.u32 %v6716, 8388607
      %v6718 = vor.u32 %v6717, 8388608
      %v6719 = vsub.s32 0, %v6718
      %v6720 = vadd.s32 %v6715, 1
      %vm6721 = vcmp.gt.s32.totalorder %v6720, 0
      %v6722 = vsel %vm6721, %v6720, 0
      %v6723 = vshrl.u32 %v6722, 5
      %v6724 = vand.u32 %v6722, 31
      %v6725 = vsub.s32 32, %v6724
      %v6726 = vshrl.u32 683565275, %v6725
      %v6727 = vshll.u32 683565275, %v6724
      %v6728 = vshrl.u32 2475754826, %v6725
      %v6729 = vor.u32 %v6727, %v6728
      %v6730 = vshll.u32 2475754826, %v6724
      %v6731 = vshrl.u32 2131351028, %v6725
      %v6732 = vor.u32 %v6730, %v6731
      %v6733 = vshll.u32 2131351028, %v6724
      %v6734 = vshrl.u32 2102212464, %v6725
      %v6735 = vor.u32 %v6733, %v6734
      %v6736 = vshll.u32 2102212464, %v6724
      %v6737 = vshrl.u32 920167782, %v6725
      %v6738 = vor.u32 %v6736, %v6737
      %v6739 = vshll.u32 920167782, %v6724
      %v6740 = vshrl.u32 1326507024, %v6725
      %v6741 = vor.u32 %v6739, %v6740
      %vm6742 = vcmp.lt.s32.totalorder %v6723, 1
      %vm6743 = vcmp.lt.s32.totalorder %v6723, 2
      %vm6744 = vcmp.lt.s32.totalorder %v6723, 3
      %vm6745 = vcmp.lt.s32.totalorder %v6723, 4
      %v6746 = vsel %vm6742, %v6726, %v6729
      %v6747 = vsel %vm6745, %v6735, 2102212464
      %v6748 = vsel %vm6744, %v6732, %v6747
      %v6749 = vsel %vm6743, %v6746, %v6748
      %v6750 = vsel %vm6742, %v6729, %v6732
      %v6751 = vsel %vm6745, %v6738, 920167782
      %v6752 = vsel %vm6744, %v6735, %v6751
      %v6753 = vsel %vm6743, %v6750, %v6752
      %v6754 = vsel %vm6742, %v6732, %v6735
      %v6755 = vsel %vm6745, %v6741, 1326507024
      %v6756 = vsel %vm6744, %v6738, %v6755
      %v6757 = vsel %vm6743, %v6754, %v6756
      %v6758 = vshll.u32 %v6718, 8
      %v6759 = vmul.u32.u64.compose %v6758, %v6757
      %v6760 = vextract.low.u32 %v6759
      %v6761 = vextract.high.u32 %v6759
      %v6762 = vmul.u32.u64.compose %v6758, %v6753
      %v6763 = vextract.low.u32 %v6762
      %v6764 = vextract.high.u32 %v6762
      %v6765 = vmul.u32 %v6758, %v6749
      %v6766 = vadd.s32 %v6761, %v6763
      %vm6767 = vc.u32 %v6761, %v6763
      %v6768 = vadd.s32 %v6764, 1
      %v6769 = vsel %vm6767, %v6768, %v6764
      %v6770 = vadd.s32 %v6765, %v6769
      %v6771 = vadd.s32 %v6770, 536870912
      %v6772 = vshrl.u32 %v6771, 30
      %v6773 = vshll.u32 %v6772, 30
      %v6774 = vsub.s32 %v6770, %v6773
      %vm6775 = vcmp.lt.s32.totalorder %v6774, 0
      %v6776 = vsub.s32 0, %v6774
      %v6777 = vsel %vm6775, %v6776, %v6774
      %v6778 = vclz %v6777
      %v6779 = vsub.s32 %v6778, 2
      %vm6780 = vcmp.gt.s32.totalorder 0, %v6779
      %v6781 = vsel %vm6780, 0, %v6779
      %v6782 = vsub.s32 32, %v6781
      %v6783 = vshll.u32 %v6774, %v6781
      %v6784 = vshrl.u32 %v6766, %v6782
      %v6785 = vor.u32 %v6783, %v6784
      %v6786 = vsub.s32 4294967266, %v6781
      %v6787 = vadd.s32 %v6786, 127
      %v6788 = vshll.u32 %v6787, 23
      %v6789 = vor.u32 4788187, %v6788
      %v6790 = vand.u32 2147483647, %v6789
      %v6792 = vcvt.s32.f32 %v6785
      %v6793 = vmul.f32 %v6792, %v6790
      %v6794 = vxor.u32 %v6793, 2147483648
      %v6795 = vsel %vm6712, %v6794, %v6793
      %v6796 = vsub.s32 4, %v6772
      %v6797 = vsel %vm6712, %v6796, %v6772
      %v6798 = vsel %vm6711, %v1046, %v6795
      %v6799 = vsel %vm6711, 0, %v6797
      %v6800 = vcosq.f32.pop %v6798
      %v6801 = vsinq.f32.pop %v6798
      %vm6802 = vweird.f32 %v1046
      %v6803 = vadd.s32 %v6799, 3
      %v6804 = vand.u32 %v6803, 3
      %vm6805 = vcmp.lt.s32.totalorder %v6804, 2
      %vm6806 = vcmp.eq.s32.totalorder %v6804, 0
      %v6807 = vxor.u32 %v6801, 2147483648
      %v6808 = vsel %vm6806, %v6800, %v6807
      %vm6809 = vcmp.eq.s32.totalorder %v6804, 2
      %v6810 = vxor.u32 %v6800, 2147483648
      %v6811 = vsel %vm6809, %v6810, %v6801
      %v6812 = vsel %vm6805, %v6808, %v6811
      %v6813 = vsel %vm6802, nan, %v6812
      %v6814 = vand.u32 2147483647, %v1051
      %vm6815 = vcmp.le.f32.partialorder %v6814, 0.7853982
      %vm6816 = vcmp.lt.s32.totalorder %v1051, 0
      %v6817 = vand.u32 %v1051, 2139095040
      %v6818 = vshrl.u32 %v6817, 23
      %v6819 = vsub.s32 %v6818, 127
      %v6820 = vand.u32 2147483647, %v1051
      %v6821 = vand.u32 %v6820, 8388607
      %v6822 = vor.u32 %v6821, 8388608
      %v6823 = vsub.s32 0, %v6822
      %v6824 = vadd.s32 %v6819, 1
      %vm6825 = vcmp.gt.s32.totalorder %v6824, 0
      %v6826 = vsel %vm6825, %v6824, 0
      %v6827 = vshrl.u32 %v6826, 5
      %v6828 = vand.u32 %v6826, 31
      %v6829 = vsub.s32 32, %v6828
      %v6830 = vshrl.u32 683565275, %v6829
      %v6831 = vshll.u32 683565275, %v6828
      %v6832 = vshrl.u32 2475754826, %v6829
      %v6833 = vor.u32 %v6831, %v6832
      %v6834 = vshll.u32 2475754826, %v6828
      %v6835 = vshrl.u32 2131351028, %v6829
      %v6836 = vor.u32 %v6834, %v6835
      %v6837 = vshll.u32 2131351028, %v6828
      %v6838 = vshrl.u32 2102212464, %v6829
      %v6839 = vor.u32 %v6837, %v6838
      %v6840 = vshll.u32 2102212464, %v6828
      %v6841 = vshrl.u32 920167782, %v6829
      %v6842 = vor.u32 %v6840, %v6841
      %v6843 = vshll.u32 920167782, %v6828
      %v6844 = vshrl.u32 1326507024, %v6829
      %v6845 = vor.u32 %v6843, %v6844
      %vm6846 = vcmp.lt.s32.totalorder %v6827, 1
      %vm6847 = vcmp.lt.s32.totalorder %v6827, 2
      %vm6848 = vcmp.lt.s32.totalorder %v6827, 3
      %vm6849 = vcmp.lt.s32.totalorder %v6827, 4
      %v6850 = vsel %vm6846, %v6830, %v6833
      %v6851 = vsel %vm6849, %v6839, 2102212464
      %v6852 = vsel %vm6848, %v6836, %v6851
      %v6853 = vsel %vm6847, %v6850, %v6852
      %v6854 = vsel %vm6846, %v6833, %v6836
      %v6855 = vsel %vm6849, %v6842, 920167782
      %v6856 = vsel %vm6848, %v6839, %v6855
      %v6857 = vsel %vm6847, %v6854, %v6856
      %v6858 = vsel %vm6846, %v6836, %v6839
      %v6859 = vsel %vm6849, %v6845, 1326507024
      %v6860 = vsel %vm6848, %v6842, %v6859
      %v6861 = vsel %vm6847, %v6858, %v6860
      %v6862 = vshll.u32 %v6822, 8
      %v6863 = vmul.u32.u64.compose %v6862, %v6861
      %v6864 = vextract.low.u32 %v6863
      %v6865 = vextract.high.u32 %v6863
      %v6866 = vmul.u32.u64.compose %v6862, %v6857
      %v6867 = vextract.low.u32 %v6866
      %v6868 = vextract.high.u32 %v6866
      %v6869 = vmul.u32 %v6862, %v6853
      %v6870 = vadd.s32 %v6865, %v6867
      %vm6871 = vc.u32 %v6865, %v6867
      %v6872 = vadd.s32 %v6868, 1
      %v6873 = vsel %vm6871, %v6872, %v6868
      %v6874 = vadd.s32 %v6869, %v6873
      %v6875 = vadd.s32 %v6874, 536870912
      %v6876 = vshrl.u32 %v6875, 30
      %v6877 = vshll.u32 %v6876, 30
      %v6878 = vsub.s32 %v6874, %v6877
      %vm6879 = vcmp.lt.s32.totalorder %v6878, 0
      %v6880 = vsub.s32 0, %v6878
      %v6881 = vsel %vm6879, %v6880, %v6878
      %v6882 = vclz %v6881
      %v6883 = vsub.s32 %v6882, 2
      %vm6884 = vcmp.gt.s32.totalorder 0, %v6883
      %v6885 = vsel %vm6884, 0, %v6883
      %v6886 = vsub.s32 32, %v6885
      %v6887 = vshll.u32 %v6878, %v6885
      %v6888 = vshrl.u32 %v6870, %v6886
      %v6889 = vor.u32 %v6887, %v6888
      %v6890 = vsub.s32 4294967266, %v6885
      %v6891 = vadd.s32 %v6890, 127
      %v6892 = vshll.u32 %v6891, 23
      %v6893 = vor.u32 4788187, %v6892
      %v6894 = vand.u32 2147483647, %v6893
      %v6896 = vcvt.s32.f32 %v6889
      %v6897 = vmul.f32 %v6896, %v6894
      %v6898 = vxor.u32 %v6897, 2147483648
      %v6899 = vsel %vm6816, %v6898, %v6897
      %v6900 = vsub.s32 4, %v6876
      %v6901 = vsel %vm6816, %v6900, %v6876
      %v6902 = vsel %vm6815, %v1051, %v6899
      %v6903 = vsel %vm6815, 0, %v6901
      %v6904 = vcosq.f32.pop %v6902
      %v6905 = vsinq.f32.pop %v6902
      %vm6906 = vweird.f32 %v1051
      %v6907 = vadd.s32 %v6903, 3
      %v6908 = vand.u32 %v6907, 3
      %vm6909 = vcmp.lt.s32.totalorder %v6908, 2
      %vm6910 = vcmp.eq.s32.totalorder %v6908, 0
      %v6911 = vxor.u32 %v6905, 2147483648
      %v6912 = vsel %vm6910, %v6904, %v6911
      %vm6913 = vcmp.eq.s32.totalorder %v6908, 2
      %v6914 = vxor.u32 %v6904, 2147483648
      %v6915 = vsel %vm6913, %v6914, %v6905
      %v6916 = vsel %vm6909, %v6912, %v6915
      %v6917 = vsel %vm6906, nan, %v6916
      %v6918 = vand.u32 2147483647, %v1056
      %vm6919 = vcmp.le.f32.partialorder %v6918, 0.7853982
      %vm6920 = vcmp.lt.s32.totalorder %v1056, 0
      %v6921 = vand.u32 %v1056, 2139095040
      %v6922 = vshrl.u32 %v6921, 23
      %v6923 = vsub.s32 %v6922, 127
      %v6924 = vand.u32 2147483647, %v1056
      %v6925 = vand.u32 %v6924, 8388607
      %v6926 = vor.u32 %v6925, 8388608
      %v6927 = vsub.s32 0, %v6926
      %v6928 = vadd.s32 %v6923, 1
      %vm6929 = vcmp.gt.s32.totalorder %v6928, 0
      %v6930 = vsel %vm6929, %v6928, 0
      %v6931 = vshrl.u32 %v6930, 5
      %v6932 = vand.u32 %v6930, 31
      %v6933 = vsub.s32 32, %v6932
      %v6934 = vshrl.u32 683565275, %v6933
      %v6935 = vshll.u32 683565275, %v6932
      %v6936 = vshrl.u32 2475754826, %v6933
      %v6937 = vor.u32 %v6935, %v6936
      %v6938 = vshll.u32 2475754826, %v6932
      %v6939 = vshrl.u32 2131351028, %v6933
      %v6940 = vor.u32 %v6938, %v6939
      %v6941 = vshll.u32 2131351028, %v6932
      %v6942 = vshrl.u32 2102212464, %v6933
      %v6943 = vor.u32 %v6941, %v6942
      %v6944 = vshll.u32 2102212464, %v6932
      %v6945 = vshrl.u32 920167782, %v6933
      %v6946 = vor.u32 %v6944, %v6945
      %v6947 = vshll.u32 920167782, %v6932
      %v6948 = vshrl.u32 1326507024, %v6933
      %v6949 = vor.u32 %v6947, %v6948
      %vm6950 = vcmp.lt.s32.totalorder %v6931, 1
      %vm6951 = vcmp.lt.s32.totalorder %v6931, 2
      %vm6952 = vcmp.lt.s32.totalorder %v6931, 3
      %vm6953 = vcmp.lt.s32.totalorder %v6931, 4
      %v6954 = vsel %vm6950, %v6934, %v6937
      %v6955 = vsel %vm6953, %v6943, 2102212464
      %v6956 = vsel %vm6952, %v6940, %v6955
      %v6957 = vsel %vm6951, %v6954, %v6956
      %v6958 = vsel %vm6950, %v6937, %v6940
      %v6959 = vsel %vm6953, %v6946, 920167782
      %v6960 = vsel %vm6952, %v6943, %v6959
      %v6961 = vsel %vm6951, %v6958, %v6960
      %v6962 = vsel %vm6950, %v6940, %v6943
      %v6963 = vsel %vm6953, %v6949, 1326507024
      %v6964 = vsel %vm6952, %v6946, %v6963
      %v6965 = vsel %vm6951, %v6962, %v6964
      %v6966 = vshll.u32 %v6926, 8
      %v6967 = vmul.u32.u64.compose %v6966, %v6965
      %v6968 = vextract.low.u32 %v6967
      %v6969 = vextract.high.u32 %v6967
      %v6970 = vmul.u32.u64.compose %v6966, %v6961
      %v6971 = vextract.low.u32 %v6970
      %v6972 = vextract.high.u32 %v6970
      %v6973 = vmul.u32 %v6966, %v6957
      %v6974 = vadd.s32 %v6969, %v6971
      %vm6975 = vc.u32 %v6969, %v6971
      %v6976 = vadd.s32 %v6972, 1
      %v6977 = vsel %vm6975, %v6976, %v6972
      %v6978 = vadd.s32 %v6973, %v6977
      %v6979 = vadd.s32 %v6978, 536870912
      %v6980 = vshrl.u32 %v6979, 30
      %v6981 = vshll.u32 %v6980, 30
      %v6982 = vsub.s32 %v6978, %v6981
      %vm6983 = vcmp.lt.s32.totalorder %v6982, 0
      %v6984 = vsub.s32 0, %v6982
      %v6985 = vsel %vm6983, %v6984, %v6982
      %v6986 = vclz %v6985
      %v6987 = vsub.s32 %v6986, 2
      %vm6988 = vcmp.gt.s32.totalorder 0, %v6987
      %v6989 = vsel %vm6988, 0, %v6987
      %v6990 = vsub.s32 32, %v6989
      %v6991 = vshll.u32 %v6982, %v6989
      %v6992 = vshrl.u32 %v6974, %v6990
      %v6993 = vor.u32 %v6991, %v6992
      %v6994 = vsub.s32 4294967266, %v6989
      %v6995 = vadd.s32 %v6994, 127
      %v6996 = vshll.u32 %v6995, 23
      %v6997 = vor.u32 4788187, %v6996
      %v6998 = vand.u32 2147483647, %v6997
      %v7000 = vcvt.s32.f32 %v6993
      %v7001 = vmul.f32 %v7000, %v6998
      %v7002 = vxor.u32 %v7001, 2147483648
      %v7003 = vsel %vm6920, %v7002, %v7001
      %v7004 = vsub.s32 4, %v6980
      %v7005 = vsel %vm6920, %v7004, %v6980
      %v7006 = vsel %vm6919, %v1056, %v7003
      %v7007 = vsel %vm6919, 0, %v7005
      %v7008 = vcosq.f32.pop %v7006
      %v7009 = vsinq.f32.pop %v7006
      %vm7010 = vweird.f32 %v1056
      %v7011 = vadd.s32 %v7007, 3
      %v7012 = vand.u32 %v7011, 3
      %vm7013 = vcmp.lt.s32.totalorder %v7012, 2
      %vm7014 = vcmp.eq.s32.totalorder %v7012, 0
      %v7015 = vxor.u32 %v7009, 2147483648
      %v7016 = vsel %vm7014, %v7008, %v7015
      %vm7017 = vcmp.eq.s32.totalorder %v7012, 2
      %v7018 = vxor.u32 %v7008, 2147483648
      %v7019 = vsel %vm7017, %v7018, %v7009
      %v7020 = vsel %vm7013, %v7016, %v7019
      %v7021 = vsel %vm7010, nan, %v7020
      %v7022 = vand.u32 2147483647, %v1061
      %vm7023 = vcmp.le.f32.partialorder %v7022, 0.7853982
      %vm7024 = vcmp.lt.s32.totalorder %v1061, 0
      %v7025 = vand.u32 %v1061, 2139095040
      %v7026 = vshrl.u32 %v7025, 23
      %v7027 = vsub.s32 %v7026, 127
      %v7028 = vand.u32 2147483647, %v1061
      %v7029 = vand.u32 %v7028, 8388607
      %v7030 = vor.u32 %v7029, 8388608
      %v7031 = vsub.s32 0, %v7030
      %v7032 = vadd.s32 %v7027, 1
      %vm7033 = vcmp.gt.s32.totalorder %v7032, 0
      %v7034 = vsel %vm7033, %v7032, 0
      %v7035 = vshrl.u32 %v7034, 5
      %v7036 = vand.u32 %v7034, 31
      %v7037 = vsub.s32 32, %v7036
      %v7038 = vshrl.u32 683565275, %v7037
      %v7039 = vshll.u32 683565275, %v7036
      %v7040 = vshrl.u32 2475754826, %v7037
      %v7041 = vor.u32 %v7039, %v7040
      %v7042 = vshll.u32 2475754826, %v7036
      %v7043 = vshrl.u32 2131351028, %v7037
      %v7044 = vor.u32 %v7042, %v7043
      %v7045 = vshll.u32 2131351028, %v7036
      %v7046 = vshrl.u32 2102212464, %v7037
      %v7047 = vor.u32 %v7045, %v7046
      %v7048 = vshll.u32 2102212464, %v7036
      %v7049 = vshrl.u32 920167782, %v7037
      %v7050 = vor.u32 %v7048, %v7049
      %v7051 = vshll.u32 920167782, %v7036
      %v7052 = vshrl.u32 1326507024, %v7037
      %v7053 = vor.u32 %v7051, %v7052
      %vm7054 = vcmp.lt.s32.totalorder %v7035, 1
      %vm7055 = vcmp.lt.s32.totalorder %v7035, 2
      %vm7056 = vcmp.lt.s32.totalorder %v7035, 3
      %vm7057 = vcmp.lt.s32.totalorder %v7035, 4
      %v7058 = vsel %vm7054, %v7038, %v7041
      %v7059 = vsel %vm7057, %v7047, 2102212464
      %v7060 = vsel %vm7056, %v7044, %v7059
      %v7061 = vsel %vm7055, %v7058, %v7060
      %v7062 = vsel %vm7054, %v7041, %v7044
      %v7063 = vsel %vm7057, %v7050, 920167782
      %v7064 = vsel %vm7056, %v7047, %v7063
      %v7065 = vsel %vm7055, %v7062, %v7064
      %v7066 = vsel %vm7054, %v7044, %v7047
      %v7067 = vsel %vm7057, %v7053, 1326507024
      %v7068 = vsel %vm7056, %v7050, %v7067
      %v7069 = vsel %vm7055, %v7066, %v7068
      %v7070 = vshll.u32 %v7030, 8
      %v7071 = vmul.u32.u64.compose %v7070, %v7069
      %v7072 = vextract.low.u32 %v7071
      %v7073 = vextract.high.u32 %v7071
      %v7074 = vmul.u32.u64.compose %v7070, %v7065
      %v7075 = vextract.low.u32 %v7074
      %v7076 = vextract.high.u32 %v7074
      %v7077 = vmul.u32 %v7070, %v7061
      %v7078 = vadd.s32 %v7073, %v7075
      %vm7079 = vc.u32 %v7073, %v7075
      %v7080 = vadd.s32 %v7076, 1
      %v7081 = vsel %vm7079, %v7080, %v7076
      %v7082 = vadd.s32 %v7077, %v7081
      %v7083 = vadd.s32 %v7082, 536870912
      %v7084 = vshrl.u32 %v7083, 30
      %v7085 = vshll.u32 %v7084, 30
      %v7086 = vsub.s32 %v7082, %v7085
      %vm7087 = vcmp.lt.s32.totalorder %v7086, 0
      %v7088 = vsub.s32 0, %v7086
      %v7089 = vsel %vm7087, %v7088, %v7086
      %v7090 = vclz %v7089
      %v7091 = vsub.s32 %v7090, 2
      %vm7092 = vcmp.gt.s32.totalorder 0, %v7091
      %v7093 = vsel %vm7092, 0, %v7091
      %v7094 = vsub.s32 32, %v7093
      %v7095 = vshll.u32 %v7086, %v7093
      %v7096 = vshrl.u32 %v7078, %v7094
      %v7097 = vor.u32 %v7095, %v7096
      %v7098 = vsub.s32 4294967266, %v7093
      %v7099 = vadd.s32 %v7098, 127
      %v7100 = vshll.u32 %v7099, 23
      %v7101 = vor.u32 4788187, %v7100
      %v7102 = vand.u32 2147483647, %v7101
      %v7104 = vcvt.s32.f32 %v7097
      %v7105 = vmul.f32 %v7104, %v7102
      %v7106 = vxor.u32 %v7105, 2147483648
      %v7107 = vsel %vm7024, %v7106, %v7105
      %v7108 = vsub.s32 4, %v7084
      %v7109 = vsel %vm7024, %v7108, %v7084
      %v7110 = vsel %vm7023, %v1061, %v7107
      %v7111 = vsel %vm7023, 0, %v7109
      %v7112 = vcosq.f32.pop %v7110
      %v7113 = vsinq.f32.pop %v7110
      %vm7114 = vweird.f32 %v1061
      %v7115 = vadd.s32 %v7111, 3
      %v7116 = vand.u32 %v7115, 3
      %vm7117 = vcmp.lt.s32.totalorder %v7116, 2
      %vm7118 = vcmp.eq.s32.totalorder %v7116, 0
      %v7119 = vxor.u32 %v7113, 2147483648
      %v7120 = vsel %vm7118, %v7112, %v7119
      %vm7121 = vcmp.eq.s32.totalorder %v7116, 2
      %v7122 = vxor.u32 %v7112, 2147483648
      %v7123 = vsel %vm7121, %v7122, %v7113
      %v7124 = vsel %vm7117, %v7120, %v7123
      %v7125 = vsel %vm7114, nan, %v7124
      %v7126 = vand.u32 2147483647, %v1066
      %vm7127 = vcmp.le.f32.partialorder %v7126, 0.7853982
      %vm7128 = vcmp.lt.s32.totalorder %v1066, 0
      %v7129 = vand.u32 %v1066, 2139095040
      %v7130 = vshrl.u32 %v7129, 23
      %v7131 = vsub.s32 %v7130, 127
      %v7132 = vand.u32 2147483647, %v1066
      %v7133 = vand.u32 %v7132, 8388607
      %v7134 = vor.u32 %v7133, 8388608
      %v7135 = vsub.s32 0, %v7134
      %v7136 = vadd.s32 %v7131, 1
      %vm7137 = vcmp.gt.s32.totalorder %v7136, 0
      %v7138 = vsel %vm7137, %v7136, 0
      %v7139 = vshrl.u32 %v7138, 5
      %v7140 = vand.u32 %v7138, 31
      %v7141 = vsub.s32 32, %v7140
      %v7142 = vshrl.u32 683565275, %v7141
      %v7143 = vshll.u32 683565275, %v7140
      %v7144 = vshrl.u32 2475754826, %v7141
      %v7145 = vor.u32 %v7143, %v7144
      %v7146 = vshll.u32 2475754826, %v7140
      %v7147 = vshrl.u32 2131351028, %v7141
      %v7148 = vor.u32 %v7146, %v7147
      %v7149 = vshll.u32 2131351028, %v7140
      %v7150 = vshrl.u32 2102212464, %v7141
      %v7151 = vor.u32 %v7149, %v7150
      %v7152 = vshll.u32 2102212464, %v7140
      %v7153 = vshrl.u32 920167782, %v7141
      %v7154 = vor.u32 %v7152, %v7153
      %v7155 = vshll.u32 920167782, %v7140
      %v7156 = vshrl.u32 1326507024, %v7141
      %v7157 = vor.u32 %v7155, %v7156
      %vm7158 = vcmp.lt.s32.totalorder %v7139, 1
      %vm7159 = vcmp.lt.s32.totalorder %v7139, 2
      %vm7160 = vcmp.lt.s32.totalorder %v7139, 3
      %vm7161 = vcmp.lt.s32.totalorder %v7139, 4
      %v7162 = vsel %vm7158, %v7142, %v7145
      %v7163 = vsel %vm7161, %v7151, 2102212464
      %v7164 = vsel %vm7160, %v7148, %v7163
      %v7165 = vsel %vm7159, %v7162, %v7164
      %v7166 = vsel %vm7158, %v7145, %v7148
      %v7167 = vsel %vm7161, %v7154, 920167782
      %v7168 = vsel %vm7160, %v7151, %v7167
      %v7169 = vsel %vm7159, %v7166, %v7168
      %v7170 = vsel %vm7158, %v7148, %v7151
      %v7171 = vsel %vm7161, %v7157, 1326507024
      %v7172 = vsel %vm7160, %v7154, %v7171
      %v7173 = vsel %vm7159, %v7170, %v7172
      %v7174 = vshll.u32 %v7134, 8
      %v7175 = vmul.u32.u64.compose %v7174, %v7173
      %v7176 = vextract.low.u32 %v7175
      %v7177 = vextract.high.u32 %v7175
      %v7178 = vmul.u32.u64.compose %v7174, %v7169
      %v7179 = vextract.low.u32 %v7178
      %v7180 = vextract.high.u32 %v7178
      %v7181 = vmul.u32 %v7174, %v7165
      %v7182 = vadd.s32 %v7177, %v7179
      %vm7183 = vc.u32 %v7177, %v7179
      %v7184 = vadd.s32 %v7180, 1
      %v7185 = vsel %vm7183, %v7184, %v7180
      %v7186 = vadd.s32 %v7181, %v7185
      %v7187 = vadd.s32 %v7186, 536870912
      %v7188 = vshrl.u32 %v7187, 30
      %v7189 = vshll.u32 %v7188, 30
      %v7190 = vsub.s32 %v7186, %v7189
      %vm7191 = vcmp.lt.s32.totalorder %v7190, 0
      %v7192 = vsub.s32 0, %v7190
      %v7193 = vsel %vm7191, %v7192, %v7190
      %v7194 = vclz %v7193
      %v7195 = vsub.s32 %v7194, 2
      %vm7196 = vcmp.gt.s32.totalorder 0, %v7195
      %v7197 = vsel %vm7196, 0, %v7195
      %v7198 = vsub.s32 32, %v7197
      %v7199 = vshll.u32 %v7190, %v7197
      %v7200 = vshrl.u32 %v7182, %v7198
      %v7201 = vor.u32 %v7199, %v7200
      %v7202 = vsub.s32 4294967266, %v7197
      %v7203 = vadd.s32 %v7202, 127
      %v7204 = vshll.u32 %v7203, 23
      %v7205 = vor.u32 4788187, %v7204
      %v7206 = vand.u32 2147483647, %v7205
      %v7208 = vcvt.s32.f32 %v7201
      %v7209 = vmul.f32 %v7208, %v7206
      %v7210 = vxor.u32 %v7209, 2147483648
      %v7211 = vsel %vm7128, %v7210, %v7209
      %v7212 = vsub.s32 4, %v7188
      %v7213 = vsel %vm7128, %v7212, %v7188
      %v7214 = vsel %vm7127, %v1066, %v7211
      %v7215 = vsel %vm7127, 0, %v7213
      %v7216 = vcosq.f32.pop %v7214
      %v7217 = vsinq.f32.pop %v7214
      %vm7218 = vweird.f32 %v1066
      %v7219 = vadd.s32 %v7215, 3
      %v7220 = vand.u32 %v7219, 3
      %vm7221 = vcmp.lt.s32.totalorder %v7220, 2
      %vm7222 = vcmp.eq.s32.totalorder %v7220, 0
      %v7223 = vxor.u32 %v7217, 2147483648
      %v7224 = vsel %vm7222, %v7216, %v7223
      %vm7225 = vcmp.eq.s32.totalorder %v7220, 2
      %v7226 = vxor.u32 %v7216, 2147483648
      %v7227 = vsel %vm7225, %v7226, %v7217
      %v7228 = vsel %vm7221, %v7224, %v7227
      %v7229 = vsel %vm7218, nan, %v7228
      %v7230 = vand.u32 2147483647, %v1071
      %vm7231 = vcmp.le.f32.partialorder %v7230, 0.7853982
      %vm7232 = vcmp.lt.s32.totalorder %v1071, 0
      %v7233 = vand.u32 %v1071, 2139095040
      %v7234 = vshrl.u32 %v7233, 23
      %v7235 = vsub.s32 %v7234, 127
      %v7236 = vand.u32 2147483647, %v1071
      %v7237 = vand.u32 %v7236, 8388607
      %v7238 = vor.u32 %v7237, 8388608
      %v7239 = vsub.s32 0, %v7238
      %v7240 = vadd.s32 %v7235, 1
      %vm7241 = vcmp.gt.s32.totalorder %v7240, 0
      %v7242 = vsel %vm7241, %v7240, 0
      %v7243 = vshrl.u32 %v7242, 5
      %v7244 = vand.u32 %v7242, 31
      %v7245 = vsub.s32 32, %v7244
      %v7246 = vshrl.u32 683565275, %v7245
      %v7247 = vshll.u32 683565275, %v7244
      %v7248 = vshrl.u32 2475754826, %v7245
      %v7249 = vor.u32 %v7247, %v7248
      %v7250 = vshll.u32 2475754826, %v7244
      %v7251 = vshrl.u32 2131351028, %v7245
      %v7252 = vor.u32 %v7250, %v7251
      %v7253 = vshll.u32 2131351028, %v7244
      %v7254 = vshrl.u32 2102212464, %v7245
      %v7255 = vor.u32 %v7253, %v7254
      %v7256 = vshll.u32 2102212464, %v7244
      %v7257 = vshrl.u32 920167782, %v7245
      %v7258 = vor.u32 %v7256, %v7257
      %v7259 = vshll.u32 920167782, %v7244
      %v7260 = vshrl.u32 1326507024, %v7245
      %v7261 = vor.u32 %v7259, %v7260
      %vm7262 = vcmp.lt.s32.totalorder %v7243, 1
      %vm7263 = vcmp.lt.s32.totalorder %v7243, 2
      %vm7264 = vcmp.lt.s32.totalorder %v7243, 3
      %vm7265 = vcmp.lt.s32.totalorder %v7243, 4
      %v7266 = vsel %vm7262, %v7246, %v7249
      %v7267 = vsel %vm7265, %v7255, 2102212464
      %v7268 = vsel %vm7264, %v7252, %v7267
      %v7269 = vsel %vm7263, %v7266, %v7268
      %v7270 = vsel %vm7262, %v7249, %v7252
      %v7271 = vsel %vm7265, %v7258, 920167782
      %v7272 = vsel %vm7264, %v7255, %v7271
      %v7273 = vsel %vm7263, %v7270, %v7272
      %v7274 = vsel %vm7262, %v7252, %v7255
      %v7275 = vsel %vm7265, %v7261, 1326507024
      %v7276 = vsel %vm7264, %v7258, %v7275
      %v7277 = vsel %vm7263, %v7274, %v7276
      %v7278 = vshll.u32 %v7238, 8
      %v7279 = vmul.u32.u64.compose %v7278, %v7277
      %v7280 = vextract.low.u32 %v7279
      %v7281 = vextract.high.u32 %v7279
      %v7282 = vmul.u32.u64.compose %v7278, %v7273
      %v7283 = vextract.low.u32 %v7282
      %v7284 = vextract.high.u32 %v7282
      %v7285 = vmul.u32 %v7278, %v7269
      %v7286 = vadd.s32 %v7281, %v7283
      %vm7287 = vc.u32 %v7281, %v7283
      %v7288 = vadd.s32 %v7284, 1
      %v7289 = vsel %vm7287, %v7288, %v7284
      %v7290 = vadd.s32 %v7285, %v7289
      %v7291 = vadd.s32 %v7290, 536870912
      %v7292 = vshrl.u32 %v7291, 30
      %v7293 = vshll.u32 %v7292, 30
      %v7294 = vsub.s32 %v7290, %v7293
      %vm7295 = vcmp.lt.s32.totalorder %v7294, 0
      %v7296 = vsub.s32 0, %v7294
      %v7297 = vsel %vm7295, %v7296, %v7294
      %v7298 = vclz %v7297
      %v7299 = vsub.s32 %v7298, 2
      %vm7300 = vcmp.gt.s32.totalorder 0, %v7299
      %v7301 = vsel %vm7300, 0, %v7299
      %v7302 = vsub.s32 32, %v7301
      %v7303 = vshll.u32 %v7294, %v7301
      %v7304 = vshrl.u32 %v7286, %v7302
      %v7305 = vor.u32 %v7303, %v7304
      %v7306 = vsub.s32 4294967266, %v7301
      %v7307 = vadd.s32 %v7306, 127
      %v7308 = vshll.u32 %v7307, 23
      %v7309 = vor.u32 4788187, %v7308
      %v7310 = vand.u32 2147483647, %v7309
      %v7312 = vcvt.s32.f32 %v7305
      %v7313 = vmul.f32 %v7312, %v7310
      %v7314 = vxor.u32 %v7313, 2147483648
      %v7315 = vsel %vm7232, %v7314, %v7313
      %v7316 = vsub.s32 4, %v7292
      %v7317 = vsel %vm7232, %v7316, %v7292
      %v7318 = vsel %vm7231, %v1071, %v7315
      %v7319 = vsel %vm7231, 0, %v7317
      %v7320 = vcosq.f32.pop %v7318
      %v7321 = vsinq.f32.pop %v7318
      %vm7322 = vweird.f32 %v1071
      %v7323 = vadd.s32 %v7319, 3
      %v7324 = vand.u32 %v7323, 3
      %vm7325 = vcmp.lt.s32.totalorder %v7324, 2
      %vm7326 = vcmp.eq.s32.totalorder %v7324, 0
      %v7327 = vxor.u32 %v7321, 2147483648
      %v7328 = vsel %vm7326, %v7320, %v7327
      %vm7329 = vcmp.eq.s32.totalorder %v7324, 2
      %v7330 = vxor.u32 %v7320, 2147483648
      %v7331 = vsel %vm7329, %v7330, %v7321
      %v7332 = vsel %vm7325, %v7328, %v7331
      %v7333 = vsel %vm7322, nan, %v7332
      %v7334 = vand.u32 2147483647, %v1076
      %vm7335 = vcmp.le.f32.partialorder %v7334, 0.7853982
      %vm7336 = vcmp.lt.s32.totalorder %v1076, 0
      %v7337 = vand.u32 %v1076, 2139095040
      %v7338 = vshrl.u32 %v7337, 23
      %v7339 = vsub.s32 %v7338, 127
      %v7340 = vand.u32 2147483647, %v1076
      %v7341 = vand.u32 %v7340, 8388607
      %v7342 = vor.u32 %v7341, 8388608
      %v7343 = vsub.s32 0, %v7342
      %v7344 = vadd.s32 %v7339, 1
      %vm7345 = vcmp.gt.s32.totalorder %v7344, 0
      %v7346 = vsel %vm7345, %v7344, 0
      %v7347 = vshrl.u32 %v7346, 5
      %v7348 = vand.u32 %v7346, 31
      %v7349 = vsub.s32 32, %v7348
      %v7350 = vshrl.u32 683565275, %v7349
      %v7351 = vshll.u32 683565275, %v7348
      %v7352 = vshrl.u32 2475754826, %v7349
      %v7353 = vor.u32 %v7351, %v7352
      %v7354 = vshll.u32 2475754826, %v7348
      %v7355 = vshrl.u32 2131351028, %v7349
      %v7356 = vor.u32 %v7354, %v7355
      %v7357 = vshll.u32 2131351028, %v7348
      %v7358 = vshrl.u32 2102212464, %v7349
      %v7359 = vor.u32 %v7357, %v7358
      %v7360 = vshll.u32 2102212464, %v7348
      %v7361 = vshrl.u32 920167782, %v7349
      %v7362 = vor.u32 %v7360, %v7361
      %v7363 = vshll.u32 920167782, %v7348
      %v7364 = vshrl.u32 1326507024, %v7349
      %v7365 = vor.u32 %v7363, %v7364
      %vm7366 = vcmp.lt.s32.totalorder %v7347, 1
      %vm7367 = vcmp.lt.s32.totalorder %v7347, 2
      %vm7368 = vcmp.lt.s32.totalorder %v7347, 3
      %vm7369 = vcmp.lt.s32.totalorder %v7347, 4
      %v7370 = vsel %vm7366, %v7350, %v7353
      %v7371 = vsel %vm7369, %v7359, 2102212464
      %v7372 = vsel %vm7368, %v7356, %v7371
      %v7373 = vsel %vm7367, %v7370, %v7372
      %v7374 = vsel %vm7366, %v7353, %v7356
      %v7375 = vsel %vm7369, %v7362, 920167782
      %v7376 = vsel %vm7368, %v7359, %v7375
      %v7377 = vsel %vm7367, %v7374, %v7376
      %v7378 = vsel %vm7366, %v7356, %v7359
      %v7379 = vsel %vm7369, %v7365, 1326507024
      %v7380 = vsel %vm7368, %v7362, %v7379
      %v7381 = vsel %vm7367, %v7378, %v7380
      %v7382 = vshll.u32 %v7342, 8
      %v7383 = vmul.u32.u64.compose %v7382, %v7381
      %v7384 = vextract.low.u32 %v7383
      %v7385 = vextract.high.u32 %v7383
      %v7386 = vmul.u32.u64.compose %v7382, %v7377
      %v7387 = vextract.low.u32 %v7386
      %v7388 = vextract.high.u32 %v7386
      %v7389 = vmul.u32 %v7382, %v7373
      %v7390 = vadd.s32 %v7385, %v7387
      %vm7391 = vc.u32 %v7385, %v7387
      %v7392 = vadd.s32 %v7388, 1
      %v7393 = vsel %vm7391, %v7392, %v7388
      %v7394 = vadd.s32 %v7389, %v7393
      %v7395 = vadd.s32 %v7394, 536870912
      %v7396 = vshrl.u32 %v7395, 30
      %v7397 = vshll.u32 %v7396, 30
      %v7398 = vsub.s32 %v7394, %v7397
      %vm7399 = vcmp.lt.s32.totalorder %v7398, 0
      %v7400 = vsub.s32 0, %v7398
      %v7401 = vsel %vm7399, %v7400, %v7398
      %v7402 = vclz %v7401
      %v7403 = vsub.s32 %v7402, 2
      %vm7404 = vcmp.gt.s32.totalorder 0, %v7403
      %v7405 = vsel %vm7404, 0, %v7403
      %v7406 = vsub.s32 32, %v7405
      %v7407 = vshll.u32 %v7398, %v7405
      %v7408 = vshrl.u32 %v7390, %v7406
      %v7409 = vor.u32 %v7407, %v7408
      %v7410 = vsub.s32 4294967266, %v7405
      %v7411 = vadd.s32 %v7410, 127
      %v7412 = vshll.u32 %v7411, 23
      %v7413 = vor.u32 4788187, %v7412
      %v7414 = vand.u32 2147483647, %v7413
      %v7416 = vcvt.s32.f32 %v7409
      %v7417 = vmul.f32 %v7416, %v7414
      %v7418 = vxor.u32 %v7417, 2147483648
      %v7419 = vsel %vm7336, %v7418, %v7417
      %v7420 = vsub.s32 4, %v7396
      %v7421 = vsel %vm7336, %v7420, %v7396
      %v7422 = vsel %vm7335, %v1076, %v7419
      %v7423 = vsel %vm7335, 0, %v7421
      %v7424 = vcosq.f32.pop %v7422
      %v7425 = vsinq.f32.pop %v7422
      %vm7426 = vweird.f32 %v1076
      %v7427 = vadd.s32 %v7423, 3
      %v7428 = vand.u32 %v7427, 3
      %vm7429 = vcmp.lt.s32.totalorder %v7428, 2
      %vm7430 = vcmp.eq.s32.totalorder %v7428, 0
      %v7431 = vxor.u32 %v7425, 2147483648
      %v7432 = vsel %vm7430, %v7424, %v7431
      %vm7433 = vcmp.eq.s32.totalorder %v7428, 2
      %v7434 = vxor.u32 %v7424, 2147483648
      %v7435 = vsel %vm7433, %v7434, %v7425
      %v7436 = vsel %vm7429, %v7432, %v7435
      %v7437 = vsel %vm7426, nan, %v7436
      %v7438 = vand.u32 2147483647, %v1081
      %vm7439 = vcmp.le.f32.partialorder %v7438, 0.7853982
      %vm7440 = vcmp.lt.s32.totalorder %v1081, 0
      %v7441 = vand.u32 %v1081, 2139095040
      %v7442 = vshrl.u32 %v7441, 23
      %v7443 = vsub.s32 %v7442, 127
      %v7444 = vand.u32 2147483647, %v1081
      %v7445 = vand.u32 %v7444, 8388607
      %v7446 = vor.u32 %v7445, 8388608
      %v7447 = vsub.s32 0, %v7446
      %v7448 = vadd.s32 %v7443, 1
      %vm7449 = vcmp.gt.s32.totalorder %v7448, 0
      %v7450 = vsel %vm7449, %v7448, 0
      %v7451 = vshrl.u32 %v7450, 5
      %v7452 = vand.u32 %v7450, 31
      %v7453 = vsub.s32 32, %v7452
      %v7454 = vshrl.u32 683565275, %v7453
      %v7455 = vshll.u32 683565275, %v7452
      %v7456 = vshrl.u32 2475754826, %v7453
      %v7457 = vor.u32 %v7455, %v7456
      %v7458 = vshll.u32 2475754826, %v7452
      %v7459 = vshrl.u32 2131351028, %v7453
      %v7460 = vor.u32 %v7458, %v7459
      %v7461 = vshll.u32 2131351028, %v7452
      %v7462 = vshrl.u32 2102212464, %v7453
      %v7463 = vor.u32 %v7461, %v7462
      %v7464 = vshll.u32 2102212464, %v7452
      %v7465 = vshrl.u32 920167782, %v7453
      %v7466 = vor.u32 %v7464, %v7465
      %v7467 = vshll.u32 920167782, %v7452
      %v7468 = vshrl.u32 1326507024, %v7453
      %v7469 = vor.u32 %v7467, %v7468
      %vm7470 = vcmp.lt.s32.totalorder %v7451, 1
      %vm7471 = vcmp.lt.s32.totalorder %v7451, 2
      %vm7472 = vcmp.lt.s32.totalorder %v7451, 3
      %vm7473 = vcmp.lt.s32.totalorder %v7451, 4
      %v7474 = vsel %vm7470, %v7454, %v7457
      %v7475 = vsel %vm7473, %v7463, 2102212464
      %v7476 = vsel %vm7472, %v7460, %v7475
      %v7477 = vsel %vm7471, %v7474, %v7476
      %v7478 = vsel %vm7470, %v7457, %v7460
      %v7479 = vsel %vm7473, %v7466, 920167782
      %v7480 = vsel %vm7472, %v7463, %v7479
      %v7481 = vsel %vm7471, %v7478, %v7480
      %v7482 = vsel %vm7470, %v7460, %v7463
      %v7483 = vsel %vm7473, %v7469, 1326507024
      %v7484 = vsel %vm7472, %v7466, %v7483
      %v7485 = vsel %vm7471, %v7482, %v7484
      %v7486 = vshll.u32 %v7446, 8
      %v7487 = vmul.u32.u64.compose %v7486, %v7485
      %v7488 = vextract.low.u32 %v7487
      %v7489 = vextract.high.u32 %v7487
      %v7490 = vmul.u32.u64.compose %v7486, %v7481
      %v7491 = vextract.low.u32 %v7490
      %v7492 = vextract.high.u32 %v7490
      %v7493 = vmul.u32 %v7486, %v7477
      %v7494 = vadd.s32 %v7489, %v7491
      %vm7495 = vc.u32 %v7489, %v7491
      %v7496 = vadd.s32 %v7492, 1
      %v7497 = vsel %vm7495, %v7496, %v7492
      %v7498 = vadd.s32 %v7493, %v7497
      %v7499 = vadd.s32 %v7498, 536870912
      %v7500 = vshrl.u32 %v7499, 30
      %v7501 = vshll.u32 %v7500, 30
      %v7502 = vsub.s32 %v7498, %v7501
      %vm7503 = vcmp.lt.s32.totalorder %v7502, 0
      %v7504 = vsub.s32 0, %v7502
      %v7505 = vsel %vm7503, %v7504, %v7502
      %v7506 = vclz %v7505
      %v7507 = vsub.s32 %v7506, 2
      %vm7508 = vcmp.gt.s32.totalorder 0, %v7507
      %v7509 = vsel %vm7508, 0, %v7507
      %v7510 = vsub.s32 32, %v7509
      %v7511 = vshll.u32 %v7502, %v7509
      %v7512 = vshrl.u32 %v7494, %v7510
      %v7513 = vor.u32 %v7511, %v7512
      %v7514 = vsub.s32 4294967266, %v7509
      %v7515 = vadd.s32 %v7514, 127
      %v7516 = vshll.u32 %v7515, 23
      %v7517 = vor.u32 4788187, %v7516
      %v7518 = vand.u32 2147483647, %v7517
      %v7520 = vcvt.s32.f32 %v7513
      %v7521 = vmul.f32 %v7520, %v7518
      %v7522 = vxor.u32 %v7521, 2147483648
      %v7523 = vsel %vm7440, %v7522, %v7521
      %v7524 = vsub.s32 4, %v7500
      %v7525 = vsel %vm7440, %v7524, %v7500
      %v7526 = vsel %vm7439, %v1081, %v7523
      %v7527 = vsel %vm7439, 0, %v7525
      %v7528 = vcosq.f32.pop %v7526
      %v7529 = vsinq.f32.pop %v7526
      %vm7530 = vweird.f32 %v1081
      %v7531 = vadd.s32 %v7527, 3
      %v7532 = vand.u32 %v7531, 3
      %vm7533 = vcmp.lt.s32.totalorder %v7532, 2
      %vm7534 = vcmp.eq.s32.totalorder %v7532, 0
      %v7535 = vxor.u32 %v7529, 2147483648
      %v7536 = vsel %vm7534, %v7528, %v7535
      %vm7537 = vcmp.eq.s32.totalorder %v7532, 2
      %v7538 = vxor.u32 %v7528, 2147483648
      %v7539 = vsel %vm7537, %v7538, %v7529
      %v7540 = vsel %vm7533, %v7536, %v7539
      %v7541 = vsel %vm7530, nan, %v7540
      %v7542 = vand.u32 2147483647, %v1086
      %vm7543 = vcmp.le.f32.partialorder %v7542, 0.7853982
      %vm7544 = vcmp.lt.s32.totalorder %v1086, 0
      %v7545 = vand.u32 %v1086, 2139095040
      %v7546 = vshrl.u32 %v7545, 23
      %v7547 = vsub.s32 %v7546, 127
      %v7548 = vand.u32 2147483647, %v1086
      %v7549 = vand.u32 %v7548, 8388607
      %v7550 = vor.u32 %v7549, 8388608
      %v7551 = vsub.s32 0, %v7550
      %v7552 = vadd.s32 %v7547, 1
      %vm7553 = vcmp.gt.s32.totalorder %v7552, 0
      %v7554 = vsel %vm7553, %v7552, 0
      %v7555 = vshrl.u32 %v7554, 5
      %v7556 = vand.u32 %v7554, 31
      %v7557 = vsub.s32 32, %v7556
      %v7558 = vshrl.u32 683565275, %v7557
      %v7559 = vshll.u32 683565275, %v7556
      %v7560 = vshrl.u32 2475754826, %v7557
      %v7561 = vor.u32 %v7559, %v7560
      %v7562 = vshll.u32 2475754826, %v7556
      %v7563 = vshrl.u32 2131351028, %v7557
      %v7564 = vor.u32 %v7562, %v7563
      %v7565 = vshll.u32 2131351028, %v7556
      %v7566 = vshrl.u32 2102212464, %v7557
      %v7567 = vor.u32 %v7565, %v7566
      %v7568 = vshll.u32 2102212464, %v7556
      %v7569 = vshrl.u32 920167782, %v7557
      %v7570 = vor.u32 %v7568, %v7569
      %v7571 = vshll.u32 920167782, %v7556
      %v7572 = vshrl.u32 1326507024, %v7557
      %v7573 = vor.u32 %v7571, %v7572
      %vm7574 = vcmp.lt.s32.totalorder %v7555, 1
      %vm7575 = vcmp.lt.s32.totalorder %v7555, 2
      %vm7576 = vcmp.lt.s32.totalorder %v7555, 3
      %vm7577 = vcmp.lt.s32.totalorder %v7555, 4
      %v7578 = vsel %vm7574, %v7558, %v7561
      %v7579 = vsel %vm7577, %v7567, 2102212464
      %v7580 = vsel %vm7576, %v7564, %v7579
      %v7581 = vsel %vm7575, %v7578, %v7580
      %v7582 = vsel %vm7574, %v7561, %v7564
      %v7583 = vsel %vm7577, %v7570, 920167782
      %v7584 = vsel %vm7576, %v7567, %v7583
      %v7585 = vsel %vm7575, %v7582, %v7584
      %v7586 = vsel %vm7574, %v7564, %v7567
      %v7587 = vsel %vm7577, %v7573, 1326507024
      %v7588 = vsel %vm7576, %v7570, %v7587
      %v7589 = vsel %vm7575, %v7586, %v7588
      %v7590 = vshll.u32 %v7550, 8
      %v7591 = vmul.u32.u64.compose %v7590, %v7589
      %v7592 = vextract.low.u32 %v7591
      %v7593 = vextract.high.u32 %v7591
      %v7594 = vmul.u32.u64.compose %v7590, %v7585
      %v7595 = vextract.low.u32 %v7594
      %v7596 = vextract.high.u32 %v7594
      %v7597 = vmul.u32 %v7590, %v7581
      %v7598 = vadd.s32 %v7593, %v7595
      %vm7599 = vc.u32 %v7593, %v7595
      %v7600 = vadd.s32 %v7596, 1
      %v7601 = vsel %vm7599, %v7600, %v7596
      %v7602 = vadd.s32 %v7597, %v7601
      %v7603 = vadd.s32 %v7602, 536870912
      %v7604 = vshrl.u32 %v7603, 30
      %v7605 = vshll.u32 %v7604, 30
      %v7606 = vsub.s32 %v7602, %v7605
      %vm7607 = vcmp.lt.s32.totalorder %v7606, 0
      %v7608 = vsub.s32 0, %v7606
      %v7609 = vsel %vm7607, %v7608, %v7606
      %v7610 = vclz %v7609
      %v7611 = vsub.s32 %v7610, 2
      %vm7612 = vcmp.gt.s32.totalorder 0, %v7611
      %v7613 = vsel %vm7612, 0, %v7611
      %v7614 = vsub.s32 32, %v7613
      %v7615 = vshll.u32 %v7606, %v7613
      %v7616 = vshrl.u32 %v7598, %v7614
      %v7617 = vor.u32 %v7615, %v7616
      %v7618 = vsub.s32 4294967266, %v7613
      %v7619 = vadd.s32 %v7618, 127
      %v7620 = vshll.u32 %v7619, 23
      %v7621 = vor.u32 4788187, %v7620
      %v7622 = vand.u32 2147483647, %v7621
      %v7624 = vcvt.s32.f32 %v7617
      %v7625 = vmul.f32 %v7624, %v7622
      %v7626 = vxor.u32 %v7625, 2147483648
      %v7627 = vsel %vm7544, %v7626, %v7625
      %v7628 = vsub.s32 4, %v7604
      %v7629 = vsel %vm7544, %v7628, %v7604
      %v7630 = vsel %vm7543, %v1086, %v7627
      %v7631 = vsel %vm7543, 0, %v7629
      %v7632 = vcosq.f32.pop %v7630
      %v7633 = vsinq.f32.pop %v7630
      %vm7634 = vweird.f32 %v1086
      %v7635 = vadd.s32 %v7631, 3
      %v7636 = vand.u32 %v7635, 3
      %vm7637 = vcmp.lt.s32.totalorder %v7636, 2
      %vm7638 = vcmp.eq.s32.totalorder %v7636, 0
      %v7639 = vxor.u32 %v7633, 2147483648
      %v7640 = vsel %vm7638, %v7632, %v7639
      %vm7641 = vcmp.eq.s32.totalorder %v7636, 2
      %v7642 = vxor.u32 %v7632, 2147483648
      %v7643 = vsel %vm7641, %v7642, %v7633
      %v7644 = vsel %vm7637, %v7640, %v7643
      %v7645 = vsel %vm7634, nan, %v7644
      %v7646 = vand.u32 2147483647, %v1091
      %vm7647 = vcmp.le.f32.partialorder %v7646, 0.7853982
      %vm7648 = vcmp.lt.s32.totalorder %v1091, 0
      %v7649 = vand.u32 %v1091, 2139095040
      %v7650 = vshrl.u32 %v7649, 23
      %v7651 = vsub.s32 %v7650, 127
      %v7652 = vand.u32 2147483647, %v1091
      %v7653 = vand.u32 %v7652, 8388607
      %v7654 = vor.u32 %v7653, 8388608
      %v7655 = vsub.s32 0, %v7654
      %v7656 = vadd.s32 %v7651, 1
      %vm7657 = vcmp.gt.s32.totalorder %v7656, 0
      %v7658 = vsel %vm7657, %v7656, 0
      %v7659 = vshrl.u32 %v7658, 5
      %v7660 = vand.u32 %v7658, 31
      %v7661 = vsub.s32 32, %v7660
      %v7662 = vshrl.u32 683565275, %v7661
      %v7663 = vshll.u32 683565275, %v7660
      %v7664 = vshrl.u32 2475754826, %v7661
      %v7665 = vor.u32 %v7663, %v7664
      %v7666 = vshll.u32 2475754826, %v7660
      %v7667 = vshrl.u32 2131351028, %v7661
      %v7668 = vor.u32 %v7666, %v7667
      %v7669 = vshll.u32 2131351028, %v7660
      %v7670 = vshrl.u32 2102212464, %v7661
      %v7671 = vor.u32 %v7669, %v7670
      %v7672 = vshll.u32 2102212464, %v7660
      %v7673 = vshrl.u32 920167782, %v7661
      %v7674 = vor.u32 %v7672, %v7673
      %v7675 = vshll.u32 920167782, %v7660
      %v7676 = vshrl.u32 1326507024, %v7661
      %v7677 = vor.u32 %v7675, %v7676
      %vm7678 = vcmp.lt.s32.totalorder %v7659, 1
      %vm7679 = vcmp.lt.s32.totalorder %v7659, 2
      %vm7680 = vcmp.lt.s32.totalorder %v7659, 3
      %vm7681 = vcmp.lt.s32.totalorder %v7659, 4
      %v7682 = vsel %vm7678, %v7662, %v7665
      %v7683 = vsel %vm7681, %v7671, 2102212464
      %v7684 = vsel %vm7680, %v7668, %v7683
      %v7685 = vsel %vm7679, %v7682, %v7684
      %v7686 = vsel %vm7678, %v7665, %v7668
      %v7687 = vsel %vm7681, %v7674, 920167782
      %v7688 = vsel %vm7680, %v7671, %v7687
      %v7689 = vsel %vm7679, %v7686, %v7688
      %v7690 = vsel %vm7678, %v7668, %v7671
      %v7691 = vsel %vm7681, %v7677, 1326507024
      %v7692 = vsel %vm7680, %v7674, %v7691
      %v7693 = vsel %vm7679, %v7690, %v7692
      %v7694 = vshll.u32 %v7654, 8
      %v7695 = vmul.u32.u64.compose %v7694, %v7693
      %v7696 = vextract.low.u32 %v7695
      %v7697 = vextract.high.u32 %v7695
      %v7698 = vmul.u32.u64.compose %v7694, %v7689
      %v7699 = vextract.low.u32 %v7698
      %v7700 = vextract.high.u32 %v7698
      %v7701 = vmul.u32 %v7694, %v7685
      %v7702 = vadd.s32 %v7697, %v7699
      %vm7703 = vc.u32 %v7697, %v7699
      %v7704 = vadd.s32 %v7700, 1
      %v7705 = vsel %vm7703, %v7704, %v7700
      %v7706 = vadd.s32 %v7701, %v7705
      %v7707 = vadd.s32 %v7706, 536870912
      %v7708 = vshrl.u32 %v7707, 30
      %v7709 = vshll.u32 %v7708, 30
      %v7710 = vsub.s32 %v7706, %v7709
      %vm7711 = vcmp.lt.s32.totalorder %v7710, 0
      %v7712 = vsub.s32 0, %v7710
      %v7713 = vsel %vm7711, %v7712, %v7710
      %v7714 = vclz %v7713
      %v7715 = vsub.s32 %v7714, 2
      %vm7716 = vcmp.gt.s32.totalorder 0, %v7715
      %v7717 = vsel %vm7716, 0, %v7715
      %v7718 = vsub.s32 32, %v7717
      %v7719 = vshll.u32 %v7710, %v7717
      %v7720 = vshrl.u32 %v7702, %v7718
      %v7721 = vor.u32 %v7719, %v7720
      %v7722 = vsub.s32 4294967266, %v7717
      %v7723 = vadd.s32 %v7722, 127
      %v7724 = vshll.u32 %v7723, 23
      %v7725 = vor.u32 4788187, %v7724
      %v7726 = vand.u32 2147483647, %v7725
      %v7728 = vcvt.s32.f32 %v7721
      %v7729 = vmul.f32 %v7728, %v7726
      %v7730 = vxor.u32 %v7729, 2147483648
      %v7731 = vsel %vm7648, %v7730, %v7729
      %v7732 = vsub.s32 4, %v7708
      %v7733 = vsel %vm7648, %v7732, %v7708
      %v7734 = vsel %vm7647, %v1091, %v7731
      %v7735 = vsel %vm7647, 0, %v7733
      %v7736 = vcosq.f32.pop %v7734
      %v7737 = vsinq.f32.pop %v7734
      %vm7738 = vweird.f32 %v1091
      %v7739 = vadd.s32 %v7735, 3
      %v7740 = vand.u32 %v7739, 3
      %vm7741 = vcmp.lt.s32.totalorder %v7740, 2
      %vm7742 = vcmp.eq.s32.totalorder %v7740, 0
      %v7743 = vxor.u32 %v7737, 2147483648
      %v7744 = vsel %vm7742, %v7736, %v7743
      %vm7745 = vcmp.eq.s32.totalorder %v7740, 2
      %v7746 = vxor.u32 %v7736, 2147483648
      %v7747 = vsel %vm7745, %v7746, %v7737
      %v7748 = vsel %vm7741, %v7744, %v7747
      %v7749 = vsel %vm7738, nan, %v7748
      %v7750 = vpack.c.bf16 %v1301, %v1197
      %v7751 = vpack.c.bf16 %v1509, %v1405
      %v7752 = vpack.c.bf16 %v1717, %v1613
      %v7753 = vpack.c.bf16 %v1925, %v1821
      %v7754 = vpack.c.bf16 %v2133, %v2029
      %v7755 = vpack.c.bf16 %v2341, %v2237
      %v7756 = vpack.c.bf16 %v2549, %v2445
      %v7757 = vpack.c.bf16 %v2757, %v2653
      %v7758 = vpack.c.bf16 %v2965, %v2861
      %v7759 = vpack.c.bf16 %v3173, %v3069
      %v7760 = vpack.c.bf16 %v3381, %v3277
      %v7761 = vpack.c.bf16 %v3589, %v3485
      %v7762 = vpack.c.bf16 %v3797, %v3693
      %v7763 = vpack.c.bf16 %v4005, %v3901
      %v7764 = vpack.c.bf16 %v4213, %v4109
      %v7765 = vpack.c.bf16 %v4421, %v4317
      %v7766 = vpack.c.bf16 %v4629, %v4525
      %v7767 = vpack.c.bf16 %v4837, %v4733
      %v7768 = vpack.c.bf16 %v5045, %v4941
      %v7769 = vpack.c.bf16 %v5253, %v5149
      %v7770 = vpack.c.bf16 %v5461, %v5357
      %v7771 = vpack.c.bf16 %v5669, %v5565
      %v7772 = vpack.c.bf16 %v5877, %v5773
      %v7773 = vpack.c.bf16 %v6085, %v5981
      %v7774 = vpack.c.bf16 %v6293, %v6189
      %v7775 = vpack.c.bf16 %v6501, %v6397
      %v7776 = vpack.c.bf16 %v6709, %v6605
      %v7777 = vpack.c.bf16 %v6917, %v6813
      %v7778 = vpack.c.bf16 %v7125, %v7021
      %v7779 = vpack.c.bf16 %v7333, %v7229
      %v7780 = vpack.c.bf16 %v7541, %v7437
      %v7781 = vpack.c.bf16 %v7749, %v7645
      %v7782 = vld [vmem:[%s431] sm:$0xf]
      %v7783 = vld [vmem:[%s431 + $0x4] sm:$0xf]
      %v7784 = vld [vmem:[%s431 + $0x8] sm:$0xf]
      %v7785 = vld [vmem:[%s431 + $0xc] sm:$0xf]
      %v7786 = vld [vmem:[%s431 + $0x10] sm:$0xf]
      %v7787 = vld [vmem:[%s431 + $0x14] sm:$0xf]
      %v7788 = vld [vmem:[%s431 + $0x18] sm:$0xf]
      %v7789 = vld [vmem:[%s431 + $0x1c] sm:$0xf]
      %v7790 = vld [vmem:[%s431 + $0x20] sm:$0xf]
      %v7791 = vld [vmem:[%s431 + $0x24] sm:$0xf]
      %v7792 = vld [vmem:[%s431 + $0x28] sm:$0xf]
      %v7793 = vld [vmem:[%s431 + $0x2c] sm:$0xf]
      %v7794 = vld [vmem:[%s431 + $0x30] sm:$0xf]
      %v7795 = vld [vmem:[%s431 + $0x34] sm:$0xf]
      %v7796 = vld [vmem:[%s431 + $0x38] sm:$0xf]
      %v7797 = vld [vmem:[%s431 + $0x3c] sm:$0xf]
      %v7798 = vld [vmem:[%s431 + $0x40] sm:$0xf]
      %v7799 = vld [vmem:[%s431 + $0x44] sm:$0xf]
      %v7800 = vld [vmem:[%s431 + $0x48] sm:$0xf]
      %v7801 = vld [vmem:[%s431 + $0x4c] sm:$0xf]
      %v7802 = vld [vmem:[%s431 + $0x50] sm:$0xf]
      %v7803 = vld [vmem:[%s431 + $0x54] sm:$0xf]
      %v7804 = vld [vmem:[%s431 + $0x58] sm:$0xf]
      %v7805 = vld [vmem:[%s431 + $0x5c] sm:$0xf]
      %v7806 = vld [vmem:[%s431 + $0x60] sm:$0xf]
      %v7807 = vld [vmem:[%s431 + $0x64] sm:$0xf]
      %v7808 = vld [vmem:[%s431 + $0x68] sm:$0xf]
      %v7809 = vld [vmem:[%s431 + $0x6c] sm:$0xf]
      %v7810 = vld [vmem:[%s431 + $0x70] sm:$0xf]
      %v7811 = vld [vmem:[%s431 + $0x74] sm:$0xf]
      %v7812 = vld [vmem:[%s431 + $0x78] sm:$0xf]
      %v7813 = vld [vmem:[%s431 + $0x7c] sm:$0xf]
      %v7814 = vld [vmem:[%s431 + $0x80] sm:$0xf]
      %v7815 = vld [vmem:[%s431 + $0x84] sm:$0xf]
      %v7816 = vld [vmem:[%s431 + $0x88] sm:$0xf]
      %v7817 = vld [vmem:[%s431 + $0x8c] sm:$0xf]
      %v7818 = vld [vmem:[%s431 + $0x90] sm:$0xf]
      %v7819 = vld [vmem:[%s431 + $0x94] sm:$0xf]
      %v7820 = vld [vmem:[%s431 + $0x98] sm:$0xf]
      %v7821 = vld [vmem:[%s431 + $0x9c] sm:$0xf]
      %v7822 = vld [vmem:[%s431 + $0xa0] sm:$0xf]
      %v7823 = vld [vmem:[%s431 + $0xa4] sm:$0xf]
      %v7824 = vld [vmem:[%s431 + $0xa8] sm:$0xf]
      %v7825 = vld [vmem:[%s431 + $0xac] sm:$0xf]
      %v7826 = vld [vmem:[%s431 + $0xb0] sm:$0xf]
      %v7827 = vld [vmem:[%s431 + $0xb4] sm:$0xf]
      %v7828 = vld [vmem:[%s431 + $0xb8] sm:$0xf]
      %v7829 = vld [vmem:[%s431 + $0xbc] sm:$0xf]
      %v7830 = vld [vmem:[%s431 + $0xc0] sm:$0xf]
      %v7831 = vld [vmem:[%s431 + $0xc4] sm:$0xf]
      %v7832 = vld [vmem:[%s431 + $0xc8] sm:$0xf]
      %v7833 = vld [vmem:[%s431 + $0xcc] sm:$0xf]
      %v7834 = vld [vmem:[%s431 + $0xd0] sm:$0xf]
      %v7835 = vld [vmem:[%s431 + $0xd4] sm:$0xf]
      %v7836 = vld [vmem:[%s431 + $0xd8] sm:$0xf]
      %v7837 = vld [vmem:[%s431 + $0xdc] sm:$0xf]
      %v7838 = vld [vmem:[%s431 + $0xe0] sm:$0xf]
      %v7839 = vld [vmem:[%s431 + $0xe4] sm:$0xf]
      %v7840 = vld [vmem:[%s431 + $0xe8] sm:$0xf]
      %v7841 = vld [vmem:[%s431 + $0xec] sm:$0xf]
      %v7842 = vld [vmem:[%s431 + $0xf0] sm:$0xf]
      %v7843 = vld [vmem:[%s431 + $0xf4] sm:$0xf]
      %v7844 = vld [vmem:[%s431 + $0xf8] sm:$0xf]
      %v7845 = vld [vmem:[%s431 + $0xfc] sm:$0xf]
      %v7846 = vld [vmem:[%s4] sm:$0xf]
      %v7847 = vld [vmem:[%s4 + $0x4] sm:$0xf]
      %v7848 = vld [vmem:[%s4 + $0x8] sm:$0xf]
      %v7849 = vld [vmem:[%s4 + $0xc] sm:$0xf]
      %v7850 = vld [vmem:[%s4 + $0x10] sm:$0xf]
      %v7851 = vld [vmem:[%s4 + $0x14] sm:$0x1]
      %v7852 = vld [vmem:[%s5] sm:$0xf]
      %v7853 = vld [vmem:[%s5 + $0x4] sm:$0xf]
      %v7854 = vld [vmem:[%s5 + $0x8] sm:$0xf]
      %v7855 = vld [vmem:[%s5 + $0xc] sm:$0xf]
      %v7856 = vld [vmem:[%s5 + $0x10] sm:$0xf]
      %v7857 = vld [vmem:[%s5 + $0x14] sm:$0xf]
      %v7864 = vunpack.c.l.b16 %v7852
      %v7865 = vunpack.c.l.b16 %v7853
      %v7866 = vunpack.c.l.b16 %v7854
      %v7867 = vunpack.c.l.b16 %v7855
      %v7868 = vunpack.c.l.b16 %v7856
      %v7869 = vunpack.c.l.b16 %v7857
      %v7870 = vpack.c.b16 %v7865, %v7864
      %v7871 = vpack.c.b16 %v7867, %v7866
      %v7872 = vpack.c.b16 %v7869, %v7868
      %vm7876 = vcmask 392192
      %v7878 = vsel %vm7876, %v7750, 0
      %v7881 = vsel %vm7876, %v7751, 0
      %v7884 = vsel %vm7876, %v7752, 0
      %v7887 = vsel %vm7876, %v7753, 0
      %v7890 = vsel %vm7876, %v7754, 0
      %v7893 = vsel %vm7876, %v7755, 0
      %v7896 = vsel %vm7876, %v7756, 0
      %v7899 = vsel %vm7876, %v7757, 0
      %v7902 = vsel %vm7876, %v7758, 0
      %v7905 = vsel %vm7876, %v7759, 0
      %v7908 = vsel %vm7876, %v7760, 0
      %v7911 = vsel %vm7876, %v7761, 0
      %v7914 = vsel %vm7876, %v7762, 0
      %v7917 = vsel %vm7876, %v7763, 0
      %v7920 = vsel %vm7876, %v7764, 0
      %v7923 = vsel %vm7876, %v7765, 0
      %v7926 = vsel %vm7876, %v7766, 0
      %v7929 = vsel %vm7876, %v7767, 0
      %v7932 = vsel %vm7876, %v7768, 0
      %v7935 = vsel %vm7876, %v7769, 0
      %v7938 = vsel %vm7876, %v7770, 0
      %v7941 = vsel %vm7876, %v7771, 0
      %v7944 = vsel %vm7876, %v7772, 0
      %v7947 = vsel %vm7876, %v7773, 0
      %v7950 = vsel %vm7876, %v7774, 0
      %v7953 = vsel %vm7876, %v7775, 0
      %v7956 = vsel %vm7876, %v7776, 0
      %v7959 = vsel %vm7876, %v7777, 0
      %v7962 = vsel %vm7876, %v7778, 0
      %v7965 = vsel %vm7876, %v7779, 0
      %v7968 = vsel %vm7876, %v7780, 0
      %v7971 = vsel %vm7876, %v7781, 0
      %7973 = vmatprep.subr.bf16.mxu0 0
      %7974 = vmatpush1.bf16.msra.mxu0 %v7870
      %7975 = vmatprep.subr.bf16.mxu0 0
      %7976 = vmatpush1.bf16.msra.mxu0 %v7871
      %7977 = vmatprep.subr.bf16.mxu0 0
      %7978 = vmatpush1.bf16.msra.mxu0 %v7872
      %7979 = vmatprep.subr.bf16.mxu0 0
      %7980 = vmatpush1.bf16.msra.mxu0 0
      %7981 = vmatprep.subr.bf16.mxu0 0
      %7982 = vmatpush1.bf16.msra.mxu0 0
      %7983 = vmatprep.subr.bf16.mxu0 0
      %7984 = vmatpush1.bf16.msra.mxu0 0
      %7985 = vmatprep.subr.bf16.mxu0 0
      %7986 = vmatpush1.bf16.msra.mxu0 0
      %7987 = vmatprep.subr.bf16.mxu0 0
      %7988 = vmatpush1.bf16.msra.mxu0 0
      %7989 = vmatprep.subr.bf16.mxu0 0
      %7990 = vmatpush1.bf16.msra.mxu0 0
      %7991 = vmatprep.subr.bf16.mxu0 0
      %7992 = vmatpush1.bf16.msra.mxu0 0
      %7993 = vmatprep.subr.bf16.mxu0 0
      %7994 = vmatpush1.bf16.msra.mxu0 0
      %7995 = vmatprep.subr.bf16.mxu0 0
      %7996 = vmatpush1.bf16.msra.mxu0 0
      %7997 = vmatprep.subr.bf16.mxu0 0
      %7998 = vmatpush1.bf16.msra.mxu0 0
      %7999 = vmatprep.subr.bf16.mxu0 0
      %8000 = vmatpush1.bf16.msra.mxu0 0
      %8001 = vmatprep.subr.bf16.mxu0 0
      %8002 = vmatpush1.bf16.msra.mxu0 0
      %8003 = vmatprep.subr.bf16.mxu0 0
      %8004 = vmatpush1.bf16.msra.mxu0 0
      %8005 = vmatprep.mubr.bf16.mxu0 0
      %8006 = vmatmul.mubr.bf16.gmra.mrb[0].mxu0 %v7878
      %v8007 = vpop.f32.mrb[0].mxu0
      %v8008 = vadd.f32 0.0, %v8007
      %v8009 = vpop.f32.mrb[0].mxu0
      %v8010 = vpop.f32.mrb[0].mxu0
      %v8011 = vadd.f32 0.0, %v8010
      %v8012 = vpop.f32.mrb[0].mxu0
      %8013 = vmatprep.mubr.bf16.mxu0 0
      %8014 = vmatmul.mubr.bf16.gmra.mrb[0].mxu0 %v7881
      %v8015 = vpop.f32.mrb[0].mxu0
      %v8016 = vadd.f32 0.0, %v8015
      %v8017 = vpop.f32.mrb[0].mxu0
      %v8018 = vpop.f32.mrb[0].mxu0
      %v8019 = vadd.f32 0.0, %v8018
      %v8020 = vpop.f32.mrb[0].mxu0
      %8021 = vmatprep.mubr.bf16.mxu0 0
      %8022 = vmatmul.mubr.bf16.gmra.mrb[0].mxu0 %v7884
      %v8023 = vpop.f32.mrb[0].mxu0
      %v8024 = vadd.f32 0.0, %v8023
      %v8025 = vpop.f32.mrb[0].mxu0
      %v8026 = vpop.f32.mrb[0].mxu0
      %v8027 = vadd.f32 0.0, %v8026
      %v8028 = vpop.f32.mrb[0].mxu0
      %8029 = vmatprep.mubr.bf16.mxu0 0
      %8030 = vmatmul.mubr.bf16.gmra.mrb[0].mxu0 %v7887
      %v8031 = vpop.f32.mrb[0].mxu0
      %v8032 = vadd.f32 0.0, %v8031
      %v8033 = vpop.f32.mrb[0].mxu0
      %v8034 = vpop.f32.mrb[0].mxu0
      %v8035 = vadd.f32 0.0, %v8034
      %v8036 = vpop.f32.mrb[0].mxu0
      %8037 = vmatprep.mubr.bf16.mxu0 0
      %8038 = vmatmul.mubr.bf16.gmra.mrb[0].mxu0 %v7890
      %v8039 = vpop.f32.mrb[0].mxu0
      %v8040 = vadd.f32 0.0, %v8039
      %v8041 = vpop.f32.mrb[0].mxu0
      %v8042 = vpop.f32.mrb[0].mxu0
      %v8043 = vadd.f32 0.0, %v8042
      %v8044 = vpop.f32.mrb[0].mxu0
      %8045 = vmatprep.mubr.bf16.mxu0 0
      %8046 = vmatmul.mubr.bf16.gmra.mrb[0].mxu0 %v7893
      %v8047 = vpop.f32.mrb[0].mxu0
      %v8048 = vadd.f32 0.0, %v8047
      %v8049 = vpop.f32.mrb[0].mxu0
      %v8050 = vpop.f32.mrb[0].mxu0
      %v8051 = vadd.f32 0.0, %v8050
      %v8052 = vpop.f32.mrb[0].mxu0
      %8053 = vmatprep.mubr.bf16.mxu0 0
      %8054 = vmatmul.mubr.bf16.gmra.mrb[0].mxu0 %v7896
      %v8055 = vpop.f32.mrb[0].mxu0
      %v8056 = vadd.f32 0.0, %v8055
      %v8057 = vpop.f32.mrb[0].mxu0
      %v8058 = vpop.f32.mrb[0].mxu0
      %v8059 = vadd.f32 0.0, %v8058
      %v8060 = vpop.f32.mrb[0].mxu0
      %8061 = vmatprep.mubr.bf16.mxu0 0
      %8062 = vmatmul.mubr.bf16.gmra.mrb[0].mxu0 %v7899
      %v8063 = vpop.f32.mrb[0].mxu0
      %v8064 = vadd.f32 0.0, %v8063
      %v8065 = vpop.f32.mrb[0].mxu0
      %v8066 = vpop.f32.mrb[0].mxu0
      %v8067 = vadd.f32 0.0, %v8066
      %v8068 = vpop.f32.mrb[0].mxu0
      %8069 = vmatprep.mubr.bf16.mxu0 0
      %8070 = vmatmul.mubr.bf16.gmra.mrb[0].mxu0 %v7902
      %v8071 = vpop.f32.mrb[0].mxu0
      %v8072 = vadd.f32 0.0, %v8071
      %v8073 = vpop.f32.mrb[0].mxu0
      %v8074 = vpop.f32.mrb[0].mxu0
      %v8075 = vadd.f32 0.0, %v8074
      %v8076 = vpop.f32.mrb[0].mxu0
      %8077 = vmatprep.mubr.bf16.mxu0 0
      %8078 = vmatmul.mubr.bf16.gmra.mrb[0].mxu0 %v7905
      %v8079 = vpop.f32.mrb[0].mxu0
      %v8080 = vadd.f32 0.0, %v8079
      %v8081 = vpop.f32.mrb[0].mxu0
      %v8082 = vpop.f32.mrb[0].mxu0
      %v8083 = vadd.f32 0.0, %v8082
      %v8084 = vpop.f32.mrb[0].mxu0
      %8085 = vmatprep.mubr.bf16.mxu0 0
      %8086 = vmatmul.mubr.bf16.gmra.mrb[0].mxu0 %v7908
      %v8087 = vpop.f32.mrb[0].mxu0
      %v8088 = vadd.f32 0.0, %v8087
      %v8089 = vpop.f32.mrb[0].mxu0
      %v8090 = vpop.f32.mrb[0].mxu0
      %v8091 = vadd.f32 0.0, %v8090
      %v8092 = vpop.f32.mrb[0].mxu0
      %8093 = vmatprep.mubr.bf16.mxu0 0
      %8094 = vmatmul.mubr.bf16.gmra.mrb[0].mxu0 %v7911
      %v8095 = vpop.f32.mrb[0].mxu0
      %v8096 = vadd.f32 0.0, %v8095
      %v8097 = vpop.f32.mrb[0].mxu0
      %v8098 = vpop.f32.mrb[0].mxu0
      %v8099 = vadd.f32 0.0, %v8098
      %v8100 = vpop.f32.mrb[0].mxu0
      %8101 = vmatprep.mubr.bf16.mxu0 0
      %8102 = vmatmul.mubr.bf16.gmra.mrb[0].mxu0 %v7914
      %v8103 = vpop.f32.mrb[0].mxu0
      %v8104 = vadd.f32 0.0, %v8103
      %v8105 = vpop.f32.mrb[0].mxu0
      %v8106 = vpop.f32.mrb[0].mxu0
      %v8107 = vadd.f32 0.0, %v8106
      %v8108 = vpop.f32.mrb[0].mxu0
      %8109 = vmatprep.mubr.bf16.mxu0 0
      %8110 = vmatmul.mubr.bf16.gmra.mrb[0].mxu0 %v7917
      %v8111 = vpop.f32.mrb[0].mxu0
      %v8112 = vadd.f32 0.0, %v8111
      %v8113 = vpop.f32.mrb[0].mxu0
      %v8114 = vpop.f32.mrb[0].mxu0
      %v8115 = vadd.f32 0.0, %v8114
      %v8116 = vpop.f32.mrb[0].mxu0
      %8117 = vmatprep.mubr.bf16.mxu0 0
      %8118 = vmatmul.mubr.bf16.gmra.mrb[0].mxu0 %v7920
      %v8119 = vpop.f32.mrb[0].mxu0
      %v8120 = vadd.f32 0.0, %v8119
      %v8121 = vpop.f32.mrb[0].mxu0
      %v8122 = vpop.f32.mrb[0].mxu0
      %v8123 = vadd.f32 0.0, %v8122
      %v8124 = vpop.f32.mrb[0].mxu0
      %8125 = vmatprep.mubr.bf16.mxu0 0
      %8126 = vmatmul.mubr.bf16.gmra.mrb[0].mxu0 %v7923
      %v8127 = vpop.f32.mrb[0].mxu0
      %v8128 = vadd.f32 0.0, %v8127
      %v8129 = vpop.f32.mrb[0].mxu0
      %v8130 = vpop.f32.mrb[0].mxu0
      %v8131 = vadd.f32 0.0, %v8130
      %v8132 = vpop.f32.mrb[0].mxu0
      %8133 = vmatprep.mubr.bf16.mxu0 0
      %8134 = vmatmul.mubr.bf16.gmra.mrb[0].mxu0 %v7926
      %v8135 = vpop.f32.mrb[0].mxu0
      %v8136 = vadd.f32 0.0, %v8135
      %v8137 = vpop.f32.mrb[0].mxu0
      %v8138 = vpop.f32.mrb[0].mxu0
      %v8139 = vadd.f32 0.0, %v8138
      %v8140 = vpop.f32.mrb[0].mxu0
      %8141 = vmatprep.mubr.bf16.mxu0 0
      %8142 = vmatmul.mubr.bf16.gmra.mrb[0].mxu0 %v7929
      %v8143 = vpop.f32.mrb[0].mxu0
      %v8144 = vadd.f32 0.0, %v8143
      %v8145 = vpop.f32.mrb[0].mxu0
      %v8146 = vpop.f32.mrb[0].mxu0
      %v8147 = vadd.f32 0.0, %v8146
      %v8148 = vpop.f32.mrb[0].mxu0
      %8149 = vmatprep.mubr.bf16.mxu0 0
      %8150 = vmatmul.mubr.bf16.gmra.mrb[0].mxu0 %v7932
      %v8151 = vpop.f32.mrb[0].mxu0
      %v8152 = vadd.f32 0.0, %v8151
      %v8153 = vpop.f32.mrb[0].mxu0
      %v8154 = vpop.f32.mrb[0].mxu0
      %v8155 = vadd.f32 0.0, %v8154
      %v8156 = vpop.f32.mrb[0].mxu0
      %8157 = vmatprep.mubr.bf16.mxu0 0
      %8158 = vmatmul.mubr.bf16.gmra.mrb[0].mxu0 %v7935
      %v8159 = vpop.f32.mrb[0].mxu0
      %v8160 = vadd.f32 0.0, %v8159
      %v8161 = vpop.f32.mrb[0].mxu0
      %v8162 = vpop.f32.mrb[0].mxu0
      %v8163 = vadd.f32 0.0, %v8162
      %v8164 = vpop.f32.mrb[0].mxu0
      %8165 = vmatprep.mubr.bf16.mxu0 0
      %8166 = vmatmul.mubr.bf16.gmra.mrb[0].mxu0 %v7938
      %v8167 = vpop.f32.mrb[0].mxu0
      %v8168 = vadd.f32 0.0, %v8167
      %v8169 = vpop.f32.mrb[0].mxu0
      %v8170 = vpop.f32.mrb[0].mxu0
      %v8171 = vadd.f32 0.0, %v8170
      %v8172 = vpop.f32.mrb[0].mxu0
      %8173 = vmatprep.mubr.bf16.mxu0 0
      %8174 = vmatmul.mubr.bf16.gmra.mrb[0].mxu0 %v7941
      %v8175 = vpop.f32.mrb[0].mxu0
      %v8176 = vadd.f32 0.0, %v8175
      %v8177 = vpop.f32.mrb[0].mxu0
      %v8178 = vpop.f32.mrb[0].mxu0
      %v8179 = vadd.f32 0.0, %v8178
      %v8180 = vpop.f32.mrb[0].mxu0
      %8181 = vmatprep.mubr.bf16.mxu0 0
      %8182 = vmatmul.mubr.bf16.gmra.mrb[0].mxu0 %v7944
      %v8183 = vpop.f32.mrb[0].mxu0
      %v8184 = vadd.f32 0.0, %v8183
      %v8185 = vpop.f32.mrb[0].mxu0
      %v8186 = vpop.f32.mrb[0].mxu0
      %v8187 = vadd.f32 0.0, %v8186
      %v8188 = vpop.f32.mrb[0].mxu0
      %8189 = vmatprep.mubr.bf16.mxu0 0
      %8190 = vmatmul.mubr.bf16.gmra.mrb[0].mxu0 %v7947
      %v8191 = vpop.f32.mrb[0].mxu0
      %v8192 = vadd.f32 0.0, %v8191
      %v8193 = vpop.f32.mrb[0].mxu0
      %v8194 = vpop.f32.mrb[0].mxu0
      %v8195 = vadd.f32 0.0, %v8194
      %v8196 = vpop.f32.mrb[0].mxu0
      %8197 = vmatprep.mubr.bf16.mxu0 0
      %8198 = vmatmul.mubr.bf16.gmra.mrb[0].mxu0 %v7950
      %v8199 = vpop.f32.mrb[0].mxu0
      %v8200 = vadd.f32 0.0, %v8199
      %v8201 = vpop.f32.mrb[0].mxu0
      %v8202 = vpop.f32.mrb[0].mxu0
      %v8203 = vadd.f32 0.0, %v8202
      %v8204 = vpop.f32.mrb[0].mxu0
      %8205 = vmatprep.mubr.bf16.mxu0 0
      %8206 = vmatmul.mubr.bf16.gmra.mrb[0].mxu0 %v7953
      %v8207 = vpop.f32.mrb[0].mxu0
      %v8208 = vadd.f32 0.0, %v8207
      %v8209 = vpop.f32.mrb[0].mxu0
      %v8210 = vpop.f32.mrb[0].mxu0
      %v8211 = vadd.f32 0.0, %v8210
      %v8212 = vpop.f32.mrb[0].mxu0
      %8213 = vmatprep.mubr.bf16.mxu0 0
      %8214 = vmatmul.mubr.bf16.gmra.mrb[0].mxu0 %v7956
      %v8215 = vpop.f32.mrb[0].mxu0
      %v8216 = vadd.f32 0.0, %v8215
      %v8217 = vpop.f32.mrb[0].mxu0
      %v8218 = vpop.f32.mrb[0].mxu0
      %v8219 = vadd.f32 0.0, %v8218
      %v8220 = vpop.f32.mrb[0].mxu0
      %8221 = vmatprep.mubr.bf16.mxu0 0
      %8222 = vmatmul.mubr.bf16.gmra.mrb[0].mxu0 %v7959
      %v8223 = vpop.f32.mrb[0].mxu0
      %v8224 = vadd.f32 0.0, %v8223
      %v8225 = vpop.f32.mrb[0].mxu0
      %v8226 = vpop.f32.mrb[0].mxu0
      %v8227 = vadd.f32 0.0, %v8226
      %v8228 = vpop.f32.mrb[0].mxu0
      %8229 = vmatprep.mubr.bf16.mxu0 0
      %8230 = vmatmul.mubr.bf16.gmra.mrb[0].mxu0 %v7962
      %v8231 = vpop.f32.mrb[0].mxu0
      %v8232 = vadd.f32 0.0, %v8231
      %v8233 = vpop.f32.mrb[0].mxu0
      %v8234 = vpop.f32.mrb[0].mxu0
      %v8235 = vadd.f32 0.0, %v8234
      %v8236 = vpop.f32.mrb[0].mxu0
      %8237 = vmatprep.mubr.bf16.mxu0 0
      %8238 = vmatmul.mubr.bf16.gmra.mrb[0].mxu0 %v7965
      %v8239 = vpop.f32.mrb[0].mxu0
      %v8240 = vadd.f32 0.0, %v8239
      %v8241 = vpop.f32.mrb[0].mxu0
      %v8242 = vpop.f32.mrb[0].mxu0
      %v8243 = vadd.f32 0.0, %v8242
      %v8244 = vpop.f32.mrb[0].mxu0
      %8245 = vmatprep.mubr.bf16.mxu0 0
      %8246 = vmatmul.mubr.bf16.gmra.mrb[0].mxu0 %v7968
      %v8247 = vpop.f32.mrb[0].mxu0
      %v8248 = vadd.f32 0.0, %v8247
      %v8249 = vpop.f32.mrb[0].mxu0
      %v8250 = vpop.f32.mrb[0].mxu0
      %v8251 = vadd.f32 0.0, %v8250
      %v8252 = vpop.f32.mrb[0].mxu0
      %8253 = vmatprep.mubr.bf16.mxu0 0
      %8254 = vmatmul.mubr.bf16.gmra.mrb[0].mxu0 %v7971
      %v8255 = vpop.f32.mrb[0].mxu0
      %v8256 = vadd.f32 0.0, %v8255
      %v8257 = vpop.f32.mrb[0].mxu0
      %v8258 = vpop.f32.mrb[0].mxu0
      %v8259 = vadd.f32 0.0, %v8258
      %v8260 = vpop.f32.mrb[0].mxu0
      %8261 = vdwg.mxu0
      %v8326 = vunpack.c.l.b16 %v7782
      %v8327 = vunpack.c.l.b16 %v7783
      %v8328 = vunpack.c.l.b16 %v7784
      %v8329 = vunpack.c.l.b16 %v7785
      %v8330 = vunpack.c.l.b16 %v7786
      %v8331 = vunpack.c.l.b16 %v7787
      %v8332 = vunpack.c.l.b16 %v7788
      %v8333 = vunpack.c.l.b16 %v7789
      %v8334 = vunpack.c.l.b16 %v7790
      %v8335 = vunpack.c.l.b16 %v7791
      %v8336 = vunpack.c.l.b16 %v7792
      %v8337 = vunpack.c.l.b16 %v7793
      %v8338 = vunpack.c.l.b16 %v7794
      %v8339 = vunpack.c.l.b16 %v7795
      %v8340 = vunpack.c.l.b16 %v7796
      %v8341 = vunpack.c.l.b16 %v7797
      %v8342 = vunpack.c.l.b16 %v7798
      %v8343 = vunpack.c.l.b16 %v7799
      %v8344 = vunpack.c.l.b16 %v7800
      %v8345 = vunpack.c.l.b16 %v7801
      %v8346 = vunpack.c.l.b16 %v7802
      %v8347 = vunpack.c.l.b16 %v7803
      %v8348 = vunpack.c.l.b16 %v7804
      %v8349 = vunpack.c.l.b16 %v7805
      %v8350 = vunpack.c.l.b16 %v7806
      %v8351 = vunpack.c.l.b16 %v7807
      %v8352 = vunpack.c.l.b16 %v7808
      %v8353 = vunpack.c.l.b16 %v7809
      %v8354 = vunpack.c.l.b16 %v7810
      %v8355 = vunpack.c.l.b16 %v7811
      %v8356 = vunpack.c.l.b16 %v7812
      %v8357 = vunpack.c.l.b16 %v7813
      %v8358 = vunpack.c.l.b16 %v7814
      %v8359 = vunpack.c.l.b16 %v7815
      %v8360 = vunpack.c.l.b16 %v7816
      %v8361 = vunpack.c.l.b16 %v7817
      %v8362 = vunpack.c.l.b16 %v7818
      %v8363 = vunpack.c.l.b16 %v7819
      %v8364 = vunpack.c.l.b16 %v7820
      %v8365 = vunpack.c.l.b16 %v7821
      %v8366 = vunpack.c.l.b16 %v7822
      %v8367 = vunpack.c.l.b16 %v7823
      %v8368 = vunpack.c.l.b16 %v7824
      %v8369 = vunpack.c.l.b16 %v7825
      %v8370 = vunpack.c.l.b16 %v7826
      %v8371 = vunpack.c.l.b16 %v7827
      %v8372 = vunpack.c.l.b16 %v7828
      %v8373 = vunpack.c.l.b16 %v7829
      %v8374 = vunpack.c.l.b16 %v7830
      %v8375 = vunpack.c.l.b16 %v7831
      %v8376 = vunpack.c.l.b16 %v7832
      %v8377 = vunpack.c.l.b16 %v7833
      %v8378 = vunpack.c.l.b16 %v7834
      %v8379 = vunpack.c.l.b16 %v7835
      %v8380 = vunpack.c.l.b16 %v7836
      %v8381 = vunpack.c.l.b16 %v7837
      %v8382 = vunpack.c.l.b16 %v7838
      %v8383 = vunpack.c.l.b16 %v7839
      %v8384 = vunpack.c.l.b16 %v7840
      %v8385 = vunpack.c.l.b16 %v7841
      %v8386 = vunpack.c.l.b16 %v7842
      %v8387 = vunpack.c.l.b16 %v7843
      %v8388 = vunpack.c.l.b16 %v7844
      %v8389 = vunpack.c.l.b16 %v7845
      %v8390 = vpack.c.b16 %v8327, %v8326
      %v8391 = vpack.c.b16 %v8329, %v8328
      %v8392 = vpack.c.b16 %v8331, %v8330
      %v8393 = vpack.c.b16 %v8333, %v8332
      %v8394 = vpack.c.b16 %v8335, %v8334
      %v8395 = vpack.c.b16 %v8337, %v8336
      %v8396 = vpack.c.b16 %v8339, %v8338
      %v8397 = vpack.c.b16 %v8341, %v8340
      %v8398 = vpack.c.b16 %v8343, %v8342
      %v8399 = vpack.c.b16 %v8345, %v8344
      %v8400 = vpack.c.b16 %v8347, %v8346
      %v8401 = vpack.c.b16 %v8349, %v8348
      %v8402 = vpack.c.b16 %v8351, %v8350
      %v8403 = vpack.c.b16 %v8353, %v8352
      %v8404 = vpack.c.b16 %v8355, %v8354
      %v8405 = vpack.c.b16 %v8357, %v8356
      %v8406 = vpack.c.b16 %v8359, %v8358
      %v8407 = vpack.c.b16 %v8361, %v8360
      %v8408 = vpack.c.b16 %v8363, %v8362
      %v8409 = vpack.c.b16 %v8365, %v8364
      %v8410 = vpack.c.b16 %v8367, %v8366
      %v8411 = vpack.c.b16 %v8369, %v8368
      %v8412 = vpack.c.b16 %v8371, %v8370
      %v8413 = vpack.c.b16 %v8373, %v8372
      %v8414 = vpack.c.b16 %v8375, %v8374
      %v8415 = vpack.c.b16 %v8377, %v8376
      %v8416 = vpack.c.b16 %v8379, %v8378
      %v8417 = vpack.c.b16 %v8381, %v8380
      %v8418 = vpack.c.b16 %v8383, %v8382
      %v8419 = vpack.c.b16 %v8385, %v8384
      %v8420 = vpack.c.b16 %v8387, %v8386
      %v8421 = vpack.c.b16 %v8389, %v8388
      %v8428 = vunpack.c.l.b16 %v7846
      %v8429 = vunpack.c.l.b16 %v7847
      %v8430 = vunpack.c.l.b16 %v7848
      %v8431 = vunpack.c.l.b16 %v7849
      %v8432 = vunpack.c.l.b16 %v7850
      %v8433 = vunpack.c.l.b16 %v7851
      %v8434 = vpack.c.b16 %v8429, %v8428
      %v8435 = vpack.c.b16 %v8431, %v8430
      %v8436 = vpack.c.b16 %v8433, %v8432
      %vm8439 = vcmask 334848
      %v8441 = vsel %vm8439, %v8390, 0
      %v8444 = vsel %vm8439, %v8391, 0
      %v8447 = vsel %vm8439, %v8392, 0
      %v8450 = vsel %vm8439, %v8393, 0
      %v8453 = vsel %vm8439, %v8394, 0
      %v8456 = vsel %vm8439, %v8395, 0
      %v8459 = vsel %vm8439, %v8396, 0
      %v8462 = vsel %vm8439, %v8397, 0
      %v8465 = vsel %vm8439, %v8398, 0
      %v8468 = vsel %vm8439, %v8399, 0
      %v8471 = vsel %vm8439, %v8400, 0
      %v8474 = vsel %vm8439, %v8401, 0
      %v8477 = vsel %vm8439, %v8402, 0
      %v8480 = vsel %vm8439, %v8403, 0
      %v8483 = vsel %vm8439, %v8404, 0
      %v8486 = vsel %vm8439, %v8405, 0
      %v8489 = vsel %vm8439, %v8406, 0
      %v8492 = vsel %vm8439, %v8407, 0
      %v8495 = vsel %vm8439, %v8408, 0
      %v8498 = vsel %vm8439, %v8409, 0
      %v8501 = vsel %vm8439, %v8410, 0
      %v8504 = vsel %vm8439, %v8411, 0
      %v8507 = vsel %vm8439, %v8412, 0
      %v8510 = vsel %vm8439, %v8413, 0
      %v8513 = vsel %vm8439, %v8414, 0
      %v8516 = vsel %vm8439, %v8415, 0
      %v8519 = vsel %vm8439, %v8416, 0
      %v8522 = vsel %vm8439, %v8417, 0
      %v8525 = vsel %vm8439, %v8418, 0
      %v8528 = vsel %vm8439, %v8419, 0
      %v8531 = vsel %vm8439, %v8420, 0
      %v8534 = vsel %vm8439, %v8421, 0
      %vm8536 = vcmask 1043456
      %vm8537 = vcmask 1044480
      %v8538 = vsel %vm8536, 4294967295, 65535
      %v8539 = vsel %vm8537, %v8538, 0
      %v8541 = vand.u32 %v8436, %v8539
      %8543 = vmatprep.subr.bf16.mxu0 0
      %8544 = vmatpush1.bf16.msra.mxu0 %v8434
      %8545 = vmatprep.subr.bf16.mxu0 0
      %8546 = vmatpush1.bf16.msra.mxu0 %v8435
      %8547 = vmatprep.subr.bf16.mxu0 0
      %8548 = vmatpush1.bf16.msra.mxu0 %v8541
      %8549 = vmatprep.subr.bf16.mxu0 0
      %8550 = vmatpush1.bf16.msra.mxu0 0
      %8551 = vmatprep.subr.bf16.mxu0 0
      %8552 = vmatpush1.bf16.msra.mxu0 0
      %8553 = vmatprep.subr.bf16.mxu0 0
      %8554 = vmatpush1.bf16.msra.mxu0 0
      %8555 = vmatprep.subr.bf16.mxu0 0
      %8556 = vmatpush1.bf16.msra.mxu0 0
      %8557 = vmatprep.subr.bf16.mxu0 0
      %8558 = vmatpush1.bf16.msra.mxu0 0
      %8559 = vmatprep.subr.bf16.mxu0 0
      %8560 = vmatpush1.bf16.msra.mxu0 0
      %8561 = vmatprep.subr.bf16.mxu0 0
      %8562 = vmatpush1.bf16.msra.mxu0 0
      %8563 = vmatprep.subr.bf16.mxu0 0
      %8564 = vmatpush1.bf16.msra.mxu0 0
      %8565 = vmatprep.subr.bf16.mxu0 0
      %8566 = vmatpush1.bf16.msra.mxu0 0
      %8567 = vmatprep.subr.bf16.mxu0 0
      %8568 = vmatpush1.bf16.msra.mxu0 0
      %8569 = vmatprep.subr.bf16.mxu0 0
      %8570 = vmatpush1.bf16.msra.mxu0 0
      %8571 = vmatprep.subr.bf16.mxu0 0
      %8572 = vmatpush1.bf16.msra.mxu0 0
      %8573 = vmatprep.subr.bf16.mxu0 0
      %8574 = vmatpush1.bf16.msra.mxu0 0
      %8575 = vmatprep.mubr.bf16.mxu0 0
      %8576 = vmatmul.mubr.bf16.gmra.mrb[0].mxu0 %v8441
      %v8577 = vpop.f32.mrb[0].mxu0
      %v8578 = vadd.f32 %v8008, %v8577
      %v8579 = vpop.f32.mrb[0].mxu0
      %v8580 = vpop.f32.mrb[0].mxu0
      %v8581 = vadd.f32 %v8011, %v8580
      %v8582 = vpop.f32.mrb[0].mxu0
      %8583 = vmatprep.mubr.bf16.mxu0 0
      %8584 = vmatmul.mubr.bf16.gmra.mrb[0].mxu0 %v8444
      %v8585 = vpop.f32.mrb[0].mxu0
      %v8586 = vadd.f32 %v8016, %v8585
      %v8587 = vpop.f32.mrb[0].mxu0
      %v8588 = vpop.f32.mrb[0].mxu0
      %v8589 = vadd.f32 %v8019, %v8588
      %v8590 = vpop.f32.mrb[0].mxu0
      %8591 = vmatprep.mubr.bf16.mxu0 0
      %8592 = vmatmul.mubr.bf16.gmra.mrb[0].mxu0 %v8447
      %v8593 = vpop.f32.mrb[0].mxu0
      %v8594 = vadd.f32 %v8024, %v8593
      %v8595 = vpop.f32.mrb[0].mxu0
      %v8596 = vpop.f32.mrb[0].mxu0
      %v8597 = vadd.f32 %v8027, %v8596
      %v8598 = vpop.f32.mrb[0].mxu0
      %8599 = vmatprep.mubr.bf16.mxu0 0
      %8600 = vmatmul.mubr.bf16.gmra.mrb[0].mxu0 %v8450
      %v8601 = vpop.f32.mrb[0].mxu0
      %v8602 = vadd.f32 %v8032, %v8601
      %v8603 = vpop.f32.mrb[0].mxu0
      %v8604 = vpop.f32.mrb[0].mxu0
      %v8605 = vadd.f32 %v8035, %v8604
      %v8606 = vpop.f32.mrb[0].mxu0
      %8607 = vmatprep.mubr.bf16.mxu0 0
      %8608 = vmatmul.mubr.bf16.gmra.mrb[0].mxu0 %v8453
      %v8609 = vpop.f32.mrb[0].mxu0
      %v8610 = vadd.f32 %v8040, %v8609
      %v8611 = vpop.f32.mrb[0].mxu0
      %v8612 = vpop.f32.mrb[0].mxu0
      %v8613 = vadd.f32 %v8043, %v8612
      %v8614 = vpop.f32.mrb[0].mxu0
      %8615 = vmatprep.mubr.bf16.mxu0 0
      %8616 = vmatmul.mubr.bf16.gmra.mrb[0].mxu0 %v8456
      %v8617 = vpop.f32.mrb[0].mxu0
      %v8618 = vadd.f32 %v8048, %v8617
      %v8619 = vpop.f32.mrb[0].mxu0
      %v8620 = vpop.f32.mrb[0].mxu0
      %v8621 = vadd.f32 %v8051, %v8620
      %v8622 = vpop.f32.mrb[0].mxu0
      %8623 = vmatprep.mubr.bf16.mxu0 0
      %8624 = vmatmul.mubr.bf16.gmra.mrb[0].mxu0 %v8459
      %v8625 = vpop.f32.mrb[0].mxu0
      %v8626 = vadd.f32 %v8056, %v8625
      %v8627 = vpop.f32.mrb[0].mxu0
      %v8628 = vpop.f32.mrb[0].mxu0
      %v8629 = vadd.f32 %v8059, %v8628
      %v8630 = vpop.f32.mrb[0].mxu0
      %8631 = vmatprep.mubr.bf16.mxu0 0
      %8632 = vmatmul.mubr.bf16.gmra.mrb[0].mxu0 %v8462
      %v8633 = vpop.f32.mrb[0].mxu0
      %v8634 = vadd.f32 %v8064, %v8633
      %v8635 = vpop.f32.mrb[0].mxu0
      %v8636 = vpop.f32.mrb[0].mxu0
      %v8637 = vadd.f32 %v8067, %v8636
      %v8638 = vpop.f32.mrb[0].mxu0
      %8639 = vmatprep.mubr.bf16.mxu0 0
      %8640 = vmatmul.mubr.bf16.gmra.mrb[0].mxu0 %v8465
      %v8641 = vpop.f32.mrb[0].mxu0
      %v8642 = vadd.f32 %v8072, %v8641
      %v8643 = vpop.f32.mrb[0].mxu0
      %v8644 = vpop.f32.mrb[0].mxu0
      %v8645 = vadd.f32 %v8075, %v8644
      %v8646 = vpop.f32.mrb[0].mxu0
      %8647 = vmatprep.mubr.bf16.mxu0 0
      %8648 = vmatmul.mubr.bf16.gmra.mrb[0].mxu0 %v8468
      %v8649 = vpop.f32.mrb[0].mxu0
      %v8650 = vadd.f32 %v8080, %v8649
      %v8651 = vpop.f32.mrb[0].mxu0
      %v8652 = vpop.f32.mrb[0].mxu0
      %v8653 = vadd.f32 %v8083, %v8652
      %v8654 = vpop.f32.mrb[0].mxu0
      %8655 = vmatprep.mubr.bf16.mxu0 0
      %8656 = vmatmul.mubr.bf16.gmra.mrb[0].mxu0 %v8471
      %v8657 = vpop.f32.mrb[0].mxu0
      %v8658 = vadd.f32 %v8088, %v8657
      %v8659 = vpop.f32.mrb[0].mxu0
      %v8660 = vpop.f32.mrb[0].mxu0
      %v8661 = vadd.f32 %v8091, %v8660
      %v8662 = vpop.f32.mrb[0].mxu0
      %8663 = vmatprep.mubr.bf16.mxu0 0
      %8664 = vmatmul.mubr.bf16.gmra.mrb[0].mxu0 %v8474
      %v8665 = vpop.f32.mrb[0].mxu0
      %v8666 = vadd.f32 %v8096, %v8665
      %v8667 = vpop.f32.mrb[0].mxu0
      %v8668 = vpop.f32.mrb[0].mxu0
      %v8669 = vadd.f32 %v8099, %v8668
      %v8670 = vpop.f32.mrb[0].mxu0
      %8671 = vmatprep.mubr.bf16.mxu0 0
      %8672 = vmatmul.mubr.bf16.gmra.mrb[0].mxu0 %v8477
      %v8673 = vpop.f32.mrb[0].mxu0
      %v8674 = vadd.f32 %v8104, %v8673
      %v8675 = vpop.f32.mrb[0].mxu0
      %v8676 = vpop.f32.mrb[0].mxu0
      %v8677 = vadd.f32 %v8107, %v8676
      %v8678 = vpop.f32.mrb[0].mxu0
      %8679 = vmatprep.mubr.bf16.mxu0 0
      %8680 = vmatmul.mubr.bf16.gmra.mrb[0].mxu0 %v8480
      %v8681 = vpop.f32.mrb[0].mxu0
      %v8682 = vadd.f32 %v8112, %v8681
      %v8683 = vpop.f32.mrb[0].mxu0
      %v8684 = vpop.f32.mrb[0].mxu0
      %v8685 = vadd.f32 %v8115, %v8684
      %v8686 = vpop.f32.mrb[0].mxu0
      %8687 = vmatprep.mubr.bf16.mxu0 0
      %8688 = vmatmul.mubr.bf16.gmra.mrb[0].mxu0 %v8483
      %v8689 = vpop.f32.mrb[0].mxu0
      %v8690 = vadd.f32 %v8120, %v8689
      %v8691 = vpop.f32.mrb[0].mxu0
      %v8692 = vpop.f32.mrb[0].mxu0
      %v8693 = vadd.f32 %v8123, %v8692
      %v8694 = vpop.f32.mrb[0].mxu0
      %8695 = vmatprep.mubr.bf16.mxu0 0
      %8696 = vmatmul.mubr.bf16.gmra.mrb[0].mxu0 %v8486
      %v8697 = vpop.f32.mrb[0].mxu0
      %v8698 = vadd.f32 %v8128, %v8697
      %v8699 = vpop.f32.mrb[0].mxu0
      %v8700 = vpop.f32.mrb[0].mxu0
      %v8701 = vadd.f32 %v8131, %v8700
      %v8702 = vpop.f32.mrb[0].mxu0
      %8703 = vmatprep.mubr.bf16.mxu0 0
      %8704 = vmatmul.mubr.bf16.gmra.mrb[0].mxu0 %v8489
      %v8705 = vpop.f32.mrb[0].mxu0
      %v8706 = vadd.f32 %v8136, %v8705
      %v8707 = vpop.f32.mrb[0].mxu0
      %v8708 = vpop.f32.mrb[0].mxu0
      %v8709 = vadd.f32 %v8139, %v8708
      %v8710 = vpop.f32.mrb[0].mxu0
      %8711 = vmatprep.mubr.bf16.mxu0 0
      %8712 = vmatmul.mubr.bf16.gmra.mrb[0].mxu0 %v8492
      %v8713 = vpop.f32.mrb[0].mxu0
      %v8714 = vadd.f32 %v8144, %v8713
      %v8715 = vpop.f32.mrb[0].mxu0
      %v8716 = vpop.f32.mrb[0].mxu0
      %v8717 = vadd.f32 %v8147, %v8716
      %v8718 = vpop.f32.mrb[0].mxu0
      %8719 = vmatprep.mubr.bf16.mxu0 0
      %8720 = vmatmul.mubr.bf16.gmra.mrb[0].mxu0 %v8495
      %v8721 = vpop.f32.mrb[0].mxu0
      %v8722 = vadd.f32 %v8152, %v8721
      %v8723 = vpop.f32.mrb[0].mxu0
      %v8724 = vpop.f32.mrb[0].mxu0
      %v8725 = vadd.f32 %v8155, %v8724
      %v8726 = vpop.f32.mrb[0].mxu0
      %8727 = vmatprep.mubr.bf16.mxu0 0
      %8728 = vmatmul.mubr.bf16.gmra.mrb[0].mxu0 %v8498
      %v8729 = vpop.f32.mrb[0].mxu0
      %v8730 = vadd.f32 %v8160, %v8729
      %v8731 = vpop.f32.mrb[0].mxu0
      %v8732 = vpop.f32.mrb[0].mxu0
      %v8733 = vadd.f32 %v8163, %v8732
      %v8734 = vpop.f32.mrb[0].mxu0
      %8735 = vmatprep.mubr.bf16.mxu0 0
      %8736 = vmatmul.mubr.bf16.gmra.mrb[0].mxu0 %v8501
      %v8737 = vpop.f32.mrb[0].mxu0
      %v8738 = vadd.f32 %v8168, %v8737
      %v8739 = vpop.f32.mrb[0].mxu0
      %v8740 = vpop.f32.mrb[0].mxu0
      %v8741 = vadd.f32 %v8171, %v8740
      %v8742 = vpop.f32.mrb[0].mxu0
      %8743 = vmatprep.mubr.bf16.mxu0 0
      %8744 = vmatmul.mubr.bf16.gmra.mrb[0].mxu0 %v8504
      %v8745 = vpop.f32.mrb[0].mxu0
      %v8746 = vadd.f32 %v8176, %v8745
      %v8747 = vpop.f32.mrb[0].mxu0
      %v8748 = vpop.f32.mrb[0].mxu0
      %v8749 = vadd.f32 %v8179, %v8748
      %v8750 = vpop.f32.mrb[0].mxu0
      %8751 = vmatprep.mubr.bf16.mxu0 0
      %8752 = vmatmul.mubr.bf16.gmra.mrb[0].mxu0 %v8507
      %v8753 = vpop.f32.mrb[0].mxu0
      %v8754 = vadd.f32 %v8184, %v8753
      %v8755 = vpop.f32.mrb[0].mxu0
      %v8756 = vpop.f32.mrb[0].mxu0
      %v8757 = vadd.f32 %v8187, %v8756
      %v8758 = vpop.f32.mrb[0].mxu0
      %8759 = vmatprep.mubr.bf16.mxu0 0
      %8760 = vmatmul.mubr.bf16.gmra.mrb[0].mxu0 %v8510
      %v8761 = vpop.f32.mrb[0].mxu0
      %v8762 = vadd.f32 %v8192, %v8761
      %v8763 = vpop.f32.mrb[0].mxu0
      %v8764 = vpop.f32.mrb[0].mxu0
      %v8765 = vadd.f32 %v8195, %v8764
      %v8766 = vpop.f32.mrb[0].mxu0
      %8767 = vmatprep.mubr.bf16.mxu0 0
      %8768 = vmatmul.mubr.bf16.gmra.mrb[0].mxu0 %v8513
      %v8769 = vpop.f32.mrb[0].mxu0
      %v8770 = vadd.f32 %v8200, %v8769
      %v8771 = vpop.f32.mrb[0].mxu0
      %v8772 = vpop.f32.mrb[0].mxu0
      %v8773 = vadd.f32 %v8203, %v8772
      %v8774 = vpop.f32.mrb[0].mxu0
      %8775 = vmatprep.mubr.bf16.mxu0 0
      %8776 = vmatmul.mubr.bf16.gmra.mrb[0].mxu0 %v8516
      %v8777 = vpop.f32.mrb[0].mxu0
      %v8778 = vadd.f32 %v8208, %v8777
      %v8779 = vpop.f32.mrb[0].mxu0
      %v8780 = vpop.f32.mrb[0].mxu0
      %v8781 = vadd.f32 %v8211, %v8780
      %v8782 = vpop.f32.mrb[0].mxu0
      %8783 = vmatprep.mubr.bf16.mxu0 0
      %8784 = vmatmul.mubr.bf16.gmra.mrb[0].mxu0 %v8519
      %v8785 = vpop.f32.mrb[0].mxu0
      %v8786 = vadd.f32 %v8216, %v8785
      %v8787 = vpop.f32.mrb[0].mxu0
      %v8788 = vpop.f32.mrb[0].mxu0
      %v8789 = vadd.f32 %v8219, %v8788
      %v8790 = vpop.f32.mrb[0].mxu0
      %8791 = vmatprep.mubr.bf16.mxu0 0
      %8792 = vmatmul.mubr.bf16.gmra.mrb[0].mxu0 %v8522
      %v8793 = vpop.f32.mrb[0].mxu0
      %v8794 = vadd.f32 %v8224, %v8793
      %v8795 = vpop.f32.mrb[0].mxu0
      %v8796 = vpop.f32.mrb[0].mxu0
      %v8797 = vadd.f32 %v8227, %v8796
      %v8798 = vpop.f32.mrb[0].mxu0
      %8799 = vmatprep.mubr.bf16.mxu0 0
      %8800 = vmatmul.mubr.bf16.gmra.mrb[0].mxu0 %v8525
      %v8801 = vpop.f32.mrb[0].mxu0
      %v8802 = vadd.f32 %v8232, %v8801
      %v8803 = vpop.f32.mrb[0].mxu0
      %v8804 = vpop.f32.mrb[0].mxu0
      %v8805 = vadd.f32 %v8235, %v8804
      %v8806 = vpop.f32.mrb[0].mxu0
      %8807 = vmatprep.mubr.bf16.mxu0 0
      %8808 = vmatmul.mubr.bf16.gmra.mrb[0].mxu0 %v8528
      %v8809 = vpop.f32.mrb[0].mxu0
      %v8810 = vadd.f32 %v8240, %v8809
      %v8811 = vpop.f32.mrb[0].mxu0
      %v8812 = vpop.f32.mrb[0].mxu0
      %v8813 = vadd.f32 %v8243, %v8812
      %v8814 = vpop.f32.mrb[0].mxu0
      %8815 = vmatprep.mubr.bf16.mxu0 0
      %8816 = vmatmul.mubr.bf16.gmra.mrb[0].mxu0 %v8531
      %v8817 = vpop.f32.mrb[0].mxu0
      %v8818 = vadd.f32 %v8248, %v8817
      %v8819 = vpop.f32.mrb[0].mxu0
      %v8820 = vpop.f32.mrb[0].mxu0
      %v8821 = vadd.f32 %v8251, %v8820
      %v8822 = vpop.f32.mrb[0].mxu0
      %8823 = vmatprep.mubr.bf16.mxu0 0
      %8824 = vmatmul.mubr.bf16.gmra.mrb[0].mxu0 %v8534
      %v8825 = vpop.f32.mrb[0].mxu0
      %v8826 = vadd.f32 %v8256, %v8825
      %v8827 = vpop.f32.mrb[0].mxu0
      %v8828 = vpop.f32.mrb[0].mxu0
      %v8829 = vadd.f32 %v8259, %v8828
      %v8830 = vpop.f32.mrb[0].mxu0
      %8831 = vdwg.mxu0
      %v8832 = vld [vmem:[%s6] sm:$0x1]
      %v8834 = vlaneseq
      %v8835 = vshrl.u32 %v8834, 7
      %v8836 = vsub.s32 0, %v8835
      %v8837 = vrot.slane %v8832, %v8836
      %v8839 = vadd.f32 %v8578, %v8837
      %v8840 = vadd.f32 %v8581, %v8837
      %v8841 = vadd.f32 %v8586, %v8837
      %v8842 = vadd.f32 %v8589, %v8837
      %v8843 = vadd.f32 %v8594, %v8837
      %v8844 = vadd.f32 %v8597, %v8837
      %v8845 = vadd.f32 %v8602, %v8837
      %v8846 = vadd.f32 %v8605, %v8837
      %v8847 = vadd.f32 %v8610, %v8837
      %v8848 = vadd.f32 %v8613, %v8837
      %v8849 = vadd.f32 %v8618, %v8837
      %v8850 = vadd.f32 %v8621, %v8837
      %v8851 = vadd.f32 %v8626, %v8837
      %v8852 = vadd.f32 %v8629, %v8837
      %v8853 = vadd.f32 %v8634, %v8837
      %v8854 = vadd.f32 %v8637, %v8837
      %v8855 = vadd.f32 %v8642, %v8837
      %v8856 = vadd.f32 %v8645, %v8837
      %v8857 = vadd.f32 %v8650, %v8837
      %v8858 = vadd.f32 %v8653, %v8837
      %v8859 = vadd.f32 %v8658, %v8837
      %v8860 = vadd.f32 %v8661, %v8837
      %v8861 = vadd.f32 %v8666, %v8837
      %v8862 = vadd.f32 %v8669, %v8837
      %v8863 = vadd.f32 %v8674, %v8837
      %v8864 = vadd.f32 %v8677, %v8837
      %v8865 = vadd.f32 %v8682, %v8837
      %v8866 = vadd.f32 %v8685, %v8837
      %v8867 = vadd.f32 %v8690, %v8837
      %v8868 = vadd.f32 %v8693, %v8837
      %v8869 = vadd.f32 %v8698, %v8837
      %v8870 = vadd.f32 %v8701, %v8837
      %v8871 = vadd.f32 %v8706, %v8837
      %v8872 = vadd.f32 %v8709, %v8837
      %v8873 = vadd.f32 %v8714, %v8837
      %v8874 = vadd.f32 %v8717, %v8837
      %v8875 = vadd.f32 %v8722, %v8837
      %v8876 = vadd.f32 %v8725, %v8837
      %v8877 = vadd.f32 %v8730, %v8837
      %v8878 = vadd.f32 %v8733, %v8837
      %v8879 = vadd.f32 %v8738, %v8837
      %v8880 = vadd.f32 %v8741, %v8837
      %v8881 = vadd.f32 %v8746, %v8837
      %v8882 = vadd.f32 %v8749, %v8837
      %v8883 = vadd.f32 %v8754, %v8837
      %v8884 = vadd.f32 %v8757, %v8837
      %v8885 = vadd.f32 %v8762, %v8837
      %v8886 = vadd.f32 %v8765, %v8837
      %v8887 = vadd.f32 %v8770, %v8837
      %v8888 = vadd.f32 %v8773, %v8837
      %v8889 = vadd.f32 %v8778, %v8837
      %v8890 = vadd.f32 %v8781, %v8837
      %v8891 = vadd.f32 %v8786, %v8837
      %v8892 = vadd.f32 %v8789, %v8837
      %v8893 = vadd.f32 %v8794, %v8837
      %v8894 = vadd.f32 %v8797, %v8837
      %v8895 = vadd.f32 %v8802, %v8837
      %v8896 = vadd.f32 %v8805, %v8837
      %v8897 = vadd.f32 %v8810, %v8837
      %v8898 = vadd.f32 %v8813, %v8837
      %v8899 = vadd.f32 %v8818, %v8837
      %v8900 = vadd.f32 %v8821, %v8837
      %v8901 = vadd.f32 %v8826, %v8837
      %v8902 = vadd.f32 %v8829, %v8837
      %v8903 = vmax.f32 %v8839, 0.0
      %v8904 = vmax.f32 %v8840, 0.0
      %v8905 = vmax.f32 %v8841, 0.0
      %v8906 = vmax.f32 %v8842, 0.0
      %v8907 = vmax.f32 %v8843, 0.0
      %v8908 = vmax.f32 %v8844, 0.0
      %v8909 = vmax.f32 %v8845, 0.0
      %v8910 = vmax.f32 %v8846, 0.0
      %v8911 = vmax.f32 %v8847, 0.0
      %v8912 = vmax.f32 %v8848, 0.0
      %v8913 = vmax.f32 %v8849, 0.0
      %v8914 = vmax.f32 %v8850, 0.0
      %v8915 = vmax.f32 %v8851, 0.0
      %v8916 = vmax.f32 %v8852, 0.0
      %v8917 = vmax.f32 %v8853, 0.0
      %v8918 = vmax.f32 %v8854, 0.0
      %v8919 = vmax.f32 %v8855, 0.0
      %v8920 = vmax.f32 %v8856, 0.0
      %v8921 = vmax.f32 %v8857, 0.0
      %v8922 = vmax.f32 %v8858, 0.0
      %v8923 = vmax.f32 %v8859, 0.0
      %v8924 = vmax.f32 %v8860, 0.0
      %v8925 = vmax.f32 %v8861, 0.0
      %v8926 = vmax.f32 %v8862, 0.0
      %v8927 = vmax.f32 %v8863, 0.0
      %v8928 = vmax.f32 %v8864, 0.0
      %v8929 = vmax.f32 %v8865, 0.0
      %v8930 = vmax.f32 %v8866, 0.0
      %v8931 = vmax.f32 %v8867, 0.0
      %v8932 = vmax.f32 %v8868, 0.0
      %v8933 = vmax.f32 %v8869, 0.0
      %v8934 = vmax.f32 %v8870, 0.0
      %v8935 = vmax.f32 %v8871, 0.0
      %v8936 = vmax.f32 %v8872, 0.0
      %v8937 = vmax.f32 %v8873, 0.0
      %v8938 = vmax.f32 %v8874, 0.0
      %v8939 = vmax.f32 %v8875, 0.0
      %v8940 = vmax.f32 %v8876, 0.0
      %v8941 = vmax.f32 %v8877, 0.0
      %v8942 = vmax.f32 %v8878, 0.0
      %v8943 = vmax.f32 %v8879, 0.0
      %v8944 = vmax.f32 %v8880, 0.0
      %v8945 = vmax.f32 %v8881, 0.0
      %v8946 = vmax.f32 %v8882, 0.0
      %v8947 = vmax.f32 %v8883, 0.0
      %v8948 = vmax.f32 %v8884, 0.0
      %v8949 = vmax.f32 %v8885, 0.0
      %v8950 = vmax.f32 %v8886, 0.0
      %v8951 = vmax.f32 %v8887, 0.0
      %v8952 = vmax.f32 %v8888, 0.0
      %v8953 = vmax.f32 %v8889, 0.0
      %v8954 = vmax.f32 %v8890, 0.0
      %v8955 = vmax.f32 %v8891, 0.0
      %v8956 = vmax.f32 %v8892, 0.0
      %v8957 = vmax.f32 %v8893, 0.0
      %v8958 = vmax.f32 %v8894, 0.0
      %v8959 = vmax.f32 %v8895, 0.0
      %v8960 = vmax.f32 %v8896, 0.0
      %v8961 = vmax.f32 %v8897, 0.0
      %v8962 = vmax.f32 %v8898, 0.0
      %v8963 = vmax.f32 %v8899, 0.0
      %v8964 = vmax.f32 %v8900, 0.0
      %v8965 = vmax.f32 %v8901, 0.0
      %v8966 = vmax.f32 %v8902, 0.0
      %v8967 = vpack.c.bf16 %v8904, %v8903
      %v8968 = vpack.c.bf16 %v8906, %v8905
      %v8969 = vpack.c.bf16 %v8908, %v8907
      %v8970 = vpack.c.bf16 %v8910, %v8909
      %v8971 = vpack.c.bf16 %v8912, %v8911
      %v8972 = vpack.c.bf16 %v8914, %v8913
      %v8973 = vpack.c.bf16 %v8916, %v8915
      %v8974 = vpack.c.bf16 %v8918, %v8917
      %v8975 = vpack.c.bf16 %v8920, %v8919
      %v8976 = vpack.c.bf16 %v8922, %v8921
      %v8977 = vpack.c.bf16 %v8924, %v8923
      %v8978 = vpack.c.bf16 %v8926, %v8925
      %v8979 = vpack.c.bf16 %v8928, %v8927
      %v8980 = vpack.c.bf16 %v8930, %v8929
      %v8981 = vpack.c.bf16 %v8932, %v8931
      %v8982 = vpack.c.bf16 %v8934, %v8933
      %v8983 = vpack.c.bf16 %v8936, %v8935
      %v8984 = vpack.c.bf16 %v8938, %v8937
      %v8985 = vpack.c.bf16 %v8940, %v8939
      %v8986 = vpack.c.bf16 %v8942, %v8941
      %v8987 = vpack.c.bf16 %v8944, %v8943
      %v8988 = vpack.c.bf16 %v8946, %v8945
      %v8989 = vpack.c.bf16 %v8948, %v8947
      %v8990 = vpack.c.bf16 %v8950, %v8949
      %v8991 = vpack.c.bf16 %v8952, %v8951
      %v8992 = vpack.c.bf16 %v8954, %v8953
      %v8993 = vpack.c.bf16 %v8956, %v8955
      %v8994 = vpack.c.bf16 %v8958, %v8957
      %v8995 = vpack.c.bf16 %v8960, %v8959
      %v8996 = vpack.c.bf16 %v8962, %v8961
      %v8997 = vpack.c.bf16 %v8964, %v8963
      %v8998 = vpack.c.bf16 %v8966, %v8965
      %v8999 = vld [vmem:[%s7] sm:$0xf]
      %v9000 = vld [vmem:[%s7 + $0x4] sm:$0xf]
      %v9001 = vld [vmem:[%s7 + $0x8] sm:$0xf]
      %v9002 = vld [vmem:[%s7 + $0xc] sm:$0xf]
      %v9003 = vld [vmem:[%s7 + $0x10] sm:$0xf]
      %v9004 = vld [vmem:[%s7 + $0x14] sm:$0xf]
      %v9005 = vld [vmem:[%s7 + $0x18] sm:$0xf]
      %v9006 = vld [vmem:[%s7 + $0x1c] sm:$0xf]
      %v9007 = vld [vmem:[%s8] sm:$0x1]
      %v9009 = vlaneseq
      %v9010 = vshrl.u32 %v9009, 7
      %v9011 = vsub.s32 0, %v9010
      %v9012 = vrot.slane %v9007, %v9011
      %v9022 = vunpack.c.l.b16 %v8999
      %v9023 = vunpack.c.l.b16 %v9000
      %v9024 = vunpack.c.l.b16 %v9001
      %v9025 = vunpack.c.l.b16 %v9002
      %v9026 = vunpack.c.l.b16 %v9003
      %v9027 = vunpack.c.l.b16 %v9004
      %v9028 = vunpack.c.l.b16 %v9005
      %v9029 = vunpack.c.l.b16 %v9006
      %v9030 = vpack.c.b16 %v9023, %v9022
      %v9031 = vpack.c.b16 %v9025, %v9024
      %v9032 = vpack.c.b16 %v9027, %v9026
      %v9033 = vpack.c.b16 %v9029, %v9028
      %vm9038 = vcmask 523264
      %v9040 = vsel %vm9038, %v8967, 0
      %v9043 = vsel %vm9038, %v8968, 0
      %v9046 = vsel %vm9038, %v8969, 0
      %v9049 = vsel %vm9038, %v8970, 0
      %v9052 = vsel %vm9038, %v8971, 0
      %v9055 = vsel %vm9038, %v8972, 0
      %v9058 = vsel %vm9038, %v8973, 0
      %v9061 = vsel %vm9038, %v8974, 0
      %v9064 = vsel %vm9038, %v8975, 0
      %v9067 = vsel %vm9038, %v8976, 0
      %v9070 = vsel %vm9038, %v8977, 0
      %v9073 = vsel %vm9038, %v8978, 0
      %v9076 = vsel %vm9038, %v8979, 0
      %v9079 = vsel %vm9038, %v8980, 0
      %v9082 = vsel %vm9038, %v8981, 0
      %v9085 = vsel %vm9038, %v8982, 0
      %v9088 = vsel %vm9038, %v8983, 0
      %v9091 = vsel %vm9038, %v8984, 0
      %v9094 = vsel %vm9038, %v8985, 0
      %v9097 = vsel %vm9038, %v8986, 0
      %v9100 = vsel %vm9038, %v8987, 0
      %v9103 = vsel %vm9038, %v8988, 0
      %v9106 = vsel %vm9038, %v8989, 0
      %v9109 = vsel %vm9038, %v8990, 0
      %v9112 = vsel %vm9038, %v8991, 0
      %v9115 = vsel %vm9038, %v8992, 0
      %v9118 = vsel %vm9038, %v8993, 0
      %v9121 = vsel %vm9038, %v8994, 0
      %v9124 = vsel %vm9038, %v8995, 0
      %v9127 = vsel %vm9038, %v8996, 0
      %v9130 = vsel %vm9038, %v8997, 0
      %v9133 = vsel %vm9038, %v8998, 0
      %9135 = vmatprep.subr.bf16.mxu0 0
      %9136 = vmatpush1.bf16.msra.mxu0 %v9030
      %9137 = vmatprep.subr.bf16.mxu0 0
      %9138 = vmatpush1.bf16.msra.mxu0 %v9031
      %9139 = vmatprep.subr.bf16.mxu0 0
      %9140 = vmatpush1.bf16.msra.mxu0 %v9032
      %9141 = vmatprep.subr.bf16.mxu0 0
      %9142 = vmatpush1.bf16.msra.mxu0 %v9033
      %9143 = vmatprep.subr.bf16.mxu0 0
      %9144 = vmatpush1.bf16.msra.mxu0 0
      %9145 = vmatprep.subr.bf16.mxu0 0
      %9146 = vmatpush1.bf16.msra.mxu0 0
      %9147 = vmatprep.subr.bf16.mxu0 0
      %9148 = vmatpush1.bf16.msra.mxu0 0
      %9149 = vmatprep.subr.bf16.mxu0 0
      %9150 = vmatpush1.bf16.msra.mxu0 0
      %9151 = vmatprep.subr.bf16.mxu0 0
      %9152 = vmatpush1.bf16.msra.mxu0 0
      %9153 = vmatprep.subr.bf16.mxu0 0
      %9154 = vmatpush1.bf16.msra.mxu0 0
      %9155 = vmatprep.subr.bf16.mxu0 0
      %9156 = vmatpush1.bf16.msra.mxu0 0
      %9157 = vmatprep.subr.bf16.mxu0 0
      %9158 = vmatpush1.bf16.msra.mxu0 0
      %9159 = vmatprep.subr.bf16.mxu0 0
      %9160 = vmatpush1.bf16.msra.mxu0 0
      %9161 = vmatprep.subr.bf16.mxu0 0
      %9162 = vmatpush1.bf16.msra.mxu0 0
      %9163 = vmatprep.subr.bf16.mxu0 0
      %9164 = vmatpush1.bf16.msra.mxu0 0
      %9165 = vmatprep.subr.bf16.mxu0 0
      %9166 = vmatpush1.bf16.msra.mxu0 0
      %9167 = vmatprep.mubr.bf16.mxu0 0
      %9168 = vmatmul.mubr.bf16.gmra.mrb[0].mxu0 %v9040
      %v9169 = vpop.f32.mrb[0].mxu0
      %v9170 = vadd.f32 %v9012, %v9169
      %v9171 = vpop.f32.mrb[0].mxu0
      %v9172 = vpop.f32.mrb[0].mxu0
      %v9173 = vadd.f32 %v9012, %v9172
      %v9174 = vpop.f32.mrb[0].mxu0
      %9175 = vmatprep.mubr.bf16.mxu0 0
      %9176 = vmatmul.mubr.bf16.gmra.mrb[0].mxu0 %v9043
      %v9177 = vpop.f32.mrb[0].mxu0
      %v9178 = vadd.f32 %v9012, %v9177
      %v9179 = vpop.f32.mrb[0].mxu0
      %v9180 = vpop.f32.mrb[0].mxu0
      %v9181 = vadd.f32 %v9012, %v9180
      %v9182 = vpop.f32.mrb[0].mxu0
      %9183 = vmatprep.mubr.bf16.mxu0 0
      %9184 = vmatmul.mubr.bf16.gmra.mrb[0].mxu0 %v9046
      %v9185 = vpop.f32.mrb[0].mxu0
      %v9186 = vadd.f32 %v9012, %v9185
      %v9187 = vpop.f32.mrb[0].mxu0
      %v9188 = vpop.f32.mrb[0].mxu0
      %v9189 = vadd.f32 %v9012, %v9188
      %v9190 = vpop.f32.mrb[0].mxu0
      %9191 = vmatprep.mubr.bf16.mxu0 0
      %9192 = vmatmul.mubr.bf16.gmra.mrb[0].mxu0 %v9049
      %v9193 = vpop.f32.mrb[0].mxu0
      %v9194 = vadd.f32 %v9012, %v9193
      %v9195 = vpop.f32.mrb[0].mxu0
      %v9196 = vpop.f32.mrb[0].mxu0
      %v9197 = vadd.f32 %v9012, %v9196
      %v9198 = vpop.f32.mrb[0].mxu0
      %9199 = vmatprep.mubr.bf16.mxu0 0
      %9200 = vmatmul.mubr.bf16.gmra.mrb[0].mxu0 %v9052
      %v9201 = vpop.f32.mrb[0].mxu0
      %v9202 = vadd.f32 %v9012, %v9201
      %v9203 = vpop.f32.mrb[0].mxu0
      %v9204 = vpop.f32.mrb[0].mxu0
      %v9205 = vadd.f32 %v9012, %v9204
      %v9206 = vpop.f32.mrb[0].mxu0
      %9207 = vmatprep.mubr.bf16.mxu0 0
      %9208 = vmatmul.mubr.bf16.gmra.mrb[0].mxu0 %v9055
      %v9209 = vpop.f32.mrb[0].mxu0
      %v9210 = vadd.f32 %v9012, %v9209
      %v9211 = vpop.f32.mrb[0].mxu0
      %v9212 = vpop.f32.mrb[0].mxu0
      %v9213 = vadd.f32 %v9012, %v9212
      %v9214 = vpop.f32.mrb[0].mxu0
      %9215 = vmatprep.mubr.bf16.mxu0 0
      %9216 = vmatmul.mubr.bf16.gmra.mrb[0].mxu0 %v9058
      %v9217 = vpop.f32.mrb[0].mxu0
      %v9218 = vadd.f32 %v9012, %v9217
      %v9219 = vpop.f32.mrb[0].mxu0
      %v9220 = vpop.f32.mrb[0].mxu0
      %v9221 = vadd.f32 %v9012, %v9220
      %v9222 = vpop.f32.mrb[0].mxu0
      %9223 = vmatprep.mubr.bf16.mxu0 0
      %9224 = vmatmul.mubr.bf16.gmra.mrb[0].mxu0 %v9061
      %v9225 = vpop.f32.mrb[0].mxu0
      %v9226 = vadd.f32 %v9012, %v9225
      %v9227 = vpop.f32.mrb[0].mxu0
      %v9228 = vpop.f32.mrb[0].mxu0
      %v9229 = vadd.f32 %v9012, %v9228
      %v9230 = vpop.f32.mrb[0].mxu0
      %9231 = vmatprep.mubr.bf16.mxu0 0
      %9232 = vmatmul.mubr.bf16.gmra.mrb[0].mxu0 %v9064
      %v9233 = vpop.f32.mrb[0].mxu0
      %v9234 = vadd.f32 %v9012, %v9233
      %v9235 = vpop.f32.mrb[0].mxu0
      %v9236 = vpop.f32.mrb[0].mxu0
      %v9237 = vadd.f32 %v9012, %v9236
      %v9238 = vpop.f32.mrb[0].mxu0
      %9239 = vmatprep.mubr.bf16.mxu0 0
      %9240 = vmatmul.mubr.bf16.gmra.mrb[0].mxu0 %v9067
      %v9241 = vpop.f32.mrb[0].mxu0
      %v9242 = vadd.f32 %v9012, %v9241
      %v9243 = vpop.f32.mrb[0].mxu0
      %v9244 = vpop.f32.mrb[0].mxu0
      %v9245 = vadd.f32 %v9012, %v9244
      %v9246 = vpop.f32.mrb[0].mxu0
      %9247 = vmatprep.mubr.bf16.mxu0 0
      %9248 = vmatmul.mubr.bf16.gmra.mrb[0].mxu0 %v9070
      %v9249 = vpop.f32.mrb[0].mxu0
      %v9250 = vadd.f32 %v9012, %v9249
      %v9251 = vpop.f32.mrb[0].mxu0
      %v9252 = vpop.f32.mrb[0].mxu0
      %v9253 = vadd.f32 %v9012, %v9252
      %v9254 = vpop.f32.mrb[0].mxu0
      %9255 = vmatprep.mubr.bf16.mxu0 0
      %9256 = vmatmul.mubr.bf16.gmra.mrb[0].mxu0 %v9073
      %v9257 = vpop.f32.mrb[0].mxu0
      %v9258 = vadd.f32 %v9012, %v9257
      %v9259 = vpop.f32.mrb[0].mxu0
      %v9260 = vpop.f32.mrb[0].mxu0
      %v9261 = vadd.f32 %v9012, %v9260
      %v9262 = vpop.f32.mrb[0].mxu0
      %9263 = vmatprep.mubr.bf16.mxu0 0
      %9264 = vmatmul.mubr.bf16.gmra.mrb[0].mxu0 %v9076
      %v9265 = vpop.f32.mrb[0].mxu0
      %v9266 = vadd.f32 %v9012, %v9265
      %v9267 = vpop.f32.mrb[0].mxu0
      %v9268 = vpop.f32.mrb[0].mxu0
      %v9269 = vadd.f32 %v9012, %v9268
      %v9270 = vpop.f32.mrb[0].mxu0
      %9271 = vmatprep.mubr.bf16.mxu0 0
      %9272 = vmatmul.mubr.bf16.gmra.mrb[0].mxu0 %v9079
      %v9273 = vpop.f32.mrb[0].mxu0
      %v9274 = vadd.f32 %v9012, %v9273
      %v9275 = vpop.f32.mrb[0].mxu0
      %v9276 = vpop.f32.mrb[0].mxu0
      %v9277 = vadd.f32 %v9012, %v9276
      %v9278 = vpop.f32.mrb[0].mxu0
      %9279 = vmatprep.mubr.bf16.mxu0 0
      %9280 = vmatmul.mubr.bf16.gmra.mrb[0].mxu0 %v9082
      %v9281 = vpop.f32.mrb[0].mxu0
      %v9282 = vadd.f32 %v9012, %v9281
      %v9283 = vpop.f32.mrb[0].mxu0
      %v9284 = vpop.f32.mrb[0].mxu0
      %v9285 = vadd.f32 %v9012, %v9284
      %v9286 = vpop.f32.mrb[0].mxu0
      %9287 = vmatprep.mubr.bf16.mxu0 0
      %9288 = vmatmul.mubr.bf16.gmra.mrb[0].mxu0 %v9085
      %v9289 = vpop.f32.mrb[0].mxu0
      %v9290 = vadd.f32 %v9012, %v9289
      %v9291 = vpop.f32.mrb[0].mxu0
      %v9292 = vpop.f32.mrb[0].mxu0
      %v9293 = vadd.f32 %v9012, %v9292
      %v9294 = vpop.f32.mrb[0].mxu0
      %9295 = vmatprep.mubr.bf16.mxu0 0
      %9296 = vmatmul.mubr.bf16.gmra.mrb[0].mxu0 %v9088
      %v9297 = vpop.f32.mrb[0].mxu0
      %v9298 = vadd.f32 %v9012, %v9297
      %v9299 = vpop.f32.mrb[0].mxu0
      %v9300 = vpop.f32.mrb[0].mxu0
      %v9301 = vadd.f32 %v9012, %v9300
      %v9302 = vpop.f32.mrb[0].mxu0
      %9303 = vmatprep.mubr.bf16.mxu0 0
      %9304 = vmatmul.mubr.bf16.gmra.mrb[0].mxu0 %v9091
      %v9305 = vpop.f32.mrb[0].mxu0
      %v9306 = vadd.f32 %v9012, %v9305
      %v9307 = vpop.f32.mrb[0].mxu0
      %v9308 = vpop.f32.mrb[0].mxu0
      %v9309 = vadd.f32 %v9012, %v9308
      %v9310 = vpop.f32.mrb[0].mxu0
      %9311 = vmatprep.mubr.bf16.mxu0 0
      %9312 = vmatmul.mubr.bf16.gmra.mrb[0].mxu0 %v9094
      %v9313 = vpop.f32.mrb[0].mxu0
      %v9314 = vadd.f32 %v9012, %v9313
      %v9315 = vpop.f32.mrb[0].mxu0
      %v9316 = vpop.f32.mrb[0].mxu0
      %v9317 = vadd.f32 %v9012, %v9316
      %v9318 = vpop.f32.mrb[0].mxu0
      %9319 = vmatprep.mubr.bf16.mxu0 0
      %9320 = vmatmul.mubr.bf16.gmra.mrb[0].mxu0 %v9097
      %v9321 = vpop.f32.mrb[0].mxu0
      %v9322 = vadd.f32 %v9012, %v9321
      %v9323 = vpop.f32.mrb[0].mxu0
      %v9324 = vpop.f32.mrb[0].mxu0
      %v9325 = vadd.f32 %v9012, %v9324
      %v9326 = vpop.f32.mrb[0].mxu0
      %9327 = vmatprep.mubr.bf16.mxu0 0
      %9328 = vmatmul.mubr.bf16.gmra.mrb[0].mxu0 %v9100
      %v9329 = vpop.f32.mrb[0].mxu0
      %v9330 = vadd.f32 %v9012, %v9329
      %v9331 = vpop.f32.mrb[0].mxu0
      %v9332 = vpop.f32.mrb[0].mxu0
      %v9333 = vadd.f32 %v9012, %v9332
      %v9334 = vpop.f32.mrb[0].mxu0
      %9335 = vmatprep.mubr.bf16.mxu0 0
      %9336 = vmatmul.mubr.bf16.gmra.mrb[0].mxu0 %v9103
      %v9337 = vpop.f32.mrb[0].mxu0
      %v9338 = vadd.f32 %v9012, %v9337
      %v9339 = vpop.f32.mrb[0].mxu0
      %v9340 = vpop.f32.mrb[0].mxu0
      %v9341 = vadd.f32 %v9012, %v9340
      %v9342 = vpop.f32.mrb[0].mxu0
      %9343 = vmatprep.mubr.bf16.mxu0 0
      %9344 = vmatmul.mubr.bf16.gmra.mrb[0].mxu0 %v9106
      %v9345 = vpop.f32.mrb[0].mxu0
      %v9346 = vadd.f32 %v9012, %v9345
      %v9347 = vpop.f32.mrb[0].mxu0
      %v9348 = vpop.f32.mrb[0].mxu0
      %v9349 = vadd.f32 %v9012, %v9348
      %v9350 = vpop.f32.mrb[0].mxu0
      %9351 = vmatprep.mubr.bf16.mxu0 0
      %9352 = vmatmul.mubr.bf16.gmra.mrb[0].mxu0 %v9109
      %v9353 = vpop.f32.mrb[0].mxu0
      %v9354 = vadd.f32 %v9012, %v9353
      %v9355 = vpop.f32.mrb[0].mxu0
      %v9356 = vpop.f32.mrb[0].mxu0
      %v9357 = vadd.f32 %v9012, %v9356
      %v9358 = vpop.f32.mrb[0].mxu0
      %9359 = vmatprep.mubr.bf16.mxu0 0
      %9360 = vmatmul.mubr.bf16.gmra.mrb[0].mxu0 %v9112
      %v9361 = vpop.f32.mrb[0].mxu0
      %v9362 = vadd.f32 %v9012, %v9361
      %v9363 = vpop.f32.mrb[0].mxu0
      %v9364 = vpop.f32.mrb[0].mxu0
      %v9365 = vadd.f32 %v9012, %v9364
      %v9366 = vpop.f32.mrb[0].mxu0
      %9367 = vmatprep.mubr.bf16.mxu0 0
      %9368 = vmatmul.mubr.bf16.gmra.mrb[0].mxu0 %v9115
      %v9369 = vpop.f32.mrb[0].mxu0
      %v9370 = vadd.f32 %v9012, %v9369
      %v9371 = vpop.f32.mrb[0].mxu0
      %v9372 = vpop.f32.mrb[0].mxu0
      %v9373 = vadd.f32 %v9012, %v9372
      %v9374 = vpop.f32.mrb[0].mxu0
      %9375 = vmatprep.mubr.bf16.mxu0 0
      %9376 = vmatmul.mubr.bf16.gmra.mrb[0].mxu0 %v9118
      %v9377 = vpop.f32.mrb[0].mxu0
      %v9378 = vadd.f32 %v9012, %v9377
      %v9379 = vpop.f32.mrb[0].mxu0
      %v9380 = vpop.f32.mrb[0].mxu0
      %v9381 = vadd.f32 %v9012, %v9380
      %v9382 = vpop.f32.mrb[0].mxu0
      %9383 = vmatprep.mubr.bf16.mxu0 0
      %9384 = vmatmul.mubr.bf16.gmra.mrb[0].mxu0 %v9121
      %v9385 = vpop.f32.mrb[0].mxu0
      %v9386 = vadd.f32 %v9012, %v9385
      %v9387 = vpop.f32.mrb[0].mxu0
      %v9388 = vpop.f32.mrb[0].mxu0
      %v9389 = vadd.f32 %v9012, %v9388
      %v9390 = vpop.f32.mrb[0].mxu0
      %9391 = vmatprep.mubr.bf16.mxu0 0
      %9392 = vmatmul.mubr.bf16.gmra.mrb[0].mxu0 %v9124
      %v9393 = vpop.f32.mrb[0].mxu0
      %v9394 = vadd.f32 %v9012, %v9393
      %v9395 = vpop.f32.mrb[0].mxu0
      %v9396 = vpop.f32.mrb[0].mxu0
      %v9397 = vadd.f32 %v9012, %v9396
      %v9398 = vpop.f32.mrb[0].mxu0
      %9399 = vmatprep.mubr.bf16.mxu0 0
      %9400 = vmatmul.mubr.bf16.gmra.mrb[0].mxu0 %v9127
      %v9401 = vpop.f32.mrb[0].mxu0
      %v9402 = vadd.f32 %v9012, %v9401
      %v9403 = vpop.f32.mrb[0].mxu0
      %v9404 = vpop.f32.mrb[0].mxu0
      %v9405 = vadd.f32 %v9012, %v9404
      %v9406 = vpop.f32.mrb[0].mxu0
      %9407 = vmatprep.mubr.bf16.mxu0 0
      %9408 = vmatmul.mubr.bf16.gmra.mrb[0].mxu0 %v9130
      %v9409 = vpop.f32.mrb[0].mxu0
      %v9410 = vadd.f32 %v9012, %v9409
      %v9411 = vpop.f32.mrb[0].mxu0
      %v9412 = vpop.f32.mrb[0].mxu0
      %v9413 = vadd.f32 %v9012, %v9412
      %v9414 = vpop.f32.mrb[0].mxu0
      %9415 = vmatprep.mubr.bf16.mxu0 0
      %9416 = vmatmul.mubr.bf16.gmra.mrb[0].mxu0 %v9133
      %v9417 = vpop.f32.mrb[0].mxu0
      %v9418 = vadd.f32 %v9012, %v9417
      %v9419 = vpop.f32.mrb[0].mxu0
      %v9420 = vpop.f32.mrb[0].mxu0
      %v9421 = vadd.f32 %v9012, %v9420
      %v9422 = vpop.f32.mrb[0].mxu0
      %9423 = vdwg.mxu0
      %v9424 = vmax.f32 %v9170, 0.0
      %v9425 = vmax.f32 %v9173, 0.0
      %v9426 = vmax.f32 %v9178, 0.0
      %v9427 = vmax.f32 %v9181, 0.0
      %v9428 = vmax.f32 %v9186, 0.0
      %v9429 = vmax.f32 %v9189, 0.0
      %v9430 = vmax.f32 %v9194, 0.0
      %v9431 = vmax.f32 %v9197, 0.0
      %v9432 = vmax.f32 %v9202, 0.0
      %v9433 = vmax.f32 %v9205, 0.0
      %v9434 = vmax.f32 %v9210, 0.0
      %v9435 = vmax.f32 %v9213, 0.0
      %v9436 = vmax.f32 %v9218, 0.0
      %v9437 = vmax.f32 %v9221, 0.0
      %v9438 = vmax.f32 %v9226, 0.0
      %v9439 = vmax.f32 %v9229, 0.0
      %v9440 = vmax.f32 %v9234, 0.0
      %v9441 = vmax.f32 %v9237, 0.0
      %v9442 = vmax.f32 %v9242, 0.0
      %v9443 = vmax.f32 %v9245, 0.0
      %v9444 = vmax.f32 %v9250, 0.0
      %v9445 = vmax.f32 %v9253, 0.0
      %v9446 = vmax.f32 %v9258, 0.0
      %v9447 = vmax.f32 %v9261, 0.0
      %v9448 = vmax.f32 %v9266, 0.0
      %v9449 = vmax.f32 %v9269, 0.0
      %v9450 = vmax.f32 %v9274, 0.0
      %v9451 = vmax.f32 %v9277, 0.0
      %v9452 = vmax.f32 %v9282, 0.0
      %v9453 = vmax.f32 %v9285, 0.0
      %v9454 = vmax.f32 %v9290, 0.0
      %v9455 = vmax.f32 %v9293, 0.0
      %v9456 = vmax.f32 %v9298, 0.0
      %v9457 = vmax.f32 %v9301, 0.0
      %v9458 = vmax.f32 %v9306, 0.0
      %v9459 = vmax.f32 %v9309, 0.0
      %v9460 = vmax.f32 %v9314, 0.0
      %v9461 = vmax.f32 %v9317, 0.0
      %v9462 = vmax.f32 %v9322, 0.0
      %v9463 = vmax.f32 %v9325, 0.0
      %v9464 = vmax.f32 %v9330, 0.0
      %v9465 = vmax.f32 %v9333, 0.0
      %v9466 = vmax.f32 %v9338, 0.0
      %v9467 = vmax.f32 %v9341, 0.0
      %v9468 = vmax.f32 %v9346, 0.0
      %v9469 = vmax.f32 %v9349, 0.0
      %v9470 = vmax.f32 %v9354, 0.0
      %v9471 = vmax.f32 %v9357, 0.0
      %v9472 = vmax.f32 %v9362, 0.0
      %v9473 = vmax.f32 %v9365, 0.0
      %v9474 = vmax.f32 %v9370, 0.0
      %v9475 = vmax.f32 %v9373, 0.0
      %v9476 = vmax.f32 %v9378, 0.0
      %v9477 = vmax.f32 %v9381, 0.0
      %v9478 = vmax.f32 %v9386, 0.0
      %v9479 = vmax.f32 %v9389, 0.0
      %v9480 = vmax.f32 %v9394, 0.0
      %v9481 = vmax.f32 %v9397, 0.0
      %v9482 = vmax.f32 %v9402, 0.0
      %v9483 = vmax.f32 %v9405, 0.0
      %v9484 = vmax.f32 %v9410, 0.0
      %v9485 = vmax.f32 %v9413, 0.0
      %v9486 = vmax.f32 %v9418, 0.0
      %v9487 = vmax.f32 %v9421, 0.0
      %v9488 = vpack.c.bf16 %v9425, %v9424
      %v9489 = vpack.c.bf16 %v9427, %v9426
      %v9490 = vpack.c.bf16 %v9429, %v9428
      %v9491 = vpack.c.bf16 %v9431, %v9430
      %v9492 = vpack.c.bf16 %v9433, %v9432
      %v9493 = vpack.c.bf16 %v9435, %v9434
      %v9494 = vpack.c.bf16 %v9437, %v9436
      %v9495 = vpack.c.bf16 %v9439, %v9438
      %v9496 = vpack.c.bf16 %v9441, %v9440
      %v9497 = vpack.c.bf16 %v9443, %v9442
      %v9498 = vpack.c.bf16 %v9445, %v9444
      %v9499 = vpack.c.bf16 %v9447, %v9446
      %v9500 = vpack.c.bf16 %v9449, %v9448
      %v9501 = vpack.c.bf16 %v9451, %v9450
      %v9502 = vpack.c.bf16 %v9453, %v9452
      %v9503 = vpack.c.bf16 %v9455, %v9454
      %v9504 = vpack.c.bf16 %v9457, %v9456
      %v9505 = vpack.c.bf16 %v9459, %v9458
      %v9506 = vpack.c.bf16 %v9461, %v9460
      %v9507 = vpack.c.bf16 %v9463, %v9462
      %v9508 = vpack.c.bf16 %v9465, %v9464
      %v9509 = vpack.c.bf16 %v9467, %v9466
      %v9510 = vpack.c.bf16 %v9469, %v9468
      %v9511 = vpack.c.bf16 %v9471, %v9470
      %v9512 = vpack.c.bf16 %v9473, %v9472
      %v9513 = vpack.c.bf16 %v9475, %v9474
      %v9514 = vpack.c.bf16 %v9477, %v9476
      %v9515 = vpack.c.bf16 %v9479, %v9478
      %v9516 = vpack.c.bf16 %v9481, %v9480
      %v9517 = vpack.c.bf16 %v9483, %v9482
      %v9518 = vpack.c.bf16 %v9485, %v9484
      %v9519 = vpack.c.bf16 %v9487, %v9486
      %v9520 = vld [vmem:[%s9] sm:$0xf]
      %v9521 = vld [vmem:[%s9 + $0x4] sm:$0xf]
      %v9522 = vld [vmem:[%s9 + $0x8] sm:$0xf]
      %v9523 = vld [vmem:[%s9 + $0xc] sm:$0xf]
      %v9524 = vld [vmem:[%s9 + $0x10] sm:$0xf]
      %v9525 = vld [vmem:[%s9 + $0x14] sm:$0xf]
      %v9526 = vld [vmem:[%s9 + $0x18] sm:$0xf]
      %v9527 = vld [vmem:[%s9 + $0x1c] sm:$0xf]
      %v9536 = vunpack.c.l.b16 %v9520
      %v9537 = vunpack.c.l.b16 %v9521
      %v9538 = vunpack.c.l.b16 %v9522
      %v9539 = vunpack.c.l.b16 %v9523
      %v9540 = vunpack.c.l.b16 %v9524
      %v9541 = vunpack.c.l.b16 %v9525
      %v9542 = vunpack.c.l.b16 %v9526
      %v9543 = vunpack.c.l.b16 %v9527
      %v9544 = vpack.c.b16 %v9537, %v9536
      %v9545 = vpack.c.b16 %v9539, %v9538
      %v9546 = vpack.c.b16 %v9541, %v9540
      %v9547 = vpack.c.b16 %v9543, %v9542
      %9616 = vrot.lane.b32.xlu0 %v8839, 64
      %v9617 = vpop.permute.xlu0 %9616
      %9618 = vrot.lane.b32.xlu0 %v8840, 64
      %v9619 = vpop.permute.xlu0 %9618
      %9620 = vrot.lane.b32.xlu0 %v8841, 64
      %v9621 = vpop.permute.xlu0 %9620
      %9622 = vrot.lane.b32.xlu0 %v8842, 64
      %v9623 = vpop.permute.xlu0 %9622
      %9624 = vrot.lane.b32.xlu0 %v8843, 64
      %v9625 = vpop.permute.xlu0 %9624
      %9626 = vrot.lane.b32.xlu0 %v8844, 64
      %v9627 = vpop.permute.xlu0 %9626
      %9628 = vrot.lane.b32.xlu0 %v8845, 64
      %v9629 = vpop.permute.xlu0 %9628
      %9630 = vrot.lane.b32.xlu0 %v8846, 64
      %v9631 = vpop.permute.xlu0 %9630
      %9632 = vrot.lane.b32.xlu0 %v8847, 64
      %v9633 = vpop.permute.xlu0 %9632
      %9634 = vrot.lane.b32.xlu0 %v8848, 64
      %v9635 = vpop.permute.xlu0 %9634
      %9636 = vrot.lane.b32.xlu0 %v8849, 64
      %v9637 = vpop.permute.xlu0 %9636
      %9638 = vrot.lane.b32.xlu0 %v8850, 64
      %v9639 = vpop.permute.xlu0 %9638
      %9640 = vrot.lane.b32.xlu0 %v8851, 64
      %v9641 = vpop.permute.xlu0 %9640
      %9642 = vrot.lane.b32.xlu0 %v8852, 64
      %v9643 = vpop.permute.xlu0 %9642
      %9644 = vrot.lane.b32.xlu0 %v8853, 64
      %v9645 = vpop.permute.xlu0 %9644
      %9646 = vrot.lane.b32.xlu0 %v8854, 64
      %v9647 = vpop.permute.xlu0 %9646
      %9648 = vrot.lane.b32.xlu0 %v8855, 64
      %v9649 = vpop.permute.xlu0 %9648
      %9650 = vrot.lane.b32.xlu0 %v8856, 64
      %v9651 = vpop.permute.xlu0 %9650
      %9652 = vrot.lane.b32.xlu0 %v8857, 64
      %v9653 = vpop.permute.xlu0 %9652
      %9654 = vrot.lane.b32.xlu0 %v8858, 64
      %v9655 = vpop.permute.xlu0 %9654
      %9656 = vrot.lane.b32.xlu0 %v8859, 64
      %v9657 = vpop.permute.xlu0 %9656
      %9658 = vrot.lane.b32.xlu0 %v8860, 64
      %v9659 = vpop.permute.xlu0 %9658
      %9660 = vrot.lane.b32.xlu0 %v8861, 64
      %v9661 = vpop.permute.xlu0 %9660
      %9662 = vrot.lane.b32.xlu0 %v8862, 64
      %v9663 = vpop.permute.xlu0 %9662
      %9664 = vrot.lane.b32.xlu0 %v8863, 64
      %v9665 = vpop.permute.xlu0 %9664
      %9666 = vrot.lane.b32.xlu0 %v8864, 64
      %v9667 = vpop.permute.xlu0 %9666
      %9668 = vrot.lane.b32.xlu0 %v8865, 64
      %v9669 = vpop.permute.xlu0 %9668
      %9670 = vrot.lane.b32.xlu0 %v8866, 64
      %v9671 = vpop.permute.xlu0 %9670
      %9672 = vrot.lane.b32.xlu0 %v8867, 64
      %v9673 = vpop.permute.xlu0 %9672
      %9674 = vrot.lane.b32.xlu0 %v8868, 64
      %v9675 = vpop.permute.xlu0 %9674
      %9676 = vrot.lane.b32.xlu0 %v8869, 64
      %v9677 = vpop.permute.xlu0 %9676
      %9678 = vrot.lane.b32.xlu0 %v8870, 64
      %v9679 = vpop.permute.xlu0 %9678
      %9680 = vrot.lane.b32.xlu0 %v8871, 64
      %v9681 = vpop.permute.xlu0 %9680
      %9682 = vrot.lane.b32.xlu0 %v8872, 64
      %v9683 = vpop.permute.xlu0 %9682
      %9684 = vrot.lane.b32.xlu0 %v8873, 64
      %v9685 = vpop.permute.xlu0 %9684
      %9686 = vrot.lane.b32.xlu0 %v8874, 64
      %v9687 = vpop.permute.xlu0 %9686
      %9688 = vrot.lane.b32.xlu0 %v8875, 64
      %v9689 = vpop.permute.xlu0 %9688
      %9690 = vrot.lane.b32.xlu0 %v8876, 64
      %v9691 = vpop.permute.xlu0 %9690
      %9692 = vrot.lane.b32.xlu0 %v8877, 64
      %v9693 = vpop.permute.xlu0 %9692
      %9694 = vrot.lane.b32.xlu0 %v8878, 64
      %v9695 = vpop.permute.xlu0 %9694
      %9696 = vrot.lane.b32.xlu0 %v8879, 64
      %v9697 = vpop.permute.xlu0 %9696
      %9698 = vrot.lane.b32.xlu0 %v8880, 64
      %v9699 = vpop.permute.xlu0 %9698
      %9700 = vrot.lane.b32.xlu0 %v8881, 64
      %v9701 = vpop.permute.xlu0 %9700
      %9702 = vrot.lane.b32.xlu0 %v8882, 64
      %v9703 = vpop.permute.xlu0 %9702
      %9704 = vrot.lane.b32.xlu0 %v8883, 64
      %v9705 = vpop.permute.xlu0 %9704
      %9706 = vrot.lane.b32.xlu0 %v8884, 64
      %v9707 = vpop.permute.xlu0 %9706
      %9708 = vrot.lane.b32.xlu0 %v8885, 64
      %v9709 = vpop.permute.xlu0 %9708
      %9710 = vrot.lane.b32.xlu0 %v8886, 64
      %v9711 = vpop.permute.xlu0 %9710
      %9712 = vrot.lane.b32.xlu0 %v8887, 64
      %v9713 = vpop.permute.xlu0 %9712
      %9714 = vrot.lane.b32.xlu0 %v8888, 64
      %v9715 = vpop.permute.xlu0 %9714
      %9716 = vrot.lane.b32.xlu0 %v8889, 64
      %v9717 = vpop.permute.xlu0 %9716
      %9718 = vrot.lane.b32.xlu0 %v8890, 64
      %v9719 = vpop.permute.xlu0 %9718
      %9720 = vrot.lane.b32.xlu0 %v8891, 64
      %v9721 = vpop.permute.xlu0 %9720
      %9722 = vrot.lane.b32.xlu0 %v8892, 64
      %v9723 = vpop.permute.xlu0 %9722
      %9724 = vrot.lane.b32.xlu0 %v8893, 64
      %v9725 = vpop.permute.xlu0 %9724
      %9726 = vrot.lane.b32.xlu0 %v8894, 64
      %v9727 = vpop.permute.xlu0 %9726
      %9728 = vrot.lane.b32.xlu0 %v8895, 64
      %v9729 = vpop.permute.xlu0 %9728
      %9730 = vrot.lane.b32.xlu0 %v8896, 64
      %v9731 = vpop.permute.xlu0 %9730
      %9732 = vrot.lane.b32.xlu0 %v8897, 64
      %v9733 = vpop.permute.xlu0 %9732
      %9734 = vrot.lane.b32.xlu0 %v8898, 64
      %v9735 = vpop.permute.xlu0 %9734
      %9736 = vrot.lane.b32.xlu0 %v8899, 64
      %v9737 = vpop.permute.xlu0 %9736
      %9738 = vrot.lane.b32.xlu0 %v8900, 64
      %v9739 = vpop.permute.xlu0 %9738
      %9740 = vrot.lane.b32.xlu0 %v8901, 64
      %v9741 = vpop.permute.xlu0 %9740
      %9742 = vrot.lane.b32.xlu0 %v8902, 64
      %v9743 = vpop.permute.xlu0 %9742
      %v9809 = vsel %vm9038, %v9488, 0
      %v9812 = vsel %vm9038, %v9489, 0
      %v9815 = vsel %vm9038, %v9490, 0
      %v9818 = vsel %vm9038, %v9491, 0
      %v9821 = vsel %vm9038, %v9492, 0
      %v9824 = vsel %vm9038, %v9493, 0
      %v9827 = vsel %vm9038, %v9494, 0
      %v9830 = vsel %vm9038, %v9495, 0
      %v9833 = vsel %vm9038, %v9496, 0
      %v9836 = vsel %vm9038, %v9497, 0
      %v9839 = vsel %vm9038, %v9498, 0
      %v9842 = vsel %vm9038, %v9499, 0
      %v9845 = vsel %vm9038, %v9500, 0
      %v9848 = vsel %vm9038, %v9501, 0
      %v9851 = vsel %vm9038, %v9502, 0
      %v9854 = vsel %vm9038, %v9503, 0
      %v9857 = vsel %vm9038, %v9504, 0
      %v9860 = vsel %vm9038, %v9505, 0
      %v9863 = vsel %vm9038, %v9506, 0
      %v9866 = vsel %vm9038, %v9507, 0
      %v9869 = vsel %vm9038, %v9508, 0
      %v9872 = vsel %vm9038, %v9509, 0
      %v9875 = vsel %vm9038, %v9510, 0
      %v9878 = vsel %vm9038, %v9511, 0
      %v9881 = vsel %vm9038, %v9512, 0
      %v9884 = vsel %vm9038, %v9513, 0
      %v9887 = vsel %vm9038, %v9514, 0
      %v9890 = vsel %vm9038, %v9515, 0
      %v9893 = vsel %vm9038, %v9516, 0
      %v9896 = vsel %vm9038, %v9517, 0
      %v9899 = vsel %vm9038, %v9518, 0
      %v9902 = vsel %vm9038, %v9519, 0
      %9904 = vmatprep.subr.bf16.mxu0 0
      %9905 = vmatpush1.bf16.msra.mxu0 %v9544
      %9906 = vmatprep.subr.bf16.mxu0 0
      %9907 = vmatpush1.bf16.msra.mxu0 %v9545
      %9908 = vmatprep.subr.bf16.mxu0 0
      %9909 = vmatpush1.bf16.msra.mxu0 %v9546
      %9910 = vmatprep.subr.bf16.mxu0 0
      %9911 = vmatpush1.bf16.msra.mxu0 %v9547
      %9912 = vmatprep.subr.bf16.mxu0 0
      %9913 = vmatpush1.bf16.msra.mxu0 0
      %9914 = vmatprep.subr.bf16.mxu0 0
      %9915 = vmatpush1.bf16.msra.mxu0 0
      %9916 = vmatprep.subr.bf16.mxu0 0
      %9917 = vmatpush1.bf16.msra.mxu0 0
      %9918 = vmatprep.subr.bf16.mxu0 0
      %9919 = vmatpush1.bf16.msra.mxu0 0
      %9920 = vmatprep.subr.bf16.mxu0 0
      %9921 = vmatpush1.bf16.msra.mxu0 0
      %9922 = vmatprep.subr.bf16.mxu0 0
      %9923 = vmatpush1.bf16.msra.mxu0 0
      %9924 = vmatprep.subr.bf16.mxu0 0
      %9925 = vmatpush1.bf16.msra.mxu0 0
      %9926 = vmatprep.subr.bf16.mxu0 0
      %9927 = vmatpush1.bf16.msra.mxu0 0
      %9928 = vmatprep.subr.bf16.mxu0 0
      %9929 = vmatpush1.bf16.msra.mxu0 0
      %9930 = vmatprep.subr.bf16.mxu0 0
      %9931 = vmatpush1.bf16.msra.mxu0 0
      %9932 = vmatprep.subr.bf16.mxu0 0
      %9933 = vmatpush1.bf16.msra.mxu0 0
      %9934 = vmatprep.subr.bf16.mxu0 0
      %9935 = vmatpush1.bf16.msra.mxu0 0
      %9936 = vmatprep.mubr.bf16.mxu0 0
      %9937 = vmatmul.mubr.bf16.gmra.mrb[0].mxu0 %v9809
      %v9938 = vpop.f32.mrb[0].mxu0
      %v9939 = vadd.f32 %v9617, %v9938
      %v9940 = vpop.f32.mrb[0].mxu0
      %v9941 = vpop.f32.mrb[0].mxu0
      %v9942 = vadd.f32 %v9619, %v9941
      %v9943 = vpop.f32.mrb[0].mxu0
      %9944 = vmatprep.mubr.bf16.mxu0 0
      %9945 = vmatmul.mubr.bf16.gmra.mrb[0].mxu0 %v9812
      %v9946 = vpop.f32.mrb[0].mxu0
      %v9947 = vadd.f32 %v9621, %v9946
      %v9948 = vpop.f32.mrb[0].mxu0
      %v9949 = vpop.f32.mrb[0].mxu0
      %v9950 = vadd.f32 %v9623, %v9949
      %v9951 = vpop.f32.mrb[0].mxu0
      %9952 = vmatprep.mubr.bf16.mxu0 0
      %9953 = vmatmul.mubr.bf16.gmra.mrb[0].mxu0 %v9815
      %v9954 = vpop.f32.mrb[0].mxu0
      %v9955 = vadd.f32 %v9625, %v9954
      %v9956 = vpop.f32.mrb[0].mxu0
      %v9957 = vpop.f32.mrb[0].mxu0
      %v9958 = vadd.f32 %v9627, %v9957
      %v9959 = vpop.f32.mrb[0].mxu0
      %9960 = vmatprep.mubr.bf16.mxu0 0
      %9961 = vmatmul.mubr.bf16.gmra.mrb[0].mxu0 %v9818
      %v9962 = vpop.f32.mrb[0].mxu0
      %v9963 = vadd.f32 %v9629, %v9962
      %v9964 = vpop.f32.mrb[0].mxu0
      %v9965 = vpop.f32.mrb[0].mxu0
      %v9966 = vadd.f32 %v9631, %v9965
      %v9967 = vpop.f32.mrb[0].mxu0
      %9968 = vmatprep.mubr.bf16.mxu0 0
      %9969 = vmatmul.mubr.bf16.gmra.mrb[0].mxu0 %v9821
      %v9970 = vpop.f32.mrb[0].mxu0
      %v9971 = vadd.f32 %v9633, %v9970
      %v9972 = vpop.f32.mrb[0].mxu0
      %v9973 = vpop.f32.mrb[0].mxu0
      %v9974 = vadd.f32 %v9635, %v9973
      %v9975 = vpop.f32.mrb[0].mxu0
      %9976 = vmatprep.mubr.bf16.mxu0 0
      %9977 = vmatmul.mubr.bf16.gmra.mrb[0].mxu0 %v9824
      %v9978 = vpop.f32.mrb[0].mxu0
      %v9979 = vadd.f32 %v9637, %v9978
      %v9980 = vpop.f32.mrb[0].mxu0
      %v9981 = vpop.f32.mrb[0].mxu0
      %v9982 = vadd.f32 %v9639, %v9981
      %v9983 = vpop.f32.mrb[0].mxu0
      %9984 = vmatprep.mubr.bf16.mxu0 0
      %9985 = vmatmul.mubr.bf16.gmra.mrb[0].mxu0 %v9827
      %v9986 = vpop.f32.mrb[0].mxu0
      %v9987 = vadd.f32 %v9641, %v9986
      %v9988 = vpop.f32.mrb[0].mxu0
      %v9989 = vpop.f32.mrb[0].mxu0
      %v9990 = vadd.f32 %v9643, %v9989
      %v9991 = vpop.f32.mrb[0].mxu0
      %9992 = vmatprep.mubr.bf16.mxu0 0
      %9993 = vmatmul.mubr.bf16.gmra.mrb[0].mxu0 %v9830
      %v9994 = vpop.f32.mrb[0].mxu0
      %v9995 = vadd.f32 %v9645, %v9994
      %v9996 = vpop.f32.mrb[0].mxu0
      %v9997 = vpop.f32.mrb[0].mxu0
      %v9998 = vadd.f32 %v9647, %v9997
      %v9999 = vpop.f32.mrb[0].mxu0
      %10000 = vmatprep.mubr.bf16.mxu0 0
      %10001 = vmatmul.mubr.bf16.gmra.mrb[0].mxu0 %v9833
      %v10002 = vpop.f32.mrb[0].mxu0
      %v10003 = vadd.f32 %v9649, %v10002
      %v10004 = vpop.f32.mrb[0].mxu0
      %v10005 = vpop.f32.mrb[0].mxu0
      %v10006 = vadd.f32 %v9651, %v10005
      %v10007 = vpop.f32.mrb[0].mxu0
      %10008 = vmatprep.mubr.bf16.mxu0 0
      %10009 = vmatmul.mubr.bf16.gmra.mrb[0].mxu0 %v9836
      %v10010 = vpop.f32.mrb[0].mxu0
      %v10011 = vadd.f32 %v9653, %v10010
      %v10012 = vpop.f32.mrb[0].mxu0
      %v10013 = vpop.f32.mrb[0].mxu0
      %v10014 = vadd.f32 %v9655, %v10013
      %v10015 = vpop.f32.mrb[0].mxu0
      %10016 = vmatprep.mubr.bf16.mxu0 0
      %10017 = vmatmul.mubr.bf16.gmra.mrb[0].mxu0 %v9839
      %v10018 = vpop.f32.mrb[0].mxu0
      %v10019 = vadd.f32 %v9657, %v10018
      %v10020 = vpop.f32.mrb[0].mxu0
      %v10021 = vpop.f32.mrb[0].mxu0
      %v10022 = vadd.f32 %v9659, %v10021
      %v10023 = vpop.f32.mrb[0].mxu0
      %10024 = vmatprep.mubr.bf16.mxu0 0
      %10025 = vmatmul.mubr.bf16.gmra.mrb[0].mxu0 %v9842
      %v10026 = vpop.f32.mrb[0].mxu0
      %v10027 = vadd.f32 %v9661, %v10026
      %v10028 = vpop.f32.mrb[0].mxu0
      %v10029 = vpop.f32.mrb[0].mxu0
      %v10030 = vadd.f32 %v9663, %v10029
      %v10031 = vpop.f32.mrb[0].mxu0
      %10032 = vmatprep.mubr.bf16.mxu0 0
      %10033 = vmatmul.mubr.bf16.gmra.mrb[0].mxu0 %v9845
      %v10034 = vpop.f32.mrb[0].mxu0
      %v10035 = vadd.f32 %v9665, %v10034
      %v10036 = vpop.f32.mrb[0].mxu0
      %v10037 = vpop.f32.mrb[0].mxu0
      %v10038 = vadd.f32 %v9667, %v10037
      %v10039 = vpop.f32.mrb[0].mxu0
      %10040 = vmatprep.mubr.bf16.mxu0 0
      %10041 = vmatmul.mubr.bf16.gmra.mrb[0].mxu0 %v9848
      %v10042 = vpop.f32.mrb[0].mxu0
      %v10043 = vadd.f32 %v9669, %v10042
      %v10044 = vpop.f32.mrb[0].mxu0
      %v10045 = vpop.f32.mrb[0].mxu0
      %v10046 = vadd.f32 %v9671, %v10045
      %v10047 = vpop.f32.mrb[0].mxu0
      %10048 = vmatprep.mubr.bf16.mxu0 0
      %10049 = vmatmul.mubr.bf16.gmra.mrb[0].mxu0 %v9851
      %v10050 = vpop.f32.mrb[0].mxu0
      %v10051 = vadd.f32 %v9673, %v10050
      %v10052 = vpop.f32.mrb[0].mxu0
      %v10053 = vpop.f32.mrb[0].mxu0
      %v10054 = vadd.f32 %v9675, %v10053
      %v10055 = vpop.f32.mrb[0].mxu0
      %10056 = vmatprep.mubr.bf16.mxu0 0
      %10057 = vmatmul.mubr.bf16.gmra.mrb[0].mxu0 %v9854
      %v10058 = vpop.f32.mrb[0].mxu0
      %v10059 = vadd.f32 %v9677, %v10058
      %v10060 = vpop.f32.mrb[0].mxu0
      %v10061 = vpop.f32.mrb[0].mxu0
      %v10062 = vadd.f32 %v9679, %v10061
      %v10063 = vpop.f32.mrb[0].mxu0
      %10064 = vmatprep.mubr.bf16.mxu0 0
      %10065 = vmatmul.mubr.bf16.gmra.mrb[0].mxu0 %v9857
      %v10066 = vpop.f32.mrb[0].mxu0
      %v10067 = vadd.f32 %v9681, %v10066
      %v10068 = vpop.f32.mrb[0].mxu0
      %v10069 = vpop.f32.mrb[0].mxu0
      %v10070 = vadd.f32 %v9683, %v10069
      %v10071 = vpop.f32.mrb[0].mxu0
      %10072 = vmatprep.mubr.bf16.mxu0 0
      %10073 = vmatmul.mubr.bf16.gmra.mrb[0].mxu0 %v9860
      %v10074 = vpop.f32.mrb[0].mxu0
      %v10075 = vadd.f32 %v9685, %v10074
      %v10076 = vpop.f32.mrb[0].mxu0
      %v10077 = vpop.f32.mrb[0].mxu0
      %v10078 = vadd.f32 %v9687, %v10077
      %v10079 = vpop.f32.mrb[0].mxu0
      %10080 = vmatprep.mubr.bf16.mxu0 0
      %10081 = vmatmul.mubr.bf16.gmra.mrb[0].mxu0 %v9863
      %v10082 = vpop.f32.mrb[0].mxu0
      %v10083 = vadd.f32 %v9689, %v10082
      %v10084 = vpop.f32.mrb[0].mxu0
      %v10085 = vpop.f32.mrb[0].mxu0
      %v10086 = vadd.f32 %v9691, %v10085
      %v10087 = vpop.f32.mrb[0].mxu0
      %10088 = vmatprep.mubr.bf16.mxu0 0
      %10089 = vmatmul.mubr.bf16.gmra.mrb[0].mxu0 %v9866
      %v10090 = vpop.f32.mrb[0].mxu0
      %v10091 = vadd.f32 %v9693, %v10090
      %v10092 = vpop.f32.mrb[0].mxu0
      %v10093 = vpop.f32.mrb[0].mxu0
      %v10094 = vadd.f32 %v9695, %v10093
      %v10095 = vpop.f32.mrb[0].mxu0
      %10096 = vmatprep.mubr.bf16.mxu0 0
      %10097 = vmatmul.mubr.bf16.gmra.mrb[0].mxu0 %v9869
      %v10098 = vpop.f32.mrb[0].mxu0
      %v10099 = vadd.f32 %v9697, %v10098
      %v10100 = vpop.f32.mrb[0].mxu0
      %v10101 = vpop.f32.mrb[0].mxu0
      %v10102 = vadd.f32 %v9699, %v10101
      %v10103 = vpop.f32.mrb[0].mxu0
      %10104 = vmatprep.mubr.bf16.mxu0 0
      %10105 = vmatmul.mubr.bf16.gmra.mrb[0].mxu0 %v9872
      %v10106 = vpop.f32.mrb[0].mxu0
      %v10107 = vadd.f32 %v9701, %v10106
      %v10108 = vpop.f32.mrb[0].mxu0
      %v10109 = vpop.f32.mrb[0].mxu0
      %v10110 = vadd.f32 %v9703, %v10109
      %v10111 = vpop.f32.mrb[0].mxu0
      %10112 = vmatprep.mubr.bf16.mxu0 0
      %10113 = vmatmul.mubr.bf16.gmra.mrb[0].mxu0 %v9875
      %v10114 = vpop.f32.mrb[0].mxu0
      %v10115 = vadd.f32 %v9705, %v10114
      %v10116 = vpop.f32.mrb[0].mxu0
      %v10117 = vpop.f32.mrb[0].mxu0
      %v10118 = vadd.f32 %v9707, %v10117
      %v10119 = vpop.f32.mrb[0].mxu0
      %10120 = vmatprep.mubr.bf16.mxu0 0
      %10121 = vmatmul.mubr.bf16.gmra.mrb[0].mxu0 %v9878
      %v10122 = vpop.f32.mrb[0].mxu0
      %v10123 = vadd.f32 %v9709, %v10122
      %v10124 = vpop.f32.mrb[0].mxu0
      %v10125 = vpop.f32.mrb[0].mxu0
      %v10126 = vadd.f32 %v9711, %v10125
      %v10127 = vpop.f32.mrb[0].mxu0
      %10128 = vmatprep.mubr.bf16.mxu0 0
      %10129 = vmatmul.mubr.bf16.gmra.mrb[0].mxu0 %v9881
      %v10130 = vpop.f32.mrb[0].mxu0
      %v10131 = vadd.f32 %v9713, %v10130
      %v10132 = vpop.f32.mrb[0].mxu0
      %v10133 = vpop.f32.mrb[0].mxu0
      %v10134 = vadd.f32 %v9715, %v10133
      %v10135 = vpop.f32.mrb[0].mxu0
      %10136 = vmatprep.mubr.bf16.mxu0 0
      %10137 = vmatmul.mubr.bf16.gmra.mrb[0].mxu0 %v9884
      %v10138 = vpop.f32.mrb[0].mxu0
      %v10139 = vadd.f32 %v9717, %v10138
      %v10140 = vpop.f32.mrb[0].mxu0
      %v10141 = vpop.f32.mrb[0].mxu0
      %v10142 = vadd.f32 %v9719, %v10141
      %v10143 = vpop.f32.mrb[0].mxu0
      %10144 = vmatprep.mubr.bf16.mxu0 0
      %10145 = vmatmul.mubr.bf16.gmra.mrb[0].mxu0 %v9887
      %v10146 = vpop.f32.mrb[0].mxu0
      %v10147 = vadd.f32 %v9721, %v10146
      %v10148 = vpop.f32.mrb[0].mxu0
      %v10149 = vpop.f32.mrb[0].mxu0
      %v10150 = vadd.f32 %v9723, %v10149
      %v10151 = vpop.f32.mrb[0].mxu0
      %10152 = vmatprep.mubr.bf16.mxu0 0
      %10153 = vmatmul.mubr.bf16.gmra.mrb[0].mxu0 %v9890
      %v10154 = vpop.f32.mrb[0].mxu0
      %v10155 = vadd.f32 %v9725, %v10154
      %v10156 = vpop.f32.mrb[0].mxu0
      %v10157 = vpop.f32.mrb[0].mxu0
      %v10158 = vadd.f32 %v9727, %v10157
      %v10159 = vpop.f32.mrb[0].mxu0
      %10160 = vmatprep.mubr.bf16.mxu0 0
      %10161 = vmatmul.mubr.bf16.gmra.mrb[0].mxu0 %v9893
      %v10162 = vpop.f32.mrb[0].mxu0
      %v10163 = vadd.f32 %v9729, %v10162
      %v10164 = vpop.f32.mrb[0].mxu0
      %v10165 = vpop.f32.mrb[0].mxu0
      %v10166 = vadd.f32 %v9731, %v10165
      %v10167 = vpop.f32.mrb[0].mxu0
      %10168 = vmatprep.mubr.bf16.mxu0 0
      %10169 = vmatmul.mubr.bf16.gmra.mrb[0].mxu0 %v9896
      %v10170 = vpop.f32.mrb[0].mxu0
      %v10171 = vadd.f32 %v9733, %v10170
      %v10172 = vpop.f32.mrb[0].mxu0
      %v10173 = vpop.f32.mrb[0].mxu0
      %v10174 = vadd.f32 %v9735, %v10173
      %v10175 = vpop.f32.mrb[0].mxu0
      %10176 = vmatprep.mubr.bf16.mxu0 0
      %10177 = vmatmul.mubr.bf16.gmra.mrb[0].mxu0 %v9899
      %v10178 = vpop.f32.mrb[0].mxu0
      %v10179 = vadd.f32 %v9737, %v10178
      %v10180 = vpop.f32.mrb[0].mxu0
      %v10181 = vpop.f32.mrb[0].mxu0
      %v10182 = vadd.f32 %v9739, %v10181
      %v10183 = vpop.f32.mrb[0].mxu0
      %10184 = vmatprep.mubr.bf16.mxu0 0
      %10185 = vmatmul.mubr.bf16.gmra.mrb[0].mxu0 %v9902
      %v10186 = vpop.f32.mrb[0].mxu0
      %v10187 = vadd.f32 %v9741, %v10186
      %v10188 = vpop.f32.mrb[0].mxu0
      %v10189 = vpop.f32.mrb[0].mxu0
      %v10190 = vadd.f32 %v9743, %v10189
      %v10191 = vpop.f32.mrb[0].mxu0
      %10192 = vdwg.mxu0
      %v10193 = vmax.f32 %v9939, 0.0
      %v10194 = vmax.f32 %v9942, 0.0
      %v10195 = vmax.f32 %v9947, 0.0
      %v10196 = vmax.f32 %v9950, 0.0
      %v10197 = vmax.f32 %v9955, 0.0
      %v10198 = vmax.f32 %v9958, 0.0
      %v10199 = vmax.f32 %v9963, 0.0
      %v10200 = vmax.f32 %v9966, 0.0
      %v10201 = vmax.f32 %v9971, 0.0
      %v10202 = vmax.f32 %v9974, 0.0
      %v10203 = vmax.f32 %v9979, 0.0
      %v10204 = vmax.f32 %v9982, 0.0
      %v10205 = vmax.f32 %v9987, 0.0
      %v10206 = vmax.f32 %v9990, 0.0
      %v10207 = vmax.f32 %v9995, 0.0
      %v10208 = vmax.f32 %v9998, 0.0
      %v10209 = vmax.f32 %v10003, 0.0
      %v10210 = vmax.f32 %v10006, 0.0
      %v10211 = vmax.f32 %v10011, 0.0
      %v10212 = vmax.f32 %v10014, 0.0
      %v10213 = vmax.f32 %v10019, 0.0
      %v10214 = vmax.f32 %v10022, 0.0
      %v10215 = vmax.f32 %v10027, 0.0
      %v10216 = vmax.f32 %v10030, 0.0
      %v10217 = vmax.f32 %v10035, 0.0
      %v10218 = vmax.f32 %v10038, 0.0
      %v10219 = vmax.f32 %v10043, 0.0
      %v10220 = vmax.f32 %v10046, 0.0
      %v10221 = vmax.f32 %v10051, 0.0
      %v10222 = vmax.f32 %v10054, 0.0
      %v10223 = vmax.f32 %v10059, 0.0
      %v10224 = vmax.f32 %v10062, 0.0
      %v10225 = vmax.f32 %v10067, 0.0
      %v10226 = vmax.f32 %v10070, 0.0
      %v10227 = vmax.f32 %v10075, 0.0
      %v10228 = vmax.f32 %v10078, 0.0
      %v10229 = vmax.f32 %v10083, 0.0
      %v10230 = vmax.f32 %v10086, 0.0
      %v10231 = vmax.f32 %v10091, 0.0
      %v10232 = vmax.f32 %v10094, 0.0
      %v10233 = vmax.f32 %v10099, 0.0
      %v10234 = vmax.f32 %v10102, 0.0
      %v10235 = vmax.f32 %v10107, 0.0
      %v10236 = vmax.f32 %v10110, 0.0
      %v10237 = vmax.f32 %v10115, 0.0
      %v10238 = vmax.f32 %v10118, 0.0
      %v10239 = vmax.f32 %v10123, 0.0
      %v10240 = vmax.f32 %v10126, 0.0
      %v10241 = vmax.f32 %v10131, 0.0
      %v10242 = vmax.f32 %v10134, 0.0
      %v10243 = vmax.f32 %v10139, 0.0
      %v10244 = vmax.f32 %v10142, 0.0
      %v10245 = vmax.f32 %v10147, 0.0
      %v10246 = vmax.f32 %v10150, 0.0
      %v10247 = vmax.f32 %v10155, 0.0
      %v10248 = vmax.f32 %v10158, 0.0
      %v10249 = vmax.f32 %v10163, 0.0
      %v10250 = vmax.f32 %v10166, 0.0
      %v10251 = vmax.f32 %v10171, 0.0
      %v10252 = vmax.f32 %v10174, 0.0
      %v10253 = vmax.f32 %v10179, 0.0
      %v10254 = vmax.f32 %v10182, 0.0
      %v10255 = vmax.f32 %v10187, 0.0
      %v10256 = vmax.f32 %v10190, 0.0
      %v10257 = vpack.c.bf16 %v10194, %v10193
      %v10258 = vpack.c.bf16 %v10196, %v10195
      %v10259 = vpack.c.bf16 %v10198, %v10197
      %v10260 = vpack.c.bf16 %v10200, %v10199
      %v10261 = vpack.c.bf16 %v10202, %v10201
      %v10262 = vpack.c.bf16 %v10204, %v10203
      %v10263 = vpack.c.bf16 %v10206, %v10205
      %v10264 = vpack.c.bf16 %v10208, %v10207
      %v10265 = vpack.c.bf16 %v10210, %v10209
      %v10266 = vpack.c.bf16 %v10212, %v10211
      %v10267 = vpack.c.bf16 %v10214, %v10213
      %v10268 = vpack.c.bf16 %v10216, %v10215
      %v10269 = vpack.c.bf16 %v10218, %v10217
      %v10270 = vpack.c.bf16 %v10220, %v10219
      %v10271 = vpack.c.bf16 %v10222, %v10221
      %v10272 = vpack.c.bf16 %v10224, %v10223
      %v10273 = vpack.c.bf16 %v10226, %v10225
      %v10274 = vpack.c.bf16 %v10228, %v10227
      %v10275 = vpack.c.bf16 %v10230, %v10229
      %v10276 = vpack.c.bf16 %v10232, %v10231
      %v10277 = vpack.c.bf16 %v10234, %v10233
      %v10278 = vpack.c.bf16 %v10236, %v10235
      %v10279 = vpack.c.bf16 %v10238, %v10237
      %v10280 = vpack.c.bf16 %v10240, %v10239
      %v10281 = vpack.c.bf16 %v10242, %v10241
      %v10282 = vpack.c.bf16 %v10244, %v10243
      %v10283 = vpack.c.bf16 %v10246, %v10245
      %v10284 = vpack.c.bf16 %v10248, %v10247
      %v10285 = vpack.c.bf16 %v10250, %v10249
      %v10286 = vpack.c.bf16 %v10252, %v10251
      %v10287 = vpack.c.bf16 %v10254, %v10253
      %v10288 = vpack.c.bf16 %v10256, %v10255
      %v10289 = vld [vmem:[%s10] sm:$0xf]
      %v10290 = vld [vmem:[%s10 + $0x4] sm:$0xf]
      %v10291 = vld [vmem:[%s10 + $0x8] sm:$0xf]
      %v10292 = vld [vmem:[%s10 + $0xc] sm:$0xf]
      %v10293 = vld [vmem:[%s10 + $0x10] sm:$0xf]
      %v10294 = vld [vmem:[%s10 + $0x14] sm:$0xf]
      %v10295 = vld [vmem:[%s10 + $0x18] sm:$0xf]
      %v10296 = vld [vmem:[%s10 + $0x1c] sm:$0xf]
      %v10297 = vld [vmem:[%s11] sm:$0x1]
      %v10299 = vlaneseq
      %v10300 = vshrl.u32 %v10299, 7
      %v10301 = vsub.s32 0, %v10300
      %v10302 = vrot.slane %v10297, %v10301
      %v10312 = vunpack.c.l.b16 %v10289
      %v10313 = vunpack.c.l.b16 %v10290
      %v10314 = vunpack.c.l.b16 %v10291
      %v10315 = vunpack.c.l.b16 %v10292
      %v10316 = vunpack.c.l.b16 %v10293
      %v10317 = vunpack.c.l.b16 %v10294
      %v10318 = vunpack.c.l.b16 %v10295
      %v10319 = vunpack.c.l.b16 %v10296
      %v10320 = vpack.c.b16 %v10313, %v10312
      %v10321 = vpack.c.b16 %v10315, %v10314
      %v10322 = vpack.c.b16 %v10317, %v10316
      %v10323 = vpack.c.b16 %v10319, %v10318
      %v10329 = vsel %vm9038, %v10257, 0
      %v10332 = vsel %vm9038, %v10258, 0
      %v10335 = vsel %vm9038, %v10259, 0
      %v10338 = vsel %vm9038, %v10260, 0
      %v10341 = vsel %vm9038, %v10261, 0
      %v10344 = vsel %vm9038, %v10262, 0
      %v10347 = vsel %vm9038, %v10263, 0
      %v10350 = vsel %vm9038, %v10264, 0
      %v10353 = vsel %vm9038, %v10265, 0
      %v10356 = vsel %vm9038, %v10266, 0
      %v10359 = vsel %vm9038, %v10267, 0
      %v10362 = vsel %vm9038, %v10268, 0
      %v10365 = vsel %vm9038, %v10269, 0
      %v10368 = vsel %vm9038, %v10270, 0
      %v10371 = vsel %vm9038, %v10271, 0
      %v10374 = vsel %vm9038, %v10272, 0
      %v10377 = vsel %vm9038, %v10273, 0
      %v10380 = vsel %vm9038, %v10274, 0
      %v10383 = vsel %vm9038, %v10275, 0
      %v10386 = vsel %vm9038, %v10276, 0
      %v10389 = vsel %vm9038, %v10277, 0
      %v10392 = vsel %vm9038, %v10278, 0
      %v10395 = vsel %vm9038, %v10279, 0
      %v10398 = vsel %vm9038, %v10280, 0
      %v10401 = vsel %vm9038, %v10281, 0
      %v10404 = vsel %vm9038, %v10282, 0
      %v10407 = vsel %vm9038, %v10283, 0
      %v10410 = vsel %vm9038, %v10284, 0
      %v10413 = vsel %vm9038, %v10285, 0
      %v10416 = vsel %vm9038, %v10286, 0
      %v10419 = vsel %vm9038, %v10287, 0
      %v10422 = vsel %vm9038, %v10288, 0
      %10424 = vmatprep.subr.bf16.mxu0 0
      %10425 = vmatpush1.bf16.msra.mxu0 %v10320
      %10426 = vmatprep.subr.bf16.mxu0 0
      %10427 = vmatpush1.bf16.msra.mxu0 %v10321
      %10428 = vmatprep.subr.bf16.mxu0 0
      %10429 = vmatpush1.bf16.msra.mxu0 %v10322
      %10430 = vmatprep.subr.bf16.mxu0 0
      %10431 = vmatpush1.bf16.msra.mxu0 %v10323
      %10432 = vmatprep.subr.bf16.mxu0 0
      %10433 = vmatpush1.bf16.msra.mxu0 0
      %10434 = vmatprep.subr.bf16.mxu0 0
      %10435 = vmatpush1.bf16.msra.mxu0 0
      %10436 = vmatprep.subr.bf16.mxu0 0
      %10437 = vmatpush1.bf16.msra.mxu0 0
      %10438 = vmatprep.subr.bf16.mxu0 0
      %10439 = vmatpush1.bf16.msra.mxu0 0
      %10440 = vmatprep.subr.bf16.mxu0 0
      %10441 = vmatpush1.bf16.msra.mxu0 0
      %10442 = vmatprep.subr.bf16.mxu0 0
      %10443 = vmatpush1.bf16.msra.mxu0 0
      %10444 = vmatprep.subr.bf16.mxu0 0
      %10445 = vmatpush1.bf16.msra.mxu0 0
      %10446 = vmatprep.subr.bf16.mxu0 0
      %10447 = vmatpush1.bf16.msra.mxu0 0
      %10448 = vmatprep.subr.bf16.mxu0 0
      %10449 = vmatpush1.bf16.msra.mxu0 0
      %10450 = vmatprep.subr.bf16.mxu0 0
      %10451 = vmatpush1.bf16.msra.mxu0 0
      %10452 = vmatprep.subr.bf16.mxu0 0
      %10453 = vmatpush1.bf16.msra.mxu0 0
      %10454 = vmatprep.subr.bf16.mxu0 0
      %10455 = vmatpush1.bf16.msra.mxu0 0
      %10456 = vmatprep.mubr.bf16.mxu0 0
      %10457 = vmatmul.mubr.bf16.gmra.mrb[0].mxu0 %v10329
      %v10458 = vpop.f32.mrb[0].mxu0
      %v10459 = vadd.f32 %v10302, %v10458
      %v10460 = vpop.f32.mrb[0].mxu0
      %v10461 = vpop.f32.mrb[0].mxu0
      %v10462 = vadd.f32 %v10302, %v10461
      %v10463 = vpop.f32.mrb[0].mxu0
      %10464 = vmatprep.mubr.bf16.mxu0 0
      %10465 = vmatmul.mubr.bf16.gmra.mrb[0].mxu0 %v10332
      %v10466 = vpop.f32.mrb[0].mxu0
      %v10467 = vadd.f32 %v10302, %v10466
      %v10468 = vpop.f32.mrb[0].mxu0
      %v10469 = vpop.f32.mrb[0].mxu0
      %v10470 = vadd.f32 %v10302, %v10469
      %v10471 = vpop.f32.mrb[0].mxu0
      %10472 = vmatprep.mubr.bf16.mxu0 0
      %10473 = vmatmul.mubr.bf16.gmra.mrb[0].mxu0 %v10335
      %v10474 = vpop.f32.mrb[0].mxu0
      %v10475 = vadd.f32 %v10302, %v10474
      %v10476 = vpop.f32.mrb[0].mxu0
      %v10477 = vpop.f32.mrb[0].mxu0
      %v10478 = vadd.f32 %v10302, %v10477
      %v10479 = vpop.f32.mrb[0].mxu0
      %10480 = vmatprep.mubr.bf16.mxu0 0
      %10481 = vmatmul.mubr.bf16.gmra.mrb[0].mxu0 %v10338
      %v10482 = vpop.f32.mrb[0].mxu0
      %v10483 = vadd.f32 %v10302, %v10482
      %v10484 = vpop.f32.mrb[0].mxu0
      %v10485 = vpop.f32.mrb[0].mxu0
      %v10486 = vadd.f32 %v10302, %v10485
      %v10487 = vpop.f32.mrb[0].mxu0
      %10488 = vmatprep.mubr.bf16.mxu0 0
      %10489 = vmatmul.mubr.bf16.gmra.mrb[0].mxu0 %v10341
      %v10490 = vpop.f32.mrb[0].mxu0
      %v10491 = vadd.f32 %v10302, %v10490
      %v10492 = vpop.f32.mrb[0].mxu0
      %v10493 = vpop.f32.mrb[0].mxu0
      %v10494 = vadd.f32 %v10302, %v10493
      %v10495 = vpop.f32.mrb[0].mxu0
      %10496 = vmatprep.mubr.bf16.mxu0 0
      %10497 = vmatmul.mubr.bf16.gmra.mrb[0].mxu0 %v10344
      %v10498 = vpop.f32.mrb[0].mxu0
      %v10499 = vadd.f32 %v10302, %v10498
      %v10500 = vpop.f32.mrb[0].mxu0
      %v10501 = vpop.f32.mrb[0].mxu0
      %v10502 = vadd.f32 %v10302, %v10501
      %v10503 = vpop.f32.mrb[0].mxu0
      %10504 = vmatprep.mubr.bf16.mxu0 0
      %10505 = vmatmul.mubr.bf16.gmra.mrb[0].mxu0 %v10347
      %v10506 = vpop.f32.mrb[0].mxu0
      %v10507 = vadd.f32 %v10302, %v10506
      %v10508 = vpop.f32.mrb[0].mxu0
      %v10509 = vpop.f32.mrb[0].mxu0
      %v10510 = vadd.f32 %v10302, %v10509
      %v10511 = vpop.f32.mrb[0].mxu0
      %10512 = vmatprep.mubr.bf16.mxu0 0
      %10513 = vmatmul.mubr.bf16.gmra.mrb[0].mxu0 %v10350
      %v10514 = vpop.f32.mrb[0].mxu0
      %v10515 = vadd.f32 %v10302, %v10514
      %v10516 = vpop.f32.mrb[0].mxu0
      %v10517 = vpop.f32.mrb[0].mxu0
      %v10518 = vadd.f32 %v10302, %v10517
      %v10519 = vpop.f32.mrb[0].mxu0
      %10520 = vmatprep.mubr.bf16.mxu0 0
      %10521 = vmatmul.mubr.bf16.gmra.mrb[0].mxu0 %v10353
      %v10522 = vpop.f32.mrb[0].mxu0
      %v10523 = vadd.f32 %v10302, %v10522
      %v10524 = vpop.f32.mrb[0].mxu0
      %v10525 = vpop.f32.mrb[0].mxu0
      %v10526 = vadd.f32 %v10302, %v10525
      %v10527 = vpop.f32.mrb[0].mxu0
      %10528 = vmatprep.mubr.bf16.mxu0 0
      %10529 = vmatmul.mubr.bf16.gmra.mrb[0].mxu0 %v10356
      %v10530 = vpop.f32.mrb[0].mxu0
      %v10531 = vadd.f32 %v10302, %v10530
      %v10532 = vpop.f32.mrb[0].mxu0
      %v10533 = vpop.f32.mrb[0].mxu0
      %v10534 = vadd.f32 %v10302, %v10533
      %v10535 = vpop.f32.mrb[0].mxu0
      %10536 = vmatprep.mubr.bf16.mxu0 0
      %10537 = vmatmul.mubr.bf16.gmra.mrb[0].mxu0 %v10359
      %v10538 = vpop.f32.mrb[0].mxu0
      %v10539 = vadd.f32 %v10302, %v10538
      %v10540 = vpop.f32.mrb[0].mxu0
      %v10541 = vpop.f32.mrb[0].mxu0
      %v10542 = vadd.f32 %v10302, %v10541
      %v10543 = vpop.f32.mrb[0].mxu0
      %10544 = vmatprep.mubr.bf16.mxu0 0
      %10545 = vmatmul.mubr.bf16.gmra.mrb[0].mxu0 %v10362
      %v10546 = vpop.f32.mrb[0].mxu0
      %v10547 = vadd.f32 %v10302, %v10546
      %v10548 = vpop.f32.mrb[0].mxu0
      %v10549 = vpop.f32.mrb[0].mxu0
      %v10550 = vadd.f32 %v10302, %v10549
      %v10551 = vpop.f32.mrb[0].mxu0
      %10552 = vmatprep.mubr.bf16.mxu0 0
      %10553 = vmatmul.mubr.bf16.gmra.mrb[0].mxu0 %v10365
      %v10554 = vpop.f32.mrb[0].mxu0
      %v10555 = vadd.f32 %v10302, %v10554
      %v10556 = vpop.f32.mrb[0].mxu0
      %v10557 = vpop.f32.mrb[0].mxu0
      %v10558 = vadd.f32 %v10302, %v10557
      %v10559 = vpop.f32.mrb[0].mxu0
      %10560 = vmatprep.mubr.bf16.mxu0 0
      %10561 = vmatmul.mubr.bf16.gmra.mrb[0].mxu0 %v10368
      %v10562 = vpop.f32.mrb[0].mxu0
      %v10563 = vadd.f32 %v10302, %v10562
      %v10564 = vpop.f32.mrb[0].mxu0
      %v10565 = vpop.f32.mrb[0].mxu0
      %v10566 = vadd.f32 %v10302, %v10565
      %v10567 = vpop.f32.mrb[0].mxu0
      %10568 = vmatprep.mubr.bf16.mxu0 0
      %10569 = vmatmul.mubr.bf16.gmra.mrb[0].mxu0 %v10371
      %v10570 = vpop.f32.mrb[0].mxu0
      %v10571 = vadd.f32 %v10302, %v10570
      %v10572 = vpop.f32.mrb[0].mxu0
      %v10573 = vpop.f32.mrb[0].mxu0
      %v10574 = vadd.f32 %v10302, %v10573
      %v10575 = vpop.f32.mrb[0].mxu0
      %10576 = vmatprep.mubr.bf16.mxu0 0
      %10577 = vmatmul.mubr.bf16.gmra.mrb[0].mxu0 %v10374
      %v10578 = vpop.f32.mrb[0].mxu0
      %v10579 = vadd.f32 %v10302, %v10578
      %v10580 = vpop.f32.mrb[0].mxu0
      %v10581 = vpop.f32.mrb[0].mxu0
      %v10582 = vadd.f32 %v10302, %v10581
      %v10583 = vpop.f32.mrb[0].mxu0
      %10584 = vmatprep.mubr.bf16.mxu0 0
      %10585 = vmatmul.mubr.bf16.gmra.mrb[0].mxu0 %v10377
      %v10586 = vpop.f32.mrb[0].mxu0
      %v10587 = vadd.f32 %v10302, %v10586
      %v10588 = vpop.f32.mrb[0].mxu0
      %v10589 = vpop.f32.mrb[0].mxu0
      %v10590 = vadd.f32 %v10302, %v10589
      %v10591 = vpop.f32.mrb[0].mxu0
      %10592 = vmatprep.mubr.bf16.mxu0 0
      %10593 = vmatmul.mubr.bf16.gmra.mrb[0].mxu0 %v10380
      %v10594 = vpop.f32.mrb[0].mxu0
      %v10595 = vadd.f32 %v10302, %v10594
      %v10596 = vpop.f32.mrb[0].mxu0
      %v10597 = vpop.f32.mrb[0].mxu0
      %v10598 = vadd.f32 %v10302, %v10597
      %v10599 = vpop.f32.mrb[0].mxu0
      %10600 = vmatprep.mubr.bf16.mxu0 0
      %10601 = vmatmul.mubr.bf16.gmra.mrb[0].mxu0 %v10383
      %v10602 = vpop.f32.mrb[0].mxu0
      %v10603 = vadd.f32 %v10302, %v10602
      %v10604 = vpop.f32.mrb[0].mxu0
      %v10605 = vpop.f32.mrb[0].mxu0
      %v10606 = vadd.f32 %v10302, %v10605
      %v10607 = vpop.f32.mrb[0].mxu0
      %10608 = vmatprep.mubr.bf16.mxu0 0
      %10609 = vmatmul.mubr.bf16.gmra.mrb[0].mxu0 %v10386
      %v10610 = vpop.f32.mrb[0].mxu0
      %v10611 = vadd.f32 %v10302, %v10610
      %v10612 = vpop.f32.mrb[0].mxu0
      %v10613 = vpop.f32.mrb[0].mxu0
      %v10614 = vadd.f32 %v10302, %v10613
      %v10615 = vpop.f32.mrb[0].mxu0
      %10616 = vmatprep.mubr.bf16.mxu0 0
      %10617 = vmatmul.mubr.bf16.gmra.mrb[0].mxu0 %v10389
      %v10618 = vpop.f32.mrb[0].mxu0
      %v10619 = vadd.f32 %v10302, %v10618
      %v10620 = vpop.f32.mrb[0].mxu0
      %v10621 = vpop.f32.mrb[0].mxu0
      %v10622 = vadd.f32 %v10302, %v10621
      %v10623 = vpop.f32.mrb[0].mxu0
      %10624 = vmatprep.mubr.bf16.mxu0 0
      %10625 = vmatmul.mubr.bf16.gmra.mrb[0].mxu0 %v10392
      %v10626 = vpop.f32.mrb[0].mxu0
      %v10627 = vadd.f32 %v10302, %v10626
      %v10628 = vpop.f32.mrb[0].mxu0
      %v10629 = vpop.f32.mrb[0].mxu0
      %v10630 = vadd.f32 %v10302, %v10629
      %v10631 = vpop.f32.mrb[0].mxu0
      %10632 = vmatprep.mubr.bf16.mxu0 0
      %10633 = vmatmul.mubr.bf16.gmra.mrb[0].mxu0 %v10395
      %v10634 = vpop.f32.mrb[0].mxu0
      %v10635 = vadd.f32 %v10302, %v10634
      %v10636 = vpop.f32.mrb[0].mxu0
      %v10637 = vpop.f32.mrb[0].mxu0
      %v10638 = vadd.f32 %v10302, %v10637
      %v10639 = vpop.f32.mrb[0].mxu0
      %10640 = vmatprep.mubr.bf16.mxu0 0
      %10641 = vmatmul.mubr.bf16.gmra.mrb[0].mxu0 %v10398
      %v10642 = vpop.f32.mrb[0].mxu0
      %v10643 = vadd.f32 %v10302, %v10642
      %v10644 = vpop.f32.mrb[0].mxu0
      %v10645 = vpop.f32.mrb[0].mxu0
      %v10646 = vadd.f32 %v10302, %v10645
      %v10647 = vpop.f32.mrb[0].mxu0
      %10648 = vmatprep.mubr.bf16.mxu0 0
      %10649 = vmatmul.mubr.bf16.gmra.mrb[0].mxu0 %v10401
      %v10650 = vpop.f32.mrb[0].mxu0
      %v10651 = vadd.f32 %v10302, %v10650
      %v10652 = vpop.f32.mrb[0].mxu0
      %v10653 = vpop.f32.mrb[0].mxu0
      %v10654 = vadd.f32 %v10302, %v10653
      %v10655 = vpop.f32.mrb[0].mxu0
      %10656 = vmatprep.mubr.bf16.mxu0 0
      %10657 = vmatmul.mubr.bf16.gmra.mrb[0].mxu0 %v10404
      %v10658 = vpop.f32.mrb[0].mxu0
      %v10659 = vadd.f32 %v10302, %v10658
      %v10660 = vpop.f32.mrb[0].mxu0
      %v10661 = vpop.f32.mrb[0].mxu0
      %v10662 = vadd.f32 %v10302, %v10661
      %v10663 = vpop.f32.mrb[0].mxu0
      %10664 = vmatprep.mubr.bf16.mxu0 0
      %10665 = vmatmul.mubr.bf16.gmra.mrb[0].mxu0 %v10407
      %v10666 = vpop.f32.mrb[0].mxu0
      %v10667 = vadd.f32 %v10302, %v10666
      %v10668 = vpop.f32.mrb[0].mxu0
      %v10669 = vpop.f32.mrb[0].mxu0
      %v10670 = vadd.f32 %v10302, %v10669
      %v10671 = vpop.f32.mrb[0].mxu0
      %10672 = vmatprep.mubr.bf16.mxu0 0
      %10673 = vmatmul.mubr.bf16.gmra.mrb[0].mxu0 %v10410
      %v10674 = vpop.f32.mrb[0].mxu0
      %v10675 = vadd.f32 %v10302, %v10674
      %v10676 = vpop.f32.mrb[0].mxu0
      %v10677 = vpop.f32.mrb[0].mxu0
      %v10678 = vadd.f32 %v10302, %v10677
      %v10679 = vpop.f32.mrb[0].mxu0
      %10680 = vmatprep.mubr.bf16.mxu0 0
      %10681 = vmatmul.mubr.bf16.gmra.mrb[0].mxu0 %v10413
      %v10682 = vpop.f32.mrb[0].mxu0
      %v10683 = vadd.f32 %v10302, %v10682
      %v10684 = vpop.f32.mrb[0].mxu0
      %v10685 = vpop.f32.mrb[0].mxu0
      %v10686 = vadd.f32 %v10302, %v10685
      %v10687 = vpop.f32.mrb[0].mxu0
      %10688 = vmatprep.mubr.bf16.mxu0 0
      %10689 = vmatmul.mubr.bf16.gmra.mrb[0].mxu0 %v10416
      %v10690 = vpop.f32.mrb[0].mxu0
      %v10691 = vadd.f32 %v10302, %v10690
      %v10692 = vpop.f32.mrb[0].mxu0
      %v10693 = vpop.f32.mrb[0].mxu0
      %v10694 = vadd.f32 %v10302, %v10693
      %v10695 = vpop.f32.mrb[0].mxu0
      %10696 = vmatprep.mubr.bf16.mxu0 0
      %10697 = vmatmul.mubr.bf16.gmra.mrb[0].mxu0 %v10419
      %v10698 = vpop.f32.mrb[0].mxu0
      %v10699 = vadd.f32 %v10302, %v10698
      %v10700 = vpop.f32.mrb[0].mxu0
      %v10701 = vpop.f32.mrb[0].mxu0
      %v10702 = vadd.f32 %v10302, %v10701
      %v10703 = vpop.f32.mrb[0].mxu0
      %10704 = vmatprep.mubr.bf16.mxu0 0
      %10705 = vmatmul.mubr.bf16.gmra.mrb[0].mxu0 %v10422
      %v10706 = vpop.f32.mrb[0].mxu0
      %v10707 = vadd.f32 %v10302, %v10706
      %v10708 = vpop.f32.mrb[0].mxu0
      %v10709 = vpop.f32.mrb[0].mxu0
      %v10710 = vadd.f32 %v10302, %v10709
      %v10711 = vpop.f32.mrb[0].mxu0
      %10712 = vdwg.mxu0
      %v10713 = vxor.u32 %v10459, 2147483648
      %v10714 = vxor.u32 %v10462, 2147483648
      %v10715 = vxor.u32 %v10467, 2147483648
      %v10716 = vxor.u32 %v10470, 2147483648
      %v10717 = vxor.u32 %v10475, 2147483648
      %v10718 = vxor.u32 %v10478, 2147483648
      %v10719 = vxor.u32 %v10483, 2147483648
      %v10720 = vxor.u32 %v10486, 2147483648
      %v10721 = vxor.u32 %v10491, 2147483648
      %v10722 = vxor.u32 %v10494, 2147483648
      %v10723 = vxor.u32 %v10499, 2147483648
      %v10724 = vxor.u32 %v10502, 2147483648
      %v10725 = vxor.u32 %v10507, 2147483648
      %v10726 = vxor.u32 %v10510, 2147483648
      %v10727 = vxor.u32 %v10515, 2147483648
      %v10728 = vxor.u32 %v10518, 2147483648
      %v10729 = vxor.u32 %v10523, 2147483648
      %v10730 = vxor.u32 %v10526, 2147483648
      %v10731 = vxor.u32 %v10531, 2147483648
      %v10732 = vxor.u32 %v10534, 2147483648
      %v10733 = vxor.u32 %v10539, 2147483648
      %v10734 = vxor.u32 %v10542, 2147483648
      %v10735 = vxor.u32 %v10547, 2147483648
      %v10736 = vxor.u32 %v10550, 2147483648
      %v10737 = vxor.u32 %v10555, 2147483648
      %v10738 = vxor.u32 %v10558, 2147483648
      %v10739 = vxor.u32 %v10563, 2147483648
      %v10740 = vxor.u32 %v10566, 2147483648
      %v10741 = vxor.u32 %v10571, 2147483648
      %v10742 = vxor.u32 %v10574, 2147483648
      %v10743 = vxor.u32 %v10579, 2147483648
      %v10744 = vxor.u32 %v10582, 2147483648
      %v10745 = vxor.u32 %v10587, 2147483648
      %v10746 = vxor.u32 %v10590, 2147483648
      %v10747 = vxor.u32 %v10595, 2147483648
      %v10748 = vxor.u32 %v10598, 2147483648
      %v10749 = vxor.u32 %v10603, 2147483648
      %v10750 = vxor.u32 %v10606, 2147483648
      %v10751 = vxor.u32 %v10611, 2147483648
      %v10752 = vxor.u32 %v10614, 2147483648
      %v10753 = vxor.u32 %v10619, 2147483648
      %v10754 = vxor.u32 %v10622, 2147483648
      %v10755 = vxor.u32 %v10627, 2147483648
      %v10756 = vxor.u32 %v10630, 2147483648
      %v10757 = vxor.u32 %v10635, 2147483648
      %v10758 = vxor.u32 %v10638, 2147483648
      %v10759 = vxor.u32 %v10643, 2147483648
      %v10760 = vxor.u32 %v10646, 2147483648
      %v10761 = vxor.u32 %v10651, 2147483648
      %v10762 = vxor.u32 %v10654, 2147483648
      %v10763 = vxor.u32 %v10659, 2147483648
      %v10764 = vxor.u32 %v10662, 2147483648
      %v10765 = vxor.u32 %v10667, 2147483648
      %v10766 = vxor.u32 %v10670, 2147483648
      %v10767 = vxor.u32 %v10675, 2147483648
      %v10768 = vxor.u32 %v10678, 2147483648
      %v10769 = vxor.u32 %v10683, 2147483648
      %v10770 = vxor.u32 %v10686, 2147483648
      %v10771 = vxor.u32 %v10691, 2147483648
      %v10772 = vxor.u32 %v10694, 2147483648
      %v10773 = vxor.u32 %v10699, 2147483648
      %v10774 = vxor.u32 %v10702, 2147483648
      %v10775 = vxor.u32 %v10707, 2147483648
      %v10776 = vxor.u32 %v10710, 2147483648
      %v10777 = vmul.f32 %v10713, 1.442695
      %v10778 = vpow.pop %v10777
      %v10779 = vmul.f32 %v10714, 1.442695
      %v10780 = vpow.pop %v10779
      %v10781 = vmul.f32 %v10715, 1.442695
      %v10782 = vpow.pop %v10781
      %v10783 = vmul.f32 %v10716, 1.442695
      %v10784 = vpow.pop %v10783
      %v10785 = vmul.f32 %v10717, 1.442695
      %v10786 = vpow.pop %v10785
      %v10787 = vmul.f32 %v10718, 1.442695
      %v10788 = vpow.pop %v10787
      %v10789 = vmul.f32 %v10719, 1.442695
      %v10790 = vpow.pop %v10789
      %v10791 = vmul.f32 %v10720, 1.442695
      %v10792 = vpow.pop %v10791
      %v10793 = vmul.f32 %v10721, 1.442695
      %v10794 = vpow.pop %v10793
      %v10795 = vmul.f32 %v10722, 1.442695
      %v10796 = vpow.pop %v10795
      %v10797 = vmul.f32 %v10723, 1.442695
      %v10798 = vpow.pop %v10797
      %v10799 = vmul.f32 %v10724, 1.442695
      %v10800 = vpow.pop %v10799
      %v10801 = vmul.f32 %v10725, 1.442695
      %v10802 = vpow.pop %v10801
      %v10803 = vmul.f32 %v10726, 1.442695
      %v10804 = vpow.pop %v10803
      %v10805 = vmul.f32 %v10727, 1.442695
      %v10806 = vpow.pop %v10805
      %v10807 = vmul.f32 %v10728, 1.442695
      %v10808 = vpow.pop %v10807
      %v10809 = vmul.f32 %v10729, 1.442695
      %v10810 = vpow.pop %v10809
      %v10811 = vmul.f32 %v10730, 1.442695
      %v10812 = vpow.pop %v10811
      %v10813 = vmul.f32 %v10731, 1.442695
      %v10814 = vpow.pop %v10813
      %v10815 = vmul.f32 %v10732, 1.442695
      %v10816 = vpow.pop %v10815
      %v10817 = vmul.f32 %v10733, 1.442695
      %v10818 = vpow.pop %v10817
      %v10819 = vmul.f32 %v10734, 1.442695
      %v10820 = vpow.pop %v10819
      %v10821 = vmul.f32 %v10735, 1.442695
      %v10822 = vpow.pop %v10821
      %v10823 = vmul.f32 %v10736, 1.442695
      %v10824 = vpow.pop %v10823
      %v10825 = vmul.f32 %v10737, 1.442695
      %v10826 = vpow.pop %v10825
      %v10827 = vmul.f32 %v10738, 1.442695
      %v10828 = vpow.pop %v10827
      %v10829 = vmul.f32 %v10739, 1.442695
      %v10830 = vpow.pop %v10829
      %v10831 = vmul.f32 %v10740, 1.442695
      %v10832 = vpow.pop %v10831
      %v10833 = vmul.f32 %v10741, 1.442695
      %v10834 = vpow.pop %v10833
      %v10835 = vmul.f32 %v10742, 1.442695
      %v10836 = vpow.pop %v10835
      %v10837 = vmul.f32 %v10743, 1.442695
      %v10838 = vpow.pop %v10837
      %v10839 = vmul.f32 %v10744, 1.442695
      %v10840 = vpow.pop %v10839
      %v10841 = vmul.f32 %v10745, 1.442695
      %v10842 = vpow.pop %v10841
      %v10843 = vmul.f32 %v10746, 1.442695
      %v10844 = vpow.pop %v10843
      %v10845 = vmul.f32 %v10747, 1.442695
      %v10846 = vpow.pop %v10845
      %v10847 = vmul.f32 %v10748, 1.442695
      %v10848 = vpow.pop %v10847
      %v10849 = vmul.f32 %v10749, 1.442695
      %v10850 = vpow.pop %v10849
      %v10851 = vmul.f32 %v10750, 1.442695
      %v10852 = vpow.pop %v10851
      %v10853 = vmul.f32 %v10751, 1.442695
      %v10854 = vpow.pop %v10853
      %v10855 = vmul.f32 %v10752, 1.442695
      %v10856 = vpow.pop %v10855
      %v10857 = vmul.f32 %v10753, 1.442695
      %v10858 = vpow.pop %v10857
      %v10859 = vmul.f32 %v10754, 1.442695
      %v10860 = vpow.pop %v10859
      %v10861 = vmul.f32 %v10755, 1.442695
      %v10862 = vpow.pop %v10861
      %v10863 = vmul.f32 %v10756, 1.442695
      %v10864 = vpow.pop %v10863
      %v10865 = vmul.f32 %v10757, 1.442695
      %v10866 = vpow.pop %v10865
      %v10867 = vmul.f32 %v10758, 1.442695
      %v10868 = vpow.pop %v10867
      %v10869 = vmul.f32 %v10759, 1.442695
      %v10870 = vpow.pop %v10869
      %v10871 = vmul.f32 %v10760, 1.442695
      %v10872 = vpow.pop %v10871
      %v10873 = vmul.f32 %v10761, 1.442695
      %v10874 = vpow.pop %v10873
      %v10875 = vmul.f32 %v10762, 1.442695
      %v10876 = vpow.pop %v10875
      %v10877 = vmul.f32 %v10763, 1.442695
      %v10878 = vpow.pop %v10877
      %v10879 = vmul.f32 %v10764, 1.442695
      %v10880 = vpow.pop %v10879
      %v10881 = vmul.f32 %v10765, 1.442695
      %v10882 = vpow.pop %v10881
      %v10883 = vmul.f32 %v10766, 1.442695
      %v10884 = vpow.pop %v10883
      %v10885 = vmul.f32 %v10767, 1.442695
      %v10886 = vpow.pop %v10885
      %v10887 = vmul.f32 %v10768, 1.442695
      %v10888 = vpow.pop %v10887
      %v10889 = vmul.f32 %v10769, 1.442695
      %v10890 = vpow.pop %v10889
      %v10891 = vmul.f32 %v10770, 1.442695
      %v10892 = vpow.pop %v10891
      %v10893 = vmul.f32 %v10771, 1.442695
      %v10894 = vpow.pop %v10893
      %v10895 = vmul.f32 %v10772, 1.442695
      %v10896 = vpow.pop %v10895
      %v10897 = vmul.f32 %v10773, 1.442695
      %v10898 = vpow.pop %v10897
      %v10899 = vmul.f32 %v10774, 1.442695
      %v10900 = vpow.pop %v10899
      %v10901 = vmul.f32 %v10775, 1.442695
      %v10902 = vpow.pop %v10901
      %v10903 = vmul.f32 %v10776, 1.442695
      %v10904 = vpow.pop %v10903
      %v10905 = vadd.f32 %v10778, 1.0
      %v10906 = vadd.f32 %v10780, 1.0
      %v10907 = vadd.f32 %v10782, 1.0
      %v10908 = vadd.f32 %v10784, 1.0
      %v10909 = vadd.f32 %v10786, 1.0
      %v10910 = vadd.f32 %v10788, 1.0
      %v10911 = vadd.f32 %v10790, 1.0
      %v10912 = vadd.f32 %v10792, 1.0
      %v10913 = vadd.f32 %v10794, 1.0
      %v10914 = vadd.f32 %v10796, 1.0
      %v10915 = vadd.f32 %v10798, 1.0
      %v10916 = vadd.f32 %v10800, 1.0
      %v10917 = vadd.f32 %v10802, 1.0
      %v10918 = vadd.f32 %v10804, 1.0
      %v10919 = vadd.f32 %v10806, 1.0
      %v10920 = vadd.f32 %v10808, 1.0
      %v10921 = vadd.f32 %v10810, 1.0
      %v10922 = vadd.f32 %v10812, 1.0
      %v10923 = vadd.f32 %v10814, 1.0
      %v10924 = vadd.f32 %v10816, 1.0
      %v10925 = vadd.f32 %v10818, 1.0
      %v10926 = vadd.f32 %v10820, 1.0
      %v10927 = vadd.f32 %v10822, 1.0
      %v10928 = vadd.f32 %v10824, 1.0
      %v10929 = vadd.f32 %v10826, 1.0
      %v10930 = vadd.f32 %v10828, 1.0
      %v10931 = vadd.f32 %v10830, 1.0
      %v10932 = vadd.f32 %v10832, 1.0
      %v10933 = vadd.f32 %v10834, 1.0
      %v10934 = vadd.f32 %v10836, 1.0
      %v10935 = vadd.f32 %v10838, 1.0
      %v10936 = vadd.f32 %v10840, 1.0
      %v10937 = vadd.f32 %v10842, 1.0
      %v10938 = vadd.f32 %v10844, 1.0
      %v10939 = vadd.f32 %v10846, 1.0
      %v10940 = vadd.f32 %v10848, 1.0
      %v10941 = vadd.f32 %v10850, 1.0
      %v10942 = vadd.f32 %v10852, 1.0
      %v10943 = vadd.f32 %v10854, 1.0
      %v10944 = vadd.f32 %v10856, 1.0
      %v10945 = vadd.f32 %v10858, 1.0
      %v10946 = vadd.f32 %v10860, 1.0
      %v10947 = vadd.f32 %v10862, 1.0
      %v10948 = vadd.f32 %v10864, 1.0
      %v10949 = vadd.f32 %v10866, 1.0
      %v10950 = vadd.f32 %v10868, 1.0
      %v10951 = vadd.f32 %v10870, 1.0
      %v10952 = vadd.f32 %v10872, 1.0
      %v10953 = vadd.f32 %v10874, 1.0
      %v10954 = vadd.f32 %v10876, 1.0
      %v10955 = vadd.f32 %v10878, 1.0
      %v10956 = vadd.f32 %v10880, 1.0
      %v10957 = vadd.f32 %v10882, 1.0
      %v10958 = vadd.f32 %v10884, 1.0
      %v10959 = vadd.f32 %v10886, 1.0
      %v10960 = vadd.f32 %v10888, 1.0
      %v10961 = vadd.f32 %v10890, 1.0
      %v10962 = vadd.f32 %v10892, 1.0
      %v10963 = vadd.f32 %v10894, 1.0
      %v10964 = vadd.f32 %v10896, 1.0
      %v10965 = vadd.f32 %v10898, 1.0
      %v10966 = vadd.f32 %v10900, 1.0
      %v10967 = vadd.f32 %v10902, 1.0
      %v10968 = vadd.f32 %v10904, 1.0
      %v10969 = vrcp.pop %v10905
      %v10970 = vmul.f32 1.0, %v10969
      %v10971 = vrcp.pop %v10906
      %v10972 = vmul.f32 1.0, %v10971
      %v10973 = vrcp.pop %v10907
      %v10974 = vmul.f32 1.0, %v10973
      %v10975 = vrcp.pop %v10908
      %v10976 = vmul.f32 1.0, %v10975
      %v10977 = vrcp.pop %v10909
      %v10978 = vmul.f32 1.0, %v10977
      %v10979 = vrcp.pop %v10910
      %v10980 = vmul.f32 1.0, %v10979
      %v10981 = vrcp.pop %v10911
      %v10982 = vmul.f32 1.0, %v10981
      %v10983 = vrcp.pop %v10912
      %v10984 = vmul.f32 1.0, %v10983
      %v10985 = vrcp.pop %v10913
      %v10986 = vmul.f32 1.0, %v10985
      %v10987 = vrcp.pop %v10914
      %v10988 = vmul.f32 1.0, %v10987
      %v10989 = vrcp.pop %v10915
      %v10990 = vmul.f32 1.0, %v10989
      %v10991 = vrcp.pop %v10916
      %v10992 = vmul.f32 1.0, %v10991
      %v10993 = vrcp.pop %v10917
      %v10994 = vmul.f32 1.0, %v10993
      %v10995 = vrcp.pop %v10918
      %v10996 = vmul.f32 1.0, %v10995
      %v10997 = vrcp.pop %v10919
      %v10998 = vmul.f32 1.0, %v10997
      %v10999 = vrcp.pop %v10920
      %v11000 = vmul.f32 1.0, %v10999
      %v11001 = vrcp.pop %v10921
      %v11002 = vmul.f32 1.0, %v11001
      %v11003 = vrcp.pop %v10922
      %v11004 = vmul.f32 1.0, %v11003
      %v11005 = vrcp.pop %v10923
      %v11006 = vmul.f32 1.0, %v11005
      %v11007 = vrcp.pop %v10924
      %v11008 = vmul.f32 1.0, %v11007
      %v11009 = vrcp.pop %v10925
      %v11010 = vmul.f32 1.0, %v11009
      %v11011 = vrcp.pop %v10926
      %v11012 = vmul.f32 1.0, %v11011
      %v11013 = vrcp.pop %v10927
      %v11014 = vmul.f32 1.0, %v11013
      %v11015 = vrcp.pop %v10928
      %v11016 = vmul.f32 1.0, %v11015
      %v11017 = vrcp.pop %v10929
      %v11018 = vmul.f32 1.0, %v11017
      %v11019 = vrcp.pop %v10930
      %v11020 = vmul.f32 1.0, %v11019
      %v11021 = vrcp.pop %v10931
      %v11022 = vmul.f32 1.0, %v11021
      %v11023 = vrcp.pop %v10932
      %v11024 = vmul.f32 1.0, %v11023
      %v11025 = vrcp.pop %v10933
      %v11026 = vmul.f32 1.0, %v11025
      %v11027 = vrcp.pop %v10934
      %v11028 = vmul.f32 1.0, %v11027
      %v11029 = vrcp.pop %v10935
      %v11030 = vmul.f32 1.0, %v11029
      %v11031 = vrcp.pop %v10936
      %v11032 = vmul.f32 1.0, %v11031
      %v11033 = vrcp.pop %v10937
      %v11034 = vmul.f32 1.0, %v11033
      %v11035 = vrcp.pop %v10938
      %v11036 = vmul.f32 1.0, %v11035
      %v11037 = vrcp.pop %v10939
      %v11038 = vmul.f32 1.0, %v11037
      %v11039 = vrcp.pop %v10940
      %v11040 = vmul.f32 1.0, %v11039
      %v11041 = vrcp.pop %v10941
      %v11042 = vmul.f32 1.0, %v11041
      %v11043 = vrcp.pop %v10942
      %v11044 = vmul.f32 1.0, %v11043
      %v11045 = vrcp.pop %v10943
      %v11046 = vmul.f32 1.0, %v11045
      %v11047 = vrcp.pop %v10944
      %v11048 = vmul.f32 1.0, %v11047
      %v11049 = vrcp.pop %v10945
      %v11050 = vmul.f32 1.0, %v11049
      %v11051 = vrcp.pop %v10946
      %v11052 = vmul.f32 1.0, %v11051
      %v11053 = vrcp.pop %v10947
      %v11054 = vmul.f32 1.0, %v11053
      %v11055 = vrcp.pop %v10948
      %v11056 = vmul.f32 1.0, %v11055
      %v11057 = vrcp.pop %v10949
      %v11058 = vmul.f32 1.0, %v11057
      %v11059 = vrcp.pop %v10950
      %v11060 = vmul.f32 1.0, %v11059
      %v11061 = vrcp.pop %v10951
      %v11062 = vmul.f32 1.0, %v11061
      %v11063 = vrcp.pop %v10952
      %v11064 = vmul.f32 1.0, %v11063
      %v11065 = vrcp.pop %v10953
      %v11066 = vmul.f32 1.0, %v11065
      %v11067 = vrcp.pop %v10954
      %v11068 = vmul.f32 1.0, %v11067
      %v11069 = vrcp.pop %v10955
      %v11070 = vmul.f32 1.0, %v11069
      %v11071 = vrcp.pop %v10956
      %v11072 = vmul.f32 1.0, %v11071
      %v11073 = vrcp.pop %v10957
      %v11074 = vmul.f32 1.0, %v11073
      %v11075 = vrcp.pop %v10958
      %v11076 = vmul.f32 1.0, %v11075
      %v11077 = vrcp.pop %v10959
      %v11078 = vmul.f32 1.0, %v11077
      %v11079 = vrcp.pop %v10960
      %v11080 = vmul.f32 1.0, %v11079
      %v11081 = vrcp.pop %v10961
      %v11082 = vmul.f32 1.0, %v11081
      %v11083 = vrcp.pop %v10962
      %v11084 = vmul.f32 1.0, %v11083
      %v11085 = vrcp.pop %v10963
      %v11086 = vmul.f32 1.0, %v11085
      %v11087 = vrcp.pop %v10964
      %v11088 = vmul.f32 1.0, %v11087
      %v11089 = vrcp.pop %v10965
      %v11090 = vmul.f32 1.0, %v11089
      %v11091 = vrcp.pop %v10966
      %v11092 = vmul.f32 1.0, %v11091
      %v11093 = vrcp.pop %v10967
      %v11094 = vmul.f32 1.0, %v11093
      %v11095 = vrcp.pop %v10968
      %v11096 = vmul.f32 1.0, %v11095
      %vm11097 = vcmask 23552
      %11098 = vst.msk [vmem:[%s437] sm:$0xff] %vm11097, %v10970
      %11099 = vst.msk [vmem:[%s437 + $0x8] sm:$0xff] %vm11097, %v10972
      %11100 = vst.msk [vmem:[%s437 + $0x10] sm:$0xff] %vm11097, %v10974
      %11101 = vst.msk [vmem:[%s437 + $0x18] sm:$0xff] %vm11097, %v10976
      %11102 = vst.msk [vmem:[%s437 + $0x20] sm:$0xff] %vm11097, %v10978
      %11103 = vst.msk [vmem:[%s437 + $0x28] sm:$0xff] %vm11097, %v10980
      %11104 = vst.msk [vmem:[%s437 + $0x30] sm:$0xff] %vm11097, %v10982
      %11105 = vst.msk [vmem:[%s437 + $0x38] sm:$0xff] %vm11097, %v10984
      %11106 = vst.msk [vmem:[%s437 + $0x40] sm:$0xff] %vm11097, %v10986
      %11107 = vst.msk [vmem:[%s437 + $0x48] sm:$0xff] %vm11097, %v10988
      %11108 = vst.msk [vmem:[%s437 + $0x50] sm:$0xff] %vm11097, %v10990
      %11109 = vst.msk [vmem:[%s437 + $0x58] sm:$0xff] %vm11097, %v10992
      %11110 = vst.msk [vmem:[%s437 + $0x60] sm:$0xff] %vm11097, %v10994
      %11111 = vst.msk [vmem:[%s437 + $0x68] sm:$0xff] %vm11097, %v10996
      %11112 = vst.msk [vmem:[%s437 + $0x70] sm:$0xff] %vm11097, %v10998
      %11113 = vst.msk [vmem:[%s437 + $0x78] sm:$0xff] %vm11097, %v11000
      %11114 = vst.msk [vmem:[%s437 + $0x80] sm:$0xff] %vm11097, %v11002
      %11115 = vst.msk [vmem:[%s437 + $0x88] sm:$0xff] %vm11097, %v11004
      %11116 = vst.msk [vmem:[%s437 + $0x90] sm:$0xff] %vm11097, %v11006
      %11117 = vst.msk [vmem:[%s437 + $0x98] sm:$0xff] %vm11097, %v11008
      %11118 = vst.msk [vmem:[%s437 + $0xa0] sm:$0xff] %vm11097, %v11010
      %11119 = vst.msk [vmem:[%s437 + $0xa8] sm:$0xff] %vm11097, %v11012
      %11120 = vst.msk [vmem:[%s437 + $0xb0] sm:$0xff] %vm11097, %v11014
      %11121 = vst.msk [vmem:[%s437 + $0xb8] sm:$0xff] %vm11097, %v11016
      %11122 = vst.msk [vmem:[%s437 + $0xc0] sm:$0xff] %vm11097, %v11018
      %11123 = vst.msk [vmem:[%s437 + $0xc8] sm:$0xff] %vm11097, %v11020
      %11124 = vst.msk [vmem:[%s437 + $0xd0] sm:$0xff] %vm11097, %v11022
      %11125 = vst.msk [vmem:[%s437 + $0xd8] sm:$0xff] %vm11097, %v11024
      %11126 = vst.msk [vmem:[%s437 + $0xe0] sm:$0xff] %vm11097, %v11026
      %11127 = vst.msk [vmem:[%s437 + $0xe8] sm:$0xff] %vm11097, %v11028
      %11128 = vst.msk [vmem:[%s437 + $0xf0] sm:$0xff] %vm11097, %v11030
      %11129 = vst.msk [vmem:[%s437 + $0xf8] sm:$0xff] %vm11097, %v11032
      %11130 = vst.msk [vmem:[%s437 + $0x100] sm:$0xff] %vm11097, %v11034
      %11131 = vst.msk [vmem:[%s437 + $0x108] sm:$0xff] %vm11097, %v11036
      %11132 = vst.msk [vmem:[%s437 + $0x110] sm:$0xff] %vm11097, %v11038
      %11133 = vst.msk [vmem:[%s437 + $0x118] sm:$0xff] %vm11097, %v11040
      %11134 = vst.msk [vmem:[%s437 + $0x120] sm:$0xff] %vm11097, %v11042
      %11135 = vst.msk [vmem:[%s437 + $0x128] sm:$0xff] %vm11097, %v11044
      %11136 = vst.msk [vmem:[%s437 + $0x130] sm:$0xff] %vm11097, %v11046
      %11137 = vst.msk [vmem:[%s437 + $0x138] sm:$0xff] %vm11097, %v11048
      %11138 = vst.msk [vmem:[%s437 + $0x140] sm:$0xff] %vm11097, %v11050
      %11139 = vst.msk [vmem:[%s437 + $0x148] sm:$0xff] %vm11097, %v11052
      %11140 = vst.msk [vmem:[%s437 + $0x150] sm:$0xff] %vm11097, %v11054
      %11141 = vst.msk [vmem:[%s437 + $0x158] sm:$0xff] %vm11097, %v11056
      %11142 = vst.msk [vmem:[%s437 + $0x160] sm:$0xff] %vm11097, %v11058
      %11143 = vst.msk [vmem:[%s437 + $0x168] sm:$0xff] %vm11097, %v11060
      %11144 = vst.msk [vmem:[%s437 + $0x170] sm:$0xff] %vm11097, %v11062
      %11145 = vst.msk [vmem:[%s437 + $0x178] sm:$0xff] %vm11097, %v11064
      %11146 = vst.msk [vmem:[%s437 + $0x180] sm:$0xff] %vm11097, %v11066
      %11147 = vst.msk [vmem:[%s437 + $0x188] sm:$0xff] %vm11097, %v11068
      %11148 = vst.msk [vmem:[%s437 + $0x190] sm:$0xff] %vm11097, %v11070
      %11149 = vst.msk [vmem:[%s437 + $0x198] sm:$0xff] %vm11097, %v11072
      %11150 = vst.msk [vmem:[%s437 + $0x1a0] sm:$0xff] %vm11097, %v11074
      %11151 = vst.msk [vmem:[%s437 + $0x1a8] sm:$0xff] %vm11097, %v11076
      %11152 = vst.msk [vmem:[%s437 + $0x1b0] sm:$0xff] %vm11097, %v11078
      %11153 = vst.msk [vmem:[%s437 + $0x1b8] sm:$0xff] %vm11097, %v11080
      %11154 = vst.msk [vmem:[%s437 + $0x1c0] sm:$0xff] %vm11097, %v11082
      %11155 = vst.msk [vmem:[%s437 + $0x1c8] sm:$0xff] %vm11097, %v11084
      %11156 = vst.msk [vmem:[%s437 + $0x1d0] sm:$0xff] %vm11097, %v11086
      %11157 = vst.msk [vmem:[%s437 + $0x1d8] sm:$0xff] %vm11097, %v11088
      %11158 = vst.msk [vmem:[%s437 + $0x1e0] sm:$0xff] %vm11097, %v11090
      %11159 = vst.msk [vmem:[%s437 + $0x1e8] sm:$0xff] %vm11097, %v11092
      %11160 = vst.msk [vmem:[%s437 + $0x1f0] sm:$0xff] %vm11097, %v11094
      %11161 = vst.msk [vmem:[%s437 + $0x1f8] sm:$0xff] %vm11097, %v11096
      %s11162 = smul.u32 64, %s23
      %p11163 = scmp.lt.s32.totalorder %s11162, 511
      %s11164 = scalar_select %p11163, %s11162, 511
      %s11165 = smul.addr %s11164, 8
      %s11166 = scalar_lea.vmem %s12, %s11165
      // Predicated region
      $region69: #{tpu_custom_call.1} parent=67 // pred_check
        %p11167 = pneg %p303
      $region70: #{tpu_custom_call.1} parent=67 // pred_check_branch
        %11169 = sbr.rel (%p11167) target = $region72
      $region71: #{tpu_custom_call.1} parent=67 // pred_region
        %s11170 = smul.u32 64, %s23
      $region72: #{tpu_custom_call.1} parent=67 // pred_fallthru
        _
    $region68: #{tpu_custom_call.1} parent=5 // pred_fallthru
      _
    %p11171 = scmp.le.s32.totalorder 2, %s18
    // Predicated region
    $region73: #{tpu_custom_call.1} parent=5 // pred_check
      %p11172 = pneg %p11171
    $region74: #{tpu_custom_call.1} parent=5 // pred_check_branch
      %11174 = sbr.rel (%p11172) target = $region76
    $region75: #{tpu_custom_call.1} parent=5 // pred_region
      %s11175 = ssub.s32 %s18, 2
      // Predicated region
      $region77: #{tpu_custom_call.1} parent=75 // pred_check
        %p11176 = pneg %p309
      $region78: #{tpu_custom_call.1} parent=75 // pred_check_branch
        %11178 = sbr.rel (%p11176) target = $region80
      $region79: #{tpu_custom_call.1} parent=75 // pred_region
        %s11179 = smul.u32 64, %s24
        %p11180 = scmp.lt.s32.totalorder %s11179, 511
        %s11181 = scalar_select %p11180, %s11179, 511
        %s11182 = smul.addr %s11181, 8
        %s11183 = scalar_lea.vmem %s12, %s11182
      $region80: #{tpu_custom_call.1} parent=75 // pred_fallthru
        _
    $region76: #{tpu_custom_call.1} parent=5 // pred_fallthru
      _
  $region6: #{tpu_custom_call.1} parent=0 // loop_footer
    %s22 = sadd.s32 1, %s18
  $region7: #{tpu_custom_call.1} parent=0 // loop_footer_branch
    %17 = sbr.rel target = $region3
  $region8: #{tpu_custom_call.1} parent=0 // loop_exit
    _

</llo_original>
